<compile_context>
chip_gen: v5e
topology: v5e:2x2
jax: 0.10.0
libtpu: 0.0.40
codegen_flags: <defaults>
</compile_context>

<pallas_src>
import functools
import math

import jax
import jax.numpy as jnp
from jax.experimental import pallas as pl
from jax.experimental.pallas import tpu as pltpu

LANE = 128


# ----------------------------------------------------------------------------
# Small helpers
# ----------------------------------------------------------------------------

def _round_up(x, m):
    return ((x + m - 1) // m) * m


def _pick_row_tile(M, target=256):
    """Largest row tile <= target that divides M exactly (falls back to the whole array)."""
    if M <= target:
        return M
    for t in range(target, 0, -8):
        if M % t == 0:
            return t
    return M


def _rep(shape):
    """Whole-array (grid-invariant broadcast) block, same for every grid step."""
    return pl.BlockSpec(shape, lambda i: (0,) * len(shape))


def _layernorm_masked(x, g, b, inv_n, eps):
    """LayerNorm over the real features only.  Padded lanes of x are exactly zero, so plain
    full-lane sums divided by the real feature count give exact mean / E[x^2]; gamma/beta are
    zero-padded so padded output lanes stay exactly zero."""
    mu = jnp.sum(x, axis=-1, keepdims=True) * inv_n
    ex2 = jnp.sum(x * x, axis=-1, keepdims=True) * inv_n
    var = ex2 - mu * mu
    return (x - mu) * jax.lax.rsqrt(var + eps) * g + b


# ----------------------------------------------------------------------------
# Fused FFN block:  out = x + 0.5 * W2( SiLU( W1( LN(x) ) ) )      [+ final LN]
# Operates on (B*T, d_pad) row tiles (B and T folded into the matmul M dimension).
# ----------------------------------------------------------------------------

def _ffn_fused_kernel(x_ref, ln_g_ref, ln_b_ref, w1_ref, b1_ref, w2_ref, b2_ref,
                      fln_g_ref, fln_b_ref, o_ref, *, scale, inv_d, eps, final_ln):
    x = x_ref[...]                                            # (tm, d_pad) f32
    y = _layernorm_masked(x, ln_g_ref[...], ln_b_ref[...], inv_d, eps)
    h = jnp.dot(y.astype(jnp.bfloat16), w1_ref[...],          # bf16 weights straight from HBM
                preferred_element_type=jnp.float32) + b1_ref[...]
    h = h * jax.nn.sigmoid(h)                                  # SiLU in f32
    z = jnp.dot(h.astype(jnp.bfloat16), w2_ref[...],
                preferred_element_type=jnp.float32) + b2_ref[...]
    out = x + scale * z                                        # residual folded into epilogue
    if final_ln:                                               # trailing block LayerNorm fused here
        out = _layernorm_masked(out, fln_g_ref[...], fln_b_ref[...], inv_d, eps)
    o_ref[...] = out


def ffn_block_pallas(p, x, *, d_real, scale=0.5, final_ln=None, eps=1e-5, row_tile=256):
    B, T, dp = x.shape
    M = B * T
    d_ff = p["w1"].shape[1]
    xf = x.reshape(M, dp)
    tm = _pick_row_tile(M, row_tile)
    if final_ln is None:
        fg = jnp.zeros((1, dp), jnp.float32)
        fb = jnp.zeros((1, dp), jnp.float32)
    else:
        fg, fb = final_ln
    out = pl.pallas_call(
        functools.partial(_ffn_fused_kernel, scale=scale, inv_d=1.0 / d_real, eps=eps,
                          final_ln=final_ln is not None),
        out_shape=jax.ShapeDtypeStruct((M, dp), jnp.float32),
        grid=(M // tm,),
        in_specs=[
            pl.BlockSpec((tm, dp), lambda i: (i, 0)),
            _rep((1, dp)), _rep((1, dp)),
            _rep((dp, d_ff)), _rep((1, d_ff)),
            _rep((d_ff, dp)), _rep((1, dp)),
            _rep((1, dp)), _rep((1, dp)),
        ],
        out_specs=pl.BlockSpec((tm, dp), lambda i: (i, 0)),
        compiler_params=pltpu.CompilerParams(dimension_semantics=("parallel",)),
    )(xf, p["ln_g"], p["ln_b"], p["w1"], p["b1"], p["w2"], p["b2"], fg, fb)
    return out.reshape(B, T, dp)


# ----------------------------------------------------------------------------
# Fused attention block: out = x + OutProj( MHSA( LN(x) ) )
# ----------------------------------------------------------------------------

def _attn_fused_kernel(x_ref, ln_g_ref, ln_b_ref, qkv_w_ref, qkv_b_ref,
                       out_w_ref, out_b_ref, o_ref, *, num_heads, d_head, d_pad, inv_d, eps):
    x = x_ref[0]                                               # (T, d_pad) f32
    y = _layernorm_masked(x, ln_g_ref[...], ln_b_ref[...], inv_d, eps)
    qkv = jnp.dot(y.astype(jnp.bfloat16), qkv_w_ref[...],
                  preferred_element_type=jnp.float32) + qkv_b_ref[...]   # (T, 3*d_pad)
    qkv16 = qkv.astype(jnp.bfloat16)                           # cast once; slice bf16 per head
    out_w16 = out_w_ref[...]                                   # (d_pad, d_pad) bf16 (no cast)
    scale = 1.0 / math.sqrt(d_head)

    out = jnp.zeros(x.shape, jnp.float32)
    # TODO(synk): at production d/T pack all heads into one batched dot_general and add
    #             flash-style online-softmax KV tiling (full (T,T) score kept here: T is tiny).
    for head in range(num_heads):                              # static, small H
        lo = head * d_head
        qh = qkv16[:, lo:lo + d_head]
        kh = qkv16[:, d_pad + lo:d_pad + lo + d_head]
        vh = qkv16[:, 2 * d_pad + lo:2 * d_pad + lo + d_head]
        # Contract directly on d_head -> no explicit kh.T (no XLU transpose).
        s = jax.lax.dot_general(qh, kh, (((1,), (1,)), ((), ())),
                                preferred_element_type=jnp.float32) * scale       # (T, T)
        m = jnp.max(s, axis=-1, keepdims=True)
        p = jnp.exp(s - m)                                     # softmax in f32
        p = p * pl.reciprocal(jnp.sum(p, axis=-1, keepdims=True), approx=True)
        oh = jnp.dot(p.astype(jnp.bfloat16), vh, preferred_element_type=jnp.float32)
        # Fold this head straight through its slice of the output projection
        # (mathematically identical to concat(heads) @ out_w).
        out = out + jnp.dot(oh.astype(jnp.bfloat16), out_w16[lo:lo + d_head, :],
                            preferred_element_type=jnp.float32)
    o_ref[0] = x + out + out_b_ref[...]                        # residual + out-proj bias


def attn_block_pallas(p, x, *, d_real, num_heads, eps=1e-5):
    B, T, dp = x.shape
    return pl.pallas_call(
        functools.partial(_attn_fused_kernel, num_heads=num_heads,
                          d_head=d_real // num_heads, d_pad=dp, inv_d=1.0 / d_real, eps=eps),
        out_shape=jax.ShapeDtypeStruct((B, T, dp), jnp.float32),
        grid=(B,),
        in_specs=[
            pl.BlockSpec((1, T, dp), lambda b: (b, 0, 0)),
            _rep((1, dp)), _rep((1, dp)),
            _rep((dp, 3 * dp)), _rep((1, 3 * dp)),
            _rep((dp, dp)), _rep((1, dp)),
        ],
        out_specs=pl.BlockSpec((1, T, dp), lambda b: (b, 0, 0)),
        compiler_params=pltpu.CompilerParams(dimension_semantics=("parallel",)),
    )(x, p["ln_g"], p["ln_b"], p["in_w"], p["in_b"], p["out_w"], p["out_b"])


# ----------------------------------------------------------------------------
# Fused convolution block:
#   out = x + PW2( SiLU( BN( DWConv_k31( GLU( PW1( LN(x) ) ) ) ) ) )
# Depthwise conv: channels stay on lanes, time zero-padded in a VMEM scratch,
# taps are sublane-shifted slices + VPU FMA (no transposes, no selection matmul).
# ----------------------------------------------------------------------------

def _conv_fused_kernel(x_ref, ln_g_ref, ln_b_ref, pw1_w_ref, pw1_b_ref,
                       dw_w_ref, dw_b_ref, bns_ref, bnb_ref, pw2_w_ref, pw2_b_ref,
                       o_ref, pad_buf, *, pad, ci_pad, inv_d, eps):
    x = x_ref[0]                                               # (T, d_pad) f32
    T = x.shape[0]
    K = dw_w_ref.shape[0]
    y = _layernorm_masked(x, ln_g_ref[...], ln_b_ref[...], inv_d, eps)

    # Pointwise conv 1 (d -> 2*ci) + GLU.
    h = jnp.dot(y.astype(jnp.bfloat16), pw1_w_ref[...],
                preferred_element_type=jnp.float32) + pw1_b_ref[...]     # (T, 2*ci_pad)
    g = h[:, :ci_pad] * jax.nn.sigmoid(h[:, ci_pad:])                    # (T, ci_pad)

    # Zero-padded time buffer in VMEM scratch; channels stay on lanes.
    pad_buf[...] = jnp.zeros_like(pad_buf)
    pad_buf[pad:pad + T, :] = g

    acc = jnp.zeros((T, ci_pad), jnp.float32)
    # TODO(synk): at production T switch to a partially-unrolled lax.fori_loop (unroll 4-8)
    #             so the 31 shifted slices don't blow the 64-vreg file.
    for k in range(K):                                         # static unroll, K = 31
        acc = acc + pad_buf[k:k + T, :] * dw_w_ref[k:k + 1, :]

    conv = acc + dw_b_ref[...]
    # BatchNorm1d eval (running stats folded into scale/shift in init) + SiLU.
    conv = conv * bns_ref[...] + bnb_ref[...]
    conv = conv * jax.nn.sigmoid(conv)

    # Pointwise conv 2 (ci -> d) + residual.
    z = jnp.dot(conv.astype(jnp.bfloat16), pw2_w_ref[...],
                preferred_element_type=jnp.float32) + pw2_b_ref[...]
    o_ref[0] = x + z


def conv_block_pallas(p, x, *, d_real, pad, eps=1e-5):
    B, T, dp = x.shape
    K, cip = p["dw_w"].shape
    c2 = p["pw1_w"].shape[1]
    return pl.pallas_call(
        functools.partial(_conv_fused_kernel, pad=pad, ci_pad=cip,
                          inv_d=1.0 / d_real, eps=eps),
        out_shape=jax.ShapeDtypeStruct((B, T, dp), jnp.float32),
        grid=(B,),
        in_specs=[
            pl.BlockSpec((1, T, dp), lambda b: (b, 0, 0)),
            _rep((1, dp)), _rep((1, dp)),
            _rep((dp, c2)), _rep((1, c2)),
            _rep((K, cip)), _rep((1, cip)),
            _rep((1, cip)), _rep((1, cip)),
            _rep((cip, dp)), _rep((1, dp)),
        ],
        out_specs=pl.BlockSpec((1, T, dp), lambda b: (b, 0, 0)),
        scratch_shapes=[pltpu.VMEM((T + 2 * pad, cip), jnp.float32)],
        compiler_params=pltpu.CompilerParams(dimension_semantics=("parallel",)),
    )(x, p["ln_g"], p["ln_b"], p["pw1_w"], p["pw1_b"], p["dw_w"], p["dw_b"],
      p["bn_scale"], p["bn_shift"], p["pw2_w"], p["pw2_b"])


# ----------------------------------------------------------------------------
# Preamble: Conv2d subsample (im2col + M-tiled fused matmul/bias/ReLU) and linear projection
# ----------------------------------------------------------------------------

def _matmul_bias_act_kernel(x_ref, w_ref, b_ref, o_ref, *, activation):
    y = jnp.dot(x_ref[...].astype(jnp.bfloat16), w_ref[...],
                preferred_element_type=jnp.float32) + b_ref[...]
    if activation == "relu":
        y = jnp.maximum(y, 0.0)
    o_ref[...] = y


def linear_pallas(x, w, b, activation="none", row_tile=256):
    """x: (..., K) f32, w: (K, N) bf16, b: (1, N) f32.  M-tiled grid over flattened rows."""
    lead = x.shape[:-1]
    K = x.shape[-1]
    N = w.shape[1]
    M = int(math.prod(lead))
    tm = _pick_row_tile(M, row_tile)
    out = pl.pallas_call(
        functools.partial(_matmul_bias_act_kernel, activation=activation),
        out_shape=jax.ShapeDtypeStruct((M, N), jnp.float32),
        grid=(M // tm,),
        in_specs=[pl.BlockSpec((tm, K), lambda i: (i, 0)), _rep((K, N)), _rep((1, N))],
        out_specs=pl.BlockSpec((tm, N), lambda i: (i, 0)),
        compiler_params=pltpu.CompilerParams(dimension_semantics=("parallel",)),
    )(x.reshape(M, K), w, b)
    return out.reshape(*lead, N)


def conv2d_relu(x, w_mm, b, kh=3, kw=3, stride=2):
    """NCHW Conv2d (valid, stride 2) + ReLU via im2col + fused Pallas matmul.
    w_mm is pre-reshaped to (Cin*kh*kw, Cout) bf16 matmul layout."""
    # TODO(synk): replace the Python-level im2col with per-tap strided index_maps (or
    #             lax.conv_general_dilated) to avoid the kh*kw HBM blow-up at production T.
    B, Cin, H, W = x.shape
    Cout = w_mm.shape[1]
    Ho = (H - kh) // stride + 1
    Wo = (W - kw) // stride + 1
    cols = []
    for i in range(kh):
        for j in range(kw):
            cols.append(x[:, :, i:i + stride * Ho:stride, j:j + stride * Wo:stride])
    patches = jnp.stack(cols, axis=2)                          # (B, Cin, kh*kw, Ho, Wo)
    patches = patches.transpose(0, 3, 4, 1, 2).reshape(B * Ho * Wo, Cin * kh * kw)
    y = linear_pallas(patches, w_mm, b, activation="relu")
    return y.reshape(B, Ho, Wo, Cout).transpose(0, 3, 1, 2)    # back to NCHW


def conv_subsample(p, x):
    """x: (B, T, F) -> (B, T'', C * F'') with the PyTorch channel-major flatten."""
    x = x[:, None, :, :]                                       # (B, 1, T, F)
    y = conv2d_relu(x, p["w1"], p["b1"])
    y = conv2d_relu(y, p["w2"], p["b2"])
    B, C, T2, F2 = y.shape
    return y.transpose(0, 2, 1, 3).reshape(B, T2, C * F2)


# ----------------------------------------------------------------------------
# Full encoder forward (dropouts are identity -- eval semantics)
# ----------------------------------------------------------------------------

def conformer_encoder_forward(params, x, *, d_encoder, num_heads, conv_pad=15):
    """x: (B, input_dim, T) -- PyTorch spectrogram layout before .transpose(1, 2)."""
    x = jnp.transpose(x, (0, 2, 1))                            # (B, T, F)
    x = conv_subsample(params["subsample"], x)                 # (B, T', in_feat)
    # Linear projection into the lane-padded residual stream (padded lanes are exactly zero).
    x = linear_pallas(x, params["proj_w"], params["proj_b"])   # (B, T', d_pad)
    for lp in params["layers"]:
        x = ffn_block_pallas(lp["ffn1"], x, d_real=d_encoder, scale=0.5)            # x + 0.5*FFN
        x = attn_block_pallas(lp["attn"], x, d_real=d_encoder, num_heads=num_heads)  # x + MHSA
        x = conv_block_pallas(lp["conv"], x, d_real=d_encoder, pad=conv_pad)         # x + ConvModule
        x = ffn_block_pallas(lp["ffn2"], x, d_real=d_encoder, scale=0.5,
                             final_ln=(lp["ln_g"], lp["ln_b"]))                       # + final LN
    return x[..., :d_encoder]                                  # drop the lane padding


# ----------------------------------------------------------------------------
# Deterministic parameter init: PyTorch-equivalent shapes, stored in kernel-ready layouts
# (bf16 matmul weights, zero lane-padding to multiples of 128, BN folded to scale/shift).
# ----------------------------------------------------------------------------

def init_params(key, input_dim, d, num_layers, num_heads, ffl_exp, conv_exp, ksize,
                bn_eps=1e-5):
    dp = _round_up(d, LANE)                    # lane-padded encoder dim
    d_ff = d * ffl_exp
    ci = (d * conv_exp) // 2                   # depthwise channels (after GLU)
    cip = _round_up(ci, LANE)                  # lane-padded depthwise channels
    in_feat = d * ((input_dim - 1) // 2 - 1) // 2

    keys = iter(jax.random.split(key, 1024))
    nk = lambda: next(keys)
    _w = lambda shape, scale=0.02: scale * jax.random.normal(nk(), shape, jnp.float32)
    f32_zeros = lambda *s: jnp.zeros(s, jnp.float32)

    def pad2(w, rows, cols):
        """Zero-pad a 2-D f32 weight to (rows, cols) and cast to bf16 (MXU operand)."""
        out = jnp.zeros((rows, cols), jnp.float32).at[:w.shape[0], :w.shape[1]].set(w)
        return out.astype(jnp.bfloat16)

    def ln_gamma():
        return jnp.zeros((1, dp), jnp.float32).at[:, :d].set(1.0)

    # BatchNorm1d eval with fresh running stats (mean=0, var=1), folded into scale/shift.
    # TODO(synk): fold real running stats here when loading a trained checkpoint.
    bn_scale = jnp.zeros((1, cip), jnp.float32).at[:, :ci].set(1.0 / math.sqrt(1.0 + bn_eps))
    bn_shift = f32_zeros(1, cip)

    params = {
        "subsample": {
            # Conv weights pre-reshaped to im2col matmul layout (Cin*3*3, Cout), bf16.
            "w1": _w((d, 1, 3, 3)).reshape(d, 9).T.astype(jnp.bfloat16),
            "b1": f32_zeros(1, d),
            "w2": _w((d, d, 3, 3)).reshape(d, d * 9).T.astype(jnp.bfloat16),
            "b2": f32_zeros(1, d),
        },
        "proj_w": pad2(_w((in_feat, d)), in_feat, dp),
        "proj_b": f32_zeros(1, dp),
        "layers": [],
    }

    for _ in range(num_layers):
        # QKV packed so q / k / v each occupy their own lane-padded d_pad span.
        in_w = jnp.zeros((dp, 3 * dp), jnp.float32)
        for s in range(3):
            in_w = in_w.at[:d, s * dp:s * dp + d].set(_w((d, d)))
        # Pointwise conv 1: GLU a-half / b-half each lane-padded to ci_pad (split at ci_pad).
        pw1 = jnp.zeros((dp, 2 * cip), jnp.float32)
        pw1 = pw1.at[:d, :ci].set(_w((d, ci))).at[:d, cip:cip + ci].set(_w((d, ci)))

        layer = {
            "ffn1": {"ln_g": ln_gamma(), "ln_b": f32_zeros(1, dp),
                     "w1": pad2(_w((d, d_ff)), dp, d_ff), "b1": f32_zeros(1, d_ff),
                     "w2": pad2(_w((d_ff, d)), d_ff, dp), "b2": f32_zeros(1, dp)},
            "attn": {"ln_g": ln_gamma(), "ln_b": f32_zeros(1, dp),
                     "in_w": in_w.astype(jnp.bfloat16), "in_b": f32_zeros(1, 3 * dp),
                     "out_w": pad2(_w((d, d)), dp, dp), "out_b": f32_zeros(1, dp)},
            "conv": {"ln_g": ln_gamma(), "ln_b": f32_zeros(1, dp),
                     "pw1_w": pw1.astype(jnp.bfloat16), "pw1_b": f32_zeros(1, 2 * cip),
                     # Depthwise taps stored (K, ci_pad), f32 (VPU operand).
                     "dw_w": jnp.zeros((ksize, cip), jnp.float32).at[:, :ci].set(_w((ci, ksize)).T),
                     "dw_b": f32_zeros(1, cip),
                     "bn_scale": bn_scale, "bn_shift": bn_shift,
                     "pw2_w": pad2(_w((ci, d)), cip, dp), "pw2_b": f32_zeros(1, dp)},
            "ffn2": {"ln_g": ln_gamma(), "ln_b": f32_zeros(1, dp),
                     "w1": pad2(_w((d, d_ff)), dp, d_ff), "b1": f32_zeros(1, d_ff),
                     "w2": pad2(_w((d_ff, d)), d_ff, dp), "b2": f32_zeros(1, dp)},
            "ln_g": ln_gamma(), "ln_b": f32_zeros(1, dp),
        }
        params["layers"].append(layer)
    return params


# ----------------------------------------------------------------------------
# Main
# ----------------------------------------------------------------------------

if __name__ == "__main__":
    B, input_dim, T = 2, 16, 28
    d_encoder = 32
    num_layers = 2
    num_heads_attention = 4
    ffl_exp_factor = 4
    conv_exp_factor = 2
    conv_kernel_size = 31  # padding=15 -> same-length depthwise conv

    key = jax.random.PRNGKey(0)
    kx, kp = jax.random.split(key)
    x = jax.random.normal(kx, (B, input_dim, T), dtype=jnp.float32)
    params = init_params(kp, input_dim, d_encoder, num_layers, num_heads_attention,
                         ffl_exp_factor, conv_exp_factor, conv_kernel_size)

    fwd = jax.jit(functools.partial(conformer_encoder_forward,
                                    d_encoder=d_encoder,
                                    num_heads=num_heads_attention, conv_pad=15))
    out = jax.block_until_ready(fwd(params, x))

    T_sub = ((T - 1) // 2 - 1) // 2  # two 3x3 / stride-2 convs
    assert out.shape == (B, T_sub, d_encoder), out.shape
    assert bool(jnp.all(jnp.isfinite(out)))
    print("KERNEL_OK")
</pallas_src>

<mosaic_0001>
module attributes {stable_mosaic.version = 11 : i64} {
  func.func @_matmul_bias_act_kernel(%arg0: i32, %arg1: memref<182x9xf32, #tpu.memory_space<vmem>>, %arg2: memref<9x32xbf16, #tpu.memory_space<vmem>>, %arg3: memref<1x32xf32, #tpu.memory_space<vmem>>, %arg4: memref<182x32xf32, #tpu.memory_space<vmem>>) attributes {dimension_semantics = [#tpu.dimension_semantics<parallel>], iteration_bounds = array<i64: 1>, scalar_prefetch = 0 : i64, scratch_operands = 0 : i64, tpu.core_type = #tpu.core_type<tc>, window_params = [{transform_indices = @transform_0, window_bounds = array<i64: 182, 9>}, {pipeline_mode = #tpu.pipeline_mode<synchronous>, transform_indices = @transform_1, window_bounds = array<i64: 9, 32>}, {pipeline_mode = #tpu.pipeline_mode<synchronous>, transform_indices = @transform_2, window_bounds = array<i64: 1, 32>}, {transform_indices = @transform_3, window_bounds = array<i64: 182, 32>}]} {
    %c0 = arith.constant 0 : index
    %c0_0 = arith.constant 0 : index
    %0 = vector.load %arg1[%c0, %c0_0] : memref<182x9xf32, #tpu.memory_space<vmem>>, vector<182x9xf32>
    %1 = arith.truncf %0 : vector<182x9xf32> to vector<182x9xbf16>
    %c0_1 = arith.constant 0 : index
    %c0_2 = arith.constant 0 : index
    %2 = vector.load %arg2[%c0_1, %c0_2] : memref<9x32xbf16, #tpu.memory_space<vmem>>, vector<9x32xbf16>
    %cst = arith.constant dense<0.000000e+00> : vector<182x32xf32>
    %3 = tpu.matmul %1, %2, %cst {dimension_numbers = #tpu.dot_dimension_numbers<[1], [0], [0], [1], [0, 0, 1, 1], [], []>} : vector<182x9xbf16>, vector<9x32xbf16>, vector<182x32xf32> -> vector<182x32xf32>
    %c0_3 = arith.constant 0 : index
    %c0_4 = arith.constant 0 : index
    %4 = vector.load %arg3[%c0_3, %c0_4] : memref<1x32xf32, #tpu.memory_space<vmem>>, vector<1x32xf32>
    %5 = vector.broadcast %4 : vector<1x32xf32> to vector<182x32xf32>
    %6 = arith.addf %3, %5 : vector<182x32xf32>
    %cst_5 = arith.constant 0.000000e+00 : f32
    %7 = vector.broadcast %cst_5 : f32 to vector<182x32xf32>
    %8 = arith.maximumf %6, %7 : vector<182x32xf32>
    %c0_6 = arith.constant 0 : index
    %c0_7 = arith.constant 0 : index
    %9 = vector.load %arg4[%c0_6, %c0_7] : memref<182x32xf32, #tpu.memory_space<vmem>>, vector<182x32xf32>
    tpu.vector_store %arg4[%c0_6, %c0_7], %8 {strides = array<i32>} : memref<182x32xf32, #tpu.memory_space<vmem>>, vector<182x32xf32>,
    return
  }
  func.func @transform_0(%arg0: i32) -> (i32, i32) {
    %c0_i32 = arith.constant 0 : i32
    %c0_i32_0 = arith.constant 0 : i32
    return %arg0, %c0_i32 : i32, i32
  }
  func.func @transform_1(%arg0: i32) -> (i32, i32) {
    %c0_i32 = arith.constant 0 : i32
    %c0_i32_0 = arith.constant 0 : i32
    %c0_i32_1 = arith.constant 0 : i32
    return %c0_i32, %c0_i32_0 : i32, i32
  }
  func.func @transform_2(%arg0: i32) -> (i32, i32) {
    %c0_i32 = arith.constant 0 : i32
    %c0_i32_0 = arith.constant 0 : i32
    %c0_i32_1 = arith.constant 0 : i32
    return %c0_i32, %c0_i32_0 : i32, i32
  }
  func.func @transform_3(%arg0: i32) -> (i32, i32) {
    %c0_i32 = arith.constant 0 : i32
    %c0_i32_0 = arith.constant 0 : i32
    return %arg0, %c0_i32 : i32, i32
  }
}

module attributes {stable_mosaic.version = 11 : i64} {
  func.func @_matmul_bias_act_kernel(%arg0: i32, %arg1: memref<36x288xf32, #tpu.memory_space<vmem>>, %arg2: memref<288x32xbf16, #tpu.memory_space<vmem>>, %arg3: memref<1x32xf32, #tpu.memory_space<vmem>>, %arg4: memref<36x32xf32, #tpu.memory_space<vmem>>) attributes {dimension_semantics = [#tpu.dimension_semantics<parallel>], iteration_bounds = array<i64: 1>, scalar_prefetch = 0 : i64, scratch_operands = 0 : i64, tpu.core_type = #tpu.core_type<tc>, window_params = [{transform_indices = @transform_0, window_bounds = array<i64: 36, 288>}, {pipeline_mode = #tpu.pipeline_mode<synchronous>, transform_indices = @transform_1, window_bounds = array<i64: 288, 32>}, {pipeline_mode = #tpu.pipeline_mode<synchronous>, transform_indices = @transform_2, window_bounds = array<i64: 1, 32>}, {transform_indices = @transform_3, window_bounds = array<i64: 36, 32>}]} {
    %c0 = arith.constant 0 : index
    %c0_0 = arith.constant 0 : index
    %0 = vector.load %arg1[%c0, %c0_0] : memref<36x288xf32, #tpu.memory_space<vmem>>, vector<36x288xf32>
    %1 = arith.truncf %0 : vector<36x288xf32> to vector<36x288xbf16>
    %c0_1 = arith.constant 0 : index
    %c0_2 = arith.constant 0 : index
    %2 = vector.load %arg2[%c0_1, %c0_2] : memref<288x32xbf16, #tpu.memory_space<vmem>>, vector<288x32xbf16>
    %cst = arith.constant dense<0.000000e+00> : vector<36x32xf32>
    %3 = tpu.matmul %1, %2, %cst {dimension_numbers = #tpu.dot_dimension_numbers<[1], [0], [0], [1], [0, 0, 1, 1], [], []>} : vector<36x288xbf16>, vector<288x32xbf16>, vector<36x32xf32> -> vector<36x32xf32>
    %c0_3 = arith.constant 0 : index
    %c0_4 = arith.constant 0 : index
    %4 = vector.load %arg3[%c0_3, %c0_4] : memref<1x32xf32, #tpu.memory_space<vmem>>, vector<1x32xf32>
    %5 = vector.broadcast %4 : vector<1x32xf32> to vector<36x32xf32>
    %6 = arith.addf %3, %5 : vector<36x32xf32>
    %cst_5 = arith.constant 0.000000e+00 : f32
    %7 = vector.broadcast %cst_5 : f32 to vector<36x32xf32>
    %8 = arith.maximumf %6, %7 : vector<36x32xf32>
    %c0_6 = arith.constant 0 : index
    %c0_7 = arith.constant 0 : index
    %9 = vector.load %arg4[%c0_6, %c0_7] : memref<36x32xf32, #tpu.memory_space<vmem>>, vector<36x32xf32>
    tpu.vector_store %arg4[%c0_6, %c0_7], %8 {strides = array<i32>} : memref<36x32xf32, #tpu.memory_space<vmem>>, vector<36x32xf32>,
    return
  }
  func.func @transform_0(%arg0: i32) -> (i32, i32) {
    %c0_i32 = arith.constant 0 : i32
    %c0_i32_0 = arith.constant 0 : i32
    return %arg0, %c0_i32 : i32, i32
  }
  func.func @transform_1(%arg0: i32) -> (i32, i32) {
    %c0_i32 = arith.constant 0 : i32
    %c0_i32_0 = arith.constant 0 : i32
    %c0_i32_1 = arith.constant 0 : i32
    return %c0_i32, %c0_i32_0 : i32, i32
  }
  func.func @transform_2(%arg0: i32) -> (i32, i32) {
    %c0_i32 = arith.constant 0 : i32
    %c0_i32_0 = arith.constant 0 : i32
    %c0_i32_1 = arith.constant 0 : i32
    return %c0_i32, %c0_i32_0 : i32, i32
  }
  func.func @transform_3(%arg0: i32) -> (i32, i32) {
    %c0_i32 = arith.constant 0 : i32
    %c0_i32_0 = arith.constant 0 : i32
    return %arg0, %c0_i32 : i32, i32
  }
}

module attributes {stable_mosaic.version = 11 : i64} {
  func.func @_matmul_bias_act_kernel(%arg0: i32, %arg1: memref<12x96xf32, #tpu.memory_space<vmem>>, %arg2: memref<96x128xbf16, #tpu.memory_space<vmem>>, %arg3: memref<1x128xf32, #tpu.memory_space<vmem>>, %arg4: memref<12x128xf32, #tpu.memory_space<vmem>>) attributes {dimension_semantics = [#tpu.dimension_semantics<parallel>], iteration_bounds = array<i64: 1>, scalar_prefetch = 0 : i64, scratch_operands = 0 : i64, tpu.core_type = #tpu.core_type<tc>, window_params = [{transform_indices = @transform_0, window_bounds = array<i64: 12, 96>}, {pipeline_mode = #tpu.pipeline_mode<synchronous>, transform_indices = @transform_1, window_bounds = array<i64: 96, 128>}, {pipeline_mode = #tpu.pipeline_mode<synchronous>, transform_indices = @transform_2, window_bounds = array<i64: 1, 128>}, {transform_indices = @transform_3, window_bounds = array<i64: 12, 128>}]} {
    %c0 = arith.constant 0 : index
    %c0_0 = arith.constant 0 : index
    %0 = vector.load %arg1[%c0, %c0_0] : memref<12x96xf32, #tpu.memory_space<vmem>>, vector<12x96xf32>
    %1 = arith.truncf %0 : vector<12x96xf32> to vector<12x96xbf16>
    %c0_1 = arith.constant 0 : index
    %c0_2 = arith.constant 0 : index
    %2 = vector.load %arg2[%c0_1, %c0_2] : memref<96x128xbf16, #tpu.memory_space<vmem>>, vector<96x128xbf16>
    %cst = arith.constant dense<0.000000e+00> : vector<12x128xf32>
    %3 = tpu.matmul %1, %2, %cst {dimension_numbers = #tpu.dot_dimension_numbers<[1], [0], [0], [1], [0, 0, 1, 1], [], []>} : vector<12x96xbf16>, vector<96x128xbf16>, vector<12x128xf32> -> vector<12x128xf32>
    %c0_3 = arith.constant 0 : index
    %c0_4 = arith.constant 0 : index
    %4 = vector.load %arg3[%c0_3, %c0_4] : memref<1x128xf32, #tpu.memory_space<vmem>>, vector<1x128xf32>
    %5 = vector.broadcast %4 : vector<1x128xf32> to vector<12x128xf32>
    %6 = arith.addf %3, %5 : vector<12x128xf32>
    %c0_5 = arith.constant 0 : index
    %c0_6 = arith.constant 0 : index
    %7 = vector.load %arg4[%c0_5, %c0_6] : memref<12x128xf32, #tpu.memory_space<vmem>>, vector<12x128xf32>
    tpu.vector_store %arg4[%c0_5, %c0_6], %6 {strides = array<i32>} : memref<12x128xf32, #tpu.memory_space<vmem>>, vector<12x128xf32>,
    return
  }
  func.func @transform_0(%arg0: i32) -> (i32, i32) {
    %c0_i32 = arith.constant 0 : i32
    %c0_i32_0 = arith.constant 0 : i32
    return %arg0, %c0_i32 : i32, i32
  }
  func.func @transform_1(%arg0: i32) -> (i32, i32) {
    %c0_i32 = arith.constant 0 : i32
    %c0_i32_0 = arith.constant 0 : i32
    %c0_i32_1 = arith.constant 0 : i32
    return %c0_i32, %c0_i32_0 : i32, i32
  }
  func.func @transform_2(%arg0: i32) -> (i32, i32) {
    %c0_i32 = arith.constant 0 : i32
    %c0_i32_0 = arith.constant 0 : i32
    %c0_i32_1 = arith.constant 0 : i32
    return %c0_i32, %c0_i32_0 : i32, i32
  }
  func.func @transform_3(%arg0: i32) -> (i32, i32) {
    %c0_i32 = arith.constant 0 : i32
    %c0_i32_0 = arith.constant 0 : i32
    return %arg0, %c0_i32 : i32, i32
  }
}

module attributes {stable_mosaic.version = 11 : i64} {
  func.func @_ffn_fused_kernel(%arg0: i32, %arg1: memref<12x128xf32, #tpu.memory_space<vmem>>, %arg2: memref<1x128xf32, #tpu.memory_space<vmem>>, %arg3: memref<1x128xf32, #tpu.memory_space<vmem>>, %arg4: memref<128x128xbf16, #tpu.memory_space<vmem>>, %arg5: memref<1x128xf32, #tpu.memory_space<vmem>>, %arg6: memref<128x128xbf16, #tpu.memory_space<vmem>>, %arg7: memref<1x128xf32, #tpu.memory_space<vmem>>, %arg8: memref<1x128xf32, #tpu.memory_space<vmem>>, %arg9: memref<1x128xf32, #tpu.memory_space<vmem>>, %arg10: memref<12x128xf32, #tpu.memory_space<vmem>>) attributes {dimension_semantics = [#tpu.dimension_semantics<parallel>], iteration_bounds = array<i64: 1>, scalar_prefetch = 0 : i64, scratch_operands = 0 : i64, tpu.core_type = #tpu.core_type<tc>, window_params = [{transform_indices = @transform_0, window_bounds = array<i64: 12, 128>}, {pipeline_mode = #tpu.pipeline_mode<synchronous>, transform_indices = @transform_1, window_bounds = array<i64: 1, 128>}, {pipeline_mode = #tpu.pipeline_mode<synchronous>, transform_indices = @transform_2, window_bounds = array<i64: 1, 128>}, {pipeline_mode = #tpu.pipeline_mode<synchronous>, transform_indices = @transform_3, window_bounds = array<i64: 128, 128>}, {pipeline_mode = #tpu.pipeline_mode<synchronous>, transform_indices = @transform_4, window_bounds = array<i64: 1, 128>}, {pipeline_mode = #tpu.pipeline_mode<synchronous>, transform_indices = @transform_5, window_bounds = array<i64: 128, 128>}, {pipeline_mode = #tpu.pipeline_mode<synchronous>, transform_indices = @transform_6, window_bounds = array<i64: 1, 128>}, {pipeline_mode = #tpu.pipeline_mode<synchronous>, transform_indices = @transform_7, window_bounds = array<i64: 1, 128>}, {pipeline_mode = #tpu.pipeline_mode<synchronous>, transform_indices = @transform_8, window_bounds = array<i64: 1, 128>}, {transform_indices = @transform_9, window_bounds = array<i64: 12, 128>}]} {
    %c0 = arith.constant 0 : index
    %c0_0 = arith.constant 0 : index
    %0 = vector.load %arg1[%c0, %c0_0] : memref<12x128xf32, #tpu.memory_space<vmem>>, vector<12x128xf32>
    %c0_1 = arith.constant 0 : index
    %c0_2 = arith.constant 0 : index
    %1 = vector.load %arg2[%c0_1, %c0_2] : memref<1x128xf32, #tpu.memory_space<vmem>>, vector<1x128xf32>
    %c0_3 = arith.constant 0 : index
    %c0_4 = arith.constant 0 : index
    %2 = vector.load %arg3[%c0_3, %c0_4] : memref<1x128xf32, #tpu.memory_space<vmem>>, vector<1x128xf32>
    %cst = arith.constant dense<0.000000e+00> : vector<12xf32>
    %3 = vector.multi_reduction <add>, %0, %cst [1] : vector<12x128xf32> to vector<12xf32>
    %4 = vector.shape_cast %3 : vector<12xf32> to vector<12x1xf32>
    %cst_5 = arith.constant 3.125000e-02 : f32
    %5 = vector.broadcast %cst_5 : f32 to vector<12x1xf32>
    %6 = arith.mulf %4, %5 : vector<12x1xf32>
    %7 = arith.mulf %0, %0 : vector<12x128xf32>
    %cst_6 = arith.constant dense<0.000000e+00> : vector<12xf32>
    %8 = vector.multi_reduction <add>, %7, %cst_6 [1] : vector<12x128xf32> to vector<12xf32>
    %9 = vector.shape_cast %8 : vector<12xf32> to vector<12x1xf32>
    %cst_7 = arith.constant 3.125000e-02 : f32
    %10 = vector.broadcast %cst_7 : f32 to vector<12x1xf32>
    %11 = arith.mulf %9, %10 : vector<12x1xf32>
    %12 = arith.mulf %6, %6 : vector<12x1xf32>
    %13 = arith.subf %11, %12 : vector<12x1xf32>
    %14 = vector.broadcast %6 : vector<12x1xf32> to vector<12x128xf32>
    %15 = arith.subf %0, %14 : vector<12x128xf32>
    %cst_8 = arith.constant 9.99999974E-6 : f32
    %16 = vector.broadcast %cst_8 : f32 to vector<12x1xf32>
    %17 = arith.addf %13, %16 : vector<12x1xf32>
    %18 = math.rsqrt %17 : vector<12x1xf32>
    %19 = vector.broadcast %18 : vector<12x1xf32> to vector<12x128xf32>
    %20 = arith.mulf %15, %19 : vector<12x128xf32>
    %21 = vector.broadcast %1 : vector<1x128xf32> to vector<12x128xf32>
    %22 = arith.mulf %20, %21 : vector<12x128xf32>
    %23 = vector.broadcast %2 : vector<1x128xf32> to vector<12x128xf32>
    %24 = arith.addf %22, %23 : vector<12x128xf32>
    %25 = arith.truncf %24 : vector<12x128xf32> to vector<12x128xbf16>
    %c0_9 = arith.constant 0 : index
    %c0_10 = arith.constant 0 : index
    %26 = vector.load %arg4[%c0_9, %c0_10] : memref<128x128xbf16, #tpu.memory_space<vmem>>, vector<128x128xbf16>
    %cst_11 = arith.constant dense<0.000000e+00> : vector<12x128xf32>
    %27 = tpu.matmul %25, %26, %cst_11 {dimension_numbers = #tpu.dot_dimension_numbers<[1], [0], [0], [1], [0, 0, 1, 1], [], []>} : vector<12x128xbf16>, vector<128x128xbf16>, vector<12x128xf32> -> vector<12x128xf32>
    %c0_12 = arith.constant 0 : index
    %c0_13 = arith.constant 0 : index
    %28 = vector.load %arg5[%c0_12, %c0_13] : memref<1x128xf32, #tpu.memory_space<vmem>>, vector<1x128xf32>
    %29 = vector.broadcast %28 : vector<1x128xf32> to vector<12x128xf32>
    %30 = arith.addf %27, %29 : vector<12x128xf32>
    %31 = arith.negf %30 : vector<12x128xf32>
    %32 = math.exp %31 : vector<12x128xf32>
    %cst_14 = arith.constant 1.000000e+00 : f32
    %33 = vector.broadcast %cst_14 : f32 to vector<12x128xf32>
    %34 = arith.addf %33, %32 : vector<12x128xf32>
    %35 = arith.divf %33, %34 : vector<12x128xf32>
    %36 = arith.mulf %30, %35 : vector<12x128xf32>
    %37 = arith.truncf %36 : vector<12x128xf32> to vector<12x128xbf16>
    %c0_15 = arith.constant 0 : index
    %c0_16 = arith.constant 0 : index
    %38 = vector.load %arg6[%c0_15, %c0_16] : memref<128x128xbf16, #tpu.memory_space<vmem>>, vector<128x128xbf16>
    %cst_17 = arith.constant dense<0.000000e+00> : vector<12x128xf32>
    %39 = tpu.matmul %37, %38, %cst_17 {dimension_numbers = #tpu.dot_dimension_numbers<[1], [0], [0], [1], [0, 0, 1, 1], [], []>} : vector<12x128xbf16>, vector<128x128xbf16>, vector<12x128xf32> -> vector<12x128xf32>
    %c0_18 = arith.constant 0 : index
    %c0_19 = arith.constant 0 : index
    %40 = vector.load %arg7[%c0_18, %c0_19] : memref<1x128xf32, #tpu.memory_space<vmem>>, vector<1x128xf32>
    %41 = vector.broadcast %40 : vector<1x128xf32> to vector<12x128xf32>
    %42 = arith.addf %39, %41 : vector<12x128xf32>
    %cst_20 = arith.constant 5.000000e-01 : f32
    %43 = vector.broadcast %cst_20 : f32 to vector<12x128xf32>
    %44 = arith.mulf %43, %42 : vector<12x128xf32>
    %45 = arith.addf %0, %44 : vector<12x128xf32>
    %c0_21 = arith.constant 0 : index
    %c0_22 = arith.constant 0 : index
    %46 = vector.load %arg10[%c0_21, %c0_22] : memref<12x128xf32, #tpu.memory_space<vmem>>, vector<12x128xf32>
    tpu.vector_store %arg10[%c0_21, %c0_22], %45 {strides = array<i32>} : memref<12x128xf32, #tpu.memory_space<vmem>>, vector<12x128xf32>,
    return
  }
  func.func @transform_0(%arg0: i32) -> (i32, i32) {
    %c0_i32 = arith.constant 0 : i32
    %c0_i32_0 = arith.constant 0 : i32
    return %arg0, %c0_i32 : i32, i32
  }
  func.func @transform_1(%arg0: i32) -> (i32, i32) {
    %c0_i32 = arith.constant 0 : i32
    %c0_i32_0 = arith.constant 0 : i32
    %c0_i32_1 = arith.constant 0 : i32
    return %c0_i32, %c0_i32_0 : i32, i32
  }
  func.func @transform_2(%arg0: i32) -> (i32, i32) {
    %c0_i32 = arith.constant 0 : i32
    %c0_i32_0 = arith.constant 0 : i32
    %c0_i32_1 = arith.constant 0 : i32
    return %c0_i32, %c0_i32_0 : i32, i32
  }
  func.func @transform_3(%arg0: i32) -> (i32, i32) {
    %c0_i32 = arith.constant 0 : i32
    %c0_i32_0 = arith.constant 0 : i32
    %c0_i32_1 = arith.constant 0 : i32
    return %c0_i32, %c0_i32_0 : i32, i32
  }
  func.func @transform_4(%arg0: i32) -> (i32, i32) {
    %c0_i32 = arith.constant 0 : i32
    %c0_i32_0 = arith.constant 0 : i32
    %c0_i32_1 = arith.constant 0 : i32
    return %c0_i32, %c0_i32_0 : i32, i32
  }
  func.func @transform_5(%arg0: i32) -> (i32, i32) {
    %c0_i32 = arith.constant 0 : i32
    %c0_i32_0 = arith.constant 0 : i32
    %c0_i32_1 = arith.constant 0 : i32
    return %c0_i32, %c0_i32_0 : i32, i32
  }
  func.func @transform_6(%arg0: i32) -> (i32, i32) {
    %c0_i32 = arith.constant 0 : i32
    %c0_i32_0 = arith.constant 0 : i32
    %c0_i32_1 = arith.constant 0 : i32
    return %c0_i32, %c0_i32_0 : i32, i32
  }
  func.func @transform_7(%arg0: i32) -> (i32, i32) {
    %c0_i32 = arith.constant 0 : i32
    %c0_i32_0 = arith.constant 0 : i32
    %c0_i32_1 = arith.constant 0 : i32
    return %c0_i32, %c0_i32_0 : i32, i32
  }
  func.func @transform_8(%arg0: i32) -> (i32, i32) {
    %c0_i32 = arith.constant 0 : i32
    %c0_i32_0 = arith.constant 0 : i32
    %c0_i32_1 = arith.constant 0 : i32
    return %c0_i32, %c0_i32_0 : i32, i32
  }
  func.func @transform_9(%arg0: i32) -> (i32, i32) {
    %c0_i32 = arith.constant 0 : i32
    %c0_i32_0 = arith.constant 0 : i32
    return %arg0, %c0_i32 : i32, i32
  }
}

module attributes {stable_mosaic.version = 11 : i64} {
  func.func @_attn_fused_kernel(%arg0: i32, %arg1: memref<1x6x128xf32, #tpu.memory_space<vmem>>, %arg2: memref<1x128xf32, #tpu.memory_space<vmem>>, %arg3: memref<1x128xf32, #tpu.memory_space<vmem>>, %arg4: memref<128x384xbf16, #tpu.memory_space<vmem>>, %arg5: memref<1x384xf32, #tpu.memory_space<vmem>>, %arg6: memref<128x128xbf16, #tpu.memory_space<vmem>>, %arg7: memref<1x128xf32, #tpu.memory_space<vmem>>, %arg8: memref<1x6x128xf32, #tpu.memory_space<vmem>>) attributes {dimension_semantics = [#tpu.dimension_semantics<parallel>], iteration_bounds = array<i64: 2>, scalar_prefetch = 0 : i64, scratch_operands = 0 : i64, tpu.core_type = #tpu.core_type<tc>, window_params = [{transform_indices = @transform_0, window_bounds = array<i64: 1, 6, 128>}, {pipeline_mode = #tpu.pipeline_mode<synchronous>, transform_indices = @transform_1, window_bounds = array<i64: 1, 128>}, {pipeline_mode = #tpu.pipeline_mode<synchronous>, transform_indices = @transform_2, window_bounds = array<i64: 1, 128>}, {pipeline_mode = #tpu.pipeline_mode<synchronous>, transform_indices = @transform_3, window_bounds = array<i64: 128, 384>}, {pipeline_mode = #tpu.pipeline_mode<synchronous>, transform_indices = @transform_4, window_bounds = array<i64: 1, 384>}, {pipeline_mode = #tpu.pipeline_mode<synchronous>, transform_indices = @transform_5, window_bounds = array<i64: 128, 128>}, {pipeline_mode = #tpu.pipeline_mode<synchronous>, transform_indices = @transform_6, window_bounds = array<i64: 1, 128>}, {transform_indices = @transform_7, window_bounds = array<i64: 1, 6, 128>}]} {
    %c0 = arith.constant 0 : index
    %c0_0 = arith.constant 0 : index
    %c0_1 = arith.constant 0 : index
    %0 = vector.load %arg1[%c0, %c0_0, %c0_1] : memref<1x6x128xf32, #tpu.memory_space<vmem>>, vector<1x6x128xf32>
    %1 = vector.shape_cast %0 : vector<1x6x128xf32> to vector<6x128xf32>
    %c0_2 = arith.constant 0 : index
    %c0_3 = arith.constant 0 : index
    %2 = vector.load %arg2[%c0_2, %c0_3] : memref<1x128xf32, #tpu.memory_space<vmem>>, vector<1x128xf32>
    %c0_4 = arith.constant 0 : index
    %c0_5 = arith.constant 0 : index
    %3 = vector.load %arg3[%c0_4, %c0_5] : memref<1x128xf32, #tpu.memory_space<vmem>>, vector<1x128xf32>
    %cst = arith.constant dense<0.000000e+00> : vector<6xf32>
    %4 = vector.multi_reduction <add>, %1, %cst [1] : vector<6x128xf32> to vector<6xf32>
    %5 = vector.shape_cast %4 : vector<6xf32> to vector<6x1xf32>
    %cst_6 = arith.constant 3.125000e-02 : f32
    %6 = vector.broadcast %cst_6 : f32 to vector<6x1xf32>
    %7 = arith.mulf %5, %6 : vector<6x1xf32>
    %8 = arith.mulf %1, %1 : vector<6x128xf32>
    %cst_7 = arith.constant dense<0.000000e+00> : vector<6xf32>
    %9 = vector.multi_reduction <add>, %8, %cst_7 [1] : vector<6x128xf32> to vector<6xf32>
    %10 = vector.shape_cast %9 : vector<6xf32> to vector<6x1xf32>
    %cst_8 = arith.constant 3.125000e-02 : f32
    %11 = vector.broadcast %cst_8 : f32 to vector<6x1xf32>
    %12 = arith.mulf %10, %11 : vector<6x1xf32>
    %13 = arith.mulf %7, %7 : vector<6x1xf32>
    %14 = arith.subf %12, %13 : vector<6x1xf32>
    %15 = vector.broadcast %7 : vector<6x1xf32> to vector<6x128xf32>
    %16 = arith.subf %1, %15 : vector<6x128xf32>
    %cst_9 = arith.constant 9.99999974E-6 : f32
    %17 = vector.broadcast %cst_9 : f32 to vector<6x1xf32>
    %18 = arith.addf %14, %17 : vector<6x1xf32>
    %19 = math.rsqrt %18 : vector<6x1xf32>
    %20 = vector.broadcast %19 : vector<6x1xf32> to vector<6x128xf32>
    %21 = arith.mulf %16, %20 : vector<6x128xf32>
    %22 = vector.broadcast %2 : vector<1x128xf32> to vector<6x128xf32>
    %23 = arith.mulf %21, %22 : vector<6x128xf32>
    %24 = vector.broadcast %3 : vector<1x128xf32> to vector<6x128xf32>
    %25 = arith.addf %23, %24 : vector<6x128xf32>
    %26 = arith.truncf %25 : vector<6x128xf32> to vector<6x128xbf16>
    %c0_10 = arith.constant 0 : index
    %c0_11 = arith.constant 0 : index
    %27 = vector.load %arg4[%c0_10, %c0_11] : memref<128x384xbf16, #tpu.memory_space<vmem>>, vector<128x384xbf16>
    %cst_12 = arith.constant dense<0.000000e+00> : vector<6x384xf32>
    %28 = tpu.matmul %26, %27, %cst_12 {dimension_numbers = #tpu.dot_dimension_numbers<[1], [0], [0], [1], [0, 0, 1, 1], [], []>} : vector<6x128xbf16>, vector<128x384xbf16>, vector<6x384xf32> -> vector<6x384xf32>
    %c0_13 = arith.constant 0 : index
    %c0_14 = arith.constant 0 : index
    %29 = vector.load %arg5[%c0_13, %c0_14] : memref<1x384xf32, #tpu.memory_space<vmem>>, vector<1x384xf32>
    %30 = vector.broadcast %29 : vector<1x384xf32> to vector<6x384xf32>
    %31 = arith.addf %28, %30 : vector<6x384xf32>
    %32 = arith.truncf %31 : vector<6x384xf32> to vector<6x384xbf16>
    %c0_15 = arith.constant 0 : index
    %c0_16 = arith.constant 0 : index
    %33 = vector.load %arg6[%c0_15, %c0_16] : memref<128x128xbf16, #tpu.memory_space<vmem>>, vector<128x128xbf16>
    %cst_17 = arith.constant 0.000000e+00 : f32
    %34 = vector.broadcast %cst_17 : f32 to vector<6x128xf32>
    %35 = vector.extract_strided_slice %32 {offsets = [0, 0], sizes = [6, 8], strides = [1, 1]} : vector<6x384xbf16> to vector<6x8xbf16>
    %36 = vector.extract_strided_slice %32 {offsets = [0, 128], sizes = [6, 8], strides = [1, 1]} : vector<6x384xbf16> to vector<6x8xbf16>
    %37 = vector.extract_strided_slice %32 {offsets = [0, 256], sizes = [6, 8], strides = [1, 1]} : vector<6x384xbf16> to vector<6x8xbf16>
    %cst_18 = arith.constant dense<0.000000e+00> : vector<6x6xf32>
    %38 = tpu.matmul %35, %36, %cst_18 {dimension_numbers = #tpu.dot_dimension_numbers<[1], [1], [0], [0], [0, 0, 1, 0], [], []>} : vector<6x8xbf16>, vector<6x8xbf16>, vector<6x6xf32> -> vector<6x6xf32>
    %cst_19 = arith.constant 0.353553385 : f32
    %39 = vector.broadcast %cst_19 : f32 to vector<6x6xf32>
    %40 = arith.mulf %38, %39 : vector<6x6xf32>
    %cst_20 = arith.constant dense<0xFF800000> : vector<6xf32>
    %41 = vector.multi_reduction <maximumf>, %40, %cst_20 [1] : vector<6x6xf32> to vector<6xf32>
    %42 = vector.shape_cast %41 : vector<6xf32> to vector<6x1xf32>
    %43 = vector.broadcast %42 : vector<6x1xf32> to vector<6x6xf32>
    %44 = arith.subf %40, %43 : vector<6x6xf32>
    %45 = math.exp %44 : vector<6x6xf32>
    %cst_21 = arith.constant dense<0.000000e+00> : vector<6xf32>
    %46 = vector.multi_reduction <add>, %45, %cst_21 [1] : vector<6x6xf32> to vector<6xf32>
    %47 = vector.shape_cast %46 : vector<6xf32> to vector<6x1xf32>
    %48 = tpu.reciprocal %47 {approx = true} : vector<6x1xf32> -> vector<6x1xf32>
    %49 = vector.broadcast %48 : vector<6x1xf32> to vector<6x6xf32>
    %50 = arith.mulf %45, %49 : vector<6x6xf32>
    %51 = arith.truncf %50 : vector<6x6xf32> to vector<6x6xbf16>
    %cst_22 = arith.constant dense<0.000000e+00> : vector<6x8xf32>
    %52 = tpu.matmul %51, %37, %cst_22 {dimension_numbers = #tpu.dot_dimension_numbers<[1], [0], [0], [1], [0, 0, 1, 1], [], []>} : vector<6x6xbf16>, vector<6x8xbf16>, vector<6x8xf32> -> vector<6x8xf32>
    %53 = arith.truncf %52 : vector<6x8xf32> to vector<6x8xbf16>
    %54 = vector.extract_strided_slice %33 {offsets = [0, 0], sizes = [8, 128], strides = [1, 1]} : vector<128x128xbf16> to vector<8x128xbf16>
    %cst_23 = arith.constant dense<0.000000e+00> : vector<6x128xf32>
    %55 = tpu.matmul %53, %54, %cst_23 {dimension_numbers = #tpu.dot_dimension_numbers<[1], [0], [0], [1], [0, 0, 1, 1], [], []>} : vector<6x8xbf16>, vector<8x128xbf16>, vector<6x128xf32> -> vector<6x128xf32>
    %56 = arith.addf %34, %55 : vector<6x128xf32>
    %57 = vector.extract_strided_slice %32 {offsets = [0, 8], sizes = [6, 8], strides = [1, 1]} : vector<6x384xbf16> to vector<6x8xbf16>
    %58 = vector.extract_strided_slice %32 {offsets = [0, 136], sizes = [6, 8], strides = [1, 1]} : vector<6x384xbf16> to vector<6x8xbf16>
    %59 = vector.extract_strided_slice %32 {offsets = [0, 264], sizes = [6, 8], strides = [1, 1]} : vector<6x384xbf16> to vector<6x8xbf16>
    %cst_24 = arith.constant dense<0.000000e+00> : vector<6x6xf32>
    %60 = tpu.matmul %57, %58, %cst_24 {dimension_numbers = #tpu.dot_dimension_numbers<[1], [1], [0], [0], [0, 0, 1, 0], [], []>} : vector<6x8xbf16>, vector<6x8xbf16>, vector<6x6xf32> -> vector<6x6xf32>
    %cst_25 = arith.constant 0.353553385 : f32
    %61 = vector.broadcast %cst_25 : f32 to vector<6x6xf32>
    %62 = arith.mulf %60, %61 : vector<6x6xf32>
    %cst_26 = arith.constant dense<0xFF800000> : vector<6xf32>
    %63 = vector.multi_reduction <maximumf>, %62, %cst_26 [1] : vector<6x6xf32> to vector<6xf32>
    %64 = vector.shape_cast %63 : vector<6xf32> to vector<6x1xf32>
    %65 = vector.broadcast %64 : vector<6x1xf32> to vector<6x6xf32>
    %66 = arith.subf %62, %65 : vector<6x6xf32>
    %67 = math.exp %66 : vector<6x6xf32>
    %cst_27 = arith.constant dense<0.000000e+00> : vector<6xf32>
    %68 = vector.multi_reduction <add>, %67, %cst_27 [1] : vector<6x6xf32> to vector<6xf32>
    %69 = vector.shape_cast %68 : vector<6xf32> to vector<6x1xf32>
    %70 = tpu.reciprocal %69 {approx = true} : vector<6x1xf32> -> vector<6x1xf32>
    %71 = vector.broadcast %70 : vector<6x1xf32> to vector<6x6xf32>
    %72 = arith.mulf %67, %71 : vector<6x6xf32>
    %73 = arith.truncf %72 : vector<6x6xf32> to vector<6x6xbf16>
    %cst_28 = arith.constant dense<0.000000e+00> : vector<6x8xf32>
    %74 = tpu.matmul %73, %59, %cst_28 {dimension_numbers = #tpu.dot_dimension_numbers<[1], [0], [0], [1], [0, 0, 1, 1], [], []>} : vector<6x6xbf16>, vector<6x8xbf16>, vector<6x8xf32> -> vector<6x8xf32>
    %75 = arith.truncf %74 : vector<6x8xf32> to vector<6x8xbf16>
    %76 = vector.extract_strided_slice %33 {offsets = [8, 0], sizes = [8, 128], strides = [1, 1]} : vector<128x128xbf16> to vector<8x128xbf16>
    %cst_29 = arith.constant dense<0.000000e+00> : vector<6x128xf32>
    %77 = tpu.matmul %75, %76, %cst_29 {dimension_numbers = #tpu.dot_dimension_numbers<[1], [0], [0], [1], [0, 0, 1, 1], [], []>} : vector<6x8xbf16>, vector<8x128xbf16>, vector<6x128xf32> -> vector<6x128xf32>
    %78 = arith.addf %56, %77 : vector<6x128xf32>
    %79 = vector.extract_strided_slice %32 {offsets = [0, 16], sizes = [6, 8], strides = [1, 1]} : vector<6x384xbf16> to vector<6x8xbf16>
    %80 = vector.extract_strided_slice %32 {offsets = [0, 144], sizes = [6, 8], strides = [1, 1]} : vector<6x384xbf16> to vector<6x8xbf16>
    %81 = vector.extract_strided_slice %32 {offsets = [0, 272], sizes = [6, 8], strides = [1, 1]} : vector<6x384xbf16> to vector<6x8xbf16>
    %cst_30 = arith.constant dense<0.000000e+00> : vector<6x6xf32>
    %82 = tpu.matmul %79, %80, %cst_30 {dimension_numbers = #tpu.dot_dimension_numbers<[1], [1], [0], [0], [0, 0, 1, 0], [], []>} : vector<6x8xbf16>, vector<6x8xbf16>, vector<6x6xf32> -> vector<6x6xf32>
    %cst_31 = arith.constant 0.353553385 : f32
    %83 = vector.broadcast %cst_31 : f32 to vector<6x6xf32>
    %84 = arith.mulf %82, %83 : vector<6x6xf32>
    %cst_32 = arith.constant dense<0xFF800000> : vector<6xf32>
    %85 = vector.multi_reduction <maximumf>, %84, %cst_32 [1] : vector<6x6xf32> to vector<6xf32>
    %86 = vector.shape_cast %85 : vector<6xf32> to vector<6x1xf32>
    %87 = vector.broadcast %86 : vector<6x1xf32> to vector<6x6xf32>
    %88 = arith.subf %84, %87 : vector<6x6xf32>
    %89 = math.exp %88 : vector<6x6xf32>
    %cst_33 = arith.constant dense<0.000000e+00> : vector<6xf32>
    %90 = vector.multi_reduction <add>, %89, %cst_33 [1] : vector<6x6xf32> to vector<6xf32>
    %91 = vector.shape_cast %90 : vector<6xf32> to vector<6x1xf32>
    %92 = tpu.reciprocal %91 {approx = true} : vector<6x1xf32> -> vector<6x1xf32>
    %93 = vector.broadcast %92 : vector<6x1xf32> to vector<6x6xf32>
    %94 = arith.mulf %89, %93 : vector<6x6xf32>
    %95 = arith.truncf %94 : vector<6x6xf32> to vector<6x6xbf16>
    %cst_34 = arith.constant dense<0.000000e+00> : vector<6x8xf32>
    %96 = tpu.matmul %95, %81, %cst_34 {dimension_numbers = #tpu.dot_dimension_numbers<[1], [0], [0], [1], [0, 0, 1, 1], [], []>} : vector<6x6xbf16>, vector<6x8xbf16>, vector<6x8xf32> -> vector<6x8xf32>
    %97 = arith.truncf %96 : vector<6x8xf32> to vector<6x8xbf16>
    %98 = vector.extract_strided_slice %33 {offsets = [16, 0], sizes = [8, 128], strides = [1, 1]} : vector<128x128xbf16> to vector<8x128xbf16>
    %cst_35 = arith.constant dense<0.000000e+00> : vector<6x128xf32>
    %99 = tpu.matmul %97, %98, %cst_35 {dimension_numbers = #tpu.dot_dimension_numbers<[1], [0], [0], [1], [0, 0, 1, 1], [], []>} : vector<6x8xbf16>, vector<8x128xbf16>, vector<6x128xf32> -> vector<6x128xf32>
    %100 = arith.addf %78, %99 : vector<6x128xf32>
    %101 = vector.extract_strided_slice %32 {offsets = [0, 24], sizes = [6, 8], strides = [1, 1]} : vector<6x384xbf16> to vector<6x8xbf16>
    %102 = vector.extract_strided_slice %32 {offsets = [0, 152], sizes = [6, 8], strides = [1, 1]} : vector<6x384xbf16> to vector<6x8xbf16>
    %103 = vector.extract_strided_slice %32 {offsets = [0, 280], sizes = [6, 8], strides = [1, 1]} : vector<6x384xbf16> to vector<6x8xbf16>
    %cst_36 = arith.constant dense<0.000000e+00> : vector<6x6xf32>
    %104 = tpu.matmul %101, %102, %cst_36 {dimension_numbers = #tpu.dot_dimension_numbers<[1], [1], [0], [0], [0, 0, 1, 0], [], []>} : vector<6x8xbf16>, vector<6x8xbf16>, vector<6x6xf32> -> vector<6x6xf32>
    %cst_37 = arith.constant 0.353553385 : f32
    %105 = vector.broadcast %cst_37 : f32 to vector<6x6xf32>
    %106 = arith.mulf %104, %105 : vector<6x6xf32>
    %cst_38 = arith.constant dense<0xFF800000> : vector<6xf32>
    %107 = vector.multi_reduction <maximumf>, %106, %cst_38 [1] : vector<6x6xf32> to vector<6xf32>
    %108 = vector.shape_cast %107 : vector<6xf32> to vector<6x1xf32>
    %109 = vector.broadcast %108 : vector<6x1xf32> to vector<6x6xf32>
    %110 = arith.subf %106, %109 : vector<6x6xf32>
    %111 = math.exp %110 : vector<6x6xf32>
    %cst_39 = arith.constant dense<0.000000e+00> : vector<6xf32>
    %112 = vector.multi_reduction <add>, %111, %cst_39 [1] : vector<6x6xf32> to vector<6xf32>
    %113 = vector.shape_cast %112 : vector<6xf32> to vector<6x1xf32>
    %114 = tpu.reciprocal %113 {approx = true} : vector<6x1xf32> -> vector<6x1xf32>
    %115 = vector.broadcast %114 : vector<6x1xf32> to vector<6x6xf32>
    %116 = arith.mulf %111, %115 : vector<6x6xf32>
    %117 = arith.truncf %116 : vector<6x6xf32> to vector<6x6xbf16>
    %cst_40 = arith.constant dense<0.000000e+00> : vector<6x8xf32>
    %118 = tpu.matmul %117, %103, %cst_40 {dimension_numbers = #tpu.dot_dimension_numbers<[1], [0], [0], [1], [0, 0, 1, 1], [], []>} : vector<6x6xbf16>, vector<6x8xbf16>, vector<6x8xf32> -> vector<6x8xf32>
    %119 = arith.truncf %118 : vector<6x8xf32> to vector<6x8xbf16>
    %120 = vector.extract_strided_slice %33 {offsets = [24, 0], sizes = [8, 128], strides = [1, 1]} : vector<128x128xbf16> to vector<8x128xbf16>
    %cst_41 = arith.constant dense<0.000000e+00> : vector<6x128xf32>
    %121 = tpu.matmul %119, %120, %cst_41 {dimension_numbers = #tpu.dot_dimension_numbers<[1], [0], [0], [1], [0, 0, 1, 1], [], []>} : vector<6x8xbf16>, vector<8x128xbf16>, vector<6x128xf32> -> vector<6x128xf32>
    %122 = arith.addf %100, %121 : vector<6x128xf32>
    %123 = arith.addf %1, %122 : vector<6x128xf32>
    %c0_42 = arith.constant 0 : index
    %c0_43 = arith.constant 0 : index
    %124 = vector.load %arg7[%c0_42, %c0_43] : memref<1x128xf32, #tpu.memory_space<vmem>>, vector<1x128xf32>
    %125 = vector.broadcast %124 : vector<1x128xf32> to vector<6x128xf32>
    %126 = arith.addf %123, %125 : vector<6x128xf32>
    %c0_44 = arith.constant 0 : index
    %c0_45 = arith.constant 0 : index
    %c0_46 = arith.constant 0 : index
    %127 = vector.load %arg8[%c0_44, %c0_45, %c0_46] : memref<1x6x128xf32, #tpu.memory_space<vmem>>, vector<1x6x128xf32>
    %128 = vector.shape_cast %127 : vector<1x6x128xf32> to vector<6x128xf32>
    %129 = vector.shape_cast %126 : vector<6x128xf32> to vector<1x6x128xf32>
    tpu.vector_store %arg8[%c0_44, %c0_45, %c0_46], %129 {strides = array<i32>} : memref<1x6x128xf32, #tpu.memory_space<vmem>>, vector<1x6x128xf32>,
    return
  }
  func.func @transform_0(%arg0: i32) -> (i32, i32, i32) {
    %c0_i32 = arith.constant 0 : i32
    %c0_i32_0 = arith.constant 0 : i32
    %c0_i32_1 = arith.constant 0 : i32
    return %arg0, %c0_i32, %c0_i32_0 : i32, i32, i32
  }
  func.func @transform_1(%arg0: i32) -> (i32, i32) {
    %c0_i32 = arith.constant 0 : i32
    %c0_i32_0 = arith.constant 0 : i32
    %c0_i32_1 = arith.constant 0 : i32
    return %c0_i32, %c0_i32_0 : i32, i32
  }
  func.func @transform_2(%arg0: i32) -> (i32, i32) {
    %c0_i32 = arith.constant 0 : i32
    %c0_i32_0 = arith.constant 0 : i32
    %c0_i32_1 = arith.constant 0 : i32
    return %c0_i32, %c0_i32_0 : i32, i32
  }
  func.func @transform_3(%arg0: i32) -> (i32, i32) {
    %c0_i32 = arith.constant 0 : i32
    %c0_i32_0 = arith.constant 0 : i32
    %c0_i32_1 = arith.constant 0 : i32
    return %c0_i32, %c0_i32_0 : i32, i32
  }
  func.func @transform_4(%arg0: i32) -> (i32, i32) {
    %c0_i32 = arith.constant 0 : i32
    %c0_i32_0 = arith.constant 0 : i32
    %c0_i32_1 = arith.constant 0 : i32
    return %c0_i32, %c0_i32_0 : i32, i32
  }
  func.func @transform_5(%arg0: i32) -> (i32, i32) {
    %c0_i32 = arith.constant 0 : i32
    %c0_i32_0 = arith.constant 0 : i32
    %c0_i32_1 = arith.constant 0 : i32
    return %c0_i32, %c0_i32_0 : i32, i32
  }
  func.func @transform_6(%arg0: i32) -> (i32, i32) {
    %c0_i32 = arith.constant 0 : i32
    %c0_i32_0 = arith.constant 0 : i32
    %c0_i32_1 = arith.constant 0 : i32
    return %c0_i32, %c0_i32_0 : i32, i32
  }
  func.func @transform_7(%arg0: i32) -> (i32, i32, i32) {
    %c0_i32 = arith.constant 0 : i32
    %c0_i32_0 = arith.constant 0 : i32
    %c0_i32_1 = arith.constant 0 : i32
    return %arg0, %c0_i32, %c0_i32_0 : i32, i32, i32
  }
}

module attributes {stable_mosaic.version = 11 : i64} {
  func.func @_conv_fused_kernel(%arg0: i32, %arg1: memref<1x6x128xf32, #tpu.memory_space<vmem>>, %arg2: memref<1x128xf32, #tpu.memory_space<vmem>>, %arg3: memref<1x128xf32, #tpu.memory_space<vmem>>, %arg4: memref<128x256xbf16, #tpu.memory_space<vmem>>, %arg5: memref<1x256xf32, #tpu.memory_space<vmem>>, %arg6: memref<31x128xf32, #tpu.memory_space<vmem>>, %arg7: memref<1x128xf32, #tpu.memory_space<vmem>>, %arg8: memref<1x128xf32, #tpu.memory_space<vmem>>, %arg9: memref<1x128xf32, #tpu.memory_space<vmem>>, %arg10: memref<128x128xbf16, #tpu.memory_space<vmem>>, %arg11: memref<1x128xf32, #tpu.memory_space<vmem>>, %arg12: memref<1x6x128xf32, #tpu.memory_space<vmem>>, %arg13: memref<36x128xf32, #tpu.memory_space<vmem>>) attributes {dimension_semantics = [#tpu.dimension_semantics<parallel>], iteration_bounds = array<i64: 2>, scalar_prefetch = 0 : i64, scratch_operands = 1 : i64, tpu.core_type = #tpu.core_type<tc>, window_params = [{transform_indices = @transform_0, window_bounds = array<i64: 1, 6, 128>}, {pipeline_mode = #tpu.pipeline_mode<synchronous>, transform_indices = @transform_1, window_bounds = array<i64: 1, 128>}, {pipeline_mode = #tpu.pipeline_mode<synchronous>, transform_indices = @transform_2, window_bounds = array<i64: 1, 128>}, {pipeline_mode = #tpu.pipeline_mode<synchronous>, transform_indices = @transform_3, window_bounds = array<i64: 128, 256>}, {pipeline_mode = #tpu.pipeline_mode<synchronous>, transform_indices = @transform_4, window_bounds = array<i64: 1, 256>}, {pipeline_mode = #tpu.pipeline_mode<synchronous>, transform_indices = @transform_5, window_bounds = array<i64: 31, 128>}, {pipeline_mode = #tpu.pipeline_mode<synchronous>, transform_indices = @transform_6, window_bounds = array<i64: 1, 128>}, {pipeline_mode = #tpu.pipeline_mode<synchronous>, transform_indices = @transform_7, window_bounds = array<i64: 1, 128>}, {pipeline_mode = #tpu.pipeline_mode<synchronous>, transform_indices = @transform_8, window_bounds = array<i64: 1, 128>}, {pipeline_mode = #tpu.pipeline_mode<synchronous>, transform_indices = @transform_9, window_bounds = array<i64: 128, 128>}, {pipeline_mode = #tpu.pipeline_mode<synchronous>, transform_indices = @transform_10, window_bounds = array<i64: 1, 128>}, {transform_indices = @transform_11, window_bounds = array<i64: 1, 6, 128>}]} {
    %c0 = arith.constant 0 : index
    %c0_0 = arith.constant 0 : index
    %c0_1 = arith.constant 0 : index
    %0 = vector.load %arg1[%c0, %c0_0, %c0_1] : memref<1x6x128xf32, #tpu.memory_space<vmem>>, vector<1x6x128xf32>
    %1 = vector.shape_cast %0 : vector<1x6x128xf32> to vector<6x128xf32>
    %c0_2 = arith.constant 0 : index
    %c0_3 = arith.constant 0 : index
    %2 = vector.load %arg2[%c0_2, %c0_3] : memref<1x128xf32, #tpu.memory_space<vmem>>, vector<1x128xf32>
    %c0_4 = arith.constant 0 : index
    %c0_5 = arith.constant 0 : index
    %3 = vector.load %arg3[%c0_4, %c0_5] : memref<1x128xf32, #tpu.memory_space<vmem>>, vector<1x128xf32>
    %cst = arith.constant dense<0.000000e+00> : vector<6xf32>
    %4 = vector.multi_reduction <add>, %1, %cst [1] : vector<6x128xf32> to vector<6xf32>
    %5 = vector.shape_cast %4 : vector<6xf32> to vector<6x1xf32>
    %cst_6 = arith.constant 3.125000e-02 : f32
    %6 = vector.broadcast %cst_6 : f32 to vector<6x1xf32>
    %7 = arith.mulf %5, %6 : vector<6x1xf32>
    %8 = arith.mulf %1, %1 : vector<6x128xf32>
    %cst_7 = arith.constant dense<0.000000e+00> : vector<6xf32>
    %9 = vector.multi_reduction <add>, %8, %cst_7 [1] : vector<6x128xf32> to vector<6xf32>
    %10 = vector.shape_cast %9 : vector<6xf32> to vector<6x1xf32>
    %cst_8 = arith.constant 3.125000e-02 : f32
    %11 = vector.broadcast %cst_8 : f32 to vector<6x1xf32>
    %12 = arith.mulf %10, %11 : vector<6x1xf32>
    %13 = arith.mulf %7, %7 : vector<6x1xf32>
    %14 = arith.subf %12, %13 : vector<6x1xf32>
    %15 = vector.broadcast %7 : vector<6x1xf32> to vector<6x128xf32>
    %16 = arith.subf %1, %15 : vector<6x128xf32>
    %cst_9 = arith.constant 9.99999974E-6 : f32
    %17 = vector.broadcast %cst_9 : f32 to vector<6x1xf32>
    %18 = arith.addf %14, %17 : vector<6x1xf32>
    %19 = math.rsqrt %18 : vector<6x1xf32>
    %20 = vector.broadcast %19 : vector<6x1xf32> to vector<6x128xf32>
    %21 = arith.mulf %16, %20 : vector<6x128xf32>
    %22 = vector.broadcast %2 : vector<1x128xf32> to vector<6x128xf32>
    %23 = arith.mulf %21, %22 : vector<6x128xf32>
    %24 = vector.broadcast %3 : vector<1x128xf32> to vector<6x128xf32>
    %25 = arith.addf %23, %24 : vector<6x128xf32>
    %26 = arith.truncf %25 : vector<6x128xf32> to vector<6x128xbf16>
    %c0_10 = arith.constant 0 : index
    %c0_11 = arith.constant 0 : index
    %27 = vector.load %arg4[%c0_10, %c0_11] : memref<128x256xbf16, #tpu.memory_space<vmem>>, vector<128x256xbf16>
    %cst_12 = arith.constant dense<0.000000e+00> : vector<6x256xf32>
    %28 = tpu.matmul %26, %27, %cst_12 {dimension_numbers = #tpu.dot_dimension_numbers<[1], [0], [0], [1], [0, 0, 1, 1], [], []>} : vector<6x128xbf16>, vector<128x256xbf16>, vector<6x256xf32> -> vector<6x256xf32>
    %c0_13 = arith.constant 0 : index
    %c0_14 = arith.constant 0 : index
    %29 = vector.load %arg5[%c0_13, %c0_14] : memref<1x256xf32, #tpu.memory_space<vmem>>, vector<1x256xf32>
    %30 = vector.broadcast %29 : vector<1x256xf32> to vector<6x256xf32>
    %31 = arith.addf %28, %30 : vector<6x256xf32>
    %32 = vector.extract_strided_slice %31 {offsets = [0, 0], sizes = [6, 128], strides = [1, 1]} : vector<6x256xf32> to vector<6x128xf32>
    %33 = vector.extract_strided_slice %31 {offsets = [0, 128], sizes = [6, 128], strides = [1, 1]} : vector<6x256xf32> to vector<6x128xf32>
    %34 = arith.negf %33 : vector<6x128xf32>
    %35 = math.exp %34 : vector<6x128xf32>
    %cst_15 = arith.constant 1.000000e+00 : f32
    %36 = vector.broadcast %cst_15 : f32 to vector<6x128xf32>
    %37 = arith.addf %36, %35 : vector<6x128xf32>
    %38 = arith.divf %36, %37 : vector<6x128xf32>
    %39 = arith.mulf %32, %38 : vector<6x128xf32>
    %cst_16 = arith.constant 0.000000e+00 : f32
    %40 = vector.broadcast %cst_16 : f32 to vector<36x128xf32>
    %c0_17 = arith.constant 0 : index
    %c0_18 = arith.constant 0 : index
    %41 = vector.load %arg13[%c0_17, %c0_18] : memref<36x128xf32, #tpu.memory_space<vmem>>, vector<36x128xf32>
    tpu.vector_store %arg13[%c0_17, %c0_18], %40 {strides = array<i32>} : memref<36x128xf32, #tpu.memory_space<vmem>>, vector<36x128xf32>,
    %c15 = arith.constant 15 : index
    %c0_19 = arith.constant 0 : index
    %42 = vector.load %arg13[%c15, %c0_19] : memref<36x128xf32, #tpu.memory_space<vmem>>, vector<6x128xf32>
    tpu.vector_store %arg13[%c15, %c0_19], %39 {strides = array<i32>} : memref<36x128xf32, #tpu.memory_space<vmem>>, vector<6x128xf32>,
    %cst_20 = arith.constant 0.000000e+00 : f32
    %43 = vector.broadcast %cst_20 : f32 to vector<6x128xf32>
    %c0_21 = arith.constant 0 : index
    %c0_22 = arith.constant 0 : index
    %44 = vector.load %arg13[%c0_21, %c0_22] : memref<36x128xf32, #tpu.memory_space<vmem>>, vector<6x128xf32>
    %c0_23 = arith.constant 0 : index
    %c0_24 = arith.constant 0 : index
    %45 = vector.load %arg6[%c0_23, %c0_24] : memref<31x128xf32, #tpu.memory_space<vmem>>, vector<1x128xf32>
    %46 = vector.broadcast %45 : vector<1x128xf32> to vector<6x128xf32>
    %47 = arith.mulf %44, %46 : vector<6x128xf32>
    %48 = arith.addf %43, %47 : vector<6x128xf32>
    %c1 = arith.constant 1 : index
    %c0_25 = arith.constant 0 : index
    %49 = vector.load %arg13[%c1, %c0_25] : memref<36x128xf32, #tpu.memory_space<vmem>>, vector<6x128xf32>
    %c1_26 = arith.constant 1 : index
    %c0_27 = arith.constant 0 : index
    %50 = vector.load %arg6[%c1_26, %c0_27] : memref<31x128xf32, #tpu.memory_space<vmem>>, vector<1x128xf32>
    %51 = vector.broadcast %50 : vector<1x128xf32> to vector<6x128xf32>
    %52 = arith.mulf %49, %51 : vector<6x128xf32>
    %53 = arith.addf %48, %52 : vector<6x128xf32>
    %c2 = arith.constant 2 : index
    %c0_28 = arith.constant 0 : index
    %54 = vector.load %arg13[%c2, %c0_28] : memref<36x128xf32, #tpu.memory_space<vmem>>, vector<6x128xf32>
    %c2_29 = arith.constant 2 : index
    %c0_30 = arith.constant 0 : index
    %55 = vector.load %arg6[%c2_29, %c0_30] : memref<31x128xf32, #tpu.memory_space<vmem>>, vector<1x128xf32>
    %56 = vector.broadcast %55 : vector<1x128xf32> to vector<6x128xf32>
    %57 = arith.mulf %54, %56 : vector<6x128xf32>
    %58 = arith.addf %53, %57 : vector<6x128xf32>
    %c3 = arith.constant 3 : index
    %c0_31 = arith.constant 0 : index
    %59 = vector.load %arg13[%c3, %c0_31] : memref<36x128xf32, #tpu.memory_space<vmem>>, vector<6x128xf32>
    %c3_32 = arith.constant 3 : index
    %c0_33 = arith.constant 0 : index
    %60 = vector.load %arg6[%c3_32, %c0_33] : memref<31x128xf32, #tpu.memory_space<vmem>>, vector<1x128xf32>
    %61 = vector.broadcast %60 : vector<1x128xf32> to vector<6x128xf32>
    %62 = arith.mulf %59, %61 : vector<6x128xf32>
    %63 = arith.addf %58, %62 : vector<6x128xf32>
    %c4 = arith.constant 4 : index
    %c0_34 = arith.constant 0 : index
    %64 = vector.load %arg13[%c4, %c0_34] : memref<36x128xf32, #tpu.memory_space<vmem>>, vector<6x128xf32>
    %c4_35 = arith.constant 4 : index
    %c0_36 = arith.constant 0 : index
    %65 = vector.load %arg6[%c4_35, %c0_36] : memref<31x128xf32, #tpu.memory_space<vmem>>, vector<1x128xf32>
    %66 = vector.broadcast %65 : vector<1x128xf32> to vector<6x128xf32>
    %67 = arith.mulf %64, %66 : vector<6x128xf32>
    %68 = arith.addf %63, %67 : vector<6x128xf32>
    %c5 = arith.constant 5 : index
    %c0_37 = arith.constant 0 : index
    %69 = vector.load %arg13[%c5, %c0_37] : memref<36x128xf32, #tpu.memory_space<vmem>>, vector<6x128xf32>
    %c5_38 = arith.constant 5 : index
    %c0_39 = arith.constant 0 : index
    %70 = vector.load %arg6[%c5_38, %c0_39] : memref<31x128xf32, #tpu.memory_space<vmem>>, vector<1x128xf32>
    %71 = vector.broadcast %70 : vector<1x128xf32> to vector<6x128xf32>
    %72 = arith.mulf %69, %71 : vector<6x128xf32>
    %73 = arith.addf %68, %72 : vector<6x128xf32>
    %c6 = arith.constant 6 : index
    %c0_40 = arith.constant 0 : index
    %74 = vector.load %arg13[%c6, %c0_40] : memref<36x128xf32, #tpu.memory_space<vmem>>, vector<6x128xf32>
    %c6_41 = arith.constant 6 : index
    %c0_42 = arith.constant 0 : index
    %75 = vector.load %arg6[%c6_41, %c0_42] : memref<31x128xf32, #tpu.memory_space<vmem>>, vector<1x128xf32>
    %76 = vector.broadcast %75 : vector<1x128xf32> to vector<6x128xf32>
    %77 = arith.mulf %74, %76 : vector<6x128xf32>
    %78 = arith.addf %73, %77 : vector<6x128xf32>
    %c7 = arith.constant 7 : index
    %c0_43 = arith.constant 0 : index
    %79 = vector.load %arg13[%c7, %c0_43] : memref<36x128xf32, #tpu.memory_space<vmem>>, vector<6x128xf32>
    %c7_44 = arith.constant 7 : index
    %c0_45 = arith.constant 0 : index
    %80 = vector.load %arg6[%c7_44, %c0_45] : memref<31x128xf32, #tpu.memory_space<vmem>>, vector<1x128xf32>
    %81 = vector.broadcast %80 : vector<1x128xf32> to vector<6x128xf32>
    %82 = arith.mulf %79, %81 : vector<6x128xf32>
    %83 = arith.addf %78, %82 : vector<6x128xf32>
    %c8 = arith.constant 8 : index
    %c0_46 = arith.constant 0 : index
    %84 = vector.load %arg13[%c8, %c0_46] : memref<36x128xf32, #tpu.memory_space<vmem>>, vector<6x128xf32>
    %c8_47 = arith.constant 8 : index
    %c0_48 = arith.constant 0 : index
    %85 = vector.load %arg6[%c8_47, %c0_48] : memref<31x128xf32, #tpu.memory_space<vmem>>, vector<1x128xf32>
    %86 = vector.broadcast %85 : vector<1x128xf32> to vector<6x128xf32>
    %87 = arith.mulf %84, %86 : vector<6x128xf32>
    %88 = arith.addf %83, %87 : vector<6x128xf32>
    %c9 = arith.constant 9 : index
    %c0_49 = arith.constant 0 : index
    %89 = vector.load %arg13[%c9, %c0_49] : memref<36x128xf32, #tpu.memory_space<vmem>>, vector<6x128xf32>
    %c9_50 = arith.constant 9 : index
    %c0_51 = arith.constant 0 : index
    %90 = vector.load %arg6[%c9_50, %c0_51] : memref<31x128xf32, #tpu.memory_space<vmem>>, vector<1x128xf32>
    %91 = vector.broadcast %90 : vector<1x128xf32> to vector<6x128xf32>
    %92 = arith.mulf %89, %91 : vector<6x128xf32>
    %93 = arith.addf %88, %92 : vector<6x128xf32>
    %c10 = arith.constant 10 : index
    %c0_52 = arith.constant 0 : index
    %94 = vector.load %arg13[%c10, %c0_52] : memref<36x128xf32, #tpu.memory_space<vmem>>, vector<6x128xf32>
    %c10_53 = arith.constant 10 : index
    %c0_54 = arith.constant 0 : index
    %95 = vector.load %arg6[%c10_53, %c0_54] : memref<31x128xf32, #tpu.memory_space<vmem>>, vector<1x128xf32>
    %96 = vector.broadcast %95 : vector<1x128xf32> to vector<6x128xf32>
    %97 = arith.mulf %94, %96 : vector<6x128xf32>
    %98 = arith.addf %93, %97 : vector<6x128xf32>
    %c11 = arith.constant 11 : index
    %c0_55 = arith.constant 0 : index
    %99 = vector.load %arg13[%c11, %c0_55] : memref<36x128xf32, #tpu.memory_space<vmem>>, vector<6x128xf32>
    %c11_56 = arith.constant 11 : index
    %c0_57 = arith.constant 0 : index
    %100 = vector.load %arg6[%c11_56, %c0_57] : memref<31x128xf32, #tpu.memory_space<vmem>>, vector<1x128xf32>
    %101 = vector.broadcast %100 : vector<1x128xf32> to vector<6x128xf32>
    %102 = arith.mulf %99, %101 : vector<6x128xf32>
    %103 = arith.addf %98, %102 : vector<6x128xf32>
    %c12 = arith.constant 12 : index
    %c0_58 = arith.constant 0 : index
    %104 = vector.load %arg13[%c12, %c0_58] : memref<36x128xf32, #tpu.memory_space<vmem>>, vector<6x128xf32>
    %c12_59 = arith.constant 12 : index
    %c0_60 = arith.constant 0 : index
    %105 = vector.load %arg6[%c12_59, %c0_60] : memref<31x128xf32, #tpu.memory_space<vmem>>, vector<1x128xf32>
    %106 = vector.broadcast %105 : vector<1x128xf32> to vector<6x128xf32>
    %107 = arith.mulf %104, %106 : vector<6x128xf32>
    %108 = arith.addf %103, %107 : vector<6x128xf32>
    %c13 = arith.constant 13 : index
    %c0_61 = arith.constant 0 : index
    %109 = vector.load %arg13[%c13, %c0_61] : memref<36x128xf32, #tpu.memory_space<vmem>>, vector<6x128xf32>
    %c13_62 = arith.constant 13 : index
    %c0_63 = arith.constant 0 : index
    %110 = vector.load %arg6[%c13_62, %c0_63] : memref<31x128xf32, #tpu.memory_space<vmem>>, vector<1x128xf32>
    %111 = vector.broadcast %110 : vector<1x128xf32> to vector<6x128xf32>
    %112 = arith.mulf %109, %111 : vector<6x128xf32>
    %113 = arith.addf %108, %112 : vector<6x128xf32>
    %c14 = arith.constant 14 : index
    %c0_64 = arith.constant 0 : index
    %114 = vector.load %arg13[%c14, %c0_64] : memref<36x128xf32, #tpu.memory_space<vmem>>, vector<6x128xf32>
    %c14_65 = arith.constant 14 : index
    %c0_66 = arith.constant 0 : index
    %115 = vector.load %arg6[%c14_65, %c0_66] : memref<31x128xf32, #tpu.memory_space<vmem>>, vector<1x128xf32>
    %116 = vector.broadcast %115 : vector<1x128xf32> to vector<6x128xf32>
    %117 = arith.mulf %114, %116 : vector<6x128xf32>
    %118 = arith.addf %113, %117 : vector<6x128xf32>
    %c15_67 = arith.constant 15 : index
    %c0_68 = arith.constant 0 : index
    %119 = vector.load %arg13[%c15_67, %c0_68] : memref<36x128xf32, #tpu.memory_space<vmem>>, vector<6x128xf32>
    %c15_69 = arith.constant 15 : index
    %c0_70 = arith.constant 0 : index
    %120 = vector.load %arg6[%c15_69, %c0_70] : memref<31x128xf32, #tpu.memory_space<vmem>>, vector<1x128xf32>
    %121 = vector.broadcast %120 : vector<1x128xf32> to vector<6x128xf32>
    %122 = arith.mulf %119, %121 : vector<6x128xf32>
    %123 = arith.addf %118, %122 : vector<6x128xf32>
    %c16 = arith.constant 16 : index
    %c0_71 = arith.constant 0 : index
    %124 = vector.load %arg13[%c16, %c0_71] : memref<36x128xf32, #tpu.memory_space<vmem>>, vector<6x128xf32>
    %c16_72 = arith.constant 16 : index
    %c0_73 = arith.constant 0 : index
    %125 = vector.load %arg6[%c16_72, %c0_73] : memref<31x128xf32, #tpu.memory_space<vmem>>, vector<1x128xf32>
    %126 = vector.broadcast %125 : vector<1x128xf32> to vector<6x128xf32>
    %127 = arith.mulf %124, %126 : vector<6x128xf32>
    %128 = arith.addf %123, %127 : vector<6x128xf32>
    %c17 = arith.constant 17 : index
    %c0_74 = arith.constant 0 : index
    %129 = vector.load %arg13[%c17, %c0_74] : memref<36x128xf32, #tpu.memory_space<vmem>>, vector<6x128xf32>
    %c17_75 = arith.constant 17 : index
    %c0_76 = arith.constant 0 : index
    %130 = vector.load %arg6[%c17_75, %c0_76] : memref<31x128xf32, #tpu.memory_space<vmem>>, vector<1x128xf32>
    %131 = vector.broadcast %130 : vector<1x128xf32> to vector<6x128xf32>
    %132 = arith.mulf %129, %131 : vector<6x128xf32>
    %133 = arith.addf %128, %132 : vector<6x128xf32>
    %c18 = arith.constant 18 : index
    %c0_77 = arith.constant 0 : index
    %134 = vector.load %arg13[%c18, %c0_77] : memref<36x128xf32, #tpu.memory_space<vmem>>, vector<6x128xf32>
    %c18_78 = arith.constant 18 : index
    %c0_79 = arith.constant 0 : index
    %135 = vector.load %arg6[%c18_78, %c0_79] : memref<31x128xf32, #tpu.memory_space<vmem>>, vector<1x128xf32>
    %136 = vector.broadcast %135 : vector<1x128xf32> to vector<6x128xf32>
    %137 = arith.mulf %134, %136 : vector<6x128xf32>
    %138 = arith.addf %133, %137 : vector<6x128xf32>
    %c19 = arith.constant 19 : index
    %c0_80 = arith.constant 0 : index
    %139 = vector.load %arg13[%c19, %c0_80] : memref<36x128xf32, #tpu.memory_space<vmem>>, vector<6x128xf32>
    %c19_81 = arith.constant 19 : index
    %c0_82 = arith.constant 0 : index
    %140 = vector.load %arg6[%c19_81, %c0_82] : memref<31x128xf32, #tpu.memory_space<vmem>>, vector<1x128xf32>
    %141 = vector.broadcast %140 : vector<1x128xf32> to vector<6x128xf32>
    %142 = arith.mulf %139, %141 : vector<6x128xf32>
    %143 = arith.addf %138, %142 : vector<6x128xf32>
    %c20 = arith.constant 20 : index
    %c0_83 = arith.constant 0 : index
    %144 = vector.load %arg13[%c20, %c0_83] : memref<36x128xf32, #tpu.memory_space<vmem>>, vector<6x128xf32>
    %c20_84 = arith.constant 20 : index
    %c0_85 = arith.constant 0 : index
    %145 = vector.load %arg6[%c20_84, %c0_85] : memref<31x128xf32, #tpu.memory_space<vmem>>, vector<1x128xf32>
    %146 = vector.broadcast %145 : vector<1x128xf32> to vector<6x128xf32>
    %147 = arith.mulf %144, %146 : vector<6x128xf32>
    %148 = arith.addf %143, %147 : vector<6x128xf32>
    %c21 = arith.constant 21 : index
    %c0_86 = arith.constant 0 : index
    %149 = vector.load %arg13[%c21, %c0_86] : memref<36x128xf32, #tpu.memory_space<vmem>>, vector<6x128xf32>
    %c21_87 = arith.constant 21 : index
    %c0_88 = arith.constant 0 : index
    %150 = vector.load %arg6[%c21_87, %c0_88] : memref<31x128xf32, #tpu.memory_space<vmem>>, vector<1x128xf32>
    %151 = vector.broadcast %150 : vector<1x128xf32> to vector<6x128xf32>
    %152 = arith.mulf %149, %151 : vector<6x128xf32>
    %153 = arith.addf %148, %152 : vector<6x128xf32>
    %c22 = arith.constant 22 : index
    %c0_89 = arith.constant 0 : index
    %154 = vector.load %arg13[%c22, %c0_89] : memref<36x128xf32, #tpu.memory_space<vmem>>, vector<6x128xf32>
    %c22_90 = arith.constant 22 : index
    %c0_91 = arith.constant 0 : index
    %155 = vector.load %arg6[%c22_90, %c0_91] : memref<31x128xf32, #tpu.memory_space<vmem>>, vector<1x128xf32>
    %156 = vector.broadcast %155 : vector<1x128xf32> to vector<6x128xf32>
    %157 = arith.mulf %154, %156 : vector<6x128xf32>
    %158 = arith.addf %153, %157 : vector<6x128xf32>
    %c23 = arith.constant 23 : index
    %c0_92 = arith.constant 0 : index
    %159 = vector.load %arg13[%c23, %c0_92] : memref<36x128xf32, #tpu.memory_space<vmem>>, vector<6x128xf32>
    %c23_93 = arith.constant 23 : index
    %c0_94 = arith.constant 0 : index
    %160 = vector.load %arg6[%c23_93, %c0_94] : memref<31x128xf32, #tpu.memory_space<vmem>>, vector<1x128xf32>
    %161 = vector.broadcast %160 : vector<1x128xf32> to vector<6x128xf32>
    %162 = arith.mulf %159, %161 : vector<6x128xf32>
    %163 = arith.addf %158, %162 : vector<6x128xf32>
    %c24 = arith.constant 24 : index
    %c0_95 = arith.constant 0 : index
    %164 = vector.load %arg13[%c24, %c0_95] : memref<36x128xf32, #tpu.memory_space<vmem>>, vector<6x128xf32>
    %c24_96 = arith.constant 24 : index
    %c0_97 = arith.constant 0 : index
    %165 = vector.load %arg6[%c24_96, %c0_97] : memref<31x128xf32, #tpu.memory_space<vmem>>, vector<1x128xf32>
    %166 = vector.broadcast %165 : vector<1x128xf32> to vector<6x128xf32>
    %167 = arith.mulf %164, %166 : vector<6x128xf32>
    %168 = arith.addf %163, %167 : vector<6x128xf32>
    %c25 = arith.constant 25 : index
    %c0_98 = arith.constant 0 : index
    %169 = vector.load %arg13[%c25, %c0_98] : memref<36x128xf32, #tpu.memory_space<vmem>>, vector<6x128xf32>
    %c25_99 = arith.constant 25 : index
    %c0_100 = arith.constant 0 : index
    %170 = vector.load %arg6[%c25_99, %c0_100] : memref<31x128xf32, #tpu.memory_space<vmem>>, vector<1x128xf32>
    %171 = vector.broadcast %170 : vector<1x128xf32> to vector<6x128xf32>
    %172 = arith.mulf %169, %171 : vector<6x128xf32>
    %173 = arith.addf %168, %172 : vector<6x128xf32>
    %c26 = arith.constant 26 : index
    %c0_101 = arith.constant 0 : index
    %174 = vector.load %arg13[%c26, %c0_101] : memref<36x128xf32, #tpu.memory_space<vmem>>, vector<6x128xf32>
    %c26_102 = arith.constant 26 : index
    %c0_103 = arith.constant 0 : index
    %175 = vector.load %arg6[%c26_102, %c0_103] : memref<31x128xf32, #tpu.memory_space<vmem>>, vector<1x128xf32>
    %176 = vector.broadcast %175 : vector<1x128xf32> to vector<6x128xf32>
    %177 = arith.mulf %174, %176 : vector<6x128xf32>
    %178 = arith.addf %173, %177 : vector<6x128xf32>
    %c27 = arith.constant 27 : index
    %c0_104 = arith.constant 0 : index
    %179 = vector.load %arg13[%c27, %c0_104] : memref<36x128xf32, #tpu.memory_space<vmem>>, vector<6x128xf32>
    %c27_105 = arith.constant 27 : index
    %c0_106 = arith.constant 0 : index
    %180 = vector.load %arg6[%c27_105, %c0_106] : memref<31x128xf32, #tpu.memory_space<vmem>>, vector<1x128xf32>
    %181 = vector.broadcast %180 : vector<1x128xf32> to vector<6x128xf32>
    %182 = arith.mulf %179, %181 : vector<6x128xf32>
    %183 = arith.addf %178, %182 : vector<6x128xf32>
    %c28 = arith.constant 28 : index
    %c0_107 = arith.constant 0 : index
    %184 = vector.load %arg13[%c28, %c0_107] : memref<36x128xf32, #tpu.memory_space<vmem>>, vector<6x128xf32>
    %c28_108 = arith.constant 28 : index
    %c0_109 = arith.constant 0 : index
    %185 = vector.load %arg6[%c28_108, %c0_109] : memref<31x128xf32, #tpu.memory_space<vmem>>, vector<1x128xf32>
    %186 = vector.broadcast %185 : vector<1x128xf32> to vector<6x128xf32>
    %187 = arith.mulf %184, %186 : vector<6x128xf32>
    %188 = arith.addf %183, %187 : vector<6x128xf32>
    %c29 = arith.constant 29 : index
    %c0_110 = arith.constant 0 : index
    %189 = vector.load %arg13[%c29, %c0_110] : memref<36x128xf32, #tpu.memory_space<vmem>>, vector<6x128xf32>
    %c29_111 = arith.constant 29 : index
    %c0_112 = arith.constant 0 : index
    %190 = vector.load %arg6[%c29_111, %c0_112] : memref<31x128xf32, #tpu.memory_space<vmem>>, vector<1x128xf32>
    %191 = vector.broadcast %190 : vector<1x128xf32> to vector<6x128xf32>
    %192 = arith.mulf %189, %191 : vector<6x128xf32>
    %193 = arith.addf %188, %192 : vector<6x128xf32>
    %c30 = arith.constant 30 : index
    %c0_113 = arith.constant 0 : index
    %194 = vector.load %arg13[%c30, %c0_113] : memref<36x128xf32, #tpu.memory_space<vmem>>, vector<6x128xf32>
    %c30_114 = arith.constant 30 : index
    %c0_115 = arith.constant 0 : index
    %195 = vector.load %arg6[%c30_114, %c0_115] : memref<31x128xf32, #tpu.memory_space<vmem>>, vector<1x128xf32>
    %196 = vector.broadcast %195 : vector<1x128xf32> to vector<6x128xf32>
    %197 = arith.mulf %194, %196 : vector<6x128xf32>
    %198 = arith.addf %193, %197 : vector<6x128xf32>
    %c0_116 = arith.constant 0 : index
    %c0_117 = arith.constant 0 : index
    %199 = vector.load %arg7[%c0_116, %c0_117] : memref<1x128xf32, #tpu.memory_space<vmem>>, vector<1x128xf32>
    %200 = vector.broadcast %199 : vector<1x128xf32> to vector<6x128xf32>
    %201 = arith.addf %198, %200 : vector<6x128xf32>
    %c0_118 = arith.constant 0 : index
    %c0_119 = arith.constant 0 : index
    %202 = vector.load %arg8[%c0_118, %c0_119] : memref<1x128xf32, #tpu.memory_space<vmem>>, vector<1x128xf32>
    %203 = vector.broadcast %202 : vector<1x128xf32> to vector<6x128xf32>
    %204 = arith.mulf %201, %203 : vector<6x128xf32>
    %c0_120 = arith.constant 0 : index
    %c0_121 = arith.constant 0 : index
    %205 = vector.load %arg9[%c0_120, %c0_121] : memref<1x128xf32, #tpu.memory_space<vmem>>, vector<1x128xf32>
    %206 = vector.broadcast %205 : vector<1x128xf32> to vector<6x128xf32>
    %207 = arith.addf %204, %206 : vector<6x128xf32>
    %208 = arith.negf %207 : vector<6x128xf32>
    %209 = math.exp %208 : vector<6x128xf32>
    %cst_122 = arith.constant 1.000000e+00 : f32
    %210 = vector.broadcast %cst_122 : f32 to vector<6x128xf32>
    %211 = arith.addf %210, %209 : vector<6x128xf32>
    %212 = arith.divf %210, %211 : vector<6x128xf32>
    %213 = arith.mulf %207, %212 : vector<6x128xf32>
    %214 = arith.truncf %213 : vector<6x128xf32> to vector<6x128xbf16>
    %c0_123 = arith.constant 0 : index
    %c0_124 = arith.constant 0 : index
    %215 = vector.load %arg10[%c0_123, %c0_124] : memref<128x128xbf16, #tpu.memory_space<vmem>>, vector<128x128xbf16>
    %cst_125 = arith.constant dense<0.000000e+00> : vector<6x128xf32>
    %216 = tpu.matmul %214, %215, %cst_125 {dimension_numbers = #tpu.dot_dimension_numbers<[1], [0], [0], [1], [0, 0, 1, 1], [], []>} : vector<6x128xbf16>, vector<128x128xbf16>, vector<6x128xf32> -> vector<6x128xf32>
    %c0_126 = arith.constant 0 : index
    %c0_127 = arith.constant 0 : index
    %217 = vector.load %arg11[%c0_126, %c0_127] : memref<1x128xf32, #tpu.memory_space<vmem>>, vector<1x128xf32>
    %218 = vector.broadcast %217 : vector<1x128xf32> to vector<6x128xf32>
    %219 = arith.addf %216, %218 : vector<6x128xf32>
    %220 = arith.addf %1, %219 : vector<6x128xf32>
    %c0_128 = arith.constant 0 : index
    %c0_129 = arith.constant 0 : index
    %c0_130 = arith.constant 0 : index
    %221 = vector.load %arg12[%c0_128, %c0_129, %c0_130] : memref<1x6x128xf32, #tpu.memory_space<vmem>>, vector<1x6x128xf32>
    %222 = vector.shape_cast %221 : vector<1x6x128xf32> to vector<6x128xf32>
    %223 = vector.shape_cast %220 : vector<6x128xf32> to vector<1x6x128xf32>
    tpu.vector_store %arg12[%c0_128, %c0_129, %c0_130], %223 {strides = array<i32>} : memref<1x6x128xf32, #tpu.memory_space<vmem>>, vector<1x6x128xf32>,
    return
  }
  func.func @transform_0(%arg0: i32) -> (i32, i32, i32) {
    %c0_i32 = arith.constant 0 : i32
    %c0_i32_0 = arith.constant 0 : i32
    %c0_i32_1 = arith.constant 0 : i32
    return %arg0, %c0_i32, %c0_i32_0 : i32, i32, i32
  }
  func.func @transform_1(%arg0: i32) -> (i32, i32) {
    %c0_i32 = arith.constant 0 : i32
    %c0_i32_0 = arith.constant 0 : i32
    %c0_i32_1 = arith.constant 0 : i32
    return %c0_i32, %c0_i32_0 : i32, i32
  }
  func.func @transform_2(%arg0: i32) -> (i32, i32) {
    %c0_i32 = arith.constant 0 : i32
    %c0_i32_0 = arith.constant 0 : i32
    %c0_i32_1 = arith.constant 0 : i32
    return %c0_i32, %c0_i32_0 : i32, i32
  }
  func.func @transform_3(%arg0: i32) -> (i32, i32) {
    %c0_i32 = arith.constant 0 : i32
    %c0_i32_0 = arith.constant 0 : i32
    %c0_i32_1 = arith.constant 0 : i32
    return %c0_i32, %c0_i32_0 : i32, i32
  }
  func.func @transform_4(%arg0: i32) -> (i32, i32) {
    %c0_i32 = arith.constant 0 : i32
    %c0_i32_0 = arith.constant 0 : i32
    %c0_i32_1 = arith.constant 0 : i32
    return %c0_i32, %c0_i32_0 : i32, i32
  }
  func.func @transform_5(%arg0: i32) -> (i32, i32) {
    %c0_i32 = arith.constant 0 : i32
    %c0_i32_0 = arith.constant 0 : i32
    %c0_i32_1 = arith.constant 0 : i32
    return %c0_i32, %c0_i32_0 : i32, i32
  }
  func.func @transform_6(%arg0: i32) -> (i32, i32) {
    %c0_i32 = arith.constant 0 : i32
    %c0_i32_0 = arith.constant 0 : i32
    %c0_i32_1 = arith.constant 0 : i32
    return %c0_i32, %c0_i32_0 : i32, i32
  }
  func.func @transform_7(%arg0: i32) -> (i32, i32) {
    %c0_i32 = arith.constant 0 : i32
    %c0_i32_0 = arith.constant 0 : i32
    %c0_i32_1 = arith.constant 0 : i32
    return %c0_i32, %c0_i32_0 : i32, i32
  }
  func.func @transform_8(%arg0: i32) -> (i32, i32) {
    %c0_i32 = arith.constant 0 : i32
    %c0_i32_0 = arith.constant 0 : i32
    %c0_i32_1 = arith.constant 0 : i32
    return %c0_i32, %c0_i32_0 : i32, i32
  }
  func.func @transform_9(%arg0: i32) -> (i32, i32) {
    %c0_i32 = arith.constant 0 : i32
    %c0_i32_0 = arith.constant 0 : i32
    %c0_i32_1 = arith.constant 0 : i32
    return %c0_i32, %c0_i32_0 : i32, i32
  }
  func.func @transform_10(%arg0: i32) -> (i32, i32) {
    %c0_i32 = arith.constant 0 : i32
    %c0_i32_0 = arith.constant 0 : i32
    %c0_i32_1 = arith.constant 0 : i32
    return %c0_i32, %c0_i32_0 : i32, i32
  }
  func.func @transform_11(%arg0: i32) -> (i32, i32, i32) {
    %c0_i32 = arith.constant 0 : i32
    %c0_i32_0 = arith.constant 0 : i32
    %c0_i32_1 = arith.constant 0 : i32
    return %arg0, %c0_i32, %c0_i32_0 : i32, i32, i32
  }
}

module attributes {stable_mosaic.version = 11 : i64} {
  func.func @_ffn_fused_kernel(%arg0: i32, %arg1: memref<12x128xf32, #tpu.memory_space<vmem>>, %arg2: memref<1x128xf32, #tpu.memory_space<vmem>>, %arg3: memref<1x128xf32, #tpu.memory_space<vmem>>, %arg4: memref<128x128xbf16, #tpu.memory_space<vmem>>, %arg5: memref<1x128xf32, #tpu.memory_space<vmem>>, %arg6: memref<128x128xbf16, #tpu.memory_space<vmem>>, %arg7: memref<1x128xf32, #tpu.memory_space<vmem>>, %arg8: memref<1x128xf32, #tpu.memory_space<vmem>>, %arg9: memref<1x128xf32, #tpu.memory_space<vmem>>, %arg10: memref<12x128xf32, #tpu.memory_space<vmem>>) attributes {dimension_semantics = [#tpu.dimension_semantics<parallel>], iteration_bounds = array<i64: 1>, scalar_prefetch = 0 : i64, scratch_operands = 0 : i64, tpu.core_type = #tpu.core_type<tc>, window_params = [{transform_indices = @transform_0, window_bounds = array<i64: 12, 128>}, {pipeline_mode = #tpu.pipeline_mode<synchronous>, transform_indices = @transform_1, window_bounds = array<i64: 1, 128>}, {pipeline_mode = #tpu.pipeline_mode<synchronous>, transform_indices = @transform_2, window_bounds = array<i64: 1, 128>}, {pipeline_mode = #tpu.pipeline_mode<synchronous>, transform_indices = @transform_3, window_bounds = array<i64: 128, 128>}, {pipeline_mode = #tpu.pipeline_mode<synchronous>, transform_indices = @transform_4, window_bounds = array<i64: 1, 128>}, {pipeline_mode = #tpu.pipeline_mode<synchronous>, transform_indices = @transform_5, window_bounds = array<i64: 128, 128>}, {pipeline_mode = #tpu.pipeline_mode<synchronous>, transform_indices = @transform_6, window_bounds = array<i64: 1, 128>}, {pipeline_mode = #tpu.pipeline_mode<synchronous>, transform_indices = @transform_7, window_bounds = array<i64: 1, 128>}, {pipeline_mode = #tpu.pipeline_mode<synchronous>, transform_indices = @transform_8, window_bounds = array<i64: 1, 128>}, {transform_indices = @transform_9, window_bounds = array<i64: 12, 128>}]} {
    %c0 = arith.constant 0 : index
    %c0_0 = arith.constant 0 : index
    %0 = vector.load %arg1[%c0, %c0_0] : memref<12x128xf32, #tpu.memory_space<vmem>>, vector<12x128xf32>
    %c0_1 = arith.constant 0 : index
    %c0_2 = arith.constant 0 : index
    %1 = vector.load %arg2[%c0_1, %c0_2] : memref<1x128xf32, #tpu.memory_space<vmem>>, vector<1x128xf32>
    %c0_3 = arith.constant 0 : index
    %c0_4 = arith.constant 0 : index
    %2 = vector.load %arg3[%c0_3, %c0_4] : memref<1x128xf32, #tpu.memory_space<vmem>>, vector<1x128xf32>
    %cst = arith.constant dense<0.000000e+00> : vector<12xf32>
    %3 = vector.multi_reduction <add>, %0, %cst [1] : vector<12x128xf32> to vector<12xf32>
    %4 = vector.shape_cast %3 : vector<12xf32> to vector<12x1xf32>
    %cst_5 = arith.constant 3.125000e-02 : f32
    %5 = vector.broadcast %cst_5 : f32 to vector<12x1xf32>
    %6 = arith.mulf %4, %5 : vector<12x1xf32>
    %7 = arith.mulf %0, %0 : vector<12x128xf32>
    %cst_6 = arith.constant dense<0.000000e+00> : vector<12xf32>
    %8 = vector.multi_reduction <add>, %7, %cst_6 [1] : vector<12x128xf32> to vector<12xf32>
    %9 = vector.shape_cast %8 : vector<12xf32> to vector<12x1xf32>
    %cst_7 = arith.constant 3.125000e-02 : f32
    %10 = vector.broadcast %cst_7 : f32 to vector<12x1xf32>
    %11 = arith.mulf %9, %10 : vector<12x1xf32>
    %12 = arith.mulf %6, %6 : vector<12x1xf32>
    %13 = arith.subf %11, %12 : vector<12x1xf32>
    %14 = vector.broadcast %6 : vector<12x1xf32> to vector<12x128xf32>
    %15 = arith.subf %0, %14 : vector<12x128xf32>
    %cst_8 = arith.constant 9.99999974E-6 : f32
    %16 = vector.broadcast %cst_8 : f32 to vector<12x1xf32>
    %17 = arith.addf %13, %16 : vector<12x1xf32>
    %18 = math.rsqrt %17 : vector<12x1xf32>
    %19 = vector.broadcast %18 : vector<12x1xf32> to vector<12x128xf32>
    %20 = arith.mulf %15, %19 : vector<12x128xf32>
    %21 = vector.broadcast %1 : vector<1x128xf32> to vector<12x128xf32>
    %22 = arith.mulf %20, %21 : vector<12x128xf32>
    %23 = vector.broadcast %2 : vector<1x128xf32> to vector<12x128xf32>
    %24 = arith.addf %22, %23 : vector<12x128xf32>
    %25 = arith.truncf %24 : vector<12x128xf32> to vector<12x128xbf16>
    %c0_9 = arith.constant 0 : index
    %c0_10 = arith.constant 0 : index
    %26 = vector.load %arg4[%c0_9, %c0_10] : memref<128x128xbf16, #tpu.memory_space<vmem>>, vector<128x128xbf16>
    %cst_11 = arith.constant dense<0.000000e+00> : vector<12x128xf32>
    %27 = tpu.matmul %25, %26, %cst_11 {dimension_numbers = #tpu.dot_dimension_numbers<[1], [0], [0], [1], [0, 0, 1, 1], [], []>} : vector<12x128xbf16>, vector<128x128xbf16>, vector<12x128xf32> -> vector<12x128xf32>
    %c0_12 = arith.constant 0 : index
    %c0_13 = arith.constant 0 : index
    %28 = vector.load %arg5[%c0_12, %c0_13] : memref<1x128xf32, #tpu.memory_space<vmem>>, vector<1x128xf32>
    %29 = vector.broadcast %28 : vector<1x128xf32> to vector<12x128xf32>
    %30 = arith.addf %27, %29 : vector<12x128xf32>
    %31 = arith.negf %30 : vector<12x128xf32>
    %32 = math.exp %31 : vector<12x128xf32>
    %cst_14 = arith.constant 1.000000e+00 : f32
    %33 = vector.broadcast %cst_14 : f32 to vector<12x128xf32>
    %34 = arith.addf %33, %32 : vector<12x128xf32>
    %35 = arith.divf %33, %34 : vector<12x128xf32>
    %36 = arith.mulf %30, %35 : vector<12x128xf32>
    %37 = arith.truncf %36 : vector<12x128xf32> to vector<12x128xbf16>
    %c0_15 = arith.constant 0 : index
    %c0_16 = arith.constant 0 : index
    %38 = vector.load %arg6[%c0_15, %c0_16] : memref<128x128xbf16, #tpu.memory_space<vmem>>, vector<128x128xbf16>
    %cst_17 = arith.constant dense<0.000000e+00> : vector<12x128xf32>
    %39 = tpu.matmul %37, %38, %cst_17 {dimension_numbers = #tpu.dot_dimension_numbers<[1], [0], [0], [1], [0, 0, 1, 1], [], []>} : vector<12x128xbf16>, vector<128x128xbf16>, vector<12x128xf32> -> vector<12x128xf32>
    %c0_18 = arith.constant 0 : index
    %c0_19 = arith.constant 0 : index
    %40 = vector.load %arg7[%c0_18, %c0_19] : memref<1x128xf32, #tpu.memory_space<vmem>>, vector<1x128xf32>
    %41 = vector.broadcast %40 : vector<1x128xf32> to vector<12x128xf32>
    %42 = arith.addf %39, %41 : vector<12x128xf32>
    %cst_20 = arith.constant 5.000000e-01 : f32
    %43 = vector.broadcast %cst_20 : f32 to vector<12x128xf32>
    %44 = arith.mulf %43, %42 : vector<12x128xf32>
    %45 = arith.addf %0, %44 : vector<12x128xf32>
    %c0_21 = arith.constant 0 : index
    %c0_22 = arith.constant 0 : index
    %46 = vector.load %arg8[%c0_21, %c0_22] : memref<1x128xf32, #tpu.memory_space<vmem>>, vector<1x128xf32>
    %c0_23 = arith.constant 0 : index
    %c0_24 = arith.constant 0 : index
    %47 = vector.load %arg9[%c0_23, %c0_24] : memref<1x128xf32, #tpu.memory_space<vmem>>, vector<1x128xf32>
    %cst_25 = arith.constant dense<0.000000e+00> : vector<12xf32>
    %48 = vector.multi_reduction <add>, %45, %cst_25 [1] : vector<12x128xf32> to vector<12xf32>
    %49 = vector.shape_cast %48 : vector<12xf32> to vector<12x1xf32>
    %cst_26 = arith.constant 3.125000e-02 : f32
    %50 = vector.broadcast %cst_26 : f32 to vector<12x1xf32>
    %51 = arith.mulf %49, %50 : vector<12x1xf32>
    %52 = arith.mulf %45, %45 : vector<12x128xf32>
    %cst_27 = arith.constant dense<0.000000e+00> : vector<12xf32>
    %53 = vector.multi_reduction <add>, %52, %cst_27 [1] : vector<12x128xf32> to vector<12xf32>
    %54 = vector.shape_cast %53 : vector<12xf32> to vector<12x1xf32>
    %cst_28 = arith.constant 3.125000e-02 : f32
    %55 = vector.broadcast %cst_28 : f32 to vector<12x1xf32>
    %56 = arith.mulf %54, %55 : vector<12x1xf32>
    %57 = arith.mulf %51, %51 : vector<12x1xf32>
    %58 = arith.subf %56, %57 : vector<12x1xf32>
    %59 = vector.broadcast %51 : vector<12x1xf32> to vector<12x128xf32>
    %60 = arith.subf %45, %59 : vector<12x128xf32>
    %cst_29 = arith.constant 9.99999974E-6 : f32
    %61 = vector.broadcast %cst_29 : f32 to vector<12x1xf32>
    %62 = arith.addf %58, %61 : vector<12x1xf32>
    %63 = math.rsqrt %62 : vector<12x1xf32>
    %64 = vector.broadcast %63 : vector<12x1xf32> to vector<12x128xf32>
    %65 = arith.mulf %60, %64 : vector<12x128xf32>
    %66 = vector.broadcast %46 : vector<1x128xf32> to vector<12x128xf32>
    %67 = arith.mulf %65, %66 : vector<12x128xf32>
    %68 = vector.broadcast %47 : vector<1x128xf32> to vector<12x128xf32>
    %69 = arith.addf %67, %68 : vector<12x128xf32>
    %c0_30 = arith.constant 0 : index
    %c0_31 = arith.constant 0 : index
    %70 = vector.load %arg10[%c0_30, %c0_31] : memref<12x128xf32, #tpu.memory_space<vmem>>, vector<12x128xf32>
    tpu.vector_store %arg10[%c0_30, %c0_31], %69 {strides = array<i32>} : memref<12x128xf32, #tpu.memory_space<vmem>>, vector<12x128xf32>,
    return
  }
  func.func @transform_0(%arg0: i32) -> (i32, i32) {
    %c0_i32 = arith.constant 0 : i32
    %c0_i32_0 = arith.constant 0 : i32
    return %arg0, %c0_i32 : i32, i32
  }
  func.func @transform_1(%arg0: i32) -> (i32, i32) {
    %c0_i32 = arith.constant 0 : i32
    %c0_i32_0 = arith.constant 0 : i32
    %c0_i32_1 = arith.constant 0 : i32
    return %c0_i32, %c0_i32_0 : i32, i32
  }
  func.func @transform_2(%arg0: i32) -> (i32, i32) {
    %c0_i32 = arith.constant 0 : i32
    %c0_i32_0 = arith.constant 0 : i32
    %c0_i32_1 = arith.constant 0 : i32
    return %c0_i32, %c0_i32_0 : i32, i32
  }
  func.func @transform_3(%arg0: i32) -> (i32, i32) {
    %c0_i32 = arith.constant 0 : i32
    %c0_i32_0 = arith.constant 0 : i32
    %c0_i32_1 = arith.constant 0 : i32
    return %c0_i32, %c0_i32_0 : i32, i32
  }
  func.func @transform_4(%arg0: i32) -> (i32, i32) {
    %c0_i32 = arith.constant 0 : i32
    %c0_i32_0 = arith.constant 0 : i32
    %c0_i32_1 = arith.constant 0 : i32
    return %c0_i32, %c0_i32_0 : i32, i32
  }
  func.func @transform_5(%arg0: i32) -> (i32, i32) {
    %c0_i32 = arith.constant 0 : i32
    %c0_i32_0 = arith.constant 0 : i32
    %c0_i32_1 = arith.constant 0 : i32
    return %c0_i32, %c0_i32_0 : i32, i32
  }
  func.func @transform_6(%arg0: i32) -> (i32, i32) {
    %c0_i32 = arith.constant 0 : i32
    %c0_i32_0 = arith.constant 0 : i32
    %c0_i32_1 = arith.constant 0 : i32
    return %c0_i32, %c0_i32_0 : i32, i32
  }
  func.func @transform_7(%arg0: i32) -> (i32, i32) {
    %c0_i32 = arith.constant 0 : i32
    %c0_i32_0 = arith.constant 0 : i32
    %c0_i32_1 = arith.constant 0 : i32
    return %c0_i32, %c0_i32_0 : i32, i32
  }
  func.func @transform_8(%arg0: i32) -> (i32, i32) {
    %c0_i32 = arith.constant 0 : i32
    %c0_i32_0 = arith.constant 0 : i32
    %c0_i32_1 = arith.constant 0 : i32
    return %c0_i32, %c0_i32_0 : i32, i32
  }
  func.func @transform_9(%arg0: i32) -> (i32, i32) {
    %c0_i32 = arith.constant 0 : i32
    %c0_i32_0 = arith.constant 0 : i32
    return %arg0, %c0_i32 : i32, i32
  }
}

module attributes {stable_mosaic.version = 11 : i64} {
  func.func @_ffn_fused_kernel(%arg0: i32, %arg1: memref<12x128xf32, #tpu.memory_space<vmem>>, %arg2: memref<1x128xf32, #tpu.memory_space<vmem>>, %arg3: memref<1x128xf32, #tpu.memory_space<vmem>>, %arg4: memref<128x128xbf16, #tpu.memory_space<vmem>>, %arg5: memref<1x128xf32, #tpu.memory_space<vmem>>, %arg6: memref<128x128xbf16, #tpu.memory_space<vmem>>, %arg7: memref<1x128xf32, #tpu.memory_space<vmem>>, %arg8: memref<1x128xf32, #tpu.memory_space<vmem>>, %arg9: memref<1x128xf32, #tpu.memory_space<vmem>>, %arg10: memref<12x128xf32, #tpu.memory_space<vmem>>) attributes {dimension_semantics = [#tpu.dimension_semantics<parallel>], iteration_bounds = array<i64: 1>, scalar_prefetch = 0 : i64, scratch_operands = 0 : i64, tpu.core_type = #tpu.core_type<tc>, window_params = [{transform_indices = @transform_0, window_bounds = array<i64: 12, 128>}, {pipeline_mode = #tpu.pipeline_mode<synchronous>, transform_indices = @transform_1, window_bounds = array<i64: 1, 128>}, {pipeline_mode = #tpu.pipeline_mode<synchronous>, transform_indices = @transform_2, window_bounds = array<i64: 1, 128>}, {pipeline_mode = #tpu.pipeline_mode<synchronous>, transform_indices = @transform_3, window_bounds = array<i64: 128, 128>}, {pipeline_mode = #tpu.pipeline_mode<synchronous>, transform_indices = @transform_4, window_bounds = array<i64: 1, 128>}, {pipeline_mode = #tpu.pipeline_mode<synchronous>, transform_indices = @transform_5, window_bounds = array<i64: 128, 128>}, {pipeline_mode = #tpu.pipeline_mode<synchronous>, transform_indices = @transform_6, window_bounds = array<i64: 1, 128>}, {pipeline_mode = #tpu.pipeline_mode<synchronous>, transform_indices = @transform_7, window_bounds = array<i64: 1, 128>}, {pipeline_mode = #tpu.pipeline_mode<synchronous>, transform_indices = @transform_8, window_bounds = array<i64: 1, 128>}, {transform_indices = @transform_9, window_bounds = array<i64: 12, 128>}]} {
    %c0 = arith.constant 0 : index
    %c0_0 = arith.constant 0 : index
    %0 = vector.load %arg1[%c0, %c0_0] : memref<12x128xf32, #tpu.memory_space<vmem>>, vector<12x128xf32>
    %c0_1 = arith.constant 0 : index
    %c0_2 = arith.constant 0 : index
    %1 = vector.load %arg2[%c0_1, %c0_2] : memref<1x128xf32, #tpu.memory_space<vmem>>, vector<1x128xf32>
    %c0_3 = arith.constant 0 : index
    %c0_4 = arith.constant 0 : index
    %2 = vector.load %arg3[%c0_3, %c0_4] : memref<1x128xf32, #tpu.memory_space<vmem>>, vector<1x128xf32>
    %cst = arith.constant dense<0.000000e+00> : vector<12xf32>
    %3 = vector.multi_reduction <add>, %0, %cst [1] : vector<12x128xf32> to vector<12xf32>
    %4 = vector.shape_cast %3 : vector<12xf32> to vector<12x1xf32>
    %cst_5 = arith.constant 3.125000e-02 : f32
    %5 = vector.broadcast %cst_5 : f32 to vector<12x1xf32>
    %6 = arith.mulf %4, %5 : vector<12x1xf32>
    %7 = arith.mulf %0, %0 : vector<12x128xf32>
    %cst_6 = arith.constant dense<0.000000e+00> : vector<12xf32>
    %8 = vector.multi_reduction <add>, %7, %cst_6 [1] : vector<12x128xf32> to vector<12xf32>
    %9 = vector.shape_cast %8 : vector<12xf32> to vector<12x1xf32>
    %cst_7 = arith.constant 3.125000e-02 : f32
    %10 = vector.broadcast %cst_7 : f32 to vector<12x1xf32>
    %11 = arith.mulf %9, %10 : vector<12x1xf32>
    %12 = arith.mulf %6, %6 : vector<12x1xf32>
    %13 = arith.subf %11, %12 : vector<12x1xf32>
    %14 = vector.broadcast %6 : vector<12x1xf32> to vector<12x128xf32>
    %15 = arith.subf %0, %14 : vector<12x128xf32>
    %cst_8 = arith.constant 9.99999974E-6 : f32
    %16 = vector.broadcast %cst_8 : f32 to vector<12x1xf32>
    %17 = arith.addf %13, %16 : vector<12x1xf32>
    %18 = math.rsqrt %17 : vector<12x1xf32>
    %19 = vector.broadcast %18 : vector<12x1xf32> to vector<12x128xf32>
    %20 = arith.mulf %15, %19 : vector<12x128xf32>
    %21 = vector.broadcast %1 : vector<1x128xf32> to vector<12x128xf32>
    %22 = arith.mulf %20, %21 : vector<12x128xf32>
    %23 = vector.broadcast %2 : vector<1x128xf32> to vector<12x128xf32>
    %24 = arith.addf %22, %23 : vector<12x128xf32>
    %25 = arith.truncf %24 : vector<12x128xf32> to vector<12x128xbf16>
    %c0_9 = arith.constant 0 : index
    %c0_10 = arith.constant 0 : index
    %26 = vector.load %arg4[%c0_9, %c0_10] : memref<128x128xbf16, #tpu.memory_space<vmem>>, vector<128x128xbf16>
    %cst_11 = arith.constant dense<0.000000e+00> : vector<12x128xf32>
    %27 = tpu.matmul %25, %26, %cst_11 {dimension_numbers = #tpu.dot_dimension_numbers<[1], [0], [0], [1], [0, 0, 1, 1], [], []>} : vector<12x128xbf16>, vector<128x128xbf16>, vector<12x128xf32> -> vector<12x128xf32>
    %c0_12 = arith.constant 0 : index
    %c0_13 = arith.constant 0 : index
    %28 = vector.load %arg5[%c0_12, %c0_13] : memref<1x128xf32, #tpu.memory_space<vmem>>, vector<1x128xf32>
    %29 = vector.broadcast %28 : vector<1x128xf32> to vector<12x128xf32>
    %30 = arith.addf %27, %29 : vector<12x128xf32>
    %31 = arith.negf %30 : vector<12x128xf32>
    %32 = math.exp %31 : vector<12x128xf32>
    %cst_14 = arith.constant 1.000000e+00 : f32
    %33 = vector.broadcast %cst_14 : f32 to vector<12x128xf32>
    %34 = arith.addf %33, %32 : vector<12x128xf32>
    %35 = arith.divf %33, %34 : vector<12x128xf32>
    %36 = arith.mulf %30, %35 : vector<12x128xf32>
    %37 = arith.truncf %36 : vector<12x128xf32> to vector<12x128xbf16>
    %c0_15 = arith.constant 0 : index
    %c0_16 = arith.constant 0 : index
    %38 = vector.load %arg6[%c0_15, %c0_16] : memref<128x128xbf16, #tpu.memory_space<vmem>>, vector<128x128xbf16>
    %cst_17 = arith.constant dense<0.000000e+00> : vector<12x128xf32>
    %39 = tpu.matmul %37, %38, %cst_17 {dimension_numbers = #tpu.dot_dimension_numbers<[1], [0], [0], [1], [0, 0, 1, 1], [], []>} : vector<12x128xbf16>, vector<128x128xbf16>, vector<12x128xf32> -> vector<12x128xf32>
    %c0_18 = arith.constant 0 : index
    %c0_19 = arith.constant 0 : index
    %40 = vector.load %arg7[%c0_18, %c0_19] : memref<1x128xf32, #tpu.memory_space<vmem>>, vector<1x128xf32>
    %41 = vector.broadcast %40 : vector<1x128xf32> to vector<12x128xf32>
    %42 = arith.addf %39, %41 : vector<12x128xf32>
    %cst_20 = arith.constant 5.000000e-01 : f32
    %43 = vector.broadcast %cst_20 : f32 to vector<12x128xf32>
    %44 = arith.mulf %43, %42 : vector<12x128xf32>
    %45 = arith.addf %0, %44 : vector<12x128xf32>
    %c0_21 = arith.constant 0 : index
    %c0_22 = arith.constant 0 : index
    %46 = vector.load %arg10[%c0_21, %c0_22] : memref<12x128xf32, #tpu.memory_space<vmem>>, vector<12x128xf32>
    tpu.vector_store %arg10[%c0_21, %c0_22], %45 {strides = array<i32>} : memref<12x128xf32, #tpu.memory_space<vmem>>, vector<12x128xf32>,
    return
  }
  func.func @transform_0(%arg0: i32) -> (i32, i32) {
    %c0_i32 = arith.constant 0 : i32
    %c0_i32_0 = arith.constant 0 : i32
    return %arg0, %c0_i32 : i32, i32
  }
  func.func @transform_1(%arg0: i32) -> (i32, i32) {
    %c0_i32 = arith.constant 0 : i32
    %c0_i32_0 = arith.constant 0 : i32
    %c0_i32_1 = arith.constant 0 : i32
    return %c0_i32, %c0_i32_0 : i32, i32
  }
  func.func @transform_2(%arg0: i32) -> (i32, i32) {
    %c0_i32 = arith.constant 0 : i32
    %c0_i32_0 = arith.constant 0 : i32
    %c0_i32_1 = arith.constant 0 : i32
    return %c0_i32, %c0_i32_0 : i32, i32
  }
  func.func @transform_3(%arg0: i32) -> (i32, i32) {
    %c0_i32 = arith.constant 0 : i32
    %c0_i32_0 = arith.constant 0 : i32
    %c0_i32_1 = arith.constant 0 : i32
    return %c0_i32, %c0_i32_0 : i32, i32
  }
  func.func @transform_4(%arg0: i32) -> (i32, i32) {
    %c0_i32 = arith.constant 0 : i32
    %c0_i32_0 = arith.constant 0 : i32
    %c0_i32_1 = arith.constant 0 : i32
    return %c0_i32, %c0_i32_0 : i32, i32
  }
  func.func @transform_5(%arg0: i32) -> (i32, i32) {
    %c0_i32 = arith.constant 0 : i32
    %c0_i32_0 = arith.constant 0 : i32
    %c0_i32_1 = arith.constant 0 : i32
    return %c0_i32, %c0_i32_0 : i32, i32
  }
  func.func @transform_6(%arg0: i32) -> (i32, i32) {
    %c0_i32 = arith.constant 0 : i32
    %c0_i32_0 = arith.constant 0 : i32
    %c0_i32_1 = arith.constant 0 : i32
    return %c0_i32, %c0_i32_0 : i32, i32
  }
  func.func @transform_7(%arg0: i32) -> (i32, i32) {
    %c0_i32 = arith.constant 0 : i32
    %c0_i32_0 = arith.constant 0 : i32
    %c0_i32_1 = arith.constant 0 : i32
    return %c0_i32, %c0_i32_0 : i32, i32
  }
  func.func @transform_8(%arg0: i32) -> (i32, i32) {
    %c0_i32 = arith.constant 0 : i32
    %c0_i32_0 = arith.constant 0 : i32
    %c0_i32_1 = arith.constant 0 : i32
    return %c0_i32, %c0_i32_0 : i32, i32
  }
  func.func @transform_9(%arg0: i32) -> (i32, i32) {
    %c0_i32 = arith.constant 0 : i32
    %c0_i32_0 = arith.constant 0 : i32
    return %arg0, %c0_i32 : i32, i32
  }
}

module attributes {stable_mosaic.version = 11 : i64} {
  func.func @_attn_fused_kernel(%arg0: i32, %arg1: memref<1x6x128xf32, #tpu.memory_space<vmem>>, %arg2: memref<1x128xf32, #tpu.memory_space<vmem>>, %arg3: memref<1x128xf32, #tpu.memory_space<vmem>>, %arg4: memref<128x384xbf16, #tpu.memory_space<vmem>>, %arg5: memref<1x384xf32, #tpu.memory_space<vmem>>, %arg6: memref<128x128xbf16, #tpu.memory_space<vmem>>, %arg7: memref<1x128xf32, #tpu.memory_space<vmem>>, %arg8: memref<1x6x128xf32, #tpu.memory_space<vmem>>) attributes {dimension_semantics = [#tpu.dimension_semantics<parallel>], iteration_bounds = array<i64: 2>, scalar_prefetch = 0 : i64, scratch_operands = 0 : i64, tpu.core_type = #tpu.core_type<tc>, window_params = [{transform_indices = @transform_0, window_bounds = array<i64: 1, 6, 128>}, {pipeline_mode = #tpu.pipeline_mode<synchronous>, transform_indices = @transform_1, window_bounds = array<i64: 1, 128>}, {pipeline_mode = #tpu.pipeline_mode<synchronous>, transform_indices = @transform_2, window_bounds = array<i64: 1, 128>}, {pipeline_mode = #tpu.pipeline_mode<synchronous>, transform_indices = @transform_3, window_bounds = array<i64: 128, 384>}, {pipeline_mode = #tpu.pipeline_mode<synchronous>, transform_indices = @transform_4, window_bounds = array<i64: 1, 384>}, {pipeline_mode = #tpu.pipeline_mode<synchronous>, transform_indices = @transform_5, window_bounds = array<i64: 128, 128>}, {pipeline_mode = #tpu.pipeline_mode<synchronous>, transform_indices = @transform_6, window_bounds = array<i64: 1, 128>}, {transform_indices = @transform_7, window_bounds = array<i64: 1, 6, 128>}]} {
    %c0 = arith.constant 0 : index
    %c0_0 = arith.constant 0 : index
    %c0_1 = arith.constant 0 : index
    %0 = vector.load %arg1[%c0, %c0_0, %c0_1] : memref<1x6x128xf32, #tpu.memory_space<vmem>>, vector<1x6x128xf32>
    %1 = vector.shape_cast %0 : vector<1x6x128xf32> to vector<6x128xf32>
    %c0_2 = arith.constant 0 : index
    %c0_3 = arith.constant 0 : index
    %2 = vector.load %arg2[%c0_2, %c0_3] : memref<1x128xf32, #tpu.memory_space<vmem>>, vector<1x128xf32>
    %c0_4 = arith.constant 0 : index
    %c0_5 = arith.constant 0 : index
    %3 = vector.load %arg3[%c0_4, %c0_5] : memref<1x128xf32, #tpu.memory_space<vmem>>, vector<1x128xf32>
    %cst = arith.constant dense<0.000000e+00> : vector<6xf32>
    %4 = vector.multi_reduction <add>, %1, %cst [1] : vector<6x128xf32> to vector<6xf32>
    %5 = vector.shape_cast %4 : vector<6xf32> to vector<6x1xf32>
    %cst_6 = arith.constant 3.125000e-02 : f32
    %6 = vector.broadcast %cst_6 : f32 to vector<6x1xf32>
    %7 = arith.mulf %5, %6 : vector<6x1xf32>
    %8 = arith.mulf %1, %1 : vector<6x128xf32>
    %cst_7 = arith.constant dense<0.000000e+00> : vector<6xf32>
    %9 = vector.multi_reduction <add>, %8, %cst_7 [1] : vector<6x128xf32> to vector<6xf32>
    %10 = vector.shape_cast %9 : vector<6xf32> to vector<6x1xf32>
    %cst_8 = arith.constant 3.125000e-02 : f32
    %11 = vector.broadcast %cst_8 : f32 to vector<6x1xf32>
    %12 = arith.mulf %10, %11 : vector<6x1xf32>
    %13 = arith.mulf %7, %7 : vector<6x1xf32>
    %14 = arith.subf %12, %13 : vector<6x1xf32>
    %15 = vector.broadcast %7 : vector<6x1xf32> to vector<6x128xf32>
    %16 = arith.subf %1, %15 : vector<6x128xf32>
    %cst_9 = arith.constant 9.99999974E-6 : f32
    %17 = vector.broadcast %cst_9 : f32 to vector<6x1xf32>
    %18 = arith.addf %14, %17 : vector<6x1xf32>
    %19 = math.rsqrt %18 : vector<6x1xf32>
    %20 = vector.broadcast %19 : vector<6x1xf32> to vector<6x128xf32>
    %21 = arith.mulf %16, %20 : vector<6x128xf32>
    %22 = vector.broadcast %2 : vector<1x128xf32> to vector<6x128xf32>
    %23 = arith.mulf %21, %22 : vector<6x128xf32>
    %24 = vector.broadcast %3 : vector<1x128xf32> to vector<6x128xf32>
    %25 = arith.addf %23, %24 : vector<6x128xf32>
    %26 = arith.truncf %25 : vector<6x128xf32> to vector<6x128xbf16>
    %c0_10 = arith.constant 0 : index
    %c0_11 = arith.constant 0 : index
    %27 = vector.load %arg4[%c0_10, %c0_11] : memref<128x384xbf16, #tpu.memory_space<vmem>>, vector<128x384xbf16>
    %cst_12 = arith.constant dense<0.000000e+00> : vector<6x384xf32>
    %28 = tpu.matmul %26, %27, %cst_12 {dimension_numbers = #tpu.dot_dimension_numbers<[1], [0], [0], [1], [0, 0, 1, 1], [], []>} : vector<6x128xbf16>, vector<128x384xbf16>, vector<6x384xf32> -> vector<6x384xf32>
    %c0_13 = arith.constant 0 : index
    %c0_14 = arith.constant 0 : index
    %29 = vector.load %arg5[%c0_13, %c0_14] : memref<1x384xf32, #tpu.memory_space<vmem>>, vector<1x384xf32>
    %30 = vector.broadcast %29 : vector<1x384xf32> to vector<6x384xf32>
    %31 = arith.addf %28, %30 : vector<6x384xf32>
    %32 = arith.truncf %31 : vector<6x384xf32> to vector<6x384xbf16>
    %c0_15 = arith.constant 0 : index
    %c0_16 = arith.constant 0 : index
    %33 = vector.load %arg6[%c0_15, %c0_16] : memref<128x128xbf16, #tpu.memory_space<vmem>>, vector<128x128xbf16>
    %cst_17 = arith.constant 0.000000e+00 : f32
    %34 = vector.broadcast %cst_17 : f32 to vector<6x128xf32>
    %35 = vector.extract_strided_slice %32 {offsets = [0, 0], sizes = [6, 8], strides = [1, 1]} : vector<6x384xbf16> to vector<6x8xbf16>
    %36 = vector.extract_strided_slice %32 {offsets = [0, 128], sizes = [6, 8], strides = [1, 1]} : vector<6x384xbf16> to vector<6x8xbf16>
    %37 = vector.extract_strided_slice %32 {offsets = [0, 256], sizes = [6, 8], strides = [1, 1]} : vector<6x384xbf16> to vector<6x8xbf16>
    %cst_18 = arith.constant dense<0.000000e+00> : vector<6x6xf32>
    %38 = tpu.matmul %35, %36, %cst_18 {dimension_numbers = #tpu.dot_dimension_numbers<[1], [1], [0], [0], [0, 0, 1, 0], [], []>} : vector<6x8xbf16>, vector<6x8xbf16>, vector<6x6xf32> -> vector<6x6xf32>
    %cst_19 = arith.constant 0.353553385 : f32
    %39 = vector.broadcast %cst_19 : f32 to vector<6x6xf32>
    %40 = arith.mulf %38, %39 : vector<6x6xf32>
    %cst_20 = arith.constant dense<0xFF800000> : vector<6xf32>
    %41 = vector.multi_reduction <maximumf>, %40, %cst_20 [1] : vector<6x6xf32> to vector<6xf32>
    %42 = vector.shape_cast %41 : vector<6xf32> to vector<6x1xf32>
    %43 = vector.broadcast %42 : vector<6x1xf32> to vector<6x6xf32>
    %44 = arith.subf %40, %43 : vector<6x6xf32>
    %45 = math.exp %44 : vector<6x6xf32>
    %cst_21 = arith.constant dense<0.000000e+00> : vector<6xf32>
    %46 = vector.multi_reduction <add>, %45, %cst_21 [1] : vector<6x6xf32> to vector<6xf32>
    %47 = vector.shape_cast %46 : vector<6xf32> to vector<6x1xf32>
    %48 = tpu.reciprocal %47 {approx = true} : vector<6x1xf32> -> vector<6x1xf32>
    %49 = vector.broadcast %48 : vector<6x1xf32> to vector<6x6xf32>
    %50 = arith.mulf %45, %49 : vector<6x6xf32>
    %51 = arith.truncf %50 : vector<6x6xf32> to vector<6x6xbf16>
    %cst_22 = arith.constant dense<0.000000e+00> : vector<6x8xf32>
    %52 = tpu.matmul %51, %37, %cst_22 {dimension_numbers = #tpu.dot_dimension_numbers<[1], [0], [0], [1], [0, 0, 1, 1], [], []>} : vector<6x6xbf16>, vector<6x8xbf16>, vector<6x8xf32> -> vector<6x8xf32>
    %53 = arith.truncf %52 : vector<6x8xf32> to vector<6x8xbf16>
    %54 = vector.extract_strided_slice %33 {offsets = [0, 0], sizes = [8, 128], strides = [1, 1]} : vector<128x128xbf16> to vector<8x128xbf16>
    %cst_23 = arith.constant dense<0.000000e+00> : vector<6x128xf32>
    %55 = tpu.matmul %53, %54, %cst_23 {dimension_numbers = #tpu.dot_dimension_numbers<[1], [0], [0], [1], [0, 0, 1, 1], [], []>} : vector<6x8xbf16>, vector<8x128xbf16>, vector<6x128xf32> -> vector<6x128xf32>
    %56 = arith.addf %34, %55 : vector<6x128xf32>
    %57 = vector.extract_strided_slice %32 {offsets = [0, 8], sizes = [6, 8], strides = [1, 1]} : vector<6x384xbf16> to vector<6x8xbf16>
    %58 = vector.extract_strided_slice %32 {offsets = [0, 136], sizes = [6, 8], strides = [1, 1]} : vector<6x384xbf16> to vector<6x8xbf16>
    %59 = vector.extract_strided_slice %32 {offsets = [0, 264], sizes = [6, 8], strides = [1, 1]} : vector<6x384xbf16> to vector<6x8xbf16>
    %cst_24 = arith.constant dense<0.000000e+00> : vector<6x6xf32>
    %60 = tpu.matmul %57, %58, %cst_24 {dimension_numbers = #tpu.dot_dimension_numbers<[1], [1], [0], [0], [0, 0, 1, 0], [], []>} : vector<6x8xbf16>, vector<6x8xbf16>, vector<6x6xf32> -> vector<6x6xf32>
    %cst_25 = arith.constant 0.353553385 : f32
    %61 = vector.broadcast %cst_25 : f32 to vector<6x6xf32>
    %62 = arith.mulf %60, %61 : vector<6x6xf32>
    %cst_26 = arith.constant dense<0xFF800000> : vector<6xf32>
    %63 = vector.multi_reduction <maximumf>, %62, %cst_26 [1] : vector<6x6xf32> to vector<6xf32>
    %64 = vector.shape_cast %63 : vector<6xf32> to vector<6x1xf32>
    %65 = vector.broadcast %64 : vector<6x1xf32> to vector<6x6xf32>
    %66 = arith.subf %62, %65 : vector<6x6xf32>
    %67 = math.exp %66 : vector<6x6xf32>
    %cst_27 = arith.constant dense<0.000000e+00> : vector<6xf32>
    %68 = vector.multi_reduction <add>, %67, %cst_27 [1] : vector<6x6xf32> to vector<6xf32>
    %69 = vector.shape_cast %68 : vector<6xf32> to vector<6x1xf32>
    %70 = tpu.reciprocal %69 {approx = true} : vector<6x1xf32> -> vector<6x1xf32>
    %71 = vector.broadcast %70 : vector<6x1xf32> to vector<6x6xf32>
    %72 = arith.mulf %67, %71 : vector<6x6xf32>
    %73 = arith.truncf %72 : vector<6x6xf32> to vector<6x6xbf16>
    %cst_28 = arith.constant dense<0.000000e+00> : vector<6x8xf32>
    %74 = tpu.matmul %73, %59, %cst_28 {dimension_numbers = #tpu.dot_dimension_numbers<[1], [0], [0], [1], [0, 0, 1, 1], [], []>} : vector<6x6xbf16>, vector<6x8xbf16>, vector<6x8xf32> -> vector<6x8xf32>
    %75 = arith.truncf %74 : vector<6x8xf32> to vector<6x8xbf16>
    %76 = vector.extract_strided_slice %33 {offsets = [8, 0], sizes = [8, 128], strides = [1, 1]} : vector<128x128xbf16> to vector<8x128xbf16>
    %cst_29 = arith.constant dense<0.000000e+00> : vector<6x128xf32>
    %77 = tpu.matmul %75, %76, %cst_29 {dimension_numbers = #tpu.dot_dimension_numbers<[1], [0], [0], [1], [0, 0, 1, 1], [], []>} : vector<6x8xbf16>, vector<8x128xbf16>, vector<6x128xf32> -> vector<6x128xf32>
    %78 = arith.addf %56, %77 : vector<6x128xf32>
    %79 = vector.extract_strided_slice %32 {offsets = [0, 16], sizes = [6, 8], strides = [1, 1]} : vector<6x384xbf16> to vector<6x8xbf16>
    %80 = vector.extract_strided_slice %32 {offsets = [0, 144], sizes = [6, 8], strides = [1, 1]} : vector<6x384xbf16> to vector<6x8xbf16>
    %81 = vector.extract_strided_slice %32 {offsets = [0, 272], sizes = [6, 8], strides = [1, 1]} : vector<6x384xbf16> to vector<6x8xbf16>
    %cst_30 = arith.constant dense<0.000000e+00> : vector<6x6xf32>
    %82 = tpu.matmul %79, %80, %cst_30 {dimension_numbers = #tpu.dot_dimension_numbers<[1], [1], [0], [0], [0, 0, 1, 0], [], []>} : vector<6x8xbf16>, vector<6x8xbf16>, vector<6x6xf32> -> vector<6x6xf32>
    %cst_31 = arith.constant 0.353553385 : f32
    %83 = vector.broadcast %cst_31 : f32 to vector<6x6xf32>
    %84 = arith.mulf %82, %83 : vector<6x6xf32>
    %cst_32 = arith.constant dense<0xFF800000> : vector<6xf32>
    %85 = vector.multi_reduction <maximumf>, %84, %cst_32 [1] : vector<6x6xf32> to vector<6xf32>
    %86 = vector.shape_cast %85 : vector<6xf32> to vector<6x1xf32>
    %87 = vector.broadcast %86 : vector<6x1xf32> to vector<6x6xf32>
    %88 = arith.subf %84, %87 : vector<6x6xf32>
    %89 = math.exp %88 : vector<6x6xf32>
    %cst_33 = arith.constant dense<0.000000e+00> : vector<6xf32>
    %90 = vector.multi_reduction <add>, %89, %cst_33 [1] : vector<6x6xf32> to vector<6xf32>
    %91 = vector.shape_cast %90 : vector<6xf32> to vector<6x1xf32>
    %92 = tpu.reciprocal %91 {approx = true} : vector<6x1xf32> -> vector<6x1xf32>
    %93 = vector.broadcast %92 : vector<6x1xf32> to vector<6x6xf32>
    %94 = arith.mulf %89, %93 : vector<6x6xf32>
    %95 = arith.truncf %94 : vector<6x6xf32> to vector<6x6xbf16>
    %cst_34 = arith.constant dense<0.000000e+00> : vector<6x8xf32>
    %96 = tpu.matmul %95, %81, %cst_34 {dimension_numbers = #tpu.dot_dimension_numbers<[1], [0], [0], [1], [0, 0, 1, 1], [], []>} : vector<6x6xbf16>, vector<6x8xbf16>, vector<6x8xf32> -> vector<6x8xf32>
    %97 = arith.truncf %96 : vector<6x8xf32> to vector<6x8xbf16>
    %98 = vector.extract_strided_slice %33 {offsets = [16, 0], sizes = [8, 128], strides = [1, 1]} : vector<128x128xbf16> to vector<8x128xbf16>
    %cst_35 = arith.constant dense<0.000000e+00> : vector<6x128xf32>
    %99 = tpu.matmul %97, %98, %cst_35 {dimension_numbers = #tpu.dot_dimension_numbers<[1], [0], [0], [1], [0, 0, 1, 1], [], []>} : vector<6x8xbf16>, vector<8x128xbf16>, vector<6x128xf32> -> vector<6x128xf32>
    %100 = arith.addf %78, %99 : vector<6x128xf32>
    %101 = vector.extract_strided_slice %32 {offsets = [0, 24], sizes = [6, 8], strides = [1, 1]} : vector<6x384xbf16> to vector<6x8xbf16>
    %102 = vector.extract_strided_slice %32 {offsets = [0, 152], sizes = [6, 8], strides = [1, 1]} : vector<6x384xbf16> to vector<6x8xbf16>
    %103 = vector.extract_strided_slice %32 {offsets = [0, 280], sizes = [6, 8], strides = [1, 1]} : vector<6x384xbf16> to vector<6x8xbf16>
    %cst_36 = arith.constant dense<0.000000e+00> : vector<6x6xf32>
    %104 = tpu.matmul %101, %102, %cst_36 {dimension_numbers = #tpu.dot_dimension_numbers<[1], [1], [0], [0], [0, 0, 1, 0], [], []>} : vector<6x8xbf16>, vector<6x8xbf16>, vector<6x6xf32> -> vector<6x6xf32>
    %cst_37 = arith.constant 0.353553385 : f32
    %105 = vector.broadcast %cst_37 : f32 to vector<6x6xf32>
    %106 = arith.mulf %104, %105 : vector<6x6xf32>
    %cst_38 = arith.constant dense<0xFF800000> : vector<6xf32>
    %107 = vector.multi_reduction <maximumf>, %106, %cst_38 [1] : vector<6x6xf32> to vector<6xf32>
    %108 = vector.shape_cast %107 : vector<6xf32> to vector<6x1xf32>
    %109 = vector.broadcast %108 : vector<6x1xf32> to vector<6x6xf32>
    %110 = arith.subf %106, %109 : vector<6x6xf32>
    %111 = math.exp %110 : vector<6x6xf32>
    %cst_39 = arith.constant dense<0.000000e+00> : vector<6xf32>
    %112 = vector.multi_reduction <add>, %111, %cst_39 [1] : vector<6x6xf32> to vector<6xf32>
    %113 = vector.shape_cast %112 : vector<6xf32> to vector<6x1xf32>
    %114 = tpu.reciprocal %113 {approx = true} : vector<6x1xf32> -> vector<6x1xf32>
    %115 = vector.broadcast %114 : vector<6x1xf32> to vector<6x6xf32>
    %116 = arith.mulf %111, %115 : vector<6x6xf32>
    %117 = arith.truncf %116 : vector<6x6xf32> to vector<6x6xbf16>
    %cst_40 = arith.constant dense<0.000000e+00> : vector<6x8xf32>
    %118 = tpu.matmul %117, %103, %cst_40 {dimension_numbers = #tpu.dot_dimension_numbers<[1], [0], [0], [1], [0, 0, 1, 1], [], []>} : vector<6x6xbf16>, vector<6x8xbf16>, vector<6x8xf32> -> vector<6x8xf32>
    %119 = arith.truncf %118 : vector<6x8xf32> to vector<6x8xbf16>
    %120 = vector.extract_strided_slice %33 {offsets = [24, 0], sizes = [8, 128], strides = [1, 1]} : vector<128x128xbf16> to vector<8x128xbf16>
    %cst_41 = arith.constant dense<0.000000e+00> : vector<6x128xf32>
    %121 = tpu.matmul %119, %120, %cst_41 {dimension_numbers = #tpu.dot_dimension_numbers<[1], [0], [0], [1], [0, 0, 1, 1], [], []>} : vector<6x8xbf16>, vector<8x128xbf16>, vector<6x128xf32> -> vector<6x128xf32>
    %122 = arith.addf %100, %121 : vector<6x128xf32>
    %123 = arith.addf %1, %122 : vector<6x128xf32>
    %c0_42 = arith.constant 0 : index
    %c0_43 = arith.constant 0 : index
    %124 = vector.load %arg7[%c0_42, %c0_43] : memref<1x128xf32, #tpu.memory_space<vmem>>, vector<1x128xf32>
    %125 = vector.broadcast %124 : vector<1x128xf32> to vector<6x128xf32>
    %126 = arith.addf %123, %125 : vector<6x128xf32>
    %c0_44 = arith.constant 0 : index
    %c0_45 = arith.constant 0 : index
    %c0_46 = arith.constant 0 : index
    %127 = vector.load %arg8[%c0_44, %c0_45, %c0_46] : memref<1x6x128xf32, #tpu.memory_space<vmem>>, vector<1x6x128xf32>
    %128 = vector.shape_cast %127 : vector<1x6x128xf32> to vector<6x128xf32>
    %129 = vector.shape_cast %126 : vector<6x128xf32> to vector<1x6x128xf32>
    tpu.vector_store %arg8[%c0_44, %c0_45, %c0_46], %129 {strides = array<i32>} : memref<1x6x128xf32, #tpu.memory_space<vmem>>, vector<1x6x128xf32>,
    return
  }
  func.func @transform_0(%arg0: i32) -> (i32, i32, i32) {
    %c0_i32 = arith.constant 0 : i32
    %c0_i32_0 = arith.constant 0 : i32
    %c0_i32_1 = arith.constant 0 : i32
    return %arg0, %c0_i32, %c0_i32_0 : i32, i32, i32
  }
  func.func @transform_1(%arg0: i32) -> (i32, i32) {
    %c0_i32 = arith.constant 0 : i32
    %c0_i32_0 = arith.constant 0 : i32
    %c0_i32_1 = arith.constant 0 : i32
    return %c0_i32, %c0_i32_0 : i32, i32
  }
  func.func @transform_2(%arg0: i32) -> (i32, i32) {
    %c0_i32 = arith.constant 0 : i32
    %c0_i32_0 = arith.constant 0 : i32
    %c0_i32_1 = arith.constant 0 : i32
    return %c0_i32, %c0_i32_0 : i32, i32
  }
  func.func @transform_3(%arg0: i32) -> (i32, i32) {
    %c0_i32 = arith.constant 0 : i32
    %c0_i32_0 = arith.constant 0 : i32
    %c0_i32_1 = arith.constant 0 : i32
    return %c0_i32, %c0_i32_0 : i32, i32
  }
  func.func @transform_4(%arg0: i32) -> (i32, i32) {
    %c0_i32 = arith.constant 0 : i32
    %c0_i32_0 = arith.constant 0 : i32
    %c0_i32_1 = arith.constant 0 : i32
    return %c0_i32, %c0_i32_0 : i32, i32
  }
  func.func @transform_5(%arg0: i32) -> (i32, i32) {
    %c0_i32 = arith.constant 0 : i32
    %c0_i32_0 = arith.constant 0 : i32
    %c0_i32_1 = arith.constant 0 : i32
    return %c0_i32, %c0_i32_0 : i32, i32
  }
  func.func @transform_6(%arg0: i32) -> (i32, i32) {
    %c0_i32 = arith.constant 0 : i32
    %c0_i32_0 = arith.constant 0 : i32
    %c0_i32_1 = arith.constant 0 : i32
    return %c0_i32, %c0_i32_0 : i32, i32
  }
  func.func @transform_7(%arg0: i32) -> (i32, i32, i32) {
    %c0_i32 = arith.constant 0 : i32
    %c0_i32_0 = arith.constant 0 : i32
    %c0_i32_1 = arith.constant 0 : i32
    return %arg0, %c0_i32, %c0_i32_0 : i32, i32, i32
  }
}

module attributes {stable_mosaic.version = 11 : i64} {
  func.func @_conv_fused_kernel(%arg0: i32, %arg1: memref<1x6x128xf32, #tpu.memory_space<vmem>>, %arg2: memref<1x128xf32, #tpu.memory_space<vmem>>, %arg3: memref<1x128xf32, #tpu.memory_space<vmem>>, %arg4: memref<128x256xbf16, #tpu.memory_space<vmem>>, %arg5: memref<1x256xf32, #tpu.memory_space<vmem>>, %arg6: memref<31x128xf32, #tpu.memory_space<vmem>>, %arg7: memref<1x128xf32, #tpu.memory_space<vmem>>, %arg8: memref<1x128xf32, #tpu.memory_space<vmem>>, %arg9: memref<1x128xf32, #tpu.memory_space<vmem>>, %arg10: memref<128x128xbf16, #tpu.memory_space<vmem>>, %arg11: memref<1x128xf32, #tpu.memory_space<vmem>>, %arg12: memref<1x6x128xf32, #tpu.memory_space<vmem>>, %arg13: memref<36x128xf32, #tpu.memory_space<vmem>>) attributes {dimension_semantics = [#tpu.dimension_semantics<parallel>], iteration_bounds = array<i64: 2>, scalar_prefetch = 0 : i64, scratch_operands = 1 : i64, tpu.core_type = #tpu.core_type<tc>, window_params = [{transform_indices = @transform_0, window_bounds = array<i64: 1, 6, 128>}, {pipeline_mode = #tpu.pipeline_mode<synchronous>, transform_indices = @transform_1, window_bounds = array<i64: 1, 128>}, {pipeline_mode = #tpu.pipeline_mode<synchronous>, transform_indices = @transform_2, window_bounds = array<i64: 1, 128>}, {pipeline_mode = #tpu.pipeline_mode<synchronous>, transform_indices = @transform_3, window_bounds = array<i64: 128, 256>}, {pipeline_mode = #tpu.pipeline_mode<synchronous>, transform_indices = @transform_4, window_bounds = array<i64: 1, 256>}, {pipeline_mode = #tpu.pipeline_mode<synchronous>, transform_indices = @transform_5, window_bounds = array<i64: 31, 128>}, {pipeline_mode = #tpu.pipeline_mode<synchronous>, transform_indices = @transform_6, window_bounds = array<i64: 1, 128>}, {pipeline_mode = #tpu.pipeline_mode<synchronous>, transform_indices = @transform_7, window_bounds = array<i64: 1, 128>}, {pipeline_mode = #tpu.pipeline_mode<synchronous>, transform_indices = @transform_8, window_bounds = array<i64: 1, 128>}, {pipeline_mode = #tpu.pipeline_mode<synchronous>, transform_indices = @transform_9, window_bounds = array<i64: 128, 128>}, {pipeline_mode = #tpu.pipeline_mode<synchronous>, transform_indices = @transform_10, window_bounds = array<i64: 1, 128>}, {transform_indices = @transform_11, window_bounds = array<i64: 1, 6, 128>}]} {
    %c0 = arith.constant 0 : index
    %c0_0 = arith.constant 0 : index
    %c0_1 = arith.constant 0 : index
    %0 = vector.load %arg1[%c0, %c0_0, %c0_1] : memref<1x6x128xf32, #tpu.memory_space<vmem>>, vector<1x6x128xf32>
    %1 = vector.shape_cast %0 : vector<1x6x128xf32> to vector<6x128xf32>
    %c0_2 = arith.constant 0 : index
    %c0_3 = arith.constant 0 : index
    %2 = vector.load %arg2[%c0_2, %c0_3] : memref<1x128xf32, #tpu.memory_space<vmem>>, vector<1x128xf32>
    %c0_4 = arith.constant 0 : index
    %c0_5 = arith.constant 0 : index
    %3 = vector.load %arg3[%c0_4, %c0_5] : memref<1x128xf32, #tpu.memory_space<vmem>>, vector<1x128xf32>
    %cst = arith.constant dense<0.000000e+00> : vector<6xf32>
    %4 = vector.multi_reduction <add>, %1, %cst [1] : vector<6x128xf32> to vector<6xf32>
    %5 = vector.shape_cast %4 : vector<6xf32> to vector<6x1xf32>
    %cst_6 = arith.constant 3.125000e-02 : f32
    %6 = vector.broadcast %cst_6 : f32 to vector<6x1xf32>
    %7 = arith.mulf %5, %6 : vector<6x1xf32>
    %8 = arith.mulf %1, %1 : vector<6x128xf32>
    %cst_7 = arith.constant dense<0.000000e+00> : vector<6xf32>
    %9 = vector.multi_reduction <add>, %8, %cst_7 [1] : vector<6x128xf32> to vector<6xf32>
    %10 = vector.shape_cast %9 : vector<6xf32> to vector<6x1xf32>
    %cst_8 = arith.constant 3.125000e-02 : f32
    %11 = vector.broadcast %cst_8 : f32 to vector<6x1xf32>
    %12 = arith.mulf %10, %11 : vector<6x1xf32>
    %13 = arith.mulf %7, %7 : vector<6x1xf32>
    %14 = arith.subf %12, %13 : vector<6x1xf32>
    %15 = vector.broadcast %7 : vector<6x1xf32> to vector<6x128xf32>
    %16 = arith.subf %1, %15 : vector<6x128xf32>
    %cst_9 = arith.constant 9.99999974E-6 : f32
    %17 = vector.broadcast %cst_9 : f32 to vector<6x1xf32>
    %18 = arith.addf %14, %17 : vector<6x1xf32>
    %19 = math.rsqrt %18 : vector<6x1xf32>
    %20 = vector.broadcast %19 : vector<6x1xf32> to vector<6x128xf32>
    %21 = arith.mulf %16, %20 : vector<6x128xf32>
    %22 = vector.broadcast %2 : vector<1x128xf32> to vector<6x128xf32>
    %23 = arith.mulf %21, %22 : vector<6x128xf32>
    %24 = vector.broadcast %3 : vector<1x128xf32> to vector<6x128xf32>
    %25 = arith.addf %23, %24 : vector<6x128xf32>
    %26 = arith.truncf %25 : vector<6x128xf32> to vector<6x128xbf16>
    %c0_10 = arith.constant 0 : index
    %c0_11 = arith.constant 0 : index
    %27 = vector.load %arg4[%c0_10, %c0_11] : memref<128x256xbf16, #tpu.memory_space<vmem>>, vector<128x256xbf16>
    %cst_12 = arith.constant dense<0.000000e+00> : vector<6x256xf32>
    %28 = tpu.matmul %26, %27, %cst_12 {dimension_numbers = #tpu.dot_dimension_numbers<[1], [0], [0], [1], [0, 0, 1, 1], [], []>} : vector<6x128xbf16>, vector<128x256xbf16>, vector<6x256xf32> -> vector<6x256xf32>
    %c0_13 = arith.constant 0 : index
    %c0_14 = arith.constant 0 : index
    %29 = vector.load %arg5[%c0_13, %c0_14] : memref<1x256xf32, #tpu.memory_space<vmem>>, vector<1x256xf32>
    %30 = vector.broadcast %29 : vector<1x256xf32> to vector<6x256xf32>
    %31 = arith.addf %28, %30 : vector<6x256xf32>
    %32 = vector.extract_strided_slice %31 {offsets = [0, 0], sizes = [6, 128], strides = [1, 1]} : vector<6x256xf32> to vector<6x128xf32>
    %33 = vector.extract_strided_slice %31 {offsets = [0, 128], sizes = [6, 128], strides = [1, 1]} : vector<6x256xf32> to vector<6x128xf32>
    %34 = arith.negf %33 : vector<6x128xf32>
    %35 = math.exp %34 : vector<6x128xf32>
    %cst_15 = arith.constant 1.000000e+00 : f32
    %36 = vector.broadcast %cst_15 : f32 to vector<6x128xf32>
    %37 = arith.addf %36, %35 : vector<6x128xf32>
    %38 = arith.divf %36, %37 : vector<6x128xf32>
    %39 = arith.mulf %32, %38 : vector<6x128xf32>
    %cst_16 = arith.constant 0.000000e+00 : f32
    %40 = vector.broadcast %cst_16 : f32 to vector<36x128xf32>
    %c0_17 = arith.constant 0 : index
    %c0_18 = arith.constant 0 : index
    %41 = vector.load %arg13[%c0_17, %c0_18] : memref<36x128xf32, #tpu.memory_space<vmem>>, vector<36x128xf32>
    tpu.vector_store %arg13[%c0_17, %c0_18], %40 {strides = array<i32>} : memref<36x128xf32, #tpu.memory_space<vmem>>, vector<36x128xf32>,
    %c15 = arith.constant 15 : index
    %c0_19 = arith.constant 0 : index
    %42 = vector.load %arg13[%c15, %c0_19] : memref<36x128xf32, #tpu.memory_space<vmem>>, vector<6x128xf32>
    tpu.vector_store %arg13[%c15, %c0_19], %39 {strides = array<i32>} : memref<36x128xf32, #tpu.memory_space<vmem>>, vector<6x128xf32>,
    %cst_20 = arith.constant 0.000000e+00 : f32
    %43 = vector.broadcast %cst_20 : f32 to vector<6x128xf32>
    %c0_21 = arith.constant 0 : index
    %c0_22 = arith.constant 0 : index
    %44 = vector.load %arg13[%c0_21, %c0_22] : memref<36x128xf32, #tpu.memory_space<vmem>>, vector<6x128xf32>
    %c0_23 = arith.constant 0 : index
    %c0_24 = arith.constant 0 : index
    %45 = vector.load %arg6[%c0_23, %c0_24] : memref<31x128xf32, #tpu.memory_space<vmem>>, vector<1x128xf32>
    %46 = vector.broadcast %45 : vector<1x128xf32> to vector<6x128xf32>
    %47 = arith.mulf %44, %46 : vector<6x128xf32>
    %48 = arith.addf %43, %47 : vector<6x128xf32>
    %c1 = arith.constant 1 : index
    %c0_25 = arith.constant 0 : index
    %49 = vector.load %arg13[%c1, %c0_25] : memref<36x128xf32, #tpu.memory_space<vmem>>, vector<6x128xf32>
    %c1_26 = arith.constant 1 : index
    %c0_27 = arith.constant 0 : index
    %50 = vector.load %arg6[%c1_26, %c0_27] : memref<31x128xf32, #tpu.memory_space<vmem>>, vector<1x128xf32>
    %51 = vector.broadcast %50 : vector<1x128xf32> to vector<6x128xf32>
    %52 = arith.mulf %49, %51 : vector<6x128xf32>
    %53 = arith.addf %48, %52 : vector<6x128xf32>
    %c2 = arith.constant 2 : index
    %c0_28 = arith.constant 0 : index
    %54 = vector.load %arg13[%c2, %c0_28] : memref<36x128xf32, #tpu.memory_space<vmem>>, vector<6x128xf32>
    %c2_29 = arith.constant 2 : index
    %c0_30 = arith.constant 0 : index
    %55 = vector.load %arg6[%c2_29, %c0_30] : memref<31x128xf32, #tpu.memory_space<vmem>>, vector<1x128xf32>
    %56 = vector.broadcast %55 : vector<1x128xf32> to vector<6x128xf32>
    %57 = arith.mulf %54, %56 : vector<6x128xf32>
    %58 = arith.addf %53, %57 : vector<6x128xf32>
    %c3 = arith.constant 3 : index
    %c0_31 = arith.constant 0 : index
    %59 = vector.load %arg13[%c3, %c0_31] : memref<36x128xf32, #tpu.memory_space<vmem>>, vector<6x128xf32>
    %c3_32 = arith.constant 3 : index
    %c0_33 = arith.constant 0 : index
    %60 = vector.load %arg6[%c3_32, %c0_33] : memref<31x128xf32, #tpu.memory_space<vmem>>, vector<1x128xf32>
    %61 = vector.broadcast %60 : vector<1x128xf32> to vector<6x128xf32>
    %62 = arith.mulf %59, %61 : vector<6x128xf32>
    %63 = arith.addf %58, %62 : vector<6x128xf32>
    %c4 = arith.constant 4 : index
    %c0_34 = arith.constant 0 : index
    %64 = vector.load %arg13[%c4, %c0_34] : memref<36x128xf32, #tpu.memory_space<vmem>>, vector<6x128xf32>
    %c4_35 = arith.constant 4 : index
    %c0_36 = arith.constant 0 : index
    %65 = vector.load %arg6[%c4_35, %c0_36] : memref<31x128xf32, #tpu.memory_space<vmem>>, vector<1x128xf32>
    %66 = vector.broadcast %65 : vector<1x128xf32> to vector<6x128xf32>
    %67 = arith.mulf %64, %66 : vector<6x128xf32>
    %68 = arith.addf %63, %67 : vector<6x128xf32>
    %c5 = arith.constant 5 : index
    %c0_37 = arith.constant 0 : index
    %69 = vector.load %arg13[%c5, %c0_37] : memref<36x128xf32, #tpu.memory_space<vmem>>, vector<6x128xf32>
    %c5_38 = arith.constant 5 : index
    %c0_39 = arith.constant 0 : index
    %70 = vector.load %arg6[%c5_38, %c0_39] : memref<31x128xf32, #tpu.memory_space<vmem>>, vector<1x128xf32>
    %71 = vector.broadcast %70 : vector<1x128xf32> to vector<6x128xf32>
    %72 = arith.mulf %69, %71 : vector<6x128xf32>
    %73 = arith.addf %68, %72 : vector<6x128xf32>
    %c6 = arith.constant 6 : index
    %c0_40 = arith.constant 0 : index
    %74 = vector.load %arg13[%c6, %c0_40] : memref<36x128xf32, #tpu.memory_space<vmem>>, vector<6x128xf32>
    %c6_41 = arith.constant 6 : index
    %c0_42 = arith.constant 0 : index
    %75 = vector.load %arg6[%c6_41, %c0_42] : memref<31x128xf32, #tpu.memory_space<vmem>>, vector<1x128xf32>
    %76 = vector.broadcast %75 : vector<1x128xf32> to vector<6x128xf32>
    %77 = arith.mulf %74, %76 : vector<6x128xf32>
    %78 = arith.addf %73, %77 : vector<6x128xf32>
    %c7 = arith.constant 7 : index
    %c0_43 = arith.constant 0 : index
    %79 = vector.load %arg13[%c7, %c0_43] : memref<36x128xf32, #tpu.memory_space<vmem>>, vector<6x128xf32>
    %c7_44 = arith.constant 7 : index
    %c0_45 = arith.constant 0 : index
    %80 = vector.load %arg6[%c7_44, %c0_45] : memref<31x128xf32, #tpu.memory_space<vmem>>, vector<1x128xf32>
    %81 = vector.broadcast %80 : vector<1x128xf32> to vector<6x128xf32>
    %82 = arith.mulf %79, %81 : vector<6x128xf32>
    %83 = arith.addf %78, %82 : vector<6x128xf32>
    %c8 = arith.constant 8 : index
    %c0_46 = arith.constant 0 : index
    %84 = vector.load %arg13[%c8, %c0_46] : memref<36x128xf32, #tpu.memory_space<vmem>>, vector<6x128xf32>
    %c8_47 = arith.constant 8 : index
    %c0_48 = arith.constant 0 : index
    %85 = vector.load %arg6[%c8_47, %c0_48] : memref<31x128xf32, #tpu.memory_space<vmem>>, vector<1x128xf32>
    %86 = vector.broadcast %85 : vector<1x128xf32> to vector<6x128xf32>
    %87 = arith.mulf %84, %86 : vector<6x128xf32>
    %88 = arith.addf %83, %87 : vector<6x128xf32>
    %c9 = arith.constant 9 : index
    %c0_49 = arith.constant 0 : index
    %89 = vector.load %arg13[%c9, %c0_49] : memref<36x128xf32, #tpu.memory_space<vmem>>, vector<6x128xf32>
    %c9_50 = arith.constant 9 : index
    %c0_51 = arith.constant 0 : index
    %90 = vector.load %arg6[%c9_50, %c0_51] : memref<31x128xf32, #tpu.memory_space<vmem>>, vector<1x128xf32>
    %91 = vector.broadcast %90 : vector<1x128xf32> to vector<6x128xf32>
    %92 = arith.mulf %89, %91 : vector<6x128xf32>
    %93 = arith.addf %88, %92 : vector<6x128xf32>
    %c10 = arith.constant 10 : index
    %c0_52 = arith.constant 0 : index
    %94 = vector.load %arg13[%c10, %c0_52] : memref<36x128xf32, #tpu.memory_space<vmem>>, vector<6x128xf32>
    %c10_53 = arith.constant 10 : index
    %c0_54 = arith.constant 0 : index
    %95 = vector.load %arg6[%c10_53, %c0_54] : memref<31x128xf32, #tpu.memory_space<vmem>>, vector<1x128xf32>
    %96 = vector.broadcast %95 : vector<1x128xf32> to vector<6x128xf32>
    %97 = arith.mulf %94, %96 : vector<6x128xf32>
    %98 = arith.addf %93, %97 : vector<6x128xf32>
    %c11 = arith.constant 11 : index
    %c0_55 = arith.constant 0 : index
    %99 = vector.load %arg13[%c11, %c0_55] : memref<36x128xf32, #tpu.memory_space<vmem>>, vector<6x128xf32>
    %c11_56 = arith.constant 11 : index
    %c0_57 = arith.constant 0 : index
    %100 = vector.load %arg6[%c11_56, %c0_57] : memref<31x128xf32, #tpu.memory_space<vmem>>, vector<1x128xf32>
    %101 = vector.broadcast %100 : vector<1x128xf32> to vector<6x128xf32>
    %102 = arith.mulf %99, %101 : vector<6x128xf32>
    %103 = arith.addf %98, %102 : vector<6x128xf32>
    %c12 = arith.constant 12 : index
    %c0_58 = arith.constant 0 : index
    %104 = vector.load %arg13[%c12, %c0_58] : memref<36x128xf32, #tpu.memory_space<vmem>>, vector<6x128xf32>
    %c12_59 = arith.constant 12 : index
    %c0_60 = arith.constant 0 : index
    %105 = vector.load %arg6[%c12_59, %c0_60] : memref<31x128xf32, #tpu.memory_space<vmem>>, vector<1x128xf32>
    %106 = vector.broadcast %105 : vector<1x128xf32> to vector<6x128xf32>
    %107 = arith.mulf %104, %106 : vector<6x128xf32>
    %108 = arith.addf %103, %107 : vector<6x128xf32>
    %c13 = arith.constant 13 : index
    %c0_61 = arith.constant 0 : index
    %109 = vector.load %arg13[%c13, %c0_61] : memref<36x128xf32, #tpu.memory_space<vmem>>, vector<6x128xf32>
    %c13_62 = arith.constant 13 : index
    %c0_63 = arith.constant 0 : index
    %110 = vector.load %arg6[%c13_62, %c0_63] : memref<31x128xf32, #tpu.memory_space<vmem>>, vector<1x128xf32>
    %111 = vector.broadcast %110 : vector<1x128xf32> to vector<6x128xf32>
    %112 = arith.mulf %109, %111 : vector<6x128xf32>
    %113 = arith.addf %108, %112 : vector<6x128xf32>
    %c14 = arith.constant 14 : index
    %c0_64 = arith.constant 0 : index
    %114 = vector.load %arg13[%c14, %c0_64] : memref<36x128xf32, #tpu.memory_space<vmem>>, vector<6x128xf32>
    %c14_65 = arith.constant 14 : index
    %c0_66 = arith.constant 0 : index
    %115 = vector.load %arg6[%c14_65, %c0_66] : memref<31x128xf32, #tpu.memory_space<vmem>>, vector<1x128xf32>
    %116 = vector.broadcast %115 : vector<1x128xf32> to vector<6x128xf32>
    %117 = arith.mulf %114, %116 : vector<6x128xf32>
    %118 = arith.addf %113, %117 : vector<6x128xf32>
    %c15_67 = arith.constant 15 : index
    %c0_68 = arith.constant 0 : index
    %119 = vector.load %arg13[%c15_67, %c0_68] : memref<36x128xf32, #tpu.memory_space<vmem>>, vector<6x128xf32>
    %c15_69 = arith.constant 15 : index
    %c0_70 = arith.constant 0 : index
    %120 = vector.load %arg6[%c15_69, %c0_70] : memref<31x128xf32, #tpu.memory_space<vmem>>, vector<1x128xf32>
    %121 = vector.broadcast %120 : vector<1x128xf32> to vector<6x128xf32>
    %122 = arith.mulf %119, %121 : vector<6x128xf32>
    %123 = arith.addf %118, %122 : vector<6x128xf32>
    %c16 = arith.constant 16 : index
    %c0_71 = arith.constant 0 : index
    %124 = vector.load %arg13[%c16, %c0_71] : memref<36x128xf32, #tpu.memory_space<vmem>>, vector<6x128xf32>
    %c16_72 = arith.constant 16 : index
    %c0_73 = arith.constant 0 : index
    %125 = vector.load %arg6[%c16_72, %c0_73] : memref<31x128xf32, #tpu.memory_space<vmem>>, vector<1x128xf32>
    %126 = vector.broadcast %125 : vector<1x128xf32> to vector<6x128xf32>
    %127 = arith.mulf %124, %126 : vector<6x128xf32>
    %128 = arith.addf %123, %127 : vector<6x128xf32>
    %c17 = arith.constant 17 : index
    %c0_74 = arith.constant 0 : index
    %129 = vector.load %arg13[%c17, %c0_74] : memref<36x128xf32, #tpu.memory_space<vmem>>, vector<6x128xf32>
    %c17_75 = arith.constant 17 : index
    %c0_76 = arith.constant 0 : index
    %130 = vector.load %arg6[%c17_75, %c0_76] : memref<31x128xf32, #tpu.memory_space<vmem>>, vector<1x128xf32>
    %131 = vector.broadcast %130 : vector<1x128xf32> to vector<6x128xf32>
    %132 = arith.mulf %129, %131 : vector<6x128xf32>
    %133 = arith.addf %128, %132 : vector<6x128xf32>
    %c18 = arith.constant 18 : index
    %c0_77 = arith.constant 0 : index
    %134 = vector.load %arg13[%c18, %c0_77] : memref<36x128xf32, #tpu.memory_space<vmem>>, vector<6x128xf32>
    %c18_78 = arith.constant 18 : index
    %c0_79 = arith.constant 0 : index
    %135 = vector.load %arg6[%c18_78, %c0_79] : memref<31x128xf32, #tpu.memory_space<vmem>>, vector<1x128xf32>
    %136 = vector.broadcast %135 : vector<1x128xf32> to vector<6x128xf32>
    %137 = arith.mulf %134, %136 : vector<6x128xf32>
    %138 = arith.addf %133, %137 : vector<6x128xf32>
    %c19 = arith.constant 19 : index
    %c0_80 = arith.constant 0 : index
    %139 = vector.load %arg13[%c19, %c0_80] : memref<36x128xf32, #tpu.memory_space<vmem>>, vector<6x128xf32>
    %c19_81 = arith.constant 19 : index
    %c0_82 = arith.constant 0 : index
    %140 = vector.load %arg6[%c19_81, %c0_82] : memref<31x128xf32, #tpu.memory_space<vmem>>, vector<1x128xf32>
    %141 = vector.broadcast %140 : vector<1x128xf32> to vector<6x128xf32>
    %142 = arith.mulf %139, %141 : vector<6x128xf32>
    %143 = arith.addf %138, %142 : vector<6x128xf32>
    %c20 = arith.constant 20 : index
    %c0_83 = arith.constant 0 : index
    %144 = vector.load %arg13[%c20, %c0_83] : memref<36x128xf32, #tpu.memory_space<vmem>>, vector<6x128xf32>
    %c20_84 = arith.constant 20 : index
    %c0_85 = arith.constant 0 : index
    %145 = vector.load %arg6[%c20_84, %c0_85] : memref<31x128xf32, #tpu.memory_space<vmem>>, vector<1x128xf32>
    %146 = vector.broadcast %145 : vector<1x128xf32> to vector<6x128xf32>
    %147 = arith.mulf %144, %146 : vector<6x128xf32>
    %148 = arith.addf %143, %147 : vector<6x128xf32>
    %c21 = arith.constant 21 : index
    %c0_86 = arith.constant 0 : index
    %149 = vector.load %arg13[%c21, %c0_86] : memref<36x128xf32, #tpu.memory_space<vmem>>, vector<6x128xf32>
    %c21_87 = arith.constant 21 : index
    %c0_88 = arith.constant 0 : index
    %150 = vector.load %arg6[%c21_87, %c0_88] : memref<31x128xf32, #tpu.memory_space<vmem>>, vector<1x128xf32>
    %151 = vector.broadcast %150 : vector<1x128xf32> to vector<6x128xf32>
    %152 = arith.mulf %149, %151 : vector<6x128xf32>
    %153 = arith.addf %148, %152 : vector<6x128xf32>
    %c22 = arith.constant 22 : index
    %c0_89 = arith.constant 0 : index
    %154 = vector.load %arg13[%c22, %c0_89] : memref<36x128xf32, #tpu.memory_space<vmem>>, vector<6x128xf32>
    %c22_90 = arith.constant 22 : index
    %c0_91 = arith.constant 0 : index
    %155 = vector.load %arg6[%c22_90, %c0_91] : memref<31x128xf32, #tpu.memory_space<vmem>>, vector<1x128xf32>
    %156 = vector.broadcast %155 : vector<1x128xf32> to vector<6x128xf32>
    %157 = arith.mulf %154, %156 : vector<6x128xf32>
    %158 = arith.addf %153, %157 : vector<6x128xf32>
    %c23 = arith.constant 23 : index
    %c0_92 = arith.constant 0 : index
    %159 = vector.load %arg13[%c23, %c0_92] : memref<36x128xf32, #tpu.memory_space<vmem>>, vector<6x128xf32>
    %c23_93 = arith.constant 23 : index
    %c0_94 = arith.constant 0 : index
    %160 = vector.load %arg6[%c23_93, %c0_94] : memref<31x128xf32, #tpu.memory_space<vmem>>, vector<1x128xf32>
    %161 = vector.broadcast %160 : vector<1x128xf32> to vector<6x128xf32>
    %162 = arith.mulf %159, %161 : vector<6x128xf32>
    %163 = arith.addf %158, %162 : vector<6x128xf32>
    %c24 = arith.constant 24 : index
    %c0_95 = arith.constant 0 : index
    %164 = vector.load %arg13[%c24, %c0_95] : memref<36x128xf32, #tpu.memory_space<vmem>>, vector<6x128xf32>
    %c24_96 = arith.constant 24 : index
    %c0_97 = arith.constant 0 : index
    %165 = vector.load %arg6[%c24_96, %c0_97] : memref<31x128xf32, #tpu.memory_space<vmem>>, vector<1x128xf32>
    %166 = vector.broadcast %165 : vector<1x128xf32> to vector<6x128xf32>
    %167 = arith.mulf %164, %166 : vector<6x128xf32>
    %168 = arith.addf %163, %167 : vector<6x128xf32>
    %c25 = arith.constant 25 : index
    %c0_98 = arith.constant 0 : index
    %169 = vector.load %arg13[%c25, %c0_98] : memref<36x128xf32, #tpu.memory_space<vmem>>, vector<6x128xf32>
    %c25_99 = arith.constant 25 : index
    %c0_100 = arith.constant 0 : index
    %170 = vector.load %arg6[%c25_99, %c0_100] : memref<31x128xf32, #tpu.memory_space<vmem>>, vector<1x128xf32>
    %171 = vector.broadcast %170 : vector<1x128xf32> to vector<6x128xf32>
    %172 = arith.mulf %169, %171 : vector<6x128xf32>
    %173 = arith.addf %168, %172 : vector<6x128xf32>
    %c26 = arith.constant 26 : index
    %c0_101 = arith.constant 0 : index
    %174 = vector.load %arg13[%c26, %c0_101] : memref<36x128xf32, #tpu.memory_space<vmem>>, vector<6x128xf32>
    %c26_102 = arith.constant 26 : index
    %c0_103 = arith.constant 0 : index
    %175 = vector.load %arg6[%c26_102, %c0_103] : memref<31x128xf32, #tpu.memory_space<vmem>>, vector<1x128xf32>
    %176 = vector.broadcast %175 : vector<1x128xf32> to vector<6x128xf32>
    %177 = arith.mulf %174, %176 : vector<6x128xf32>
    %178 = arith.addf %173, %177 : vector<6x128xf32>
    %c27 = arith.constant 27 : index
    %c0_104 = arith.constant 0 : index
    %179 = vector.load %arg13[%c27, %c0_104] : memref<36x128xf32, #tpu.memory_space<vmem>>, vector<6x128xf32>
    %c27_105 = arith.constant 27 : index
    %c0_106 = arith.constant 0 : index
    %180 = vector.load %arg6[%c27_105, %c0_106] : memref<31x128xf32, #tpu.memory_space<vmem>>, vector<1x128xf32>
    %181 = vector.broadcast %180 : vector<1x128xf32> to vector<6x128xf32>
    %182 = arith.mulf %179, %181 : vector<6x128xf32>
    %183 = arith.addf %178, %182 : vector<6x128xf32>
    %c28 = arith.constant 28 : index
    %c0_107 = arith.constant 0 : index
    %184 = vector.load %arg13[%c28, %c0_107] : memref<36x128xf32, #tpu.memory_space<vmem>>, vector<6x128xf32>
    %c28_108 = arith.constant 28 : index
    %c0_109 = arith.constant 0 : index
    %185 = vector.load %arg6[%c28_108, %c0_109] : memref<31x128xf32, #tpu.memory_space<vmem>>, vector<1x128xf32>
    %186 = vector.broadcast %185 : vector<1x128xf32> to vector<6x128xf32>
    %187 = arith.mulf %184, %186 : vector<6x128xf32>
    %188 = arith.addf %183, %187 : vector<6x128xf32>
    %c29 = arith.constant 29 : index
    %c0_110 = arith.constant 0 : index
    %189 = vector.load %arg13[%c29, %c0_110] : memref<36x128xf32, #tpu.memory_space<vmem>>, vector<6x128xf32>
    %c29_111 = arith.constant 29 : index
    %c0_112 = arith.constant 0 : index
    %190 = vector.load %arg6[%c29_111, %c0_112] : memref<31x128xf32, #tpu.memory_space<vmem>>, vector<1x128xf32>
    %191 = vector.broadcast %190 : vector<1x128xf32> to vector<6x128xf32>
    %192 = arith.mulf %189, %191 : vector<6x128xf32>
    %193 = arith.addf %188, %192 : vector<6x128xf32>
    %c30 = arith.constant 30 : index
    %c0_113 = arith.constant 0 : index
    %194 = vector.load %arg13[%c30, %c0_113] : memref<36x128xf32, #tpu.memory_space<vmem>>, vector<6x128xf32>
    %c30_114 = arith.constant 30 : index
    %c0_115 = arith.constant 0 : index
    %195 = vector.load %arg6[%c30_114, %c0_115] : memref<31x128xf32, #tpu.memory_space<vmem>>, vector<1x128xf32>
    %196 = vector.broadcast %195 : vector<1x128xf32> to vector<6x128xf32>
    %197 = arith.mulf %194, %196 : vector<6x128xf32>
    %198 = arith.addf %193, %197 : vector<6x128xf32>
    %c0_116 = arith.constant 0 : index
    %c0_117 = arith.constant 0 : index
    %199 = vector.load %arg7[%c0_116, %c0_117] : memref<1x128xf32, #tpu.memory_space<vmem>>, vector<1x128xf32>
    %200 = vector.broadcast %199 : vector<1x128xf32> to vector<6x128xf32>
    %201 = arith.addf %198, %200 : vector<6x128xf32>
    %c0_118 = arith.constant 0 : index
    %c0_119 = arith.constant 0 : index
    %202 = vector.load %arg8[%c0_118, %c0_119] : memref<1x128xf32, #tpu.memory_space<vmem>>, vector<1x128xf32>
    %203 = vector.broadcast %202 : vector<1x128xf32> to vector<6x128xf32>
    %204 = arith.mulf %201, %203 : vector<6x128xf32>
    %c0_120 = arith.constant 0 : index
    %c0_121 = arith.constant 0 : index
    %205 = vector.load %arg9[%c0_120, %c0_121] : memref<1x128xf32, #tpu.memory_space<vmem>>, vector<1x128xf32>
    %206 = vector.broadcast %205 : vector<1x128xf32> to vector<6x128xf32>
    %207 = arith.addf %204, %206 : vector<6x128xf32>
    %208 = arith.negf %207 : vector<6x128xf32>
    %209 = math.exp %208 : vector<6x128xf32>
    %cst_122 = arith.constant 1.000000e+00 : f32
    %210 = vector.broadcast %cst_122 : f32 to vector<6x128xf32>
    %211 = arith.addf %210, %209 : vector<6x128xf32>
    %212 = arith.divf %210, %211 : vector<6x128xf32>
    %213 = arith.mulf %207, %212 : vector<6x128xf32>
    %214 = arith.truncf %213 : vector<6x128xf32> to vector<6x128xbf16>
    %c0_123 = arith.constant 0 : index
    %c0_124 = arith.constant 0 : index
    %215 = vector.load %arg10[%c0_123, %c0_124] : memref<128x128xbf16, #tpu.memory_space<vmem>>, vector<128x128xbf16>
    %cst_125 = arith.constant dense<0.000000e+00> : vector<6x128xf32>
    %216 = tpu.matmul %214, %215, %cst_125 {dimension_numbers = #tpu.dot_dimension_numbers<[1], [0], [0], [1], [0, 0, 1, 1], [], []>} : vector<6x128xbf16>, vector<128x128xbf16>, vector<6x128xf32> -> vector<6x128xf32>
    %c0_126 = arith.constant 0 : index
    %c0_127 = arith.constant 0 : index
    %217 = vector.load %arg11[%c0_126, %c0_127] : memref<1x128xf32, #tpu.memory_space<vmem>>, vector<1x128xf32>
    %218 = vector.broadcast %217 : vector<1x128xf32> to vector<6x128xf32>
    %219 = arith.addf %216, %218 : vector<6x128xf32>
    %220 = arith.addf %1, %219 : vector<6x128xf32>
    %c0_128 = arith.constant 0 : index
    %c0_129 = arith.constant 0 : index
    %c0_130 = arith.constant 0 : index
    %221 = vector.load %arg12[%c0_128, %c0_129, %c0_130] : memref<1x6x128xf32, #tpu.memory_space<vmem>>, vector<1x6x128xf32>
    %222 = vector.shape_cast %221 : vector<1x6x128xf32> to vector<6x128xf32>
    %223 = vector.shape_cast %220 : vector<6x128xf32> to vector<1x6x128xf32>
    tpu.vector_store %arg12[%c0_128, %c0_129, %c0_130], %223 {strides = array<i32>} : memref<1x6x128xf32, #tpu.memory_space<vmem>>, vector<1x6x128xf32>,
    return
  }
  func.func @transform_0(%arg0: i32) -> (i32, i32, i32) {
    %c0_i32 = arith.constant 0 : i32
    %c0_i32_0 = arith.constant 0 : i32
    %c0_i32_1 = arith.constant 0 : i32
    return %arg0, %c0_i32, %c0_i32_0 : i32, i32, i32
  }
  func.func @transform_1(%arg0: i32) -> (i32, i32) {
    %c0_i32 = arith.constant 0 : i32
    %c0_i32_0 = arith.constant 0 : i32
    %c0_i32_1 = arith.constant 0 : i32
    return %c0_i32, %c0_i32_0 : i32, i32
  }
  func.func @transform_2(%arg0: i32) -> (i32, i32) {
    %c0_i32 = arith.constant 0 : i32
    %c0_i32_0 = arith.constant 0 : i32
    %c0_i32_1 = arith.constant 0 : i32
    return %c0_i32, %c0_i32_0 : i32, i32
  }
  func.func @transform_3(%arg0: i32) -> (i32, i32) {
    %c0_i32 = arith.constant 0 : i32
    %c0_i32_0 = arith.constant 0 : i32
    %c0_i32_1 = arith.constant 0 : i32
    return %c0_i32, %c0_i32_0 : i32, i32
  }
  func.func @transform_4(%arg0: i32) -> (i32, i32) {
    %c0_i32 = arith.constant 0 : i32
    %c0_i32_0 = arith.constant 0 : i32
    %c0_i32_1 = arith.constant 0 : i32
    return %c0_i32, %c0_i32_0 : i32, i32
  }
  func.func @transform_5(%arg0: i32) -> (i32, i32) {
    %c0_i32 = arith.constant 0 : i32
    %c0_i32_0 = arith.constant 0 : i32
    %c0_i32_1 = arith.constant 0 : i32
    return %c0_i32, %c0_i32_0 : i32, i32
  }
  func.func @transform_6(%arg0: i32) -> (i32, i32) {
    %c0_i32 = arith.constant 0 : i32
    %c0_i32_0 = arith.constant 0 : i32
    %c0_i32_1 = arith.constant 0 : i32
    return %c0_i32, %c0_i32_0 : i32, i32
  }
  func.func @transform_7(%arg0: i32) -> (i32, i32) {
    %c0_i32 = arith.constant 0 : i32
    %c0_i32_0 = arith.constant 0 : i32
    %c0_i32_1 = arith.constant 0 : i32
    return %c0_i32, %c0_i32_0 : i32, i32
  }
  func.func @transform_8(%arg0: i32) -> (i32, i32) {
    %c0_i32 = arith.constant 0 : i32
    %c0_i32_0 = arith.constant 0 : i32
    %c0_i32_1 = arith.constant 0 : i32
    return %c0_i32, %c0_i32_0 : i32, i32
  }
  func.func @transform_9(%arg0: i32) -> (i32, i32) {
    %c0_i32 = arith.constant 0 : i32
    %c0_i32_0 = arith.constant 0 : i32
    %c0_i32_1 = arith.constant 0 : i32
    return %c0_i32, %c0_i32_0 : i32, i32
  }
  func.func @transform_10(%arg0: i32) -> (i32, i32) {
    %c0_i32 = arith.constant 0 : i32
    %c0_i32_0 = arith.constant 0 : i32
    %c0_i32_1 = arith.constant 0 : i32
    return %c0_i32, %c0_i32_0 : i32, i32
  }
  func.func @transform_11(%arg0: i32) -> (i32, i32, i32) {
    %c0_i32 = arith.constant 0 : i32
    %c0_i32_0 = arith.constant 0 : i32
    %c0_i32_1 = arith.constant 0 : i32
    return %arg0, %c0_i32, %c0_i32_0 : i32, i32, i32
  }
}

module attributes {stable_mosaic.version = 11 : i64} {
  func.func @_ffn_fused_kernel(%arg0: i32, %arg1: memref<12x128xf32, #tpu.memory_space<vmem>>, %arg2: memref<1x128xf32, #tpu.memory_space<vmem>>, %arg3: memref<1x128xf32, #tpu.memory_space<vmem>>, %arg4: memref<128x128xbf16, #tpu.memory_space<vmem>>, %arg5: memref<1x128xf32, #tpu.memory_space<vmem>>, %arg6: memref<128x128xbf16, #tpu.memory_space<vmem>>, %arg7: memref<1x128xf32, #tpu.memory_space<vmem>>, %arg8: memref<1x128xf32, #tpu.memory_space<vmem>>, %arg9: memref<1x128xf32, #tpu.memory_space<vmem>>, %arg10: memref<12x128xf32, #tpu.memory_space<vmem>>) attributes {dimension_semantics = [#tpu.dimension_semantics<parallel>], iteration_bounds = array<i64: 1>, scalar_prefetch = 0 : i64, scratch_operands = 0 : i64, tpu.core_type = #tpu.core_type<tc>, window_params = [{transform_indices = @transform_0, window_bounds = array<i64: 12, 128>}, {pipeline_mode = #tpu.pipeline_mode<synchronous>, transform_indices = @transform_1, window_bounds = array<i64: 1, 128>}, {pipeline_mode = #tpu.pipeline_mode<synchronous>, transform_indices = @transform_2, window_bounds = array<i64: 1, 128>}, {pipeline_mode = #tpu.pipeline_mode<synchronous>, transform_indices = @transform_3, window_bounds = array<i64: 128, 128>}, {pipeline_mode = #tpu.pipeline_mode<synchronous>, transform_indices = @transform_4, window_bounds = array<i64: 1, 128>}, {pipeline_mode = #tpu.pipeline_mode<synchronous>, transform_indices = @transform_5, window_bounds = array<i64: 128, 128>}, {pipeline_mode = #tpu.pipeline_mode<synchronous>, transform_indices = @transform_6, window_bounds = array<i64: 1, 128>}, {pipeline_mode = #tpu.pipeline_mode<synchronous>, transform_indices = @transform_7, window_bounds = array<i64: 1, 128>}, {pipeline_mode = #tpu.pipeline_mode<synchronous>, transform_indices = @transform_8, window_bounds = array<i64: 1, 128>}, {transform_indices = @transform_9, window_bounds = array<i64: 12, 128>}]} {
    %c0 = arith.constant 0 : index
    %c0_0 = arith.constant 0 : index
    %0 = vector.load %arg1[%c0, %c0_0] : memref<12x128xf32, #tpu.memory_space<vmem>>, vector<12x128xf32>
    %c0_1 = arith.constant 0 : index
    %c0_2 = arith.constant 0 : index
    %1 = vector.load %arg2[%c0_1, %c0_2] : memref<1x128xf32, #tpu.memory_space<vmem>>, vector<1x128xf32>
    %c0_3 = arith.constant 0 : index
    %c0_4 = arith.constant 0 : index
    %2 = vector.load %arg3[%c0_3, %c0_4] : memref<1x128xf32, #tpu.memory_space<vmem>>, vector<1x128xf32>
    %cst = arith.constant dense<0.000000e+00> : vector<12xf32>
    %3 = vector.multi_reduction <add>, %0, %cst [1] : vector<12x128xf32> to vector<12xf32>
    %4 = vector.shape_cast %3 : vector<12xf32> to vector<12x1xf32>
    %cst_5 = arith.constant 3.125000e-02 : f32
    %5 = vector.broadcast %cst_5 : f32 to vector<12x1xf32>
    %6 = arith.mulf %4, %5 : vector<12x1xf32>
    %7 = arith.mulf %0, %0 : vector<12x128xf32>
    %cst_6 = arith.constant dense<0.000000e+00> : vector<12xf32>
    %8 = vector.multi_reduction <add>, %7, %cst_6 [1] : vector<12x128xf32> to vector<12xf32>
    %9 = vector.shape_cast %8 : vector<12xf32> to vector<12x1xf32>
    %cst_7 = arith.constant 3.125000e-02 : f32
    %10 = vector.broadcast %cst_7 : f32 to vector<12x1xf32>
    %11 = arith.mulf %9, %10 : vector<12x1xf32>
    %12 = arith.mulf %6, %6 : vector<12x1xf32>
    %13 = arith.subf %11, %12 : vector<12x1xf32>
    %14 = vector.broadcast %6 : vector<12x1xf32> to vector<12x128xf32>
    %15 = arith.subf %0, %14 : vector<12x128xf32>
    %cst_8 = arith.constant 9.99999974E-6 : f32
    %16 = vector.broadcast %cst_8 : f32 to vector<12x1xf32>
    %17 = arith.addf %13, %16 : vector<12x1xf32>
    %18 = math.rsqrt %17 : vector<12x1xf32>
    %19 = vector.broadcast %18 : vector<12x1xf32> to vector<12x128xf32>
    %20 = arith.mulf %15, %19 : vector<12x128xf32>
    %21 = vector.broadcast %1 : vector<1x128xf32> to vector<12x128xf32>
    %22 = arith.mulf %20, %21 : vector<12x128xf32>
    %23 = vector.broadcast %2 : vector<1x128xf32> to vector<12x128xf32>
    %24 = arith.addf %22, %23 : vector<12x128xf32>
    %25 = arith.truncf %24 : vector<12x128xf32> to vector<12x128xbf16>
    %c0_9 = arith.constant 0 : index
    %c0_10 = arith.constant 0 : index
    %26 = vector.load %arg4[%c0_9, %c0_10] : memref<128x128xbf16, #tpu.memory_space<vmem>>, vector<128x128xbf16>
    %cst_11 = arith.constant dense<0.000000e+00> : vector<12x128xf32>
    %27 = tpu.matmul %25, %26, %cst_11 {dimension_numbers = #tpu.dot_dimension_numbers<[1], [0], [0], [1], [0, 0, 1, 1], [], []>} : vector<12x128xbf16>, vector<128x128xbf16>, vector<12x128xf32> -> vector<12x128xf32>
    %c0_12 = arith.constant 0 : index
    %c0_13 = arith.constant 0 : index
    %28 = vector.load %arg5[%c0_12, %c0_13] : memref<1x128xf32, #tpu.memory_space<vmem>>, vector<1x128xf32>
    %29 = vector.broadcast %28 : vector<1x128xf32> to vector<12x128xf32>
    %30 = arith.addf %27, %29 : vector<12x128xf32>
    %31 = arith.negf %30 : vector<12x128xf32>
    %32 = math.exp %31 : vector<12x128xf32>
    %cst_14 = arith.constant 1.000000e+00 : f32
    %33 = vector.broadcast %cst_14 : f32 to vector<12x128xf32>
    %34 = arith.addf %33, %32 : vector<12x128xf32>
    %35 = arith.divf %33, %34 : vector<12x128xf32>
    %36 = arith.mulf %30, %35 : vector<12x128xf32>
    %37 = arith.truncf %36 : vector<12x128xf32> to vector<12x128xbf16>
    %c0_15 = arith.constant 0 : index
    %c0_16 = arith.constant 0 : index
    %38 = vector.load %arg6[%c0_15, %c0_16] : memref<128x128xbf16, #tpu.memory_space<vmem>>, vector<128x128xbf16>
    %cst_17 = arith.constant dense<0.000000e+00> : vector<12x128xf32>
    %39 = tpu.matmul %37, %38, %cst_17 {dimension_numbers = #tpu.dot_dimension_numbers<[1], [0], [0], [1], [0, 0, 1, 1], [], []>} : vector<12x128xbf16>, vector<128x128xbf16>, vector<12x128xf32> -> vector<12x128xf32>
    %c0_18 = arith.constant 0 : index
    %c0_19 = arith.constant 0 : index
    %40 = vector.load %arg7[%c0_18, %c0_19] : memref<1x128xf32, #tpu.memory_space<vmem>>, vector<1x128xf32>
    %41 = vector.broadcast %40 : vector<1x128xf32> to vector<12x128xf32>
    %42 = arith.addf %39, %41 : vector<12x128xf32>
    %cst_20 = arith.constant 5.000000e-01 : f32
    %43 = vector.broadcast %cst_20 : f32 to vector<12x128xf32>
    %44 = arith.mulf %43, %42 : vector<12x128xf32>
    %45 = arith.addf %0, %44 : vector<12x128xf32>
    %c0_21 = arith.constant 0 : index
    %c0_22 = arith.constant 0 : index
    %46 = vector.load %arg8[%c0_21, %c0_22] : memref<1x128xf32, #tpu.memory_space<vmem>>, vector<1x128xf32>
    %c0_23 = arith.constant 0 : index
    %c0_24 = arith.constant 0 : index
    %47 = vector.load %arg9[%c0_23, %c0_24] : memref<1x128xf32, #tpu.memory_space<vmem>>, vector<1x128xf32>
    %cst_25 = arith.constant dense<0.000000e+00> : vector<12xf32>
    %48 = vector.multi_reduction <add>, %45, %cst_25 [1] : vector<12x128xf32> to vector<12xf32>
    %49 = vector.shape_cast %48 : vector<12xf32> to vector<12x1xf32>
    %cst_26 = arith.constant 3.125000e-02 : f32
    %50 = vector.broadcast %cst_26 : f32 to vector<12x1xf32>
    %51 = arith.mulf %49, %50 : vector<12x1xf32>
    %52 = arith.mulf %45, %45 : vector<12x128xf32>
    %cst_27 = arith.constant dense<0.000000e+00> : vector<12xf32>
    %53 = vector.multi_reduction <add>, %52, %cst_27 [1] : vector<12x128xf32> to vector<12xf32>
    %54 = vector.shape_cast %53 : vector<12xf32> to vector<12x1xf32>
    %cst_28 = arith.constant 3.125000e-02 : f32
    %55 = vector.broadcast %cst_28 : f32 to vector<12x1xf32>
    %56 = arith.mulf %54, %55 : vector<12x1xf32>
    %57 = arith.mulf %51, %51 : vector<12x1xf32>
    %58 = arith.subf %56, %57 : vector<12x1xf32>
    %59 = vector.broadcast %51 : vector<12x1xf32> to vector<12x128xf32>
    %60 = arith.subf %45, %59 : vector<12x128xf32>
    %cst_29 = arith.constant 9.99999974E-6 : f32
    %61 = vector.broadcast %cst_29 : f32 to vector<12x1xf32>
    %62 = arith.addf %58, %61 : vector<12x1xf32>
    %63 = math.rsqrt %62 : vector<12x1xf32>
    %64 = vector.broadcast %63 : vector<12x1xf32> to vector<12x128xf32>
    %65 = arith.mulf %60, %64 : vector<12x128xf32>
    %66 = vector.broadcast %46 : vector<1x128xf32> to vector<12x128xf32>
    %67 = arith.mulf %65, %66 : vector<12x128xf32>
    %68 = vector.broadcast %47 : vector<1x128xf32> to vector<12x128xf32>
    %69 = arith.addf %67, %68 : vector<12x128xf32>
    %c0_30 = arith.constant 0 : index
    %c0_31 = arith.constant 0 : index
    %70 = vector.load %arg10[%c0_30, %c0_31] : memref<12x128xf32, #tpu.memory_space<vmem>>, vector<12x128xf32>
    tpu.vector_store %arg10[%c0_30, %c0_31], %69 {strides = array<i32>} : memref<12x128xf32, #tpu.memory_space<vmem>>, vector<12x128xf32>,
    return
  }
  func.func @transform_0(%arg0: i32) -> (i32, i32) {
    %c0_i32 = arith.constant 0 : i32
    %c0_i32_0 = arith.constant 0 : i32
    return %arg0, %c0_i32 : i32, i32
  }
  func.func @transform_1(%arg0: i32) -> (i32, i32) {
    %c0_i32 = arith.constant 0 : i32
    %c0_i32_0 = arith.constant 0 : i32
    %c0_i32_1 = arith.constant 0 : i32
    return %c0_i32, %c0_i32_0 : i32, i32
  }
  func.func @transform_2(%arg0: i32) -> (i32, i32) {
    %c0_i32 = arith.constant 0 : i32
    %c0_i32_0 = arith.constant 0 : i32
    %c0_i32_1 = arith.constant 0 : i32
    return %c0_i32, %c0_i32_0 : i32, i32
  }
  func.func @transform_3(%arg0: i32) -> (i32, i32) {
    %c0_i32 = arith.constant 0 : i32
    %c0_i32_0 = arith.constant 0 : i32
    %c0_i32_1 = arith.constant 0 : i32
    return %c0_i32, %c0_i32_0 : i32, i32
  }
  func.func @transform_4(%arg0: i32) -> (i32, i32) {
    %c0_i32 = arith.constant 0 : i32
    %c0_i32_0 = arith.constant 0 : i32
    %c0_i32_1 = arith.constant 0 : i32
    return %c0_i32, %c0_i32_0 : i32, i32
  }
  func.func @transform_5(%arg0: i32) -> (i32, i32) {
    %c0_i32 = arith.constant 0 : i32
    %c0_i32_0 = arith.constant 0 : i32
    %c0_i32_1 = arith.constant 0 : i32
    return %c0_i32, %c0_i32_0 : i32, i32
  }
  func.func @transform_6(%arg0: i32) -> (i32, i32) {
    %c0_i32 = arith.constant 0 : i32
    %c0_i32_0 = arith.constant 0 : i32
    %c0_i32_1 = arith.constant 0 : i32
    return %c0_i32, %c0_i32_0 : i32, i32
  }
  func.func @transform_7(%arg0: i32) -> (i32, i32) {
    %c0_i32 = arith.constant 0 : i32
    %c0_i32_0 = arith.constant 0 : i32
    %c0_i32_1 = arith.constant 0 : i32
    return %c0_i32, %c0_i32_0 : i32, i32
  }
  func.func @transform_8(%arg0: i32) -> (i32, i32) {
    %c0_i32 = arith.constant 0 : i32
    %c0_i32_0 = arith.constant 0 : i32
    %c0_i32_1 = arith.constant 0 : i32
    return %c0_i32, %c0_i32_0 : i32, i32
  }
  func.func @transform_9(%arg0: i32) -> (i32, i32) {
    %c0_i32 = arith.constant 0 : i32
    %c0_i32_0 = arith.constant 0 : i32
    return %arg0, %c0_i32 : i32, i32
  }
}

</mosaic_0001>

<llo_original>
// kernel: conformer_encoder_forward.11
$region0: #{conformer_encoder_forward.11}
  #allocation0 [shape = 'u32[]', space=smem, size = 0x4, offset = 0x4, fixed_abs, tag = 'smem constant byte address 0x4 - core index']
  #allocation1 [shape = 'u32[72,128]{1,0:T(1,128)}', space=vmem, size = 0x9000, scoped, tag = 'internal scratch']
  %s0 = inlined_call_operand.vmem [shape: f32[182,9], index: 0, kind: input, shape index: {}]
  %s1 = inlined_call_operand.vmem [shape: bf16[9,32], index: 1, kind: input, shape index: {}]
  %s2 = inlined_call_operand.vmem [shape: f32[1,32], index: 2, kind: input, shape index: {}]
  %s3 = inlined_call_operand.vmem [shape: f32[182,32], index: 3, kind: output, shape index: {}]
  %s4 = sld [smem:[#allocation0]]
  $region22: #{conformer_encoder_forward.11} parent=0
    _
  %s6 = ssub.s32 1, %s4
  %s7 = scalar_select 0, %s6, %s4
  // Predicated region
  $region2: #{conformer_encoder_forward.11} parent=0 // pred_check
    _
  $region3: #{conformer_encoder_forward.11} parent=0 // pred_check_branch
    %9 = sbr.rel (0) target = $region5
  $region4: #{conformer_encoder_forward.11} parent=0 // pred_region
    _
  $region5: #{conformer_encoder_forward.11} parent=0 // pred_fallthru
    _
  // Predicated region
  $region6: #{conformer_encoder_forward.11} parent=0 // pred_check
    _
  $region7: #{conformer_encoder_forward.11} parent=0 // pred_check_branch
    %11 = sbr.rel (0) target = $region9
  $region8: #{conformer_encoder_forward.11} parent=0 // pred_region
    _
  $region9: #{conformer_encoder_forward.11} parent=0 // pred_fallthru
    _
  // Predicated region
  $region10: #{conformer_encoder_forward.11} parent=0 // pred_check
    _
  $region11: #{conformer_encoder_forward.11} parent=0 // pred_check_branch
    %13 = sbr.rel (0) target = $region13
  $region12: #{conformer_encoder_forward.11} parent=0 // pred_region
    _
  $region13: #{conformer_encoder_forward.11} parent=0 // pred_fallthru
    _
  %v15 = vld [vmem:[%s0] sm:$0xff]
  %v16 = vld [vmem:[%s0 + $0x8] sm:$0xff]
  %v17 = vld [vmem:[%s0 + $0x10] sm:$0xff]
  %v18 = vld [vmem:[%s0 + $0x18] sm:$0xff]
  %v19 = vld [vmem:[%s0 + $0x20] sm:$0xff]
  %v20 = vld [vmem:[%s0 + $0x28] sm:$0xff]
  %v21 = vld [vmem:[%s0 + $0x30] sm:$0xff]
  %v22 = vld [vmem:[%s0 + $0x38] sm:$0xff]
  %v23 = vld [vmem:[%s0 + $0x40] sm:$0xff]
  %v24 = vld [vmem:[%s0 + $0x48] sm:$0xff]
  %v25 = vld [vmem:[%s0 + $0x50] sm:$0xff]
  %v26 = vld [vmem:[%s0 + $0x58] sm:$0xff]
  %v27 = vld [vmem:[%s0 + $0x60] sm:$0xff]
  %v28 = vld [vmem:[%s0 + $0x68] sm:$0xff]
  %v29 = vld [vmem:[%s0 + $0x70] sm:$0xff]
  %v30 = vld [vmem:[%s0 + $0x78] sm:$0xff]
  %v31 = vld [vmem:[%s0 + $0x80] sm:$0xff]
  %v32 = vld [vmem:[%s0 + $0x88] sm:$0xff]
  %v33 = vld [vmem:[%s0 + $0x90] sm:$0xff]
  %v34 = vld [vmem:[%s0 + $0x98] sm:$0xff]
  %v35 = vld [vmem:[%s0 + $0xa0] sm:$0xff]
  %v36 = vld [vmem:[%s0 + $0xa8] sm:$0xff]
  %v37 = vld [vmem:[%s0 + $0xb0] sm:$0x3f]
  %v38 = vpack.c.bf16 %v16, %v15
  %v39 = vpack.c.bf16 %v18, %v17
  %v40 = vpack.c.bf16 %v20, %v19
  %v41 = vpack.c.bf16 %v22, %v21
  %v42 = vpack.c.bf16 %v24, %v23
  %v43 = vpack.c.bf16 %v26, %v25
  %v44 = vpack.c.bf16 %v28, %v27
  %v45 = vpack.c.bf16 %v30, %v29
  %v46 = vpack.c.bf16 %v32, %v31
  %v47 = vpack.c.bf16 %v34, %v33
  %v48 = vpack.c.bf16 %v36, %v35
  %v49 = vpack.c.bf16 %v37, %v37
  %v50 = vld [vmem:[%s1] sm:$0xf]
  %v51 = vld [vmem:[%s1 + $0x4] sm:$0x1]
  %v52 = vld [vmem:[%s2] sm:$0x1]
  %v54 = vperm.slane %v52, 0
  %v58 = vunpack.c.l.b16 %v50
  %v59 = vunpack.c.l.b16 %v51
  %v60 = vpack.c.b16 %v59, %v58
  %vm61 = vcmask 72704
  %v63 = vsel %vm61, %v38, 0
  %v66 = vsel %vm61, %v39, 0
  %v69 = vsel %vm61, %v40, 0
  %v72 = vsel %vm61, %v41, 0
  %v75 = vsel %vm61, %v42, 0
  %v78 = vsel %vm61, %v43, 0
  %v81 = vsel %vm61, %v44, 0
  %v84 = vsel %vm61, %v45, 0
  %v87 = vsel %vm61, %v46, 0
  %v90 = vsel %vm61, %v47, 0
  %v93 = vsel %vm61, %v48, 0
  %v96 = vsel %vm61, %v49, 0
  %vm98 = vcmask 1043456
  %vm99 = vcmask 1044480
  %v100 = vsel %vm98, 4294967295, 65535
  %v101 = vsel %vm99, %v100, 0
  %v103 = vand.u32 %v60, %v101
  %105 = vmatpush.bf16.msra.mxu0 0
  %106 = vmatpush.bf16.msra.mxu0 0
  %107 = vmatpush.bf16.msra.mxu0 0
  %108 = vmatpush.bf16.msra.mxu0 0
  %109 = vmatpush.bf16.msra.mxu0 0
  %110 = vmatpush.bf16.msra.mxu0 0
  %111 = vmatpush.bf16.msra.mxu0 0
  %112 = vmatpush.bf16.msra.mxu0 %v103
  %113 = vmatmul.bf16.gmra.mxu0 %v63
  %v114 = vpop.f32.mrf.mxu0
  %v115 = vadd.f32 %v54, %v114
  %v116 = vpop.f32.mrf.mxu0
  %v117 = vadd.f32 %v54, %v116
  %118 = vmatmul.bf16.gmra.mxu0 %v66
  %v119 = vpop.f32.mrf.mxu0
  %v120 = vadd.f32 %v54, %v119
  %v121 = vpop.f32.mrf.mxu0
  %v122 = vadd.f32 %v54, %v121
  %123 = vmatmul.bf16.gmra.mxu0 %v69
  %v124 = vpop.f32.mrf.mxu0
  %v125 = vadd.f32 %v54, %v124
  %v126 = vpop.f32.mrf.mxu0
  %v127 = vadd.f32 %v54, %v126
  %128 = vmatmul.bf16.gmra.mxu0 %v72
  %v129 = vpop.f32.mrf.mxu0
  %v130 = vadd.f32 %v54, %v129
  %v131 = vpop.f32.mrf.mxu0
  %v132 = vadd.f32 %v54, %v131
  %133 = vmatmul.bf16.gmra.mxu0 %v75
  %v134 = vpop.f32.mrf.mxu0
  %v135 = vadd.f32 %v54, %v134
  %v136 = vpop.f32.mrf.mxu0
  %v137 = vadd.f32 %v54, %v136
  %138 = vmatmul.bf16.gmra.mxu0 %v78
  %v139 = vpop.f32.mrf.mxu0
  %v140 = vadd.f32 %v54, %v139
  %v141 = vpop.f32.mrf.mxu0
  %v142 = vadd.f32 %v54, %v141
  %143 = vmatmul.bf16.gmra.mxu0 %v81
  %v144 = vpop.f32.mrf.mxu0
  %v145 = vadd.f32 %v54, %v144
  %v146 = vpop.f32.mrf.mxu0
  %v147 = vadd.f32 %v54, %v146
  %148 = vmatmul.bf16.gmra.mxu0 %v84
  %v149 = vpop.f32.mrf.mxu0
  %v150 = vadd.f32 %v54, %v149
  %v151 = vpop.f32.mrf.mxu0
  %v152 = vadd.f32 %v54, %v151
  %153 = vmatmul.bf16.gmra.mxu0 %v87
  %v154 = vpop.f32.mrf.mxu0
  %v155 = vadd.f32 %v54, %v154
  %v156 = vpop.f32.mrf.mxu0
  %v157 = vadd.f32 %v54, %v156
  %158 = vmatmul.bf16.gmra.mxu0 %v90
  %v159 = vpop.f32.mrf.mxu0
  %v160 = vadd.f32 %v54, %v159
  %v161 = vpop.f32.mrf.mxu0
  %v162 = vadd.f32 %v54, %v161
  %163 = vmatmul.bf16.gmra.mxu0 %v93
  %v164 = vpop.f32.mrf.mxu0
  %v165 = vadd.f32 %v54, %v164
  %v166 = vpop.f32.mrf.mxu0
  %v167 = vadd.f32 %v54, %v166
  %168 = vmatmul.bf16.gmra.mxu0 %v96
  %v169 = vpop.f32.mrf.mxu0
  %v170 = vadd.f32 %v54, %v169
  %v171 = vpop.f32.mrf.mxu0
  %172 = vdwg.mxu0
  %v173 = vmax.f32 %v115, 0.0
  %v174 = vmax.f32 %v117, 0.0
  %v175 = vmax.f32 %v120, 0.0
  %v176 = vmax.f32 %v122, 0.0
  %v177 = vmax.f32 %v125, 0.0
  %v178 = vmax.f32 %v127, 0.0
  %v179 = vmax.f32 %v130, 0.0
  %v180 = vmax.f32 %v132, 0.0
  %v181 = vmax.f32 %v135, 0.0
  %v182 = vmax.f32 %v137, 0.0
  %v183 = vmax.f32 %v140, 0.0
  %v184 = vmax.f32 %v142, 0.0
  %v185 = vmax.f32 %v145, 0.0
  %v186 = vmax.f32 %v147, 0.0
  %v187 = vmax.f32 %v150, 0.0
  %v188 = vmax.f32 %v152, 0.0
  %v189 = vmax.f32 %v155, 0.0
  %v190 = vmax.f32 %v157, 0.0
  %v191 = vmax.f32 %v160, 0.0
  %v192 = vmax.f32 %v162, 0.0
  %v193 = vmax.f32 %v165, 0.0
  %v194 = vmax.f32 %v167, 0.0
  %v195 = vmax.f32 %v170, 0.0
  %vm196 = vcmask 261120
  %197 = vst.msk [vmem:[%s3] sm:$0xff] %vm196, %v173
  %198 = vst.msk [vmem:[%s3 + $0x8] sm:$0xff] %vm196, %v174
  %199 = vst.msk [vmem:[%s3 + $0x10] sm:$0xff] %vm196, %v175
  %200 = vst.msk [vmem:[%s3 + $0x18] sm:$0xff] %vm196, %v176
  %201 = vst.msk [vmem:[%s3 + $0x20] sm:$0xff] %vm196, %v177
  %202 = vst.msk [vmem:[%s3 + $0x28] sm:$0xff] %vm196, %v178
  %203 = vst.msk [vmem:[%s3 + $0x30] sm:$0xff] %vm196, %v179
  %204 = vst.msk [vmem:[%s3 + $0x38] sm:$0xff] %vm196, %v180
  %205 = vst.msk [vmem:[%s3 + $0x40] sm:$0xff] %vm196, %v181
  %206 = vst.msk [vmem:[%s3 + $0x48] sm:$0xff] %vm196, %v182
  %207 = vst.msk [vmem:[%s3 + $0x50] sm:$0xff] %vm196, %v183
  %208 = vst.msk [vmem:[%s3 + $0x58] sm:$0xff] %vm196, %v184
  %209 = vst.msk [vmem:[%s3 + $0x60] sm:$0xff] %vm196, %v185
  %210 = vst.msk [vmem:[%s3 + $0x68] sm:$0xff] %vm196, %v186
  %211 = vst.msk [vmem:[%s3 + $0x70] sm:$0xff] %vm196, %v187
  %212 = vst.msk [vmem:[%s3 + $0x78] sm:$0xff] %vm196, %v188
  %213 = vst.msk [vmem:[%s3 + $0x80] sm:$0xff] %vm196, %v189
  %214 = vst.msk [vmem:[%s3 + $0x88] sm:$0xff] %vm196, %v190
  %215 = vst.msk [vmem:[%s3 + $0x90] sm:$0xff] %vm196, %v191
  %216 = vst.msk [vmem:[%s3 + $0x98] sm:$0xff] %vm196, %v192
  %217 = vst.msk [vmem:[%s3 + $0xa0] sm:$0xff] %vm196, %v193
  %218 = vst.msk [vmem:[%s3 + $0xa8] sm:$0xff] %vm196, %v194
  %vm219 = vcmask 259072
  %220 = vst.msk [vmem:[%s3 + $0xb0] sm:$0x3f] %vm219, %v195
  // Predicated region
  $region14: #{conformer_encoder_forward.11} parent=0 // pred_check
    _
  $region15: #{conformer_encoder_forward.11} parent=0 // pred_check_branch
    %222 = sbr.rel (0) target = $region17
  $region16: #{conformer_encoder_forward.11} parent=0 // pred_region
    _
  $region17: #{conformer_encoder_forward.11} parent=0 // pred_fallthru
    _
  // Predicated region
  $region18: #{conformer_encoder_forward.11} parent=0 // pred_check
    _
  $region19: #{conformer_encoder_forward.11} parent=0 // pred_check_branch
    %224 = sbr.rel (0) target = $region21
  $region20: #{conformer_encoder_forward.11} parent=0 // pred_region
    _
  $region21: #{conformer_encoder_forward.11} parent=0 // pred_fallthru
    _

// kernel: conformer_encoder_forward.12
$region0: #{conformer_encoder_forward.12}
  #allocation0 [shape = 'u32[]', space=smem, size = 0x4, offset = 0x4, fixed_abs, tag = 'smem constant byte address 0x4 - core index']
  #allocation1 [shape = 'u32[72,128]{1,0:T(1,128)}', space=vmem, size = 0x9000, scoped, tag = 'internal scratch']
  %s0 = inlined_call_operand.vmem [shape: f32[36,288], index: 0, kind: input, shape index: {}]
  %s1 = inlined_call_operand.vmem [shape: bf16[288,32], index: 1, kind: input, shape index: {}]
  %s2 = inlined_call_operand.vmem [shape: f32[1,32], index: 2, kind: input, shape index: {}]
  %s3 = inlined_call_operand.vmem [shape: f32[36,32], index: 3, kind: output, shape index: {}]
  %s4 = sld [smem:[#allocation0]]
  $region22: #{conformer_encoder_forward.12} parent=0
    _
  %s6 = ssub.s32 1, %s4
  %s7 = scalar_select 0, %s6, %s4
  // Predicated region
  $region2: #{conformer_encoder_forward.12} parent=0 // pred_check
    _
  $region3: #{conformer_encoder_forward.12} parent=0 // pred_check_branch
    %9 = sbr.rel (0) target = $region5
  $region4: #{conformer_encoder_forward.12} parent=0 // pred_region
    _
  $region5: #{conformer_encoder_forward.12} parent=0 // pred_fallthru
    _
  // Predicated region
  $region6: #{conformer_encoder_forward.12} parent=0 // pred_check
    _
  $region7: #{conformer_encoder_forward.12} parent=0 // pred_check_branch
    %11 = sbr.rel (0) target = $region9
  $region8: #{conformer_encoder_forward.12} parent=0 // pred_region
    _
  $region9: #{conformer_encoder_forward.12} parent=0 // pred_fallthru
    _
  // Predicated region
  $region10: #{conformer_encoder_forward.12} parent=0 // pred_check
    _
  $region11: #{conformer_encoder_forward.12} parent=0 // pred_check_branch
    %13 = sbr.rel (0) target = $region13
  $region12: #{conformer_encoder_forward.12} parent=0 // pred_region
    _
  $region13: #{conformer_encoder_forward.12} parent=0 // pred_fallthru
    _
  %v15 = vld [vmem:[%s0] sm:$0xff]
  %v16 = vld [vmem:[%s0 + $0x8] sm:$0xff]
  %v17 = vld [vmem:[%s0 + $0x10] sm:$0xff]
  %v18 = vld [vmem:[%s0 + $0x18] sm:$0xff]
  %v19 = vld [vmem:[%s0 + $0x20] sm:$0xff]
  %v20 = vld [vmem:[%s0 + $0x28] sm:$0xff]
  %v21 = vld [vmem:[%s0 + $0x30] sm:$0xff]
  %v22 = vld [vmem:[%s0 + $0x38] sm:$0xff]
  %v23 = vld [vmem:[%s0 + $0x40] sm:$0xff]
  %v24 = vld [vmem:[%s0 + $0x48] sm:$0xff]
  %v25 = vld [vmem:[%s0 + $0x50] sm:$0xff]
  %v26 = vld [vmem:[%s0 + $0x58] sm:$0xff]
  %v27 = vld [vmem:[%s0 + $0x60] sm:$0xf]
  %v28 = vld [vmem:[%s0 + $0x68] sm:$0xf]
  %v29 = vld [vmem:[%s0 + $0x70] sm:$0xf]
  %v30 = vpack.c.bf16 %v18, %v15
  %v31 = vpack.c.bf16 %v19, %v16
  %v32 = vpack.c.bf16 %v20, %v17
  %v33 = vpack.c.bf16 %v24, %v21
  %v34 = vpack.c.bf16 %v25, %v22
  %v35 = vpack.c.bf16 %v26, %v23
  %v36 = vpack.c.bf16 %v27, %v27
  %v37 = vpack.c.bf16 %v28, %v28
  %v38 = vpack.c.bf16 %v29, %v29
  %v39 = vld [vmem:[%s1] sm:$0xf]
  %v40 = vld [vmem:[%s1 + $0x4] sm:$0xf]
  %v41 = vld [vmem:[%s1 + $0x8] sm:$0xf]
  %v42 = vld [vmem:[%s1 + $0xc] sm:$0xf]
  %v43 = vld [vmem:[%s1 + $0x10] sm:$0xf]
  %v44 = vld [vmem:[%s1 + $0x14] sm:$0xf]
  %v45 = vld [vmem:[%s1 + $0x18] sm:$0xf]
  %v46 = vld [vmem:[%s1 + $0x1c] sm:$0xf]
  %v47 = vld [vmem:[%s1 + $0x20] sm:$0xf]
  %v48 = vld [vmem:[%s1 + $0x24] sm:$0xf]
  %v49 = vld [vmem:[%s1 + $0x28] sm:$0xf]
  %v50 = vld [vmem:[%s1 + $0x2c] sm:$0xf]
  %v51 = vld [vmem:[%s1 + $0x30] sm:$0xf]
  %v52 = vld [vmem:[%s1 + $0x34] sm:$0xf]
  %v53 = vld [vmem:[%s1 + $0x38] sm:$0xf]
  %v54 = vld [vmem:[%s1 + $0x3c] sm:$0xf]
  %v55 = vld [vmem:[%s1 + $0x40] sm:$0xf]
  %v56 = vld [vmem:[%s1 + $0x44] sm:$0xf]
  %v57 = vld [vmem:[%s1 + $0x48] sm:$0xf]
  %v58 = vld [vmem:[%s1 + $0x4c] sm:$0xf]
  %v59 = vld [vmem:[%s1 + $0x50] sm:$0xf]
  %v60 = vld [vmem:[%s1 + $0x54] sm:$0xf]
  %v61 = vld [vmem:[%s1 + $0x58] sm:$0xf]
  %v62 = vld [vmem:[%s1 + $0x5c] sm:$0xf]
  %v63 = vld [vmem:[%s1 + $0x60] sm:$0xf]
  %v64 = vld [vmem:[%s1 + $0x64] sm:$0xf]
  %v65 = vld [vmem:[%s1 + $0x68] sm:$0xf]
  %v66 = vld [vmem:[%s1 + $0x6c] sm:$0xf]
  %v67 = vld [vmem:[%s1 + $0x70] sm:$0xf]
  %v68 = vld [vmem:[%s1 + $0x74] sm:$0xf]
  %v69 = vld [vmem:[%s1 + $0x78] sm:$0xf]
  %v70 = vld [vmem:[%s1 + $0x7c] sm:$0xf]
  %v71 = vld [vmem:[%s1 + $0x80] sm:$0xf]
  %v72 = vld [vmem:[%s1 + $0x84] sm:$0xf]
  %v73 = vld [vmem:[%s1 + $0x88] sm:$0xf]
  %v74 = vld [vmem:[%s1 + $0x8c] sm:$0xf]
  %v75 = vld [vmem:[%s2] sm:$0x1]
  %v77 = vperm.slane %v75, 0
  %v115 = vunpack.c.l.b16 %v39
  %v116 = vunpack.c.l.b16 %v40
  %v117 = vunpack.c.l.b16 %v41
  %v118 = vunpack.c.l.b16 %v42
  %v119 = vunpack.c.l.b16 %v43
  %v120 = vunpack.c.l.b16 %v44
  %v121 = vunpack.c.l.b16 %v45
  %v122 = vunpack.c.l.b16 %v46
  %v123 = vunpack.c.l.b16 %v47
  %v124 = vunpack.c.l.b16 %v48
  %v125 = vunpack.c.l.b16 %v49
  %v126 = vunpack.c.l.b16 %v50
  %v127 = vunpack.c.l.b16 %v51
  %v128 = vunpack.c.l.b16 %v52
  %v129 = vunpack.c.l.b16 %v53
  %v130 = vunpack.c.l.b16 %v54
  %v131 = vunpack.c.l.b16 %v55
  %v132 = vunpack.c.l.b16 %v56
  %v133 = vunpack.c.l.b16 %v57
  %v134 = vunpack.c.l.b16 %v58
  %v135 = vunpack.c.l.b16 %v59
  %v136 = vunpack.c.l.b16 %v60
  %v137 = vunpack.c.l.b16 %v61
  %v138 = vunpack.c.l.b16 %v62
  %v139 = vunpack.c.l.b16 %v63
  %v140 = vunpack.c.l.b16 %v64
  %v141 = vunpack.c.l.b16 %v65
  %v142 = vunpack.c.l.b16 %v66
  %v143 = vunpack.c.l.b16 %v67
  %v144 = vunpack.c.l.b16 %v68
  %v145 = vunpack.c.l.b16 %v69
  %v146 = vunpack.c.l.b16 %v70
  %v147 = vunpack.c.l.b16 %v71
  %v148 = vunpack.c.l.b16 %v72
  %v149 = vunpack.c.l.b16 %v73
  %v150 = vunpack.c.l.b16 %v74
  %v151 = vpack.c.b16 %v116, %v115
  %v152 = vpack.c.b16 %v118, %v117
  %v153 = vpack.c.b16 %v120, %v119
  %v154 = vpack.c.b16 %v122, %v121
  %v155 = vpack.c.b16 %v124, %v123
  %v156 = vpack.c.b16 %v126, %v125
  %v157 = vpack.c.b16 %v128, %v127
  %v158 = vpack.c.b16 %v130, %v129
  %v159 = vpack.c.b16 %v132, %v131
  %v160 = vpack.c.b16 %v134, %v133
  %v161 = vpack.c.b16 %v136, %v135
  %v162 = vpack.c.b16 %v138, %v137
  %v163 = vpack.c.b16 %v140, %v139
  %v164 = vpack.c.b16 %v142, %v141
  %v165 = vpack.c.b16 %v144, %v143
  %v166 = vpack.c.b16 %v146, %v145
  %v167 = vpack.c.b16 %v148, %v147
  %v168 = vpack.c.b16 %v150, %v149
  %vm187 = vcmask 261120
  %v189 = vsel %vm187, %v32, 0
  %v192 = vsel %vm187, %v35, 0
  %v195 = vsel %vm187, %v38, 0
  %197 = vmatpush.bf16.msra.mxu0 %v158
  %198 = vmatpush.bf16.msra.mxu0 %v157
  %199 = vmatpush.bf16.msra.mxu0 %v156
  %200 = vmatpush.bf16.msra.mxu0 %v155
  %201 = vmatpush.bf16.msra.mxu0 %v154
  %202 = vmatpush.bf16.msra.mxu0 %v153
  %203 = vmatpush.bf16.msra.mxu0 %v152
  %204 = vmatpush.bf16.msra.mxu0 %v151
  %205 = vmatmul.bf16.gmra.mxu0 %v30
  %v206 = vpop.f32.mrf.mxu0
  %v207 = vadd.f32 %v77, %v206
  %v208 = vpop.f32.mrf.mxu0
  %v209 = vadd.f32 %v77, %v208
  %210 = vmatmul.bf16.gmra.mxu0 %v33
  %v211 = vpop.f32.mrf.mxu0
  %v212 = vadd.f32 %v77, %v211
  %v213 = vpop.f32.mrf.mxu0
  %v214 = vadd.f32 %v77, %v213
  %215 = vmatmul.bf16.gmra.mxu0 %v36
  %v216 = vpop.f32.mrf.mxu0
  %v217 = vadd.f32 %v77, %v216
  %v218 = vpop.f32.mrf.mxu0
  %219 = vdwg.mxu0
  %220 = vmatpush.bf16.msra.mxu0 %v166
  %221 = vmatpush.bf16.msra.mxu0 %v165
  %222 = vmatpush.bf16.msra.mxu0 %v164
  %223 = vmatpush.bf16.msra.mxu0 %v163
  %224 = vmatpush.bf16.msra.mxu0 %v162
  %225 = vmatpush.bf16.msra.mxu0 %v161
  %226 = vmatpush.bf16.msra.mxu0 %v160
  %227 = vmatpush.bf16.msra.mxu0 %v159
  %228 = vmatmul.bf16.gmra.mxu0 %v31
  %v229 = vpop.f32.mrf.mxu0
  %v230 = vadd.f32 %v207, %v229
  %v231 = vpop.f32.mrf.mxu0
  %v232 = vadd.f32 %v209, %v231
  %233 = vmatmul.bf16.gmra.mxu0 %v34
  %v234 = vpop.f32.mrf.mxu0
  %v235 = vadd.f32 %v212, %v234
  %v236 = vpop.f32.mrf.mxu0
  %v237 = vadd.f32 %v214, %v236
  %238 = vmatmul.bf16.gmra.mxu0 %v37
  %v239 = vpop.f32.mrf.mxu0
  %v240 = vadd.f32 %v217, %v239
  %v241 = vpop.f32.mrf.mxu0
  %242 = vdwg.mxu0
  %243 = vmatpush.bf16.msra.mxu0 0
  %244 = vmatpush.bf16.msra.mxu0 0
  %245 = vmatpush.bf16.msra.mxu0 0
  %246 = vmatpush.bf16.msra.mxu0 0
  %247 = vmatpush.bf16.msra.mxu0 0
  %248 = vmatpush.bf16.msra.mxu0 0
  %249 = vmatpush.bf16.msra.mxu0 %v168
  %250 = vmatpush.bf16.msra.mxu0 %v167
  %251 = vmatmul.bf16.gmra.mxu0 %v189
  %v252 = vpop.f32.mrf.mxu0
  %v253 = vadd.f32 %v230, %v252
  %v254 = vpop.f32.mrf.mxu0
  %v255 = vadd.f32 %v232, %v254
  %256 = vmatmul.bf16.gmra.mxu0 %v192
  %v257 = vpop.f32.mrf.mxu0
  %v258 = vadd.f32 %v235, %v257
  %v259 = vpop.f32.mrf.mxu0
  %v260 = vadd.f32 %v237, %v259
  %261 = vmatmul.bf16.gmra.mxu0 %v195
  %v262 = vpop.f32.mrf.mxu0
  %v263 = vadd.f32 %v240, %v262
  %v264 = vpop.f32.mrf.mxu0
  %265 = vdwg.mxu0
  %v266 = vmax.f32 %v253, 0.0
  %v267 = vmax.f32 %v255, 0.0
  %v268 = vmax.f32 %v258, 0.0
  %v269 = vmax.f32 %v260, 0.0
  %v270 = vmax.f32 %v263, 0.0
  %271 = vst.msk [vmem:[%s3] sm:$0xff] %vm187, %v266
  %272 = vst.msk [vmem:[%s3 + $0x8] sm:$0xff] %vm187, %v267
  %273 = vst.msk [vmem:[%s3 + $0x10] sm:$0xff] %vm187, %v268
  %274 = vst.msk [vmem:[%s3 + $0x18] sm:$0xff] %vm187, %v269
  %vm275 = vcmask 257024
  %276 = vst.msk [vmem:[%s3 + $0x20] sm:$0xf] %vm275, %v270
  // Predicated region
  $region14: #{conformer_encoder_forward.12} parent=0 // pred_check
    _
  $region15: #{conformer_encoder_forward.12} parent=0 // pred_check_branch
    %278 = sbr.rel (0) target = $region17
  $region16: #{conformer_encoder_forward.12} parent=0 // pred_region
    _
  $region17: #{conformer_encoder_forward.12} parent=0 // pred_fallthru
    _
  // Predicated region
  $region18: #{conformer_encoder_forward.12} parent=0 // pred_check
    _
  $region19: #{conformer_encoder_forward.12} parent=0 // pred_check_branch
    %280 = sbr.rel (0) target = $region21
  $region20: #{conformer_encoder_forward.12} parent=0 // pred_region
    _
  $region21: #{conformer_encoder_forward.12} parent=0 // pred_fallthru
    _

// kernel: conformer_encoder_forward.13
$region0: #{conformer_encoder_forward.13}
  #allocation0 [shape = 'u32[]', space=smem, size = 0x4, offset = 0x4, fixed_abs, tag = 'smem constant byte address 0x4 - core index']
  #allocation1 [shape = 'u32[72,128]{1,0:T(1,128)}', space=vmem, size = 0x9000, scoped, tag = 'internal scratch']
  %s0 = inlined_call_operand.vmem [shape: f32[12,96], index: 0, kind: input, shape index: {}]
  %s1 = inlined_call_operand.vmem [shape: bf16[96,128], index: 1, kind: input, shape index: {}]
  %s2 = inlined_call_operand.vmem [shape: f32[1,128], index: 2, kind: input, shape index: {}]
  %s3 = inlined_call_operand.vmem [shape: f32[12,128], index: 3, kind: output, shape index: {}]
  %s4 = sld [smem:[#allocation0]]
  $region22: #{conformer_encoder_forward.13} parent=0
    _
  %s6 = ssub.s32 1, %s4
  %s7 = scalar_select 0, %s6, %s4
  // Predicated region
  $region2: #{conformer_encoder_forward.13} parent=0 // pred_check
    _
  $region3: #{conformer_encoder_forward.13} parent=0 // pred_check_branch
    %9 = sbr.rel (0) target = $region5
  $region4: #{conformer_encoder_forward.13} parent=0 // pred_region
    _
  $region5: #{conformer_encoder_forward.13} parent=0 // pred_fallthru
    _
  // Predicated region
  $region6: #{conformer_encoder_forward.13} parent=0 // pred_check
    _
  $region7: #{conformer_encoder_forward.13} parent=0 // pred_check_branch
    %11 = sbr.rel (0) target = $region9
  $region8: #{conformer_encoder_forward.13} parent=0 // pred_region
    _
  $region9: #{conformer_encoder_forward.13} parent=0 // pred_fallthru
    _
  // Predicated region
  $region10: #{conformer_encoder_forward.13} parent=0 // pred_check
    _
  $region11: #{conformer_encoder_forward.13} parent=0 // pred_check_branch
    %13 = sbr.rel (0) target = $region13
  $region12: #{conformer_encoder_forward.13} parent=0 // pred_region
    _
  $region13: #{conformer_encoder_forward.13} parent=0 // pred_fallthru
    _
  %v15 = vld [vmem:[%s0] sm:$0xff]
  %v16 = vld [vmem:[%s0 + $0x8] sm:$0xf]
  %v17 = vpack.c.bf16 %v16, %v15
  %v18 = vld [vmem:[%s1] sm:$0xf]
  %v19 = vld [vmem:[%s1 + $0x4] sm:$0xf]
  %v20 = vld [vmem:[%s1 + $0x8] sm:$0xf]
  %v21 = vld [vmem:[%s1 + $0xc] sm:$0xf]
  %v22 = vld [vmem:[%s1 + $0x10] sm:$0xf]
  %v23 = vld [vmem:[%s1 + $0x14] sm:$0xf]
  %v24 = vld [vmem:[%s1 + $0x18] sm:$0xf]
  %v25 = vld [vmem:[%s1 + $0x1c] sm:$0xf]
  %v26 = vld [vmem:[%s1 + $0x20] sm:$0xf]
  %v27 = vld [vmem:[%s1 + $0x24] sm:$0xf]
  %v28 = vld [vmem:[%s1 + $0x28] sm:$0xf]
  %v29 = vld [vmem:[%s1 + $0x2c] sm:$0xf]
  %v30 = vld [vmem:[%s2] sm:$0x1]
  %v32 = vperm.slane %v30, 0
  %v46 = vunpack.c.l.b16 %v18
  %v47 = vunpack.c.l.b16 %v19
  %v48 = vunpack.c.l.b16 %v20
  %v49 = vunpack.c.l.b16 %v21
  %v50 = vunpack.c.l.b16 %v22
  %v51 = vunpack.c.l.b16 %v23
  %v52 = vunpack.c.l.b16 %v24
  %v53 = vunpack.c.l.b16 %v25
  %v54 = vunpack.c.l.b16 %v26
  %v55 = vunpack.c.l.b16 %v27
  %v56 = vunpack.c.l.b16 %v28
  %v57 = vunpack.c.l.b16 %v29
  %v58 = vpack.c.b16 %v47, %v46
  %v59 = vpack.c.b16 %v49, %v48
  %v60 = vpack.c.b16 %v51, %v50
  %v61 = vpack.c.b16 %v53, %v52
  %v62 = vpack.c.b16 %v55, %v54
  %v63 = vpack.c.b16 %v57, %v56
  %vm70 = vcmask 785408
  %v72 = vsel %vm70, %v17, 0
  %74 = vmatpush.bf16.msra.mxu0 0
  %75 = vmatpush.bf16.msra.mxu0 0
  %76 = vmatpush.bf16.msra.mxu0 %v63
  %77 = vmatpush.bf16.msra.mxu0 %v62
  %78 = vmatpush.bf16.msra.mxu0 %v61
  %79 = vmatpush.bf16.msra.mxu0 %v60
  %80 = vmatpush.bf16.msra.mxu0 %v59
  %81 = vmatpush.bf16.msra.mxu0 %v58
  %82 = vmatmul.bf16.gmra.mxu0 %v72
  %v83 = vpop.f32.mrf.mxu0
  %v84 = vadd.f32 %v32, %v83
  %v85 = vpop.f32.mrf.mxu0
  %v86 = vadd.f32 %v32, %v85
  %87 = vdwg.mxu0
  %88 = vst [vmem:[%s3] sm:$0xff] %v84
  %89 = vst [vmem:[%s3 + $0x8] sm:$0xf] %v86
  // Predicated region
  $region14: #{conformer_encoder_forward.13} parent=0 // pred_check
    _
  $region15: #{conformer_encoder_forward.13} parent=0 // pred_check_branch
    %91 = sbr.rel (0) target = $region17
  $region16: #{conformer_encoder_forward.13} parent=0 // pred_region
    _
  $region17: #{conformer_encoder_forward.13} parent=0 // pred_fallthru
    _
  // Predicated region
  $region18: #{conformer_encoder_forward.13} parent=0 // pred_check
    _
  $region19: #{conformer_encoder_forward.13} parent=0 // pred_check_branch
    %93 = sbr.rel (0) target = $region21
  $region20: #{conformer_encoder_forward.13} parent=0 // pred_region
    _
  $region21: #{conformer_encoder_forward.13} parent=0 // pred_fallthru
    _

// kernel: conformer_encoder_forward.14
$region0: #{conformer_encoder_forward.14}
  #allocation0 [shape = 'u32[]', space=smem, size = 0x4, offset = 0x4, fixed_abs, tag = 'smem constant byte address 0x4 - core index']
  #allocation1 [shape = 'u32[72,128]{1,0:T(1,128)}', space=vmem, size = 0x9000, scoped, tag = 'internal scratch']
  %s0 = inlined_call_operand.vmem [shape: f32[12,128], index: 0, kind: input, shape index: {}]
  %s1 = inlined_call_operand.vmem [shape: f32[1,128], index: 1, kind: input, shape index: {}]
  %s2 = inlined_call_operand.vmem [shape: f32[1,128], index: 2, kind: input, shape index: {}]
  %s3 = inlined_call_operand.vmem [shape: bf16[128,128], index: 3, kind: input, shape index: {}]
  %s4 = inlined_call_operand.vmem [shape: f32[1,128], index: 4, kind: input, shape index: {}]
  %s5 = inlined_call_operand.vmem [shape: bf16[128,128], index: 5, kind: input, shape index: {}]
  %s6 = inlined_call_operand.vmem [shape: f32[1,128], index: 6, kind: input, shape index: {}]
  %s7 = inlined_call_operand.vmem [shape: f32[1,128], index: 7, kind: input, shape index: {}, may-alias: {7,8}]
  %s8 = inlined_call_operand.vmem [shape: f32[1,128], index: 8, kind: input, shape index: {}, may-alias: {7,8}]
  %s9 = inlined_call_operand.vmem [shape: f32[12,128], index: 9, kind: output, shape index: {}]
  %s10 = sld [smem:[#allocation0]]
  $region46: #{conformer_encoder_forward.14} parent=0
    _
  %s12 = ssub.s32 1, %s10
  %s13 = scalar_select 0, %s12, %s10
  // Predicated region
  $region2: #{conformer_encoder_forward.14} parent=0 // pred_check
    _
  $region3: #{conformer_encoder_forward.14} parent=0 // pred_check_branch
    %15 = sbr.rel (0) target = $region5
  $region4: #{conformer_encoder_forward.14} parent=0 // pred_region
    _
  $region5: #{conformer_encoder_forward.14} parent=0 // pred_fallthru
    _
  // Predicated region
  $region6: #{conformer_encoder_forward.14} parent=0 // pred_check
    _
  $region7: #{conformer_encoder_forward.14} parent=0 // pred_check_branch
    %17 = sbr.rel (0) target = $region9
  $region8: #{conformer_encoder_forward.14} parent=0 // pred_region
    _
  $region9: #{conformer_encoder_forward.14} parent=0 // pred_fallthru
    _
  // Predicated region
  $region10: #{conformer_encoder_forward.14} parent=0 // pred_check
    _
  $region11: #{conformer_encoder_forward.14} parent=0 // pred_check_branch
    %19 = sbr.rel (0) target = $region13
  $region12: #{conformer_encoder_forward.14} parent=0 // pred_region
    _
  $region13: #{conformer_encoder_forward.14} parent=0 // pred_fallthru
    _
  // Predicated region
  $region14: #{conformer_encoder_forward.14} parent=0 // pred_check
    _
  $region15: #{conformer_encoder_forward.14} parent=0 // pred_check_branch
    %21 = sbr.rel (0) target = $region17
  $region16: #{conformer_encoder_forward.14} parent=0 // pred_region
    _
  $region17: #{conformer_encoder_forward.14} parent=0 // pred_fallthru
    _
  // Predicated region
  $region18: #{conformer_encoder_forward.14} parent=0 // pred_check
    _
  $region19: #{conformer_encoder_forward.14} parent=0 // pred_check_branch
    %23 = sbr.rel (0) target = $region21
  $region20: #{conformer_encoder_forward.14} parent=0 // pred_region
    _
  $region21: #{conformer_encoder_forward.14} parent=0 // pred_fallthru
    _
  // Predicated region
  $region22: #{conformer_encoder_forward.14} parent=0 // pred_check
    _
  $region23: #{conformer_encoder_forward.14} parent=0 // pred_check_branch
    %25 = sbr.rel (0) target = $region25
  $region24: #{conformer_encoder_forward.14} parent=0 // pred_region
    _
  $region25: #{conformer_encoder_forward.14} parent=0 // pred_fallthru
    _
  // Predicated region
  $region26: #{conformer_encoder_forward.14} parent=0 // pred_check
    _
  $region27: #{conformer_encoder_forward.14} parent=0 // pred_check_branch
    %27 = sbr.rel (0) target = $region29
  $region28: #{conformer_encoder_forward.14} parent=0 // pred_region
    _
  $region29: #{conformer_encoder_forward.14} parent=0 // pred_fallthru
    _
  // Predicated region
  $region30: #{conformer_encoder_forward.14} parent=0 // pred_check
    _
  $region31: #{conformer_encoder_forward.14} parent=0 // pred_check_branch
    %29 = sbr.rel (0) target = $region33
  $region32: #{conformer_encoder_forward.14} parent=0 // pred_region
    _
  $region33: #{conformer_encoder_forward.14} parent=0 // pred_fallthru
    _
  // Predicated region
  $region34: #{conformer_encoder_forward.14} parent=0 // pred_check
    _
  $region35: #{conformer_encoder_forward.14} parent=0 // pred_check_branch
    %31 = sbr.rel (0) target = $region37
  $region36: #{conformer_encoder_forward.14} parent=0 // pred_region
    _
  $region37: #{conformer_encoder_forward.14} parent=0 // pred_fallthru
    _
  %v32 = vld [vmem:[%s0] sm:$0xff]
  %v33 = vld [vmem:[%s0 + $0x8] sm:$0xf]
  %v34 = vld [vmem:[%s1] sm:$0x1]
  %v35 = vld [vmem:[%s2] sm:$0x1]
  %36 = vadd.xlane.f32.xlu0 %v32
  %v37 = vpop.xlane.xlu0 %36
  %vm38 = vcmask 1043456
  %v39 = vsel %vm38, %v33, 0.0
  %40 = vadd.xlane.f32.xlu0 %v39
  %v41 = vpop.xlane.xlu0 %40
  %v42 = vmul.f32 %v37, 0.03125
  %v43 = vmul.f32 %v41, 0.03125
  %v44 = vmul.f32 %v32, %v32
  %v45 = vmul.f32 %v33, %v33
  %46 = vadd.xlane.f32.xlu0 %v44
  %v47 = vpop.xlane.xlu0 %46
  %v48 = vsel %vm38, %v45, 0.0
  %49 = vadd.xlane.f32.xlu0 %v48
  %v50 = vpop.xlane.xlu0 %49
  %v51 = vmul.f32 %v47, 0.03125
  %v52 = vmul.f32 %v50, 0.03125
  %v53 = vmul.f32 %v42, %v42
  %v54 = vmul.f32 %v43, %v43
  %v55 = vsub.f32 %v51, %v53
  %v56 = vsub.f32 %v52, %v54
  %v57 = vsub.f32 %v32, %v42
  %v58 = vsub.f32 %v33, %v43
  %v59 = vadd.f32 %v55, 1e-05
  %v60 = vadd.f32 %v56, 1e-05
  %v61 = vrsqrt.pop %v59
  %v62 = vmul.f32 %v61, %v59
  %v63 = vmul.f32 %v62, %v61
  %v64 = vmul.f32 0.5, %v63
  %v65 = vsub.f32 1.5, %v64
  %v66 = vmul.f32 %v61, %v65
  %vm67 = vweird.f32 %v59
  %vm68 = vweird.f32 %v61
  %vm69 = vmor %vm67, %vm68
  %v70 = vsel %vm69, %v61, %v66
  %v71 = vrsqrt.pop %v60
  %v72 = vmul.f32 %v71, %v60
  %v73 = vmul.f32 %v72, %v71
  %v74 = vmul.f32 0.5, %v73
  %v75 = vsub.f32 1.5, %v74
  %v76 = vmul.f32 %v71, %v75
  %vm77 = vweird.f32 %v60
  %vm78 = vweird.f32 %v71
  %vm79 = vmor %vm77, %vm78
  %v80 = vsel %vm79, %v71, %v76
  %v81 = vmul.f32 %v57, %v70
  %v82 = vmul.f32 %v58, %v80
  %v84 = vperm.slane %v34, 0
  %v86 = vmul.f32 %v81, %v84
  %v87 = vmul.f32 %v82, %v84
  %v89 = vperm.slane %v35, 0
  %v91 = vadd.f32 %v86, %v89
  %v92 = vadd.f32 %v87, %v89
  %v93 = vpack.c.bf16 %v92, %v91
  %v94 = vld [vmem:[%s3] sm:$0xf]
  %v95 = vld [vmem:[%s3 + $0x4] sm:$0xf]
  %v96 = vld [vmem:[%s3 + $0x8] sm:$0xf]
  %v97 = vld [vmem:[%s3 + $0xc] sm:$0xf]
  %v98 = vld [vmem:[%s3 + $0x10] sm:$0xf]
  %v99 = vld [vmem:[%s3 + $0x14] sm:$0xf]
  %v100 = vld [vmem:[%s3 + $0x18] sm:$0xf]
  %v101 = vld [vmem:[%s3 + $0x1c] sm:$0xf]
  %v102 = vld [vmem:[%s3 + $0x20] sm:$0xf]
  %v103 = vld [vmem:[%s3 + $0x24] sm:$0xf]
  %v104 = vld [vmem:[%s3 + $0x28] sm:$0xf]
  %v105 = vld [vmem:[%s3 + $0x2c] sm:$0xf]
  %v106 = vld [vmem:[%s3 + $0x30] sm:$0xf]
  %v107 = vld [vmem:[%s3 + $0x34] sm:$0xf]
  %v108 = vld [vmem:[%s3 + $0x38] sm:$0xf]
  %v109 = vld [vmem:[%s3 + $0x3c] sm:$0xf]
  %v110 = vld [vmem:[%s4] sm:$0x1]
  %v112 = vperm.slane %v110, 0
  %v130 = vunpack.c.l.b16 %v94
  %v131 = vunpack.c.l.b16 %v95
  %v132 = vunpack.c.l.b16 %v96
  %v133 = vunpack.c.l.b16 %v97
  %v134 = vunpack.c.l.b16 %v98
  %v135 = vunpack.c.l.b16 %v99
  %v136 = vunpack.c.l.b16 %v100
  %v137 = vunpack.c.l.b16 %v101
  %v138 = vunpack.c.l.b16 %v102
  %v139 = vunpack.c.l.b16 %v103
  %v140 = vunpack.c.l.b16 %v104
  %v141 = vunpack.c.l.b16 %v105
  %v142 = vunpack.c.l.b16 %v106
  %v143 = vunpack.c.l.b16 %v107
  %v144 = vunpack.c.l.b16 %v108
  %v145 = vunpack.c.l.b16 %v109
  %v146 = vpack.c.b16 %v131, %v130
  %v147 = vpack.c.b16 %v133, %v132
  %v148 = vpack.c.b16 %v135, %v134
  %v149 = vpack.c.b16 %v137, %v136
  %v150 = vpack.c.b16 %v139, %v138
  %v151 = vpack.c.b16 %v141, %v140
  %v152 = vpack.c.b16 %v143, %v142
  %v153 = vpack.c.b16 %v145, %v144
  %162 = vmatpush.bf16.msra.mxu0 %v153
  %163 = vmatpush.bf16.msra.mxu0 %v152
  %164 = vmatpush.bf16.msra.mxu0 %v151
  %165 = vmatpush.bf16.msra.mxu0 %v150
  %166 = vmatpush.bf16.msra.mxu0 %v149
  %167 = vmatpush.bf16.msra.mxu0 %v148
  %168 = vmatpush.bf16.msra.mxu0 %v147
  %169 = vmatpush.bf16.msra.mxu0 %v146
  %170 = vmatmul.bf16.gmra.mxu0 %v93
  %v171 = vpop.f32.mrf.mxu0
  %v172 = vadd.f32 %v112, %v171
  %v173 = vpop.f32.mrf.mxu0
  %v174 = vadd.f32 %v112, %v173
  %175 = vdwg.mxu0
  %v176 = vxor.u32 %v172, 2147483648
  %v177 = vxor.u32 %v174, 2147483648
  %v178 = vmul.f32 %v176, 1.442695
  %v179 = vpow.pop %v178
  %v180 = vmul.f32 %v177, 1.442695
  %v181 = vpow.pop %v180
  %v182 = vadd.f32 %v179, 1.0
  %v183 = vadd.f32 %v181, 1.0
  %v184 = vrcp.pop %v182
  %v185 = vmul.f32 %v182, %v184
  %v186 = vsub.f32 1.0, %v185
  %v187 = vmul.f32 %v184, %v186
  %v188 = vadd.f32 %v184, %v187
  %vm189 = vweird.f32 %v182
  %vm190 = vweird.f32 %v184
  %vm191 = vmor %vm189, %vm190
  %v192 = vsel %vm191, %v184, %v188
  %v193 = vand.u32 2147483647, %v182
  %vm194 = vcmp.eq.f32.partialorder %v193, 8.507059e+37
  %v195 = vand.u32 %v182, 2147483648
  %v196 = vor.u32 1.1754944e-38, %v195
  %v197 = vsel %vm194, %v196, %v192
  %v198 = vmul.f32 1.0, %v197
  %v199 = vrcp.pop %v183
  %v200 = vmul.f32 %v183, %v199
  %v201 = vsub.f32 1.0, %v200
  %v202 = vmul.f32 %v199, %v201
  %v203 = vadd.f32 %v199, %v202
  %vm204 = vweird.f32 %v183
  %vm205 = vweird.f32 %v199
  %vm206 = vmor %vm204, %vm205
  %v207 = vsel %vm206, %v199, %v203
  %v208 = vand.u32 2147483647, %v183
  %vm209 = vcmp.eq.f32.partialorder %v208, 8.507059e+37
  %v210 = vand.u32 %v183, 2147483648
  %v211 = vor.u32 1.1754944e-38, %v210
  %v212 = vsel %vm209, %v211, %v207
  %v213 = vmul.f32 1.0, %v212
  %v214 = vmul.f32 %v172, %v198
  %v215 = vmul.f32 %v174, %v213
  %v216 = vpack.c.bf16 %v215, %v214
  %v217 = vld [vmem:[%s5] sm:$0xf]
  %v218 = vld [vmem:[%s5 + $0x4] sm:$0xf]
  %v219 = vld [vmem:[%s5 + $0x8] sm:$0xf]
  %v220 = vld [vmem:[%s5 + $0xc] sm:$0xf]
  %v221 = vld [vmem:[%s5 + $0x10] sm:$0xf]
  %v222 = vld [vmem:[%s5 + $0x14] sm:$0xf]
  %v223 = vld [vmem:[%s5 + $0x18] sm:$0xf]
  %v224 = vld [vmem:[%s5 + $0x1c] sm:$0xf]
  %v225 = vld [vmem:[%s5 + $0x20] sm:$0xf]
  %v226 = vld [vmem:[%s5 + $0x24] sm:$0xf]
  %v227 = vld [vmem:[%s5 + $0x28] sm:$0xf]
  %v228 = vld [vmem:[%s5 + $0x2c] sm:$0xf]
  %v229 = vld [vmem:[%s5 + $0x30] sm:$0xf]
  %v230 = vld [vmem:[%s5 + $0x34] sm:$0xf]
  %v231 = vld [vmem:[%s5 + $0x38] sm:$0xf]
  %v232 = vld [vmem:[%s5 + $0x3c] sm:$0xf]
  %v233 = vld [vmem:[%s6] sm:$0x1]
  %v235 = vperm.slane %v233, 0
  %v253 = vunpack.c.l.b16 %v217
  %v254 = vunpack.c.l.b16 %v218
  %v255 = vunpack.c.l.b16 %v219
  %v256 = vunpack.c.l.b16 %v220
  %v257 = vunpack.c.l.b16 %v221
  %v258 = vunpack.c.l.b16 %v222
  %v259 = vunpack.c.l.b16 %v223
  %v260 = vunpack.c.l.b16 %v224
  %v261 = vunpack.c.l.b16 %v225
  %v262 = vunpack.c.l.b16 %v226
  %v263 = vunpack.c.l.b16 %v227
  %v264 = vunpack.c.l.b16 %v228
  %v265 = vunpack.c.l.b16 %v229
  %v266 = vunpack.c.l.b16 %v230
  %v267 = vunpack.c.l.b16 %v231
  %v268 = vunpack.c.l.b16 %v232
  %v269 = vpack.c.b16 %v254, %v253
  %v270 = vpack.c.b16 %v256, %v255
  %v271 = vpack.c.b16 %v258, %v257
  %v272 = vpack.c.b16 %v260, %v259
  %v273 = vpack.c.b16 %v262, %v261
  %v274 = vpack.c.b16 %v264, %v263
  %v275 = vpack.c.b16 %v266, %v265
  %v276 = vpack.c.b16 %v268, %v267
  %285 = vmatpush.bf16.msra.mxu0 %v276
  %286 = vmatpush.bf16.msra.mxu0 %v275
  %287 = vmatpush.bf16.msra.mxu0 %v274
  %288 = vmatpush.bf16.msra.mxu0 %v273
  %289 = vmatpush.bf16.msra.mxu0 %v272
  %290 = vmatpush.bf16.msra.mxu0 %v271
  %291 = vmatpush.bf16.msra.mxu0 %v270
  %292 = vmatpush.bf16.msra.mxu0 %v269
  %293 = vmatmul.bf16.gmra.mxu0 %v216
  %v294 = vpop.f32.mrf.mxu0
  %v295 = vadd.f32 %v235, %v294
  %v296 = vpop.f32.mrf.mxu0
  %v297 = vadd.f32 %v235, %v296
  %298 = vdwg.mxu0
  %v299 = vmul.f32 %v295, 0.5
  %v300 = vmul.f32 %v297, 0.5
  %v301 = vadd.f32 %v32, %v299
  %v302 = vadd.f32 %v33, %v300
  %303 = vst [vmem:[%s9] sm:$0xff] %v301
  %304 = vst [vmem:[%s9 + $0x8] sm:$0xf] %v302
  // Predicated region
  $region38: #{conformer_encoder_forward.14} parent=0 // pred_check
    _
  $region39: #{conformer_encoder_forward.14} parent=0 // pred_check_branch
    %306 = sbr.rel (0) target = $region41
  $region40: #{conformer_encoder_forward.14} parent=0 // pred_region
    _
  $region41: #{conformer_encoder_forward.14} parent=0 // pred_fallthru
    _
  // Predicated region
  $region42: #{conformer_encoder_forward.14} parent=0 // pred_check
    _
  $region43: #{conformer_encoder_forward.14} parent=0 // pred_check_branch
    %308 = sbr.rel (0) target = $region45
  $region44: #{conformer_encoder_forward.14} parent=0 // pred_region
    _
  $region45: #{conformer_encoder_forward.14} parent=0 // pred_fallthru
    _

// kernel: conformer_encoder_forward.15
$region0: #{conformer_encoder_forward.15}
  #allocation0 [shape = 'u32[]', space=smem, size = 0x4, offset = 0x4, fixed_abs, tag = 'smem constant byte address 0x4 - core index']
  #allocation1 [shape = 'u32[72,128]{1,0:T(1,128)}', space=vmem, size = 0x9000, scoped, tag = 'internal scratch']
  %s0 = inlined_call_operand.vmem [shape: f32[2,6,128], index: 0, kind: input, shape index: {}]
  %s1 = inlined_call_operand.vmem [shape: f32[1,128], index: 1, kind: input, shape index: {}]
  %s2 = inlined_call_operand.vmem [shape: f32[1,128], index: 2, kind: input, shape index: {}]
  %s3 = inlined_call_operand.vmem [shape: bf16[128,384], index: 3, kind: input, shape index: {}]
  %s4 = inlined_call_operand.vmem [shape: f32[1,384], index: 4, kind: input, shape index: {}]
  %s5 = inlined_call_operand.vmem [shape: bf16[128,128], index: 5, kind: input, shape index: {}]
  %s6 = inlined_call_operand.vmem [shape: f32[1,128], index: 6, kind: input, shape index: {}]
  %s7 = inlined_call_operand.vmem [shape: f32[2,6,128], index: 7, kind: output, shape index: {}]
  %s8 = sld [smem:[#allocation0]]
  $region61: #{conformer_encoder_forward.15} parent=0
    _
  %s10 = ssub.s32 1, %s8
  %s11 = scalar_select 0, %s10, %s8
  loop: start=0, step=1, limit=4
  $region2: #{conformer_encoder_forward.15} parent=0 // loop_pre_header
    _
  $region3: #{conformer_encoder_forward.15} parent=0 // loop_header
    %s13 = sphi 0, %s17
    %p14 = scmp.ge.s32.totalorder %s13, 4
    %s23 = sphi 0, %s25
    %s26 = sphi 0, %s23
    %s27 = sphi 0, %s26
    %s43 = sphi 0, %s27
    %s47 = sphi 0, %s47
    %s49 = sphi 0, %s47
    %s50 = sphi 0, %s49
    %s64 = sphi 0, %s50
    %s68 = sphi 0, %s68
    %s70 = sphi 0, %s68
    %s71 = sphi 0, %s70
    %s85 = sphi 0, %s71
    %s89 = sphi 0, %s89
    %s91 = sphi 0, %s89
    %s92 = sphi 0, %s91
    %s106 = sphi 0, %s92
    %s110 = sphi 0, %s110
    %s112 = sphi 0, %s110
    %s113 = sphi 0, %s112
    %s127 = sphi 0, %s113
    %s131 = sphi 0, %s131
    %s133 = sphi 0, %s131
    %s134 = sphi 0, %s133
    %s148 = sphi 0, %s134
    %s152 = sphi 0, %s152
    %s154 = sphi 0, %s152
    %s155 = sphi 0, %s154
    %s169 = sphi 0, %s155
    %s175 = sphi 0, %s177
    %s178 = sphi 0, %s175
    %s179 = sphi 0, %s178
    %s195 = sphi 0, %s179
  $region4: #{conformer_encoder_forward.15} parent=0 // loop_header_branch
    %16 = sbr.rel (%p14) target = $region8
  $region5: #{conformer_encoder_forward.15} parent=0 // loop_body
    %s18 = ssub.s32 %s13, 1
    %s19 = ssub.s32 %s13, 2
    %s20 = sadd.s32 %s13, 1
    %s21 = ssub.s32 %s13, %s20
    %p22 = scmp.eq.s32.totalorder %s21, 0
    %s24 = sadd.s32 %s23, 1
    %s25 = scalar_select %p22, %s23, %s24
    %p28 = pneg %p22
    %p29 = scmp.eq.s32.totalorder %s13, 1
    %p30 = por %p28, %p29
    %p31 = scmp.ne.s32.totalorder %s23, %s26
    %p32 = scmp.eq.s32.totalorder %s13, 0
    %p33 = por %p31, %p32
    %p34 = scmp.ne.s32.totalorder %s23, %s26
    %p35 = scmp.eq.s32.totalorder %s18, 1
    %p36 = por %p34, %p35
    %p37 = scmp.ne.s32.totalorder %s26, %s27
    %p38 = scmp.eq.s32.totalorder %s18, 0
    %p39 = por %p37, %p38
    %p40 = scmp.ne.s32.totalorder %s26, %s27
    %p41 = scmp.eq.s32.totalorder %s19, 1
    %p42 = por %p40, %p41
    %p44 = scmp.ne.s32.totalorder %s27, %s43
    %p45 = scmp.eq.s32.totalorder %s19, 0
    %p46 = por %p44, %p45
    %s48 = sadd.s32 %s47, 1
    %p51 = scmp.eq.s32.totalorder %s13, 1
    %p52 = scmp.ne.s32.totalorder %s47, %s49
    %p53 = scmp.eq.s32.totalorder %s13, 0
    %p54 = por %p52, %p53
    %p55 = scmp.ne.s32.totalorder %s47, %s49
    %p56 = scmp.eq.s32.totalorder %s18, 1
    %p57 = por %p55, %p56
    %p58 = scmp.ne.s32.totalorder %s49, %s50
    %p59 = scmp.eq.s32.totalorder %s18, 0
    %p60 = por %p58, %p59
    %p61 = scmp.ne.s32.totalorder %s49, %s50
    %p62 = scmp.eq.s32.totalorder %s19, 1
    %p63 = por %p61, %p62
    %p65 = scmp.ne.s32.totalorder %s50, %s64
    %p66 = scmp.eq.s32.totalorder %s19, 0
    %p67 = por %p65, %p66
    %s69 = sadd.s32 %s68, 1
    %p72 = scmp.eq.s32.totalorder %s13, 1
    %p73 = scmp.ne.s32.totalorder %s68, %s70
    %p74 = scmp.eq.s32.totalorder %s13, 0
    %p75 = por %p73, %p74
    %p76 = scmp.ne.s32.totalorder %s68, %s70
    %p77 = scmp.eq.s32.totalorder %s18, 1
    %p78 = por %p76, %p77
    %p79 = scmp.ne.s32.totalorder %s70, %s71
    %p80 = scmp.eq.s32.totalorder %s18, 0
    %p81 = por %p79, %p80
    %p82 = scmp.ne.s32.totalorder %s70, %s71
    %p83 = scmp.eq.s32.totalorder %s19, 1
    %p84 = por %p82, %p83
    %p86 = scmp.ne.s32.totalorder %s71, %s85
    %p87 = scmp.eq.s32.totalorder %s19, 0
    %p88 = por %p86, %p87
    %s90 = sadd.s32 %s89, 1
    %p93 = scmp.eq.s32.totalorder %s13, 1
    %p94 = scmp.ne.s32.totalorder %s89, %s91
    %p95 = scmp.eq.s32.totalorder %s13, 0
    %p96 = por %p94, %p95
    %p97 = scmp.ne.s32.totalorder %s89, %s91
    %p98 = scmp.eq.s32.totalorder %s18, 1
    %p99 = por %p97, %p98
    %p100 = scmp.ne.s32.totalorder %s91, %s92
    %p101 = scmp.eq.s32.totalorder %s18, 0
    %p102 = por %p100, %p101
    %p103 = scmp.ne.s32.totalorder %s91, %s92
    %p104 = scmp.eq.s32.totalorder %s19, 1
    %p105 = por %p103, %p104
    %p107 = scmp.ne.s32.totalorder %s92, %s106
    %p108 = scmp.eq.s32.totalorder %s19, 0
    %p109 = por %p107, %p108
    %s111 = sadd.s32 %s110, 1
    %p114 = scmp.eq.s32.totalorder %s13, 1
    %p115 = scmp.ne.s32.totalorder %s110, %s112
    %p116 = scmp.eq.s32.totalorder %s13, 0
    %p117 = por %p115, %p116
    %p118 = scmp.ne.s32.totalorder %s110, %s112
    %p119 = scmp.eq.s32.totalorder %s18, 1
    %p120 = por %p118, %p119
    %p121 = scmp.ne.s32.totalorder %s112, %s113
    %p122 = scmp.eq.s32.totalorder %s18, 0
    %p123 = por %p121, %p122
    %p124 = scmp.ne.s32.totalorder %s112, %s113
    %p125 = scmp.eq.s32.totalorder %s19, 1
    %p126 = por %p124, %p125
    %p128 = scmp.ne.s32.totalorder %s113, %s127
    %p129 = scmp.eq.s32.totalorder %s19, 0
    %p130 = por %p128, %p129
    %s132 = sadd.s32 %s131, 1
    %p135 = scmp.eq.s32.totalorder %s13, 1
    %p136 = scmp.ne.s32.totalorder %s131, %s133
    %p137 = scmp.eq.s32.totalorder %s13, 0
    %p138 = por %p136, %p137
    %p139 = scmp.ne.s32.totalorder %s131, %s133
    %p140 = scmp.eq.s32.totalorder %s18, 1
    %p141 = por %p139, %p140
    %p142 = scmp.ne.s32.totalorder %s133, %s134
    %p143 = scmp.eq.s32.totalorder %s18, 0
    %p144 = por %p142, %p143
    %p145 = scmp.ne.s32.totalorder %s133, %s134
    %p146 = scmp.eq.s32.totalorder %s19, 1
    %p147 = por %p145, %p146
    %p149 = scmp.ne.s32.totalorder %s134, %s148
    %p150 = scmp.eq.s32.totalorder %s19, 0
    %p151 = por %p149, %p150
    %s153 = sadd.s32 %s152, 1
    %p156 = scmp.eq.s32.totalorder %s13, 1
    %p157 = scmp.ne.s32.totalorder %s152, %s154
    %p158 = scmp.eq.s32.totalorder %s13, 0
    %p159 = por %p157, %p158
    %p160 = scmp.ne.s32.totalorder %s152, %s154
    %p161 = scmp.eq.s32.totalorder %s18, 1
    %p162 = por %p160, %p161
    %p163 = scmp.ne.s32.totalorder %s154, %s155
    %p164 = scmp.eq.s32.totalorder %s18, 0
    %p165 = por %p163, %p164
    %p166 = scmp.ne.s32.totalorder %s154, %s155
    %p167 = scmp.eq.s32.totalorder %s19, 1
    %p168 = por %p166, %p167
    %p170 = scmp.ne.s32.totalorder %s155, %s169
    %p171 = scmp.eq.s32.totalorder %s19, 0
    %p172 = por %p170, %p171
    %s173 = ssub.s32 %s13, %s20
    %p174 = scmp.eq.s32.totalorder %s173, 0
    %s176 = sadd.s32 %s175, 1
    %s177 = scalar_select %p174, %s175, %s176
    %p180 = pneg %p174
    %p181 = scmp.eq.s32.totalorder %s13, 1
    %p182 = por %p180, %p181
    %p183 = scmp.ne.s32.totalorder %s175, %s178
    %p184 = scmp.eq.s32.totalorder %s13, 0
    %p185 = por %p183, %p184
    %p186 = scmp.ne.s32.totalorder %s175, %s178
    %p187 = scmp.eq.s32.totalorder %s18, 1
    %p188 = por %p186, %p187
    %p189 = scmp.ne.s32.totalorder %s178, %s179
    %p190 = scmp.eq.s32.totalorder %s18, 0
    %p191 = por %p189, %p190
    %p192 = scmp.ne.s32.totalorder %s178, %s179
    %p193 = scmp.eq.s32.totalorder %s19, 1
    %p194 = por %p192, %p193
    %p196 = scmp.ne.s32.totalorder %s179, %s195
    %p197 = scmp.eq.s32.totalorder %s19, 0
    %p198 = por %p196, %p197
    %p199 = scmp.le.s32.totalorder 1, %s13
    %p200 = scmp.lt.s32.totalorder %s13, 3
    %p201 = pnand %p199, %p200
    %p202 = pneg %p201
    // Predicated region
    $region9: #{conformer_encoder_forward.15} parent=5 // pred_check
      _
    $region10: #{conformer_encoder_forward.15} parent=5 // pred_check_branch
      %204 = sbr.rel (%p201) target = $region12
    $region11: #{conformer_encoder_forward.15} parent=5 // pred_region
      %s205 = ssub.s32 %s13, 1
      // Predicated region
      $region13: #{conformer_encoder_forward.15} parent=11 // pred_check
        %p206 = pneg %p60
      $region14: #{conformer_encoder_forward.15} parent=11 // pred_check_branch
        %208 = sbr.rel (%p206) target = $region16
      $region15: #{conformer_encoder_forward.15} parent=11 // pred_region
        _
      $region16: #{conformer_encoder_forward.15} parent=11 // pred_fallthru
        _
      // Predicated region
      $region17: #{conformer_encoder_forward.15} parent=11 // pred_check
        %p209 = pneg %p81
      $region18: #{conformer_encoder_forward.15} parent=11 // pred_check_branch
        %211 = sbr.rel (%p209) target = $region20
      $region19: #{conformer_encoder_forward.15} parent=11 // pred_region
        _
      $region20: #{conformer_encoder_forward.15} parent=11 // pred_fallthru
        _
      // Predicated region
      $region21: #{conformer_encoder_forward.15} parent=11 // pred_check
        %p212 = pneg %p102
      $region22: #{conformer_encoder_forward.15} parent=11 // pred_check_branch
        %214 = sbr.rel (%p212) target = $region24
      $region23: #{conformer_encoder_forward.15} parent=11 // pred_region
        _
      $region24: #{conformer_encoder_forward.15} parent=11 // pred_fallthru
        _
      // Predicated region
      $region25: #{conformer_encoder_forward.15} parent=11 // pred_check
        %p215 = pneg %p123
      $region26: #{conformer_encoder_forward.15} parent=11 // pred_check_branch
        %217 = sbr.rel (%p215) target = $region28
      $region27: #{conformer_encoder_forward.15} parent=11 // pred_region
        _
      $region28: #{conformer_encoder_forward.15} parent=11 // pred_fallthru
        _
      // Predicated region
      $region29: #{conformer_encoder_forward.15} parent=11 // pred_check
        %p218 = pneg %p144
      $region30: #{conformer_encoder_forward.15} parent=11 // pred_check_branch
        %220 = sbr.rel (%p218) target = $region32
      $region31: #{conformer_encoder_forward.15} parent=11 // pred_region
        _
      $region32: #{conformer_encoder_forward.15} parent=11 // pred_fallthru
        _
      // Predicated region
      $region33: #{conformer_encoder_forward.15} parent=11 // pred_check
        %p221 = pneg %p165
      $region34: #{conformer_encoder_forward.15} parent=11 // pred_check_branch
        %223 = sbr.rel (%p221) target = $region36
      $region35: #{conformer_encoder_forward.15} parent=11 // pred_region
        _
      $region36: #{conformer_encoder_forward.15} parent=11 // pred_fallthru
        _
    $region12: #{conformer_encoder_forward.15} parent=5 // pred_fallthru
      _
    %p224 = scmp.lt.s32.totalorder %s13, 2
    // Predicated region
    $region37: #{conformer_encoder_forward.15} parent=5 // pred_check
      %p225 = pneg %p224
    $region38: #{conformer_encoder_forward.15} parent=5 // pred_check_branch
      %227 = sbr.rel (%p225) target = $region40
    $region39: #{conformer_encoder_forward.15} parent=5 // pred_region
      // Predicated region
      $region41: #{conformer_encoder_forward.15} parent=39 // pred_check
        %p228 = pneg %p33
      $region42: #{conformer_encoder_forward.15} parent=39 // pred_check_branch
        %230 = sbr.rel (%p228) target = $region44
      $region43: #{conformer_encoder_forward.15} parent=39 // pred_region
        %p231 = scmp.lt.s32.totalorder %s13, 1
        %s232 = scalar_select %p231, %s13, 1
        %s233 = smul.addr %s232, 8
        %s234 = scalar_lea.vmem %s0, %s233
      $region44: #{conformer_encoder_forward.15} parent=39 // pred_fallthru
        _
    $region40: #{conformer_encoder_forward.15} parent=5 // pred_fallthru
      _
    %p235 = scmp.le.s32.totalorder 1, %s13
    %p236 = scmp.lt.s32.totalorder %s13, 3
    %p237 = pnand %p235, %p236
    %p238 = pneg %p237
    // Predicated region
    $region45: #{conformer_encoder_forward.15} parent=5 // pred_check
      _
    $region46: #{conformer_encoder_forward.15} parent=5 // pred_check_branch
      %240 = sbr.rel (%p237) target = $region48
    $region47: #{conformer_encoder_forward.15} parent=5 // pred_region
      %s241 = ssub.s32 %s13, 1
      %p242 = scmp.lt.s32.totalorder %s18, 1
      %s243 = scalar_select %p242, %s18, 1
      %s244 = smul.addr %s243, 8
      %s245 = scalar_lea.vmem %s0, %s244
      %p246 = pneg %p39
      %p247 = pneg %p36
      %p248 = pneg %p60
      %p249 = pneg %p57
      %p250 = pneg %p81
      %p251 = pneg %p78
      %p252 = pneg %p102
      %p253 = pneg %p99
      %p254 = pneg %p123
      %p255 = pneg %p120
      %p256 = pneg %p144
      %p257 = pneg %p141
      %p258 = pneg %p165
      %p259 = pneg %p162
      %p260 = pneg %p191
      %p261 = pneg %p188
      %p262 = scmp.lt.s32.totalorder %s18, 1
      %s263 = scalar_select %p262, %s18, 1
      %s264 = smul.addr %s263, 8
      %s265 = scalar_lea.vmem %s7, %s264
      %p266 = scmp.lt.s32.totalorder %s18, 1
      %s267 = scalar_select %p266, %s18, 1
      %s268 = smul.addr %s267, 8
      %s269 = scalar_lea.vmem %s0, %s268
      %p270 = scmp.lt.s32.totalorder %s18, 1
      %s271 = scalar_select %p270, %s18, 1
      %s272 = smul.addr %s271, 8
      %s273 = scalar_lea.vmem %s7, %s272
      %v275 = vld [vmem:[%s269] sm:$0x3f]
      %v276 = vld [vmem:[%s1] sm:$0x1]
      %v277 = vld [vmem:[%s2] sm:$0x1]
      %vm278 = vcmask 1045504
      %v279 = vsel %vm278, %v275, 0.0
      %280 = vadd.xlane.f32.xlu0 %v279
      %v281 = vpop.xlane.xlu0 %280
      %v282 = vmul.f32 %v281, 0.03125
      %v283 = vmul.f32 %v275, %v275
      %v284 = vsel %vm278, %v283, 0.0
      %285 = vadd.xlane.f32.xlu0 %v284
      %v286 = vpop.xlane.xlu0 %285
      %v287 = vmul.f32 %v286, 0.03125
      %v288 = vmul.f32 %v282, %v282
      %v289 = vsub.f32 %v287, %v288
      %v290 = vsub.f32 %v275, %v282
      %v291 = vadd.f32 %v289, 1e-05
      %v292 = vrsqrt.pop %v291
      %v293 = vmul.f32 %v292, %v291
      %v294 = vmul.f32 %v293, %v292
      %v295 = vmul.f32 0.5, %v294
      %v296 = vsub.f32 1.5, %v295
      %v297 = vmul.f32 %v292, %v296
      %vm298 = vweird.f32 %v291
      %vm299 = vweird.f32 %v292
      %vm300 = vmor %vm298, %vm299
      %v301 = vsel %vm300, %v292, %v297
      %v302 = vmul.f32 %v290, %v301
      %v304 = vperm.slane %v276, 0
      %v306 = vmul.f32 %v302, %v304
      %v308 = vperm.slane %v277, 0
      %v310 = vadd.f32 %v306, %v308
      %v311 = vpack.c.bf16 %v310, %v310
      %v312 = vld [vmem:[%s3] sm:$0xff]
      %v313 = vld [vmem:[%s3 + $0x8] sm:$0xf]
      %v314 = vld [vmem:[%s3 + $0xc] sm:$0xff]
      %v315 = vld [vmem:[%s3 + $0x14] sm:$0xf]
      %v316 = vld [vmem:[%s3 + $0x18] sm:$0xff]
      %v317 = vld [vmem:[%s3 + $0x20] sm:$0xf]
      %v318 = vld [vmem:[%s3 + $0x24] sm:$0xff]
      %v319 = vld [vmem:[%s3 + $0x2c] sm:$0xf]
      %v320 = vld [vmem:[%s3 + $0x30] sm:$0xff]
      %v321 = vld [vmem:[%s3 + $0x38] sm:$0xf]
      %v322 = vld [vmem:[%s3 + $0x3c] sm:$0xff]
      %v323 = vld [vmem:[%s3 + $0x44] sm:$0xf]
      %v324 = vld [vmem:[%s3 + $0x48] sm:$0xff]
      %v325 = vld [vmem:[%s3 + $0x50] sm:$0xf]
      %v326 = vld [vmem:[%s3 + $0x54] sm:$0xff]
      %v327 = vld [vmem:[%s3 + $0x5c] sm:$0xf]
      %v328 = vld [vmem:[%s3 + $0x60] sm:$0xff]
      %v329 = vld [vmem:[%s3 + $0x68] sm:$0xf]
      %v330 = vld [vmem:[%s3 + $0x6c] sm:$0xff]
      %v331 = vld [vmem:[%s3 + $0x74] sm:$0xf]
      %v332 = vld [vmem:[%s3 + $0x78] sm:$0xff]
      %v333 = vld [vmem:[%s3 + $0x80] sm:$0xf]
      %v334 = vld [vmem:[%s3 + $0x84] sm:$0xff]
      %v335 = vld [vmem:[%s3 + $0x8c] sm:$0xf]
      %v336 = vld [vmem:[%s3 + $0x90] sm:$0xff]
      %v337 = vld [vmem:[%s3 + $0x98] sm:$0xf]
      %v338 = vld [vmem:[%s3 + $0x9c] sm:$0xff]
      %v339 = vld [vmem:[%s3 + $0xa4] sm:$0xf]
      %v340 = vld [vmem:[%s3 + $0xa8] sm:$0xff]
      %v341 = vld [vmem:[%s3 + $0xb0] sm:$0xf]
      %v342 = vld [vmem:[%s3 + $0xb4] sm:$0xff]
      %v343 = vld [vmem:[%s3 + $0xbc] sm:$0xf]
      %v344 = vld [vmem:[%s4] sm:$0x7]
      %v346 = vperm.slane %v344, 0
      %v347 = vperm.slane %v344, 1
      %v348 = vperm.slane %v344, 2
      %v384 = vunpack.c.l.b16 %v312
      %v385 = vunpack.c.h.b16 %v312
      %v386 = vunpack.c.l.b16 %v313
      %v387 = vunpack.c.l.b16 %v314
      %v388 = vunpack.c.h.b16 %v314
      %v389 = vunpack.c.l.b16 %v315
      %v390 = vunpack.c.l.b16 %v316
      %v391 = vunpack.c.h.b16 %v316
      %v392 = vunpack.c.l.b16 %v317
      %v393 = vunpack.c.l.b16 %v318
      %v394 = vunpack.c.h.b16 %v318
      %v395 = vunpack.c.l.b16 %v319
      %v396 = vunpack.c.l.b16 %v320
      %v397 = vunpack.c.h.b16 %v320
      %v398 = vunpack.c.l.b16 %v321
      %v399 = vunpack.c.l.b16 %v322
      %v400 = vunpack.c.h.b16 %v322
      %v401 = vunpack.c.l.b16 %v323
      %v402 = vunpack.c.l.b16 %v324
      %v403 = vunpack.c.h.b16 %v324
      %v404 = vunpack.c.l.b16 %v325
      %v405 = vunpack.c.l.b16 %v326
      %v406 = vunpack.c.h.b16 %v326
      %v407 = vunpack.c.l.b16 %v327
      %v408 = vunpack.c.l.b16 %v328
      %v409 = vunpack.c.h.b16 %v328
      %v410 = vunpack.c.l.b16 %v329
      %v411 = vunpack.c.l.b16 %v330
      %v412 = vunpack.c.h.b16 %v330
      %v413 = vunpack.c.l.b16 %v331
      %v414 = vunpack.c.l.b16 %v332
      %v415 = vunpack.c.h.b16 %v332
      %v416 = vunpack.c.l.b16 %v333
      %v417 = vunpack.c.l.b16 %v334
      %v418 = vunpack.c.h.b16 %v334
      %v419 = vunpack.c.l.b16 %v335
      %v420 = vunpack.c.l.b16 %v336
      %v421 = vunpack.c.h.b16 %v336
      %v422 = vunpack.c.l.b16 %v337
      %v423 = vunpack.c.l.b16 %v338
      %v424 = vunpack.c.h.b16 %v338
      %v425 = vunpack.c.l.b16 %v339
      %v426 = vunpack.c.l.b16 %v340
      %v427 = vunpack.c.h.b16 %v340
      %v428 = vunpack.c.l.b16 %v341
      %v429 = vunpack.c.l.b16 %v342
      %v430 = vunpack.c.h.b16 %v342
      %v431 = vunpack.c.l.b16 %v343
      %v432 = vpack.c.b16 %v387, %v384
      %v433 = vpack.c.b16 %v388, %v385
      %v434 = vpack.c.b16 %v389, %v386
      %v435 = vpack.c.b16 %v393, %v390
      %v436 = vpack.c.b16 %v394, %v391
      %v437 = vpack.c.b16 %v395, %v392
      %v438 = vpack.c.b16 %v399, %v396
      %v439 = vpack.c.b16 %v400, %v397
      %v440 = vpack.c.b16 %v401, %v398
      %v441 = vpack.c.b16 %v405, %v402
      %v442 = vpack.c.b16 %v406, %v403
      %v443 = vpack.c.b16 %v407, %v404
      %v444 = vpack.c.b16 %v411, %v408
      %v445 = vpack.c.b16 %v412, %v409
      %v446 = vpack.c.b16 %v413, %v410
      %v447 = vpack.c.b16 %v417, %v414
      %v448 = vpack.c.b16 %v418, %v415
      %v449 = vpack.c.b16 %v419, %v416
      %v450 = vpack.c.b16 %v423, %v420
      %v451 = vpack.c.b16 %v424, %v421
      %v452 = vpack.c.b16 %v425, %v422
      %v453 = vpack.c.b16 %v429, %v426
      %v454 = vpack.c.b16 %v430, %v427
      %v455 = vpack.c.b16 %v431, %v428
      %480 = vmatpush.bf16.msra.mxu0 %v453
      %481 = vmatpush.bf16.msra.mxu0 %v450
      %482 = vmatpush.bf16.msra.mxu0 %v447
      %483 = vmatpush.bf16.msra.mxu0 %v444
      %484 = vmatpush.bf16.msra.mxu0 %v441
      %485 = vmatpush.bf16.msra.mxu0 %v438
      %486 = vmatpush.bf16.msra.mxu0 %v435
      %487 = vmatpush.bf16.msra.mxu0 %v432
      %488 = vmatmul.bf16.gmra.mxu0 %v311
      %v489 = vpop.f32.mrf.mxu0
      %v490 = vadd.f32 %v346, %v489
      %v491 = vpop.f32.mrf.mxu0
      %492 = vdwg.mxu0
      %493 = vmatpush.bf16.msra.mxu0 %v454
      %494 = vmatpush.bf16.msra.mxu0 %v451
      %495 = vmatpush.bf16.msra.mxu0 %v448
      %496 = vmatpush.bf16.msra.mxu0 %v445
      %497 = vmatpush.bf16.msra.mxu0 %v442
      %498 = vmatpush.bf16.msra.mxu0 %v439
      %499 = vmatpush.bf16.msra.mxu0 %v436
      %500 = vmatpush.bf16.msra.mxu0 %v433
      %501 = vmatmul.bf16.gmra.mxu0 %v311
      %v502 = vpop.f32.mrf.mxu0
      %v503 = vadd.f32 %v347, %v502
      %v504 = vpop.f32.mrf.mxu0
      %505 = vdwg.mxu0
      %506 = vmatpush.bf16.msra.mxu0 %v455
      %507 = vmatpush.bf16.msra.mxu0 %v452
      %508 = vmatpush.bf16.msra.mxu0 %v449
      %509 = vmatpush.bf16.msra.mxu0 %v446
      %510 = vmatpush.bf16.msra.mxu0 %v443
      %511 = vmatpush.bf16.msra.mxu0 %v440
      %512 = vmatpush.bf16.msra.mxu0 %v437
      %513 = vmatpush.bf16.msra.mxu0 %v434
      %514 = vmatmul.bf16.gmra.mxu0 %v311
      %v515 = vpop.f32.mrf.mxu0
      %v516 = vadd.f32 %v348, %v515
      %v517 = vpop.f32.mrf.mxu0
      %518 = vdwg.mxu0
      %v519 = vpack.c.bf16 %v503, %v490
      %v520 = vpack.c.bf16 %v516, %v516
      %v521 = vld [vmem:[%s5] sm:$0xf]
      %v522 = vld [vmem:[%s5 + $0x4] sm:$0xf]
      %v523 = vld [vmem:[%s5 + $0x8] sm:$0xf]
      %v524 = vld [vmem:[%s5 + $0xc] sm:$0xf]
      %v526 = vunpack.c.h.b16 %v519
      %v527 = vpack.c.b16 %v526, %v526
      %vm528 = vcmask 64512
      %v530 = vsel %vm528, %v519, 0
      %v533 = vsel %vm528, %v527, 0
      %535 = vmatpush.bf16.xpose.msra.mxu0 0
      %536 = vmatpush.bf16.xpose.msra.mxu0 0
      %537 = vmatpush.bf16.xpose.msra.mxu0 0
      %538 = vmatpush.bf16.xpose.msra.mxu0 0
      %539 = vmatpush.bf16.xpose.msra.mxu0 0
      %540 = vmatpush.bf16.xpose.msra.mxu0 0
      %541 = vmatpush.bf16.xpose.msra.mxu0 0
      %542 = vmatpush.bf16.xpose.msra.mxu0 %v533
      %543 = vmatmul.bf16.gmra.mxu0 %v530
      %v544 = vpop.f32.mrf.mxu0
      %v545 = vadd.f32 0.0, %v544
      %v546 = vpop.f32.mrf.mxu0
      %547 = vdwg.mxu0
      %v548 = vmul.f32 %v545, 0.35355338
      %vm549 = vcmask 46080
      %v550 = vsel %vm549, %v548, -inf
      %551 = vmax.xlane.f32.xlu0 %v550
      %v552 = vpop.xlane.xlu0 %551
      %v553 = vsub.f32 %v548, %v552
      %v554 = vmul.f32 %v553, 1.442695
      %v555 = vpow.pop %v554
      %v556 = vsel %vm549, %v555, 0.0
      %557 = vadd.xlane.f32.xlu0 %v556
      %v558 = vpop.xlane.xlu0 %557
      %v559 = vrcp.pop %v558
      %v560 = vmul.f32 %v555, %v559
      %v561 = vpack.c.bf16 %v560, %v560
      %vm562 = vcmask 48128
      %v564 = vsel %vm562, %v561, 0
      %vm566 = vcmask 1042432
      %v568 = vsel %vm566, %v520, 0
      %570 = vmatpush.bf16.msra.mxu0 0
      %571 = vmatpush.bf16.msra.mxu0 0
      %572 = vmatpush.bf16.msra.mxu0 0
      %573 = vmatpush.bf16.msra.mxu0 0
      %574 = vmatpush.bf16.msra.mxu0 0
      %575 = vmatpush.bf16.msra.mxu0 0
      %576 = vmatpush.bf16.msra.mxu0 0
      %577 = vmatpush.bf16.msra.mxu0 %v568
      %578 = vmatmul.bf16.gmra.mxu0 %v564
      %v579 = vpop.f32.mrf.mxu0
      %v580 = vadd.f32 0.0, %v579
      %v581 = vpop.f32.mrf.mxu0
      %582 = vdwg.mxu0
      %v583 = vpack.c.bf16 %v580, %v580
      %v584 = vunpack.c.l.b16 %v519
      %v585 = vpack.c.b16 %v584, %v584
      %586 = vrot.lane.b32.xlu0 %v585, 120
      %v587 = vpop.permute.xlu0 %586
      %588 = vrot.lane.b32.xlu0 %v527, 120
      %v589 = vpop.permute.xlu0 %588
      %v591 = vsel %vm528, %v587, 0
      %v594 = vsel %vm528, %v589, 0
      %596 = vmatpush.bf16.xpose.msra.mxu0 0
      %597 = vmatpush.bf16.xpose.msra.mxu0 0
      %598 = vmatpush.bf16.xpose.msra.mxu0 0
      %599 = vmatpush.bf16.xpose.msra.mxu0 0
      %600 = vmatpush.bf16.xpose.msra.mxu0 0
      %601 = vmatpush.bf16.xpose.msra.mxu0 0
      %602 = vmatpush.bf16.xpose.msra.mxu0 0
      %603 = vmatpush.bf16.xpose.msra.mxu0 %v594
      %604 = vmatmul.bf16.gmra.mxu0 %v591
      %v605 = vpop.f32.mrf.mxu0
      %v606 = vadd.f32 0.0, %v605
      %v607 = vpop.f32.mrf.mxu0
      %608 = vdwg.mxu0
      %v609 = vmul.f32 %v606, 0.35355338
      %v610 = vsel %vm549, %v609, -inf
      %611 = vmax.xlane.f32.xlu0 %v610
      %v612 = vpop.xlane.xlu0 %611
      %v613 = vsub.f32 %v609, %v612
      %v614 = vmul.f32 %v613, 1.442695
      %v615 = vpow.pop %v614
      %v616 = vsel %vm549, %v615, 0.0
      %617 = vadd.xlane.f32.xlu0 %v616
      %v618 = vpop.xlane.xlu0 %617
      %v619 = vrcp.pop %v618
      %v620 = vmul.f32 %v615, %v619
      %v621 = vpack.c.bf16 %v620, %v620
      %v623 = vunpack.c.l.b16 %v520
      %v624 = vpack.c.b16 %v623, %v623
      %625 = vrot.lane.b32.xlu0 %v624, 120
      %v626 = vpop.permute.xlu0 %625
      %v628 = vsel %vm562, %v621, 0
      %v631 = vsel %vm566, %v626, 0
      %633 = vmatpush.bf16.msra.mxu0 0
      %634 = vmatpush.bf16.msra.mxu0 0
      %635 = vmatpush.bf16.msra.mxu0 0
      %636 = vmatpush.bf16.msra.mxu0 0
      %637 = vmatpush.bf16.msra.mxu0 0
      %638 = vmatpush.bf16.msra.mxu0 0
      %639 = vmatpush.bf16.msra.mxu0 0
      %640 = vmatpush.bf16.msra.mxu0 %v631
      %641 = vmatmul.bf16.gmra.mxu0 %v628
      %v642 = vpop.f32.mrf.mxu0
      %v643 = vadd.f32 0.0, %v642
      %v644 = vpop.f32.mrf.mxu0
      %645 = vdwg.mxu0
      %v646 = vpack.c.bf16 %v643, %v643
      %v648 = vsel %vm528, %v646, 0
      %vm650 = vcmask 1043456
      %v652 = vsel %vm650, %v522, 0
      %654 = vmatpush.bf16.msra.mxu0 0
      %655 = vmatpush.bf16.msra.mxu0 0
      %656 = vmatpush.bf16.msra.mxu0 0
      %657 = vmatpush.bf16.msra.mxu0 0
      %658 = vmatpush.bf16.msra.mxu0 0
      %659 = vmatpush.bf16.msra.mxu0 0
      %660 = vmatpush.bf16.msra.mxu0 0
      %661 = vmatpush.bf16.msra.mxu0 %v652
      %662 = vmatmul.bf16.gmra.mxu0 %v648
      %v663 = vpop.f32.mrf.mxu0
      %v664 = vadd.f32 0.0, %v663
      %v665 = vpop.f32.mrf.mxu0
      %666 = vdwg.mxu0
      %v668 = vsel %vm528, %v583, 0
      %v671 = vsel %vm650, %v521, 0
      %673 = vmatpush.bf16.msra.mxu0 0
      %674 = vmatpush.bf16.msra.mxu0 0
      %675 = vmatpush.bf16.msra.mxu0 0
      %676 = vmatpush.bf16.msra.mxu0 0
      %677 = vmatpush.bf16.msra.mxu0 0
      %678 = vmatpush.bf16.msra.mxu0 0
      %679 = vmatpush.bf16.msra.mxu0 0
      %680 = vmatpush.bf16.msra.mxu0 %v671
      %681 = vmatmul.bf16.gmra.mxu0 %v668
      %v682 = vpop.f32.mrf.mxu0
      %v683 = vadd.f32 %v664, %v682
      %v684 = vpop.f32.mrf.mxu0
      %685 = vdwg.mxu0
      %686 = vrot.lane.b32.xlu0 %v585, 112
      %v687 = vpop.permute.xlu0 %686
      %688 = vrot.lane.b32.xlu0 %v527, 112
      %v689 = vpop.permute.xlu0 %688
      %v691 = vsel %vm528, %v687, 0
      %v694 = vsel %vm528, %v689, 0
      %696 = vmatpush.bf16.xpose.msra.mxu0 0
      %697 = vmatpush.bf16.xpose.msra.mxu0 0
      %698 = vmatpush.bf16.xpose.msra.mxu0 0
      %699 = vmatpush.bf16.xpose.msra.mxu0 0
      %700 = vmatpush.bf16.xpose.msra.mxu0 0
      %701 = vmatpush.bf16.xpose.msra.mxu0 0
      %702 = vmatpush.bf16.xpose.msra.mxu0 0
      %703 = vmatpush.bf16.xpose.msra.mxu0 %v694
      %704 = vmatmul.bf16.gmra.mxu0 %v691
      %v705 = vpop.f32.mrf.mxu0
      %v706 = vadd.f32 0.0, %v705
      %v707 = vpop.f32.mrf.mxu0
      %708 = vdwg.mxu0
      %v709 = vmul.f32 %v706, 0.35355338
      %v710 = vsel %vm549, %v709, -inf
      %711 = vmax.xlane.f32.xlu0 %v710
      %v712 = vpop.xlane.xlu0 %711
      %v713 = vsub.f32 %v709, %v712
      %v714 = vmul.f32 %v713, 1.442695
      %v715 = vpow.pop %v714
      %v716 = vsel %vm549, %v715, 0.0
      %717 = vadd.xlane.f32.xlu0 %v716
      %v718 = vpop.xlane.xlu0 %717
      %v719 = vrcp.pop %v718
      %v720 = vmul.f32 %v715, %v719
      %v721 = vpack.c.bf16 %v720, %v720
      %722 = vrot.lane.b32.xlu0 %v624, 112
      %v723 = vpop.permute.xlu0 %722
      %v725 = vsel %vm562, %v721, 0
      %v728 = vsel %vm566, %v723, 0
      %730 = vmatpush.bf16.msra.mxu0 0
      %731 = vmatpush.bf16.msra.mxu0 0
      %732 = vmatpush.bf16.msra.mxu0 0
      %733 = vmatpush.bf16.msra.mxu0 0
      %734 = vmatpush.bf16.msra.mxu0 0
      %735 = vmatpush.bf16.msra.mxu0 0
      %736 = vmatpush.bf16.msra.mxu0 0
      %737 = vmatpush.bf16.msra.mxu0 %v728
      %738 = vmatmul.bf16.gmra.mxu0 %v725
      %v739 = vpop.f32.mrf.mxu0
      %v740 = vadd.f32 0.0, %v739
      %v741 = vpop.f32.mrf.mxu0
      %742 = vdwg.mxu0
      %v743 = vpack.c.bf16 %v740, %v740
      %v745 = vsel %vm528, %v743, 0
      %v748 = vsel %vm650, %v523, 0
      %750 = vmatpush.bf16.msra.mxu0 0
      %751 = vmatpush.bf16.msra.mxu0 0
      %752 = vmatpush.bf16.msra.mxu0 0
      %753 = vmatpush.bf16.msra.mxu0 0
      %754 = vmatpush.bf16.msra.mxu0 0
      %755 = vmatpush.bf16.msra.mxu0 0
      %756 = vmatpush.bf16.msra.mxu0 0
      %757 = vmatpush.bf16.msra.mxu0 %v748
      %758 = vmatmul.bf16.gmra.mxu0 %v745
      %v759 = vpop.f32.mrf.mxu0
      %v760 = vadd.f32 0.0, %v759
      %v761 = vpop.f32.mrf.mxu0
      %762 = vdwg.mxu0
      %v763 = vadd.f32 %v683, %v760
      %764 = vrot.lane.b32.xlu0 %v585, 104
      %v765 = vpop.permute.xlu0 %764
      %766 = vrot.lane.b32.xlu0 %v527, 104
      %v767 = vpop.permute.xlu0 %766
      %v769 = vsel %vm528, %v765, 0
      %v772 = vsel %vm528, %v767, 0
      %774 = vmatpush.bf16.xpose.msra.mxu0 0
      %775 = vmatpush.bf16.xpose.msra.mxu0 0
      %776 = vmatpush.bf16.xpose.msra.mxu0 0
      %777 = vmatpush.bf16.xpose.msra.mxu0 0
      %778 = vmatpush.bf16.xpose.msra.mxu0 0
      %779 = vmatpush.bf16.xpose.msra.mxu0 0
      %780 = vmatpush.bf16.xpose.msra.mxu0 0
      %781 = vmatpush.bf16.xpose.msra.mxu0 %v772
      %782 = vmatmul.bf16.gmra.mxu0 %v769
      %v783 = vpop.f32.mrf.mxu0
      %v784 = vadd.f32 0.0, %v783
      %v785 = vpop.f32.mrf.mxu0
      %786 = vdwg.mxu0
      %v787 = vmul.f32 %v784, 0.35355338
      %v788 = vsel %vm549, %v787, -inf
      %789 = vmax.xlane.f32.xlu0 %v788
      %v790 = vpop.xlane.xlu0 %789
      %v791 = vsub.f32 %v787, %v790
      %v792 = vmul.f32 %v791, 1.442695
      %v793 = vpow.pop %v792
      %v794 = vsel %vm549, %v793, 0.0
      %795 = vadd.xlane.f32.xlu0 %v794
      %v796 = vpop.xlane.xlu0 %795
      %v797 = vrcp.pop %v796
      %v798 = vmul.f32 %v793, %v797
      %v799 = vpack.c.bf16 %v798, %v798
      %800 = vrot.lane.b32.xlu0 %v624, 104
      %v801 = vpop.permute.xlu0 %800
      %v803 = vsel %vm562, %v799, 0
      %v806 = vsel %vm566, %v801, 0
      %808 = vmatpush.bf16.msra.mxu0 0
      %809 = vmatpush.bf16.msra.mxu0 0
      %810 = vmatpush.bf16.msra.mxu0 0
      %811 = vmatpush.bf16.msra.mxu0 0
      %812 = vmatpush.bf16.msra.mxu0 0
      %813 = vmatpush.bf16.msra.mxu0 0
      %814 = vmatpush.bf16.msra.mxu0 0
      %815 = vmatpush.bf16.msra.mxu0 %v806
      %816 = vmatmul.bf16.gmra.mxu0 %v803
      %v817 = vpop.f32.mrf.mxu0
      %v818 = vadd.f32 0.0, %v817
      %v819 = vpop.f32.mrf.mxu0
      %820 = vdwg.mxu0
      %v821 = vpack.c.bf16 %v818, %v818
      %v823 = vsel %vm528, %v821, 0
      %v826 = vsel %vm650, %v524, 0
      %828 = vmatpush.bf16.msra.mxu0 0
      %829 = vmatpush.bf16.msra.mxu0 0
      %830 = vmatpush.bf16.msra.mxu0 0
      %831 = vmatpush.bf16.msra.mxu0 0
      %832 = vmatpush.bf16.msra.mxu0 0
      %833 = vmatpush.bf16.msra.mxu0 0
      %834 = vmatpush.bf16.msra.mxu0 0
      %835 = vmatpush.bf16.msra.mxu0 %v826
      %836 = vmatmul.bf16.gmra.mxu0 %v823
      %v837 = vpop.f32.mrf.mxu0
      %v838 = vadd.f32 0.0, %v837
      %v839 = vpop.f32.mrf.mxu0
      %840 = vdwg.mxu0
      %v841 = vadd.f32 %v763, %v838
      %v842 = vadd.f32 %v275, %v841
      %v843 = vld [vmem:[%s6] sm:$0x1]
      %v845 = vperm.slane %v843, 0
      %v847 = vadd.f32 %v842, %v845
      %848 = vst [vmem:[%s273] sm:$0x3f] %v847
      %p849 = scmp.lt.s32.totalorder %s18, 1
      %s850 = scalar_select %p849, %s18, 1
      %s851 = smul.addr %s850, 8
      %s852 = scalar_lea.vmem %s7, %s851
      // Predicated region
      $region49: #{conformer_encoder_forward.15} parent=47 // pred_check
        %p853 = pneg %p188
      $region50: #{conformer_encoder_forward.15} parent=47 // pred_check_branch
        %855 = sbr.rel (%p853) target = $region52
      $region51: #{conformer_encoder_forward.15} parent=47 // pred_region
        _
      $region52: #{conformer_encoder_forward.15} parent=47 // pred_fallthru
        _
    $region48: #{conformer_encoder_forward.15} parent=5 // pred_fallthru
      _
    %p856 = scmp.le.s32.totalorder 2, %s13
    // Predicated region
    $region53: #{conformer_encoder_forward.15} parent=5 // pred_check
      %p857 = pneg %p856
    $region54: #{conformer_encoder_forward.15} parent=5 // pred_check_branch
      %859 = sbr.rel (%p857) target = $region56
    $region55: #{conformer_encoder_forward.15} parent=5 // pred_region
      %s860 = ssub.s32 %s13, 2
      // Predicated region
      $region57: #{conformer_encoder_forward.15} parent=55 // pred_check
        %p861 = pneg %p194
      $region58: #{conformer_encoder_forward.15} parent=55 // pred_check_branch
        %863 = sbr.rel (%p861) target = $region60
      $region59: #{conformer_encoder_forward.15} parent=55 // pred_region
        %p864 = scmp.lt.s32.totalorder %s19, 1
        %s865 = scalar_select %p864, %s19, 1
        %s866 = smul.addr %s865, 8
        %s867 = scalar_lea.vmem %s7, %s866
      $region60: #{conformer_encoder_forward.15} parent=55 // pred_fallthru
        _
    $region56: #{conformer_encoder_forward.15} parent=5 // pred_fallthru
      _
  $region6: #{conformer_encoder_forward.15} parent=0 // loop_footer
    %s17 = sadd.s32 1, %s13
  $region7: #{conformer_encoder_forward.15} parent=0 // loop_footer_branch
    %12 = sbr.rel target = $region3
  $region8: #{conformer_encoder_forward.15} parent=0 // loop_exit
    _

// kernel: conformer_encoder_forward.17
$region0: #{conformer_encoder_forward.17}
  #allocation0 [shape = 'u32[]', space=smem, size = 0x4, offset = 0x4, fixed_abs, tag = 'smem constant byte address 0x4 - core index']
  #allocation1 [shape = 'u32[72,128]{1,0:T(1,128)}', space=vmem, size = 0x9000, scoped, tag = 'internal scratch']
  %s0 = inlined_call_operand.vmem [shape: f32[12,128], index: 0, kind: input, shape index: {}]
  %s1 = inlined_call_operand.vmem [shape: f32[1,128], index: 1, kind: input, shape index: {}]
  %s2 = inlined_call_operand.hbm [shape: f32[1,128], index: 2, kind: input, shape index: {}]
  %s3 = inlined_call_operand.vmem [shape: bf16[128,128], index: 3, kind: input, shape index: {}]
  %s4 = inlined_call_operand.hbm [shape: f32[1,128], index: 4, kind: input, shape index: {}]
  %s5 = inlined_call_operand.vmem [shape: bf16[128,128], index: 5, kind: input, shape index: {}]
  %s6 = inlined_call_operand.hbm [shape: f32[1,128], index: 6, kind: input, shape index: {}]
  %s7 = inlined_call_operand.hbm [shape: f32[1,128], index: 7, kind: input, shape index: {}]
  %s8 = inlined_call_operand.hbm [shape: f32[1,128], index: 8, kind: input, shape index: {}]
  %s9 = inlined_call_operand.vmem [shape: f32[12,128], index: 9, kind: output, shape index: {}]
  %s10 = sld [smem:[#allocation0]]
  $region66: #{conformer_encoder_forward.17} parent=0
    _
  %s12 = ssub.s32 1, %s10
  %s13 = scalar_select 0, %s12, %s10
  $region1: #{conformer_encoder_forward.17} parent=0
    #allocation2 [shape = 'u8[512]{0}', space=vmem, size = 0x400, scoped, tag = 'input window, operand 2, single buffered']
    #allocation3 [shape = 's32[1]{0}', space=sflag, size = 0x4, scoped, tag = 'scoped memory for conformer_encoder_forward.17']
    #allocation4 [shape = 'u8[512]{0}', space=vmem, size = 0x400, scoped, tag = 'input window, operand 4, single buffered']
    #allocation5 [shape = 's32[1]{0}', space=sflag, size = 0x4, scoped, tag = 'scoped memory for conformer_encoder_forward.17']
    #allocation6 [shape = 'u8[512]{0}', space=vmem, size = 0x400, scoped, tag = 'input window, operand 6, single buffered']
    #allocation7 [shape = 'u8[512]{0}', space=vmem, size = 0x400, scoped, tag = 'input window, operand 7, single buffered']
    #allocation8 [shape = 's32[1]{0}', space=sflag, size = 0x4, scoped, tag = 'scoped memory for conformer_encoder_forward.17']
    #allocation9 [shape = 'u8[512]{0}', space=vmem, size = 0x400, scoped, tag = 'input window, operand 8, single buffered']
    %14 = vsyncpa [#allocation3], 0
    %15 = vsyncpa [#allocation5], 0
    %16 = vsyncpa [#allocation8], 0
    // Predicated region
    $region2: #{conformer_encoder_forward.17} parent=1 // pred_check
      _
    $region3: #{conformer_encoder_forward.17} parent=1 // pred_check_branch
      %18 = sbr.rel (0) target = $region5
    $region4: #{conformer_encoder_forward.17} parent=1 // pred_region
      _
    $region5: #{conformer_encoder_forward.17} parent=1 // pred_fallthru
      _
    // Predicated region
    $region6: #{conformer_encoder_forward.17} parent=1 // pred_check
      _
    $region7: #{conformer_encoder_forward.17} parent=1 // pred_check_branch
      %20 = sbr.rel (0) target = $region9
    $region8: #{conformer_encoder_forward.17} parent=1 // pred_region
      _
    $region9: #{conformer_encoder_forward.17} parent=1 // pred_fallthru
      _
    // Predicated region
    $region10: #{conformer_encoder_forward.17} parent=1 // pred_check
      _
    $region11: #{conformer_encoder_forward.17} parent=1 // pred_check_branch
      %22 = sbr.rel (0) target = $region13
    $region12: #{conformer_encoder_forward.17} parent=1 // pred_region
      %24 = vsyncadd [#allocation3], 0
      %s26 = sshll.u32 %s2, 4
      %s27 = int_to_ptr.hbm [resolvable:$true] %s26
      %s28 = sshll.u32 [#allocation2], 4
      %s29 = int_to_ptr.vmem [resolvable:$true] %s28
      %31 = dma.hbm_to_vmem [thread:$0]  %s27, 16, %s29, [#allocation3]
    $region13: #{conformer_encoder_forward.17} parent=1 // pred_fallthru
      _
    // Predicated region
    $region14: #{conformer_encoder_forward.17} parent=1 // pred_check
      _
    $region15: #{conformer_encoder_forward.17} parent=1 // pred_check_branch
      %33 = sbr.rel (0) target = $region17
    $region16: #{conformer_encoder_forward.17} parent=1 // pred_region
      _
    $region17: #{conformer_encoder_forward.17} parent=1 // pred_fallthru
      _
    // Predicated region
    $region18: #{conformer_encoder_forward.17} parent=1 // pred_check
      _
    $region19: #{conformer_encoder_forward.17} parent=1 // pred_check_branch
      %35 = sbr.rel (0) target = $region21
    $region20: #{conformer_encoder_forward.17} parent=1 // pred_region
      %37 = vsyncadd [#allocation5], 0
      %s39 = sshll.u32 %s4, 4
      %s40 = int_to_ptr.hbm [resolvable:$true] %s39
      %s41 = sshll.u32 [#allocation4], 4
      %s42 = int_to_ptr.vmem [resolvable:$true] %s41
      %44 = dma.hbm_to_vmem [thread:$0]  %s40, 16, %s42, [#allocation5]
    $region21: #{conformer_encoder_forward.17} parent=1 // pred_fallthru
      _
    // Predicated region
    $region22: #{conformer_encoder_forward.17} parent=1 // pred_check
      _
    $region23: #{conformer_encoder_forward.17} parent=1 // pred_check_branch
      %46 = sbr.rel (0) target = $region25
    $region24: #{conformer_encoder_forward.17} parent=1 // pred_region
      _
    $region25: #{conformer_encoder_forward.17} parent=1 // pred_fallthru
      _
    // Predicated region
    $region26: #{conformer_encoder_forward.17} parent=1 // pred_check
      _
    $region27: #{conformer_encoder_forward.17} parent=1 // pred_check_branch
      %48 = sbr.rel (0) target = $region29
    $region28: #{conformer_encoder_forward.17} parent=1 // pred_region
      %50 = vsyncadd [#allocation5], 0
      %s52 = sshll.u32 %s6, 4
      %s53 = int_to_ptr.hbm [resolvable:$true] %s52
      %s54 = sshll.u32 [#allocation6], 4
      %s55 = int_to_ptr.vmem [resolvable:$true] %s54
      %57 = dma.hbm_to_vmem [thread:$0]  %s53, 16, %s55, [#allocation5]
    $region29: #{conformer_encoder_forward.17} parent=1 // pred_fallthru
      _
    // Predicated region
    $region30: #{conformer_encoder_forward.17} parent=1 // pred_check
      _
    $region31: #{conformer_encoder_forward.17} parent=1 // pred_check_branch
      %59 = sbr.rel (0) target = $region33
    $region32: #{conformer_encoder_forward.17} parent=1 // pred_region
      %61 = vsyncadd [#allocation8], 0
      %s63 = sshll.u32 %s7, 4
      %s64 = int_to_ptr.hbm [resolvable:$true] %s63
      %s65 = sshll.u32 [#allocation7], 4
      %s66 = int_to_ptr.vmem [resolvable:$true] %s65
      %68 = dma.hbm_to_vmem [thread:$0]  %s64, 16, %s66, [#allocation8]
    $region33: #{conformer_encoder_forward.17} parent=1 // pred_fallthru
      _
    // Predicated region
    $region34: #{conformer_encoder_forward.17} parent=1 // pred_check
      _
    $region35: #{conformer_encoder_forward.17} parent=1 // pred_check_branch
      %70 = sbr.rel (0) target = $region37
    $region36: #{conformer_encoder_forward.17} parent=1 // pred_region
      %72 = vsyncadd [#allocation8], 0
      %s74 = sshll.u32 %s8, 4
      %s75 = int_to_ptr.hbm [resolvable:$true] %s74
      %s76 = sshll.u32 [#allocation9], 4
      %s77 = int_to_ptr.vmem [resolvable:$true] %s76
      %79 = dma.hbm_to_vmem [thread:$0]  %s75, 16, %s77, [#allocation8]
    $region37: #{conformer_encoder_forward.17} parent=1 // pred_fallthru
      _
    // Predicated region
    $region38: #{conformer_encoder_forward.17} parent=1 // pred_check
      _
    $region39: #{conformer_encoder_forward.17} parent=1 // pred_check_branch
      %81 = sbr.rel (0) target = $region41
    $region40: #{conformer_encoder_forward.17} parent=1 // pred_region
      %83 = dma.done [#allocation3], 16
    $region41: #{conformer_encoder_forward.17} parent=1 // pred_fallthru
      _
    // Predicated region
    $region42: #{conformer_encoder_forward.17} parent=1 // pred_check
      _
    $region43: #{conformer_encoder_forward.17} parent=1 // pred_check_branch
      %85 = sbr.rel (0) target = $region45
    $region44: #{conformer_encoder_forward.17} parent=1 // pred_region
      %87 = dma.done [#allocation5], 16
    $region45: #{conformer_encoder_forward.17} parent=1 // pred_fallthru
      _
    // Predicated region
    $region46: #{conformer_encoder_forward.17} parent=1 // pred_check
      _
    $region47: #{conformer_encoder_forward.17} parent=1 // pred_check_branch
      %89 = sbr.rel (0) target = $region49
    $region48: #{conformer_encoder_forward.17} parent=1 // pred_region
      %91 = dma.done [#allocation5], 16
    $region49: #{conformer_encoder_forward.17} parent=1 // pred_fallthru
      _
    // Predicated region
    $region50: #{conformer_encoder_forward.17} parent=1 // pred_check
      _
    $region51: #{conformer_encoder_forward.17} parent=1 // pred_check_branch
      %93 = sbr.rel (0) target = $region53
    $region52: #{conformer_encoder_forward.17} parent=1 // pred_region
      %95 = dma.done [#allocation8], 16
    $region53: #{conformer_encoder_forward.17} parent=1 // pred_fallthru
      _
    // Predicated region
    $region54: #{conformer_encoder_forward.17} parent=1 // pred_check
      _
    $region55: #{conformer_encoder_forward.17} parent=1 // pred_check_branch
      %97 = sbr.rel (0) target = $region57
    $region56: #{conformer_encoder_forward.17} parent=1 // pred_region
      %99 = dma.done [#allocation8], 16
    $region57: #{conformer_encoder_forward.17} parent=1 // pred_fallthru
      _
    %v100 = vld [vmem:[%s0] sm:$0xff]
    %v101 = vld [vmem:[%s0 + $0x8] sm:$0xf]
    %v102 = vld [vmem:[%s1] sm:$0x1]
    %v103 = vld [vmem:[#allocation2] sm:$0x1]
    %104 = vadd.xlane.f32.xlu0 %v100
    %v105 = vpop.xlane.xlu0 %104
    %vm106 = vcmask 1043456
    %v107 = vsel %vm106, %v101, 0.0
    %108 = vadd.xlane.f32.xlu0 %v107
    %v109 = vpop.xlane.xlu0 %108
    %v110 = vmul.f32 %v105, 0.03125
    %v111 = vmul.f32 %v109, 0.03125
    %v112 = vmul.f32 %v100, %v100
    %v113 = vmul.f32 %v101, %v101
    %114 = vadd.xlane.f32.xlu0 %v112
    %v115 = vpop.xlane.xlu0 %114
    %v116 = vsel %vm106, %v113, 0.0
    %117 = vadd.xlane.f32.xlu0 %v116
    %v118 = vpop.xlane.xlu0 %117
    %v119 = vmul.f32 %v115, 0.03125
    %v120 = vmul.f32 %v118, 0.03125
    %v121 = vmul.f32 %v110, %v110
    %v122 = vmul.f32 %v111, %v111
    %v123 = vsub.f32 %v119, %v121
    %v124 = vsub.f32 %v120, %v122
    %v125 = vsub.f32 %v100, %v110
    %v126 = vsub.f32 %v101, %v111
    %v127 = vadd.f32 %v123, 1e-05
    %v128 = vadd.f32 %v124, 1e-05
    %v129 = vrsqrt.pop %v127
    %v130 = vmul.f32 %v129, %v127
    %v131 = vmul.f32 %v130, %v129
    %v132 = vmul.f32 0.5, %v131
    %v133 = vsub.f32 1.5, %v132
    %v134 = vmul.f32 %v129, %v133
    %vm135 = vweird.f32 %v127
    %vm136 = vweird.f32 %v129
    %vm137 = vmor %vm135, %vm136
    %v138 = vsel %vm137, %v129, %v134
    %v139 = vrsqrt.pop %v128
    %v140 = vmul.f32 %v139, %v128
    %v141 = vmul.f32 %v140, %v139
    %v142 = vmul.f32 0.5, %v141
    %v143 = vsub.f32 1.5, %v142
    %v144 = vmul.f32 %v139, %v143
    %vm145 = vweird.f32 %v128
    %vm146 = vweird.f32 %v139
    %vm147 = vmor %vm145, %vm146
    %v148 = vsel %vm147, %v139, %v144
    %v149 = vmul.f32 %v125, %v138
    %v150 = vmul.f32 %v126, %v148
    %v152 = vperm.slane %v102, 0
    %v154 = vmul.f32 %v149, %v152
    %v155 = vmul.f32 %v150, %v152
    %v157 = vperm.slane %v103, 0
    %v159 = vadd.f32 %v154, %v157
    %v160 = vadd.f32 %v155, %v157
    %v161 = vpack.c.bf16 %v160, %v159
    %v162 = vld [vmem:[%s3] sm:$0xf]
    %v163 = vld [vmem:[%s3 + $0x4] sm:$0xf]
    %v164 = vld [vmem:[%s3 + $0x8] sm:$0xf]
    %v165 = vld [vmem:[%s3 + $0xc] sm:$0xf]
    %v166 = vld [vmem:[%s3 + $0x10] sm:$0xf]
    %v167 = vld [vmem:[%s3 + $0x14] sm:$0xf]
    %v168 = vld [vmem:[%s3 + $0x18] sm:$0xf]
    %v169 = vld [vmem:[%s3 + $0x1c] sm:$0xf]
    %v170 = vld [vmem:[%s3 + $0x20] sm:$0xf]
    %v171 = vld [vmem:[%s3 + $0x24] sm:$0xf]
    %v172 = vld [vmem:[%s3 + $0x28] sm:$0xf]
    %v173 = vld [vmem:[%s3 + $0x2c] sm:$0xf]
    %v174 = vld [vmem:[%s3 + $0x30] sm:$0xf]
    %v175 = vld [vmem:[%s3 + $0x34] sm:$0xf]
    %v176 = vld [vmem:[%s3 + $0x38] sm:$0xf]
    %v177 = vld [vmem:[%s3 + $0x3c] sm:$0xf]
    %v178 = vld [vmem:[#allocation4] sm:$0x1]
    %v180 = vperm.slane %v178, 0
    %v198 = vunpack.c.l.b16 %v162
    %v199 = vunpack.c.l.b16 %v163
    %v200 = vunpack.c.l.b16 %v164
    %v201 = vunpack.c.l.b16 %v165
    %v202 = vunpack.c.l.b16 %v166
    %v203 = vunpack.c.l.b16 %v167
    %v204 = vunpack.c.l.b16 %v168
    %v205 = vunpack.c.l.b16 %v169
    %v206 = vunpack.c.l.b16 %v170
    %v207 = vunpack.c.l.b16 %v171
    %v208 = vunpack.c.l.b16 %v172
    %v209 = vunpack.c.l.b16 %v173
    %v210 = vunpack.c.l.b16 %v174
    %v211 = vunpack.c.l.b16 %v175
    %v212 = vunpack.c.l.b16 %v176
    %v213 = vunpack.c.l.b16 %v177
    %v214 = vpack.c.b16 %v199, %v198
    %v215 = vpack.c.b16 %v201, %v200
    %v216 = vpack.c.b16 %v203, %v202
    %v217 = vpack.c.b16 %v205, %v204
    %v218 = vpack.c.b16 %v207, %v206
    %v219 = vpack.c.b16 %v209, %v208
    %v220 = vpack.c.b16 %v211, %v210
    %v221 = vpack.c.b16 %v213, %v212
    %230 = vmatpush.bf16.msra.mxu0 %v221
    %231 = vmatpush.bf16.msra.mxu0 %v220
    %232 = vmatpush.bf16.msra.mxu0 %v219
    %233 = vmatpush.bf16.msra.mxu0 %v218
    %234 = vmatpush.bf16.msra.mxu0 %v217
    %235 = vmatpush.bf16.msra.mxu0 %v216
    %236 = vmatpush.bf16.msra.mxu0 %v215
    %237 = vmatpush.bf16.msra.mxu0 %v214
    %238 = vmatmul.bf16.gmra.mxu0 %v161
    %v239 = vpop.f32.mrf.mxu0
    %v240 = vadd.f32 %v180, %v239
    %v241 = vpop.f32.mrf.mxu0
    %v242 = vadd.f32 %v180, %v241
    %243 = vdwg.mxu0
    %v244 = vxor.u32 %v240, 2147483648
    %v245 = vxor.u32 %v242, 2147483648
    %v246 = vmul.f32 %v244, 1.442695
    %v247 = vpow.pop %v246
    %v248 = vmul.f32 %v245, 1.442695
    %v249 = vpow.pop %v248
    %v250 = vadd.f32 %v247, 1.0
    %v251 = vadd.f32 %v249, 1.0
    %v252 = vrcp.pop %v250
    %v253 = vmul.f32 %v250, %v252
    %v254 = vsub.f32 1.0, %v253
    %v255 = vmul.f32 %v252, %v254
    %v256 = vadd.f32 %v252, %v255
    %vm257 = vweird.f32 %v250
    %vm258 = vweird.f32 %v252
    %vm259 = vmor %vm257, %vm258
    %v260 = vsel %vm259, %v252, %v256
    %v261 = vand.u32 2147483647, %v250
    %vm262 = vcmp.eq.f32.partialorder %v261, 8.507059e+37
    %v263 = vand.u32 %v250, 2147483648
    %v264 = vor.u32 1.1754944e-38, %v263
    %v265 = vsel %vm262, %v264, %v260
    %v266 = vmul.f32 1.0, %v265
    %v267 = vrcp.pop %v251
    %v268 = vmul.f32 %v251, %v267
    %v269 = vsub.f32 1.0, %v268
    %v270 = vmul.f32 %v267, %v269
    %v271 = vadd.f32 %v267, %v270
    %vm272 = vweird.f32 %v251
    %vm273 = vweird.f32 %v267
    %vm274 = vmor %vm272, %vm273
    %v275 = vsel %vm274, %v267, %v271
    %v276 = vand.u32 2147483647, %v251
    %vm277 = vcmp.eq.f32.partialorder %v276, 8.507059e+37
    %v278 = vand.u32 %v251, 2147483648
    %v279 = vor.u32 1.1754944e-38, %v278
    %v280 = vsel %vm277, %v279, %v275
    %v281 = vmul.f32 1.0, %v280
    %v282 = vmul.f32 %v240, %v266
    %v283 = vmul.f32 %v242, %v281
    %v284 = vpack.c.bf16 %v283, %v282
    %v285 = vld [vmem:[%s5] sm:$0xf]
    %v286 = vld [vmem:[%s5 + $0x4] sm:$0xf]
    %v287 = vld [vmem:[%s5 + $0x8] sm:$0xf]
    %v288 = vld [vmem:[%s5 + $0xc] sm:$0xf]
    %v289 = vld [vmem:[%s5 + $0x10] sm:$0xf]
    %v290 = vld [vmem:[%s5 + $0x14] sm:$0xf]
    %v291 = vld [vmem:[%s5 + $0x18] sm:$0xf]
    %v292 = vld [vmem:[%s5 + $0x1c] sm:$0xf]
    %v293 = vld [vmem:[%s5 + $0x20] sm:$0xf]
    %v294 = vld [vmem:[%s5 + $0x24] sm:$0xf]
    %v295 = vld [vmem:[%s5 + $0x28] sm:$0xf]
    %v296 = vld [vmem:[%s5 + $0x2c] sm:$0xf]
    %v297 = vld [vmem:[%s5 + $0x30] sm:$0xf]
    %v298 = vld [vmem:[%s5 + $0x34] sm:$0xf]
    %v299 = vld [vmem:[%s5 + $0x38] sm:$0xf]
    %v300 = vld [vmem:[%s5 + $0x3c] sm:$0xf]
    %v301 = vld [vmem:[#allocation6] sm:$0x1]
    %v303 = vperm.slane %v301, 0
    %v321 = vunpack.c.l.b16 %v285
    %v322 = vunpack.c.l.b16 %v286
    %v323 = vunpack.c.l.b16 %v287
    %v324 = vunpack.c.l.b16 %v288
    %v325 = vunpack.c.l.b16 %v289
    %v326 = vunpack.c.l.b16 %v290
    %v327 = vunpack.c.l.b16 %v291
    %v328 = vunpack.c.l.b16 %v292
    %v329 = vunpack.c.l.b16 %v293
    %v330 = vunpack.c.l.b16 %v294
    %v331 = vunpack.c.l.b16 %v295
    %v332 = vunpack.c.l.b16 %v296
    %v333 = vunpack.c.l.b16 %v297
    %v334 = vunpack.c.l.b16 %v298
    %v335 = vunpack.c.l.b16 %v299
    %v336 = vunpack.c.l.b16 %v300
    %v337 = vpack.c.b16 %v322, %v321
    %v338 = vpack.c.b16 %v324, %v323
    %v339 = vpack.c.b16 %v326, %v325
    %v340 = vpack.c.b16 %v328, %v327
    %v341 = vpack.c.b16 %v330, %v329
    %v342 = vpack.c.b16 %v332, %v331
    %v343 = vpack.c.b16 %v334, %v333
    %v344 = vpack.c.b16 %v336, %v335
    %353 = vmatpush.bf16.msra.mxu0 %v344
    %354 = vmatpush.bf16.msra.mxu0 %v343
    %355 = vmatpush.bf16.msra.mxu0 %v342
    %356 = vmatpush.bf16.msra.mxu0 %v341
    %357 = vmatpush.bf16.msra.mxu0 %v340
    %358 = vmatpush.bf16.msra.mxu0 %v339
    %359 = vmatpush.bf16.msra.mxu0 %v338
    %360 = vmatpush.bf16.msra.mxu0 %v337
    %361 = vmatmul.bf16.gmra.mxu0 %v284
    %v362 = vpop.f32.mrf.mxu0
    %v363 = vadd.f32 %v303, %v362
    %v364 = vpop.f32.mrf.mxu0
    %v365 = vadd.f32 %v303, %v364
    %366 = vdwg.mxu0
    %v367 = vmul.f32 %v363, 0.5
    %v368 = vmul.f32 %v365, 0.5
    %v369 = vadd.f32 %v100, %v367
    %v370 = vadd.f32 %v101, %v368
    %v371 = vld [vmem:[#allocation7] sm:$0x1]
    %v372 = vld [vmem:[#allocation9] sm:$0x1]
    %373 = vadd.xlane.f32.xlu0 %v369
    %v374 = vpop.xlane.xlu0 %373
    %v375 = vsel %vm106, %v370, 0.0
    %376 = vadd.xlane.f32.xlu0 %v375
    %v377 = vpop.xlane.xlu0 %376
    %v378 = vmul.f32 %v374, 0.03125
    %v379 = vmul.f32 %v377, 0.03125
    %v380 = vmul.f32 %v369, %v369
    %v381 = vmul.f32 %v370, %v370
    %382 = vadd.xlane.f32.xlu0 %v380
    %v383 = vpop.xlane.xlu0 %382
    %v384 = vsel %vm106, %v381, 0.0
    %385 = vadd.xlane.f32.xlu0 %v384
    %v386 = vpop.xlane.xlu0 %385
    %v387 = vmul.f32 %v383, 0.03125
    %v388 = vmul.f32 %v386, 0.03125
    %v389 = vmul.f32 %v378, %v378
    %v390 = vmul.f32 %v379, %v379
    %v391 = vsub.f32 %v387, %v389
    %v392 = vsub.f32 %v388, %v390
    %v393 = vsub.f32 %v369, %v378
    %v394 = vsub.f32 %v370, %v379
    %v395 = vadd.f32 %v391, 1e-05
    %v396 = vadd.f32 %v392, 1e-05
    %v397 = vrsqrt.pop %v395
    %v398 = vmul.f32 %v397, %v395
    %v399 = vmul.f32 %v398, %v397
    %v400 = vmul.f32 0.5, %v399
    %v401 = vsub.f32 1.5, %v400
    %v402 = vmul.f32 %v397, %v401
    %vm403 = vweird.f32 %v395
    %vm404 = vweird.f32 %v397
    %vm405 = vmor %vm403, %vm404
    %v406 = vsel %vm405, %v397, %v402
    %v407 = vrsqrt.pop %v396
    %v408 = vmul.f32 %v407, %v396
    %v409 = vmul.f32 %v408, %v407
    %v410 = vmul.f32 0.5, %v409
    %v411 = vsub.f32 1.5, %v410
    %v412 = vmul.f32 %v407, %v411
    %vm413 = vweird.f32 %v396
    %vm414 = vweird.f32 %v407
    %vm415 = vmor %vm413, %vm414
    %v416 = vsel %vm415, %v407, %v412
    %v417 = vmul.f32 %v393, %v406
    %v418 = vmul.f32 %v394, %v416
    %v420 = vperm.slane %v371, 0
    %v422 = vmul.f32 %v417, %v420
    %v423 = vmul.f32 %v418, %v420
    %v425 = vperm.slane %v372, 0
    %v427 = vadd.f32 %v422, %v425
    %v428 = vadd.f32 %v423, %v425
    %429 = vst [vmem:[%s9] sm:$0xff] %v427
    %430 = vst [vmem:[%s9 + $0x8] sm:$0xf] %v428
    // Predicated region
    $region58: #{conformer_encoder_forward.17} parent=1 // pred_check
      _
    $region59: #{conformer_encoder_forward.17} parent=1 // pred_check_branch
      %432 = sbr.rel (0) target = $region61
    $region60: #{conformer_encoder_forward.17} parent=1 // pred_region
      _
    $region61: #{conformer_encoder_forward.17} parent=1 // pred_fallthru
      _
    // Predicated region
    $region62: #{conformer_encoder_forward.17} parent=1 // pred_check
      _
    $region63: #{conformer_encoder_forward.17} parent=1 // pred_check_branch
      %434 = sbr.rel (0) target = $region65
    $region64: #{conformer_encoder_forward.17} parent=1 // pred_region
      _
    $region65: #{conformer_encoder_forward.17} parent=1 // pred_fallthru
      _
    %435 = vsyncpa [#allocation3], 1
    %436 = vsyncpa [#allocation5], 1
    %437 = vsyncpa [#allocation8], 1

// kernel: conformer_encoder_forward.18
$region0: #{conformer_encoder_forward.18}
  #allocation0 [shape = 'u32[]', space=smem, size = 0x4, offset = 0x4, fixed_abs, tag = 'smem constant byte address 0x4 - core index']
  #allocation1 [shape = 'u32[72,128]{1,0:T(1,128)}', space=vmem, size = 0x9000, scoped, tag = 'internal scratch']
  %s0 = inlined_call_operand.vmem [shape: f32[12,128], index: 0, kind: input, shape index: {}]
  %s1 = inlined_call_operand.hbm [shape: f32[1,128], index: 1, kind: input, shape index: {}]
  %s2 = inlined_call_operand.hbm [shape: f32[1,128], index: 2, kind: input, shape index: {}]
  %s3 = inlined_call_operand.vmem [shape: bf16[128,128], index: 3, kind: input, shape index: {}]
  %s4 = inlined_call_operand.hbm [shape: f32[1,128], index: 4, kind: input, shape index: {}]
  %s5 = inlined_call_operand.vmem [shape: bf16[128,128], index: 5, kind: input, shape index: {}]
  %s6 = inlined_call_operand.hbm [shape: f32[1,128], index: 6, kind: input, shape index: {}]
  %s7 = inlined_call_operand.vmem [shape: f32[1,128], index: 7, kind: input, shape index: {}, may-alias: {7,8}]
  %s8 = inlined_call_operand.vmem [shape: f32[1,128], index: 8, kind: input, shape index: {}, may-alias: {7,8}]
  %s9 = inlined_call_operand.vmem [shape: f32[12,128], index: 9, kind: output, shape index: {}]
  %s10 = sld [smem:[#allocation0]]
  $region62: #{conformer_encoder_forward.18} parent=0
    _
  %s12 = ssub.s32 1, %s10
  %s13 = scalar_select 0, %s12, %s10
  $region1: #{conformer_encoder_forward.18} parent=0
    #allocation2 [shape = 'u8[512]{0}', space=vmem, size = 0x400, scoped, tag = 'input window, operand 1, single buffered']
    #allocation3 [shape = 's32[1]{0}', space=sflag, size = 0x4, scoped, tag = 'scoped memory for conformer_encoder_forward.18']
    #allocation4 [shape = 'u8[512]{0}', space=vmem, size = 0x400, scoped, tag = 'input window, operand 2, single buffered']
    #allocation5 [shape = 's32[1]{0}', space=sflag, size = 0x4, scoped, tag = 'scoped memory for conformer_encoder_forward.18']
    #allocation6 [shape = 'u8[512]{0}', space=vmem, size = 0x400, scoped, tag = 'input window, operand 4, single buffered']
    #allocation7 [shape = 'u8[512]{0}', space=vmem, size = 0x400, scoped, tag = 'input window, operand 6, single buffered']
    #allocation8 [shape = 's32[1]{0}', space=sflag, size = 0x4, scoped, tag = 'scoped memory for conformer_encoder_forward.18']
    %14 = vsyncpa [#allocation3], 0
    %15 = vsyncpa [#allocation5], 0
    %16 = vsyncpa [#allocation8], 0
    // Predicated region
    $region2: #{conformer_encoder_forward.18} parent=1 // pred_check
      _
    $region3: #{conformer_encoder_forward.18} parent=1 // pred_check_branch
      %18 = sbr.rel (0) target = $region5
    $region4: #{conformer_encoder_forward.18} parent=1 // pred_region
      _
    $region5: #{conformer_encoder_forward.18} parent=1 // pred_fallthru
      _
    // Predicated region
    $region6: #{conformer_encoder_forward.18} parent=1 // pred_check
      _
    $region7: #{conformer_encoder_forward.18} parent=1 // pred_check_branch
      %20 = sbr.rel (0) target = $region9
    $region8: #{conformer_encoder_forward.18} parent=1 // pred_region
      %22 = vsyncadd [#allocation3], 0
      %s24 = sshll.u32 %s1, 4
      %s25 = int_to_ptr.hbm [resolvable:$true] %s24
      %s26 = sshll.u32 [#allocation2], 4
      %s27 = int_to_ptr.vmem [resolvable:$true] %s26
      %29 = dma.hbm_to_vmem [thread:$0]  %s25, 16, %s27, [#allocation3]
    $region9: #{conformer_encoder_forward.18} parent=1 // pred_fallthru
      _
    // Predicated region
    $region10: #{conformer_encoder_forward.18} parent=1 // pred_check
      _
    $region11: #{conformer_encoder_forward.18} parent=1 // pred_check_branch
      %31 = sbr.rel (0) target = $region13
    $region12: #{conformer_encoder_forward.18} parent=1 // pred_region
      %33 = vsyncadd [#allocation5], 0
      %s35 = sshll.u32 %s2, 4
      %s36 = int_to_ptr.hbm [resolvable:$true] %s35
      %s37 = sshll.u32 [#allocation4], 4
      %s38 = int_to_ptr.vmem [resolvable:$true] %s37
      %40 = dma.hbm_to_vmem [thread:$0]  %s36, 16, %s38, [#allocation5]
    $region13: #{conformer_encoder_forward.18} parent=1 // pred_fallthru
      _
    // Predicated region
    $region14: #{conformer_encoder_forward.18} parent=1 // pred_check
      _
    $region15: #{conformer_encoder_forward.18} parent=1 // pred_check_branch
      %42 = sbr.rel (0) target = $region17
    $region16: #{conformer_encoder_forward.18} parent=1 // pred_region
      _
    $region17: #{conformer_encoder_forward.18} parent=1 // pred_fallthru
      _
    // Predicated region
    $region18: #{conformer_encoder_forward.18} parent=1 // pred_check
      _
    $region19: #{conformer_encoder_forward.18} parent=1 // pred_check_branch
      %44 = sbr.rel (0) target = $region21
    $region20: #{conformer_encoder_forward.18} parent=1 // pred_region
      %46 = vsyncadd [#allocation5], 0
      %s48 = sshll.u32 %s4, 4
      %s49 = int_to_ptr.hbm [resolvable:$true] %s48
      %s50 = sshll.u32 [#allocation6], 4
      %s51 = int_to_ptr.vmem [resolvable:$true] %s50
      %53 = dma.hbm_to_vmem [thread:$0]  %s49, 16, %s51, [#allocation5]
    $region21: #{conformer_encoder_forward.18} parent=1 // pred_fallthru
      _
    // Predicated region
    $region22: #{conformer_encoder_forward.18} parent=1 // pred_check
      _
    $region23: #{conformer_encoder_forward.18} parent=1 // pred_check_branch
      %55 = sbr.rel (0) target = $region25
    $region24: #{conformer_encoder_forward.18} parent=1 // pred_region
      _
    $region25: #{conformer_encoder_forward.18} parent=1 // pred_fallthru
      _
    // Predicated region
    $region26: #{conformer_encoder_forward.18} parent=1 // pred_check
      _
    $region27: #{conformer_encoder_forward.18} parent=1 // pred_check_branch
      %57 = sbr.rel (0) target = $region29
    $region28: #{conformer_encoder_forward.18} parent=1 // pred_region
      %59 = vsyncadd [#allocation8], 0
      %s61 = sshll.u32 %s6, 4
      %s62 = int_to_ptr.hbm [resolvable:$true] %s61
      %s63 = sshll.u32 [#allocation7], 4
      %s64 = int_to_ptr.vmem [resolvable:$true] %s63
      %66 = dma.hbm_to_vmem [thread:$0]  %s62, 16, %s64, [#allocation8]
    $region29: #{conformer_encoder_forward.18} parent=1 // pred_fallthru
      _
    // Predicated region
    $region30: #{conformer_encoder_forward.18} parent=1 // pred_check
      _
    $region31: #{conformer_encoder_forward.18} parent=1 // pred_check_branch
      %68 = sbr.rel (0) target = $region33
    $region32: #{conformer_encoder_forward.18} parent=1 // pred_region
      _
    $region33: #{conformer_encoder_forward.18} parent=1 // pred_fallthru
      _
    // Predicated region
    $region34: #{conformer_encoder_forward.18} parent=1 // pred_check
      _
    $region35: #{conformer_encoder_forward.18} parent=1 // pred_check_branch
      %70 = sbr.rel (0) target = $region37
    $region36: #{conformer_encoder_forward.18} parent=1 // pred_region
      _
    $region37: #{conformer_encoder_forward.18} parent=1 // pred_fallthru
      _
    // Predicated region
    $region38: #{conformer_encoder_forward.18} parent=1 // pred_check
      _
    $region39: #{conformer_encoder_forward.18} parent=1 // pred_check_branch
      %72 = sbr.rel (0) target = $region41
    $region40: #{conformer_encoder_forward.18} parent=1 // pred_region
      %74 = dma.done [#allocation3], 16
    $region41: #{conformer_encoder_forward.18} parent=1 // pred_fallthru
      _
    // Predicated region
    $region42: #{conformer_encoder_forward.18} parent=1 // pred_check
      _
    $region43: #{conformer_encoder_forward.18} parent=1 // pred_check_branch
      %76 = sbr.rel (0) target = $region45
    $region44: #{conformer_encoder_forward.18} parent=1 // pred_region
      %78 = dma.done [#allocation5], 16
    $region45: #{conformer_encoder_forward.18} parent=1 // pred_fallthru
      _
    // Predicated region
    $region46: #{conformer_encoder_forward.18} parent=1 // pred_check
      _
    $region47: #{conformer_encoder_forward.18} parent=1 // pred_check_branch
      %80 = sbr.rel (0) target = $region49
    $region48: #{conformer_encoder_forward.18} parent=1 // pred_region
      %82 = dma.done [#allocation5], 16
    $region49: #{conformer_encoder_forward.18} parent=1 // pred_fallthru
      _
    // Predicated region
    $region50: #{conformer_encoder_forward.18} parent=1 // pred_check
      _
    $region51: #{conformer_encoder_forward.18} parent=1 // pred_check_branch
      %84 = sbr.rel (0) target = $region53
    $region52: #{conformer_encoder_forward.18} parent=1 // pred_region
      %86 = dma.done [#allocation8], 16
    $region53: #{conformer_encoder_forward.18} parent=1 // pred_fallthru
      _
    %v87 = vld [vmem:[%s0] sm:$0xff]
    %v88 = vld [vmem:[%s0 + $0x8] sm:$0xf]
    %v89 = vld [vmem:[#allocation2] sm:$0x1]
    %v90 = vld [vmem:[#allocation4] sm:$0x1]
    %91 = vadd.xlane.f32.xlu0 %v87
    %v92 = vpop.xlane.xlu0 %91
    %vm93 = vcmask 1043456
    %v94 = vsel %vm93, %v88, 0.0
    %95 = vadd.xlane.f32.xlu0 %v94
    %v96 = vpop.xlane.xlu0 %95
    %v97 = vmul.f32 %v92, 0.03125
    %v98 = vmul.f32 %v96, 0.03125
    %v99 = vmul.f32 %v87, %v87
    %v100 = vmul.f32 %v88, %v88
    %101 = vadd.xlane.f32.xlu0 %v99
    %v102 = vpop.xlane.xlu0 %101
    %v103 = vsel %vm93, %v100, 0.0
    %104 = vadd.xlane.f32.xlu0 %v103
    %v105 = vpop.xlane.xlu0 %104
    %v106 = vmul.f32 %v102, 0.03125
    %v107 = vmul.f32 %v105, 0.03125
    %v108 = vmul.f32 %v97, %v97
    %v109 = vmul.f32 %v98, %v98
    %v110 = vsub.f32 %v106, %v108
    %v111 = vsub.f32 %v107, %v109
    %v112 = vsub.f32 %v87, %v97
    %v113 = vsub.f32 %v88, %v98
    %v114 = vadd.f32 %v110, 1e-05
    %v115 = vadd.f32 %v111, 1e-05
    %v116 = vrsqrt.pop %v114
    %v117 = vmul.f32 %v116, %v114
    %v118 = vmul.f32 %v117, %v116
    %v119 = vmul.f32 0.5, %v118
    %v120 = vsub.f32 1.5, %v119
    %v121 = vmul.f32 %v116, %v120
    %vm122 = vweird.f32 %v114
    %vm123 = vweird.f32 %v116
    %vm124 = vmor %vm122, %vm123
    %v125 = vsel %vm124, %v116, %v121
    %v126 = vrsqrt.pop %v115
    %v127 = vmul.f32 %v126, %v115
    %v128 = vmul.f32 %v127, %v126
    %v129 = vmul.f32 0.5, %v128
    %v130 = vsub.f32 1.5, %v129
    %v131 = vmul.f32 %v126, %v130
    %vm132 = vweird.f32 %v115
    %vm133 = vweird.f32 %v126
    %vm134 = vmor %vm132, %vm133
    %v135 = vsel %vm134, %v126, %v131
    %v136 = vmul.f32 %v112, %v125
    %v137 = vmul.f32 %v113, %v135
    %v139 = vperm.slane %v89, 0
    %v141 = vmul.f32 %v136, %v139
    %v142 = vmul.f32 %v137, %v139
    %v144 = vperm.slane %v90, 0
    %v146 = vadd.f32 %v141, %v144
    %v147 = vadd.f32 %v142, %v144
    %v148 = vpack.c.bf16 %v147, %v146
    %v149 = vld [vmem:[%s3] sm:$0xf]
    %v150 = vld [vmem:[%s3 + $0x4] sm:$0xf]
    %v151 = vld [vmem:[%s3 + $0x8] sm:$0xf]
    %v152 = vld [vmem:[%s3 + $0xc] sm:$0xf]
    %v153 = vld [vmem:[%s3 + $0x10] sm:$0xf]
    %v154 = vld [vmem:[%s3 + $0x14] sm:$0xf]
    %v155 = vld [vmem:[%s3 + $0x18] sm:$0xf]
    %v156 = vld [vmem:[%s3 + $0x1c] sm:$0xf]
    %v157 = vld [vmem:[%s3 + $0x20] sm:$0xf]
    %v158 = vld [vmem:[%s3 + $0x24] sm:$0xf]
    %v159 = vld [vmem:[%s3 + $0x28] sm:$0xf]
    %v160 = vld [vmem:[%s3 + $0x2c] sm:$0xf]
    %v161 = vld [vmem:[%s3 + $0x30] sm:$0xf]
    %v162 = vld [vmem:[%s3 + $0x34] sm:$0xf]
    %v163 = vld [vmem:[%s3 + $0x38] sm:$0xf]
    %v164 = vld [vmem:[%s3 + $0x3c] sm:$0xf]
    %v165 = vld [vmem:[#allocation6] sm:$0x1]
    %v167 = vperm.slane %v165, 0
    %v185 = vunpack.c.l.b16 %v149
    %v186 = vunpack.c.l.b16 %v150
    %v187 = vunpack.c.l.b16 %v151
    %v188 = vunpack.c.l.b16 %v152
    %v189 = vunpack.c.l.b16 %v153
    %v190 = vunpack.c.l.b16 %v154
    %v191 = vunpack.c.l.b16 %v155
    %v192 = vunpack.c.l.b16 %v156
    %v193 = vunpack.c.l.b16 %v157
    %v194 = vunpack.c.l.b16 %v158
    %v195 = vunpack.c.l.b16 %v159
    %v196 = vunpack.c.l.b16 %v160
    %v197 = vunpack.c.l.b16 %v161
    %v198 = vunpack.c.l.b16 %v162
    %v199 = vunpack.c.l.b16 %v163
    %v200 = vunpack.c.l.b16 %v164
    %v201 = vpack.c.b16 %v186, %v185
    %v202 = vpack.c.b16 %v188, %v187
    %v203 = vpack.c.b16 %v190, %v189
    %v204 = vpack.c.b16 %v192, %v191
    %v205 = vpack.c.b16 %v194, %v193
    %v206 = vpack.c.b16 %v196, %v195
    %v207 = vpack.c.b16 %v198, %v197
    %v208 = vpack.c.b16 %v200, %v199
    %217 = vmatpush.bf16.msra.mxu0 %v208
    %218 = vmatpush.bf16.msra.mxu0 %v207
    %219 = vmatpush.bf16.msra.mxu0 %v206
    %220 = vmatpush.bf16.msra.mxu0 %v205
    %221 = vmatpush.bf16.msra.mxu0 %v204
    %222 = vmatpush.bf16.msra.mxu0 %v203
    %223 = vmatpush.bf16.msra.mxu0 %v202
    %224 = vmatpush.bf16.msra.mxu0 %v201
    %225 = vmatmul.bf16.gmra.mxu0 %v148
    %v226 = vpop.f32.mrf.mxu0
    %v227 = vadd.f32 %v167, %v226
    %v228 = vpop.f32.mrf.mxu0
    %v229 = vadd.f32 %v167, %v228
    %230 = vdwg.mxu0
    %v231 = vxor.u32 %v227, 2147483648
    %v232 = vxor.u32 %v229, 2147483648
    %v233 = vmul.f32 %v231, 1.442695
    %v234 = vpow.pop %v233
    %v235 = vmul.f32 %v232, 1.442695
    %v236 = vpow.pop %v235
    %v237 = vadd.f32 %v234, 1.0
    %v238 = vadd.f32 %v236, 1.0
    %v239 = vrcp.pop %v237
    %v240 = vmul.f32 %v237, %v239
    %v241 = vsub.f32 1.0, %v240
    %v242 = vmul.f32 %v239, %v241
    %v243 = vadd.f32 %v239, %v242
    %vm244 = vweird.f32 %v237
    %vm245 = vweird.f32 %v239
    %vm246 = vmor %vm244, %vm245
    %v247 = vsel %vm246, %v239, %v243
    %v248 = vand.u32 2147483647, %v237
    %vm249 = vcmp.eq.f32.partialorder %v248, 8.507059e+37
    %v250 = vand.u32 %v237, 2147483648
    %v251 = vor.u32 1.1754944e-38, %v250
    %v252 = vsel %vm249, %v251, %v247
    %v253 = vmul.f32 1.0, %v252
    %v254 = vrcp.pop %v238
    %v255 = vmul.f32 %v238, %v254
    %v256 = vsub.f32 1.0, %v255
    %v257 = vmul.f32 %v254, %v256
    %v258 = vadd.f32 %v254, %v257
    %vm259 = vweird.f32 %v238
    %vm260 = vweird.f32 %v254
    %vm261 = vmor %vm259, %vm260
    %v262 = vsel %vm261, %v254, %v258
    %v263 = vand.u32 2147483647, %v238
    %vm264 = vcmp.eq.f32.partialorder %v263, 8.507059e+37
    %v265 = vand.u32 %v238, 2147483648
    %v266 = vor.u32 1.1754944e-38, %v265
    %v267 = vsel %vm264, %v266, %v262
    %v268 = vmul.f32 1.0, %v267
    %v269 = vmul.f32 %v227, %v253
    %v270 = vmul.f32 %v229, %v268
    %v271 = vpack.c.bf16 %v270, %v269
    %v272 = vld [vmem:[%s5] sm:$0xf]
    %v273 = vld [vmem:[%s5 + $0x4] sm:$0xf]
    %v274 = vld [vmem:[%s5 + $0x8] sm:$0xf]
    %v275 = vld [vmem:[%s5 + $0xc] sm:$0xf]
    %v276 = vld [vmem:[%s5 + $0x10] sm:$0xf]
    %v277 = vld [vmem:[%s5 + $0x14] sm:$0xf]
    %v278 = vld [vmem:[%s5 + $0x18] sm:$0xf]
    %v279 = vld [vmem:[%s5 + $0x1c] sm:$0xf]
    %v280 = vld [vmem:[%s5 + $0x20] sm:$0xf]
    %v281 = vld [vmem:[%s5 + $0x24] sm:$0xf]
    %v282 = vld [vmem:[%s5 + $0x28] sm:$0xf]
    %v283 = vld [vmem:[%s5 + $0x2c] sm:$0xf]
    %v284 = vld [vmem:[%s5 + $0x30] sm:$0xf]
    %v285 = vld [vmem:[%s5 + $0x34] sm:$0xf]
    %v286 = vld [vmem:[%s5 + $0x38] sm:$0xf]
    %v287 = vld [vmem:[%s5 + $0x3c] sm:$0xf]
    %v288 = vld [vmem:[#allocation7] sm:$0x1]
    %v290 = vperm.slane %v288, 0
    %v308 = vunpack.c.l.b16 %v272
    %v309 = vunpack.c.l.b16 %v273
    %v310 = vunpack.c.l.b16 %v274
    %v311 = vunpack.c.l.b16 %v275
    %v312 = vunpack.c.l.b16 %v276
    %v313 = vunpack.c.l.b16 %v277
    %v314 = vunpack.c.l.b16 %v278
    %v315 = vunpack.c.l.b16 %v279
    %v316 = vunpack.c.l.b16 %v280
    %v317 = vunpack.c.l.b16 %v281
    %v318 = vunpack.c.l.b16 %v282
    %v319 = vunpack.c.l.b16 %v283
    %v320 = vunpack.c.l.b16 %v284
    %v321 = vunpack.c.l.b16 %v285
    %v322 = vunpack.c.l.b16 %v286
    %v323 = vunpack.c.l.b16 %v287
    %v324 = vpack.c.b16 %v309, %v308
    %v325 = vpack.c.b16 %v311, %v310
    %v326 = vpack.c.b16 %v313, %v312
    %v327 = vpack.c.b16 %v315, %v314
    %v328 = vpack.c.b16 %v317, %v316
    %v329 = vpack.c.b16 %v319, %v318
    %v330 = vpack.c.b16 %v321, %v320
    %v331 = vpack.c.b16 %v323, %v322
    %340 = vmatpush.bf16.msra.mxu0 %v331
    %341 = vmatpush.bf16.msra.mxu0 %v330
    %342 = vmatpush.bf16.msra.mxu0 %v329
    %343 = vmatpush.bf16.msra.mxu0 %v328
    %344 = vmatpush.bf16.msra.mxu0 %v327
    %345 = vmatpush.bf16.msra.mxu0 %v326
    %346 = vmatpush.bf16.msra.mxu0 %v325
    %347 = vmatpush.bf16.msra.mxu0 %v324
    %348 = vmatmul.bf16.gmra.mxu0 %v271
    %v349 = vpop.f32.mrf.mxu0
    %v350 = vadd.f32 %v290, %v349
    %v351 = vpop.f32.mrf.mxu0
    %v352 = vadd.f32 %v290, %v351
    %353 = vdwg.mxu0
    %v354 = vmul.f32 %v350, 0.5
    %v355 = vmul.f32 %v352, 0.5
    %v356 = vadd.f32 %v87, %v354
    %v357 = vadd.f32 %v88, %v355
    %358 = vst [vmem:[%s9] sm:$0xff] %v356
    %359 = vst [vmem:[%s9 + $0x8] sm:$0xf] %v357
    // Predicated region
    $region54: #{conformer_encoder_forward.18} parent=1 // pred_check
      _
    $region55: #{conformer_encoder_forward.18} parent=1 // pred_check_branch
      %361 = sbr.rel (0) target = $region57
    $region56: #{conformer_encoder_forward.18} parent=1 // pred_region
      _
    $region57: #{conformer_encoder_forward.18} parent=1 // pred_fallthru
      _
    // Predicated region
    $region58: #{conformer_encoder_forward.18} parent=1 // pred_check
      _
    $region59: #{conformer_encoder_forward.18} parent=1 // pred_check_branch
      %363 = sbr.rel (0) target = $region61
    $region60: #{conformer_encoder_forward.18} parent=1 // pred_region
      _
    $region61: #{conformer_encoder_forward.18} parent=1 // pred_fallthru
      _
    %364 = vsyncpa [#allocation3], 1
    %365 = vsyncpa [#allocation5], 1
    %366 = vsyncpa [#allocation8], 1

// kernel: conformer_encoder_forward.16
$region0: #{conformer_encoder_forward.16}
  #allocation0 [shape = 'u32[]', space=smem, size = 0x4, offset = 0x4, fixed_abs, tag = 'smem constant byte address 0x4 - core index']
  #allocation1 [shape = 'u32[72,128]{1,0:T(1,128)}', space=vmem, size = 0x9000, scoped, tag = 'internal scratch']
  #allocation2 [shape = 'f32[36,128]{1,0:T(8,128)}', space=vmem, size = 0x5000, scoped, tag = 'scratch operand']
  %s0 = inlined_call_operand.vmem [shape: f32[2,6,128], index: 0, kind: input, shape index: {}]
  %s1 = inlined_call_operand.vmem [shape: f32[1,128], index: 1, kind: input, shape index: {}]
  %s2 = inlined_call_operand.vmem [shape: f32[1,128], index: 2, kind: input, shape index: {}]
  %s3 = inlined_call_operand.vmem [shape: bf16[128,256], index: 3, kind: input, shape index: {}]
  %s4 = inlined_call_operand.vmem [shape: f32[1,256], index: 4, kind: input, shape index: {}]
  %s5 = inlined_call_operand.vmem [shape: f32[31,128], index: 5, kind: input, shape index: {}]
  %s6 = inlined_call_operand.vmem [shape: f32[1,128], index: 6, kind: input, shape index: {}]
  %s7 = inlined_call_operand.vmem [shape: f32[1,128], index: 7, kind: input, shape index: {}]
  %s8 = inlined_call_operand.vmem [shape: f32[1,128], index: 8, kind: input, shape index: {}]
  %s9 = inlined_call_operand.vmem [shape: bf16[128,128], index: 9, kind: input, shape index: {}]
  %s10 = inlined_call_operand.vmem [shape: f32[1,128], index: 10, kind: input, shape index: {}]
  %s11 = inlined_call_operand.vmem [shape: f32[2,6,128], index: 11, kind: output, shape index: {}]
  %s12 = sld [smem:[#allocation0]]
  $region77: #{conformer_encoder_forward.16} parent=0
    _
  %s14 = ssub.s32 1, %s12
  %s15 = scalar_select 0, %s14, %s12
  loop: start=0, step=1, limit=4
  $region2: #{conformer_encoder_forward.16} parent=0 // loop_pre_header
    _
  $region3: #{conformer_encoder_forward.16} parent=0 // loop_header
    %s17 = sphi 0, %s21
    %p18 = scmp.ge.s32.totalorder %s17, 4
    %s27 = sphi 0, %s29
    %s30 = sphi 0, %s27
    %s31 = sphi 0, %s30
    %s47 = sphi 0, %s31
    %s51 = sphi 0, %s51
    %s53 = sphi 0, %s51
    %s54 = sphi 0, %s53
    %s68 = sphi 0, %s54
    %s72 = sphi 0, %s72
    %s74 = sphi 0, %s72
    %s75 = sphi 0, %s74
    %s89 = sphi 0, %s75
    %s93 = sphi 0, %s93
    %s95 = sphi 0, %s93
    %s96 = sphi 0, %s95
    %s110 = sphi 0, %s96
    %s114 = sphi 0, %s114
    %s116 = sphi 0, %s114
    %s117 = sphi 0, %s116
    %s131 = sphi 0, %s117
    %s135 = sphi 0, %s135
    %s137 = sphi 0, %s135
    %s138 = sphi 0, %s137
    %s152 = sphi 0, %s138
    %s156 = sphi 0, %s156
    %s158 = sphi 0, %s156
    %s159 = sphi 0, %s158
    %s173 = sphi 0, %s159
    %s177 = sphi 0, %s177
    %s179 = sphi 0, %s177
    %s180 = sphi 0, %s179
    %s194 = sphi 0, %s180
    %s198 = sphi 0, %s198
    %s200 = sphi 0, %s198
    %s201 = sphi 0, %s200
    %s215 = sphi 0, %s201
    %s219 = sphi 0, %s219
    %s221 = sphi 0, %s219
    %s222 = sphi 0, %s221
    %s236 = sphi 0, %s222
    %s240 = sphi 0, %s240
    %s242 = sphi 0, %s240
    %s243 = sphi 0, %s242
    %s257 = sphi 0, %s243
    %s263 = sphi 0, %s265
    %s266 = sphi 0, %s263
    %s267 = sphi 0, %s266
    %s283 = sphi 0, %s267
  $region4: #{conformer_encoder_forward.16} parent=0 // loop_header_branch
    %20 = sbr.rel (%p18) target = $region8
  $region5: #{conformer_encoder_forward.16} parent=0 // loop_body
    %s22 = ssub.s32 %s17, 1
    %s23 = ssub.s32 %s17, 2
    %s24 = sadd.s32 %s17, 1
    %s25 = ssub.s32 %s17, %s24
    %p26 = scmp.eq.s32.totalorder %s25, 0
    %s28 = sadd.s32 %s27, 1
    %s29 = scalar_select %p26, %s27, %s28
    %p32 = pneg %p26
    %p33 = scmp.eq.s32.totalorder %s17, 1
    %p34 = por %p32, %p33
    %p35 = scmp.ne.s32.totalorder %s27, %s30
    %p36 = scmp.eq.s32.totalorder %s17, 0
    %p37 = por %p35, %p36
    %p38 = scmp.ne.s32.totalorder %s27, %s30
    %p39 = scmp.eq.s32.totalorder %s22, 1
    %p40 = por %p38, %p39
    %p41 = scmp.ne.s32.totalorder %s30, %s31
    %p42 = scmp.eq.s32.totalorder %s22, 0
    %p43 = por %p41, %p42
    %p44 = scmp.ne.s32.totalorder %s30, %s31
    %p45 = scmp.eq.s32.totalorder %s23, 1
    %p46 = por %p44, %p45
    %p48 = scmp.ne.s32.totalorder %s31, %s47
    %p49 = scmp.eq.s32.totalorder %s23, 0
    %p50 = por %p48, %p49
    %s52 = sadd.s32 %s51, 1
    %p55 = scmp.eq.s32.totalorder %s17, 1
    %p56 = scmp.ne.s32.totalorder %s51, %s53
    %p57 = scmp.eq.s32.totalorder %s17, 0
    %p58 = por %p56, %p57
    %p59 = scmp.ne.s32.totalorder %s51, %s53
    %p60 = scmp.eq.s32.totalorder %s22, 1
    %p61 = por %p59, %p60
    %p62 = scmp.ne.s32.totalorder %s53, %s54
    %p63 = scmp.eq.s32.totalorder %s22, 0
    %p64 = por %p62, %p63
    %p65 = scmp.ne.s32.totalorder %s53, %s54
    %p66 = scmp.eq.s32.totalorder %s23, 1
    %p67 = por %p65, %p66
    %p69 = scmp.ne.s32.totalorder %s54, %s68
    %p70 = scmp.eq.s32.totalorder %s23, 0
    %p71 = por %p69, %p70
    %s73 = sadd.s32 %s72, 1
    %p76 = scmp.eq.s32.totalorder %s17, 1
    %p77 = scmp.ne.s32.totalorder %s72, %s74
    %p78 = scmp.eq.s32.totalorder %s17, 0
    %p79 = por %p77, %p78
    %p80 = scmp.ne.s32.totalorder %s72, %s74
    %p81 = scmp.eq.s32.totalorder %s22, 1
    %p82 = por %p80, %p81
    %p83 = scmp.ne.s32.totalorder %s74, %s75
    %p84 = scmp.eq.s32.totalorder %s22, 0
    %p85 = por %p83, %p84
    %p86 = scmp.ne.s32.totalorder %s74, %s75
    %p87 = scmp.eq.s32.totalorder %s23, 1
    %p88 = por %p86, %p87
    %p90 = scmp.ne.s32.totalorder %s75, %s89
    %p91 = scmp.eq.s32.totalorder %s23, 0
    %p92 = por %p90, %p91
    %s94 = sadd.s32 %s93, 1
    %p97 = scmp.eq.s32.totalorder %s17, 1
    %p98 = scmp.ne.s32.totalorder %s93, %s95
    %p99 = scmp.eq.s32.totalorder %s17, 0
    %p100 = por %p98, %p99
    %p101 = scmp.ne.s32.totalorder %s93, %s95
    %p102 = scmp.eq.s32.totalorder %s22, 1
    %p103 = por %p101, %p102
    %p104 = scmp.ne.s32.totalorder %s95, %s96
    %p105 = scmp.eq.s32.totalorder %s22, 0
    %p106 = por %p104, %p105
    %p107 = scmp.ne.s32.totalorder %s95, %s96
    %p108 = scmp.eq.s32.totalorder %s23, 1
    %p109 = por %p107, %p108
    %p111 = scmp.ne.s32.totalorder %s96, %s110
    %p112 = scmp.eq.s32.totalorder %s23, 0
    %p113 = por %p111, %p112
    %s115 = sadd.s32 %s114, 1
    %p118 = scmp.eq.s32.totalorder %s17, 1
    %p119 = scmp.ne.s32.totalorder %s114, %s116
    %p120 = scmp.eq.s32.totalorder %s17, 0
    %p121 = por %p119, %p120
    %p122 = scmp.ne.s32.totalorder %s114, %s116
    %p123 = scmp.eq.s32.totalorder %s22, 1
    %p124 = por %p122, %p123
    %p125 = scmp.ne.s32.totalorder %s116, %s117
    %p126 = scmp.eq.s32.totalorder %s22, 0
    %p127 = por %p125, %p126
    %p128 = scmp.ne.s32.totalorder %s116, %s117
    %p129 = scmp.eq.s32.totalorder %s23, 1
    %p130 = por %p128, %p129
    %p132 = scmp.ne.s32.totalorder %s117, %s131
    %p133 = scmp.eq.s32.totalorder %s23, 0
    %p134 = por %p132, %p133
    %s136 = sadd.s32 %s135, 1
    %p139 = scmp.eq.s32.totalorder %s17, 1
    %p140 = scmp.ne.s32.totalorder %s135, %s137
    %p141 = scmp.eq.s32.totalorder %s17, 0
    %p142 = por %p140, %p141
    %p143 = scmp.ne.s32.totalorder %s135, %s137
    %p144 = scmp.eq.s32.totalorder %s22, 1
    %p145 = por %p143, %p144
    %p146 = scmp.ne.s32.totalorder %s137, %s138
    %p147 = scmp.eq.s32.totalorder %s22, 0
    %p148 = por %p146, %p147
    %p149 = scmp.ne.s32.totalorder %s137, %s138
    %p150 = scmp.eq.s32.totalorder %s23, 1
    %p151 = por %p149, %p150
    %p153 = scmp.ne.s32.totalorder %s138, %s152
    %p154 = scmp.eq.s32.totalorder %s23, 0
    %p155 = por %p153, %p154
    %s157 = sadd.s32 %s156, 1
    %p160 = scmp.eq.s32.totalorder %s17, 1
    %p161 = scmp.ne.s32.totalorder %s156, %s158
    %p162 = scmp.eq.s32.totalorder %s17, 0
    %p163 = por %p161, %p162
    %p164 = scmp.ne.s32.totalorder %s156, %s158
    %p165 = scmp.eq.s32.totalorder %s22, 1
    %p166 = por %p164, %p165
    %p167 = scmp.ne.s32.totalorder %s158, %s159
    %p168 = scmp.eq.s32.totalorder %s22, 0
    %p169 = por %p167, %p168
    %p170 = scmp.ne.s32.totalorder %s158, %s159
    %p171 = scmp.eq.s32.totalorder %s23, 1
    %p172 = por %p170, %p171
    %p174 = scmp.ne.s32.totalorder %s159, %s173
    %p175 = scmp.eq.s32.totalorder %s23, 0
    %p176 = por %p174, %p175
    %s178 = sadd.s32 %s177, 1
    %p181 = scmp.eq.s32.totalorder %s17, 1
    %p182 = scmp.ne.s32.totalorder %s177, %s179
    %p183 = scmp.eq.s32.totalorder %s17, 0
    %p184 = por %p182, %p183
    %p185 = scmp.ne.s32.totalorder %s177, %s179
    %p186 = scmp.eq.s32.totalorder %s22, 1
    %p187 = por %p185, %p186
    %p188 = scmp.ne.s32.totalorder %s179, %s180
    %p189 = scmp.eq.s32.totalorder %s22, 0
    %p190 = por %p188, %p189
    %p191 = scmp.ne.s32.totalorder %s179, %s180
    %p192 = scmp.eq.s32.totalorder %s23, 1
    %p193 = por %p191, %p192
    %p195 = scmp.ne.s32.totalorder %s180, %s194
    %p196 = scmp.eq.s32.totalorder %s23, 0
    %p197 = por %p195, %p196
    %s199 = sadd.s32 %s198, 1
    %p202 = scmp.eq.s32.totalorder %s17, 1
    %p203 = scmp.ne.s32.totalorder %s198, %s200
    %p204 = scmp.eq.s32.totalorder %s17, 0
    %p205 = por %p203, %p204
    %p206 = scmp.ne.s32.totalorder %s198, %s200
    %p207 = scmp.eq.s32.totalorder %s22, 1
    %p208 = por %p206, %p207
    %p209 = scmp.ne.s32.totalorder %s200, %s201
    %p210 = scmp.eq.s32.totalorder %s22, 0
    %p211 = por %p209, %p210
    %p212 = scmp.ne.s32.totalorder %s200, %s201
    %p213 = scmp.eq.s32.totalorder %s23, 1
    %p214 = por %p212, %p213
    %p216 = scmp.ne.s32.totalorder %s201, %s215
    %p217 = scmp.eq.s32.totalorder %s23, 0
    %p218 = por %p216, %p217
    %s220 = sadd.s32 %s219, 1
    %p223 = scmp.eq.s32.totalorder %s17, 1
    %p224 = scmp.ne.s32.totalorder %s219, %s221
    %p225 = scmp.eq.s32.totalorder %s17, 0
    %p226 = por %p224, %p225
    %p227 = scmp.ne.s32.totalorder %s219, %s221
    %p228 = scmp.eq.s32.totalorder %s22, 1
    %p229 = por %p227, %p228
    %p230 = scmp.ne.s32.totalorder %s221, %s222
    %p231 = scmp.eq.s32.totalorder %s22, 0
    %p232 = por %p230, %p231
    %p233 = scmp.ne.s32.totalorder %s221, %s222
    %p234 = scmp.eq.s32.totalorder %s23, 1
    %p235 = por %p233, %p234
    %p237 = scmp.ne.s32.totalorder %s222, %s236
    %p238 = scmp.eq.s32.totalorder %s23, 0
    %p239 = por %p237, %p238
    %s241 = sadd.s32 %s240, 1
    %p244 = scmp.eq.s32.totalorder %s17, 1
    %p245 = scmp.ne.s32.totalorder %s240, %s242
    %p246 = scmp.eq.s32.totalorder %s17, 0
    %p247 = por %p245, %p246
    %p248 = scmp.ne.s32.totalorder %s240, %s242
    %p249 = scmp.eq.s32.totalorder %s22, 1
    %p250 = por %p248, %p249
    %p251 = scmp.ne.s32.totalorder %s242, %s243
    %p252 = scmp.eq.s32.totalorder %s22, 0
    %p253 = por %p251, %p252
    %p254 = scmp.ne.s32.totalorder %s242, %s243
    %p255 = scmp.eq.s32.totalorder %s23, 1
    %p256 = por %p254, %p255
    %p258 = scmp.ne.s32.totalorder %s243, %s257
    %p259 = scmp.eq.s32.totalorder %s23, 0
    %p260 = por %p258, %p259
    %s261 = ssub.s32 %s17, %s24
    %p262 = scmp.eq.s32.totalorder %s261, 0
    %s264 = sadd.s32 %s263, 1
    %s265 = scalar_select %p262, %s263, %s264
    %p268 = pneg %p262
    %p269 = scmp.eq.s32.totalorder %s17, 1
    %p270 = por %p268, %p269
    %p271 = scmp.ne.s32.totalorder %s263, %s266
    %p272 = scmp.eq.s32.totalorder %s17, 0
    %p273 = por %p271, %p272
    %p274 = scmp.ne.s32.totalorder %s263, %s266
    %p275 = scmp.eq.s32.totalorder %s22, 1
    %p276 = por %p274, %p275
    %p277 = scmp.ne.s32.totalorder %s266, %s267
    %p278 = scmp.eq.s32.totalorder %s22, 0
    %p279 = por %p277, %p278
    %p280 = scmp.ne.s32.totalorder %s266, %s267
    %p281 = scmp.eq.s32.totalorder %s23, 1
    %p282 = por %p280, %p281
    %p284 = scmp.ne.s32.totalorder %s267, %s283
    %p285 = scmp.eq.s32.totalorder %s23, 0
    %p286 = por %p284, %p285
    %p287 = scmp.le.s32.totalorder 1, %s17
    %p288 = scmp.lt.s32.totalorder %s17, 3
    %p289 = pnand %p287, %p288
    %p290 = pneg %p289
    // Predicated region
    $region9: #{conformer_encoder_forward.16} parent=5 // pred_check
      _
    $region10: #{conformer_encoder_forward.16} parent=5 // pred_check_branch
      %292 = sbr.rel (%p289) target = $region12
    $region11: #{conformer_encoder_forward.16} parent=5 // pred_region
      %s293 = ssub.s32 %s17, 1
      // Predicated region
      $region13: #{conformer_encoder_forward.16} parent=11 // pred_check
        %p294 = pneg %p64
      $region14: #{conformer_encoder_forward.16} parent=11 // pred_check_branch
        %296 = sbr.rel (%p294) target = $region16
      $region15: #{conformer_encoder_forward.16} parent=11 // pred_region
        _
      $region16: #{conformer_encoder_forward.16} parent=11 // pred_fallthru
        _
      // Predicated region
      $region17: #{conformer_encoder_forward.16} parent=11 // pred_check
        %p297 = pneg %p85
      $region18: #{conformer_encoder_forward.16} parent=11 // pred_check_branch
        %299 = sbr.rel (%p297) target = $region20
      $region19: #{conformer_encoder_forward.16} parent=11 // pred_region
        _
      $region20: #{conformer_encoder_forward.16} parent=11 // pred_fallthru
        _
      // Predicated region
      $region21: #{conformer_encoder_forward.16} parent=11 // pred_check
        %p300 = pneg %p106
      $region22: #{conformer_encoder_forward.16} parent=11 // pred_check_branch
        %302 = sbr.rel (%p300) target = $region24
      $region23: #{conformer_encoder_forward.16} parent=11 // pred_region
        _
      $region24: #{conformer_encoder_forward.16} parent=11 // pred_fallthru
        _
      // Predicated region
      $region25: #{conformer_encoder_forward.16} parent=11 // pred_check
        %p303 = pneg %p127
      $region26: #{conformer_encoder_forward.16} parent=11 // pred_check_branch
        %305 = sbr.rel (%p303) target = $region28
      $region27: #{conformer_encoder_forward.16} parent=11 // pred_region
        _
      $region28: #{conformer_encoder_forward.16} parent=11 // pred_fallthru
        _
      // Predicated region
      $region29: #{conformer_encoder_forward.16} parent=11 // pred_check
        %p306 = pneg %p148
      $region30: #{conformer_encoder_forward.16} parent=11 // pred_check_branch
        %308 = sbr.rel (%p306) target = $region32
      $region31: #{conformer_encoder_forward.16} parent=11 // pred_region
        _
      $region32: #{conformer_encoder_forward.16} parent=11 // pred_fallthru
        _
      // Predicated region
      $region33: #{conformer_encoder_forward.16} parent=11 // pred_check
        %p309 = pneg %p169
      $region34: #{conformer_encoder_forward.16} parent=11 // pred_check_branch
        %311 = sbr.rel (%p309) target = $region36
      $region35: #{conformer_encoder_forward.16} parent=11 // pred_region
        _
      $region36: #{conformer_encoder_forward.16} parent=11 // pred_fallthru
        _
      // Predicated region
      $region37: #{conformer_encoder_forward.16} parent=11 // pred_check
        %p312 = pneg %p190
      $region38: #{conformer_encoder_forward.16} parent=11 // pred_check_branch
        %314 = sbr.rel (%p312) target = $region40
      $region39: #{conformer_encoder_forward.16} parent=11 // pred_region
        _
      $region40: #{conformer_encoder_forward.16} parent=11 // pred_fallthru
        _
      // Predicated region
      $region41: #{conformer_encoder_forward.16} parent=11 // pred_check
        %p315 = pneg %p211
      $region42: #{conformer_encoder_forward.16} parent=11 // pred_check_branch
        %317 = sbr.rel (%p315) target = $region44
      $region43: #{conformer_encoder_forward.16} parent=11 // pred_region
        _
      $region44: #{conformer_encoder_forward.16} parent=11 // pred_fallthru
        _
      // Predicated region
      $region45: #{conformer_encoder_forward.16} parent=11 // pred_check
        %p318 = pneg %p232
      $region46: #{conformer_encoder_forward.16} parent=11 // pred_check_branch
        %320 = sbr.rel (%p318) target = $region48
      $region47: #{conformer_encoder_forward.16} parent=11 // pred_region
        _
      $region48: #{conformer_encoder_forward.16} parent=11 // pred_fallthru
        _
      // Predicated region
      $region49: #{conformer_encoder_forward.16} parent=11 // pred_check
        %p321 = pneg %p253
      $region50: #{conformer_encoder_forward.16} parent=11 // pred_check_branch
        %323 = sbr.rel (%p321) target = $region52
      $region51: #{conformer_encoder_forward.16} parent=11 // pred_region
        _
      $region52: #{conformer_encoder_forward.16} parent=11 // pred_fallthru
        _
    $region12: #{conformer_encoder_forward.16} parent=5 // pred_fallthru
      _
    %p324 = scmp.lt.s32.totalorder %s17, 2
    // Predicated region
    $region53: #{conformer_encoder_forward.16} parent=5 // pred_check
      %p325 = pneg %p324
    $region54: #{conformer_encoder_forward.16} parent=5 // pred_check_branch
      %327 = sbr.rel (%p325) target = $region56
    $region55: #{conformer_encoder_forward.16} parent=5 // pred_region
      // Predicated region
      $region57: #{conformer_encoder_forward.16} parent=55 // pred_check
        %p328 = pneg %p37
      $region58: #{conformer_encoder_forward.16} parent=55 // pred_check_branch
        %330 = sbr.rel (%p328) target = $region60
      $region59: #{conformer_encoder_forward.16} parent=55 // pred_region
        %p331 = scmp.lt.s32.totalorder %s17, 1
        %s332 = scalar_select %p331, %s17, 1
        %s333 = smul.addr %s332, 8
        %s334 = scalar_lea.vmem %s0, %s333
      $region60: #{conformer_encoder_forward.16} parent=55 // pred_fallthru
        _
    $region56: #{conformer_encoder_forward.16} parent=5 // pred_fallthru
      _
    %p335 = scmp.le.s32.totalorder 1, %s17
    %p336 = scmp.lt.s32.totalorder %s17, 3
    %p337 = pnand %p335, %p336
    %p338 = pneg %p337
    // Predicated region
    $region61: #{conformer_encoder_forward.16} parent=5 // pred_check
      _
    $region62: #{conformer_encoder_forward.16} parent=5 // pred_check_branch
      %340 = sbr.rel (%p337) target = $region64
    $region63: #{conformer_encoder_forward.16} parent=5 // pred_region
      %s341 = ssub.s32 %s17, 1
      %p342 = scmp.lt.s32.totalorder %s22, 1
      %s343 = scalar_select %p342, %s22, 1
      %s344 = smul.addr %s343, 8
      %s345 = scalar_lea.vmem %s0, %s344
      %p346 = pneg %p43
      %p347 = pneg %p40
      %p348 = pneg %p64
      %p349 = pneg %p61
      %p350 = pneg %p85
      %p351 = pneg %p82
      %p352 = pneg %p106
      %p353 = pneg %p103
      %p354 = pneg %p127
      %p355 = pneg %p124
      %p356 = pneg %p148
      %p357 = pneg %p145
      %p358 = pneg %p169
      %p359 = pneg %p166
      %p360 = pneg %p190
      %p361 = pneg %p187
      %p362 = pneg %p211
      %p363 = pneg %p208
      %p364 = pneg %p232
      %p365 = pneg %p229
      %p366 = pneg %p253
      %p367 = pneg %p250
      %p368 = pneg %p279
      %p369 = pneg %p276
      %p370 = scmp.lt.s32.totalorder %s22, 1
      %s371 = scalar_select %p370, %s22, 1
      %s372 = smul.addr %s371, 8
      %s373 = scalar_lea.vmem %s11, %s372
      %p374 = scmp.lt.s32.totalorder %s22, 1
      %s375 = scalar_select %p374, %s22, 1
      %s376 = smul.addr %s375, 8
      %s377 = scalar_lea.vmem %s0, %s376
      %p378 = scmp.lt.s32.totalorder %s22, 1
      %s379 = scalar_select %p378, %s22, 1
      %s380 = smul.addr %s379, 8
      %s381 = scalar_lea.vmem %s11, %s380
      %v382 = vld [vmem:[%s377] sm:$0x3f]
      %v383 = vld [vmem:[%s1] sm:$0x1]
      %v384 = vld [vmem:[%s2] sm:$0x1]
      %vm385 = vcmask 1045504
      %v386 = vsel %vm385, %v382, 0.0
      %387 = vadd.xlane.f32.xlu0 %v386
      %v388 = vpop.xlane.xlu0 %387
      %v389 = vmul.f32 %v388, 0.03125
      %v390 = vmul.f32 %v382, %v382
      %v391 = vsel %vm385, %v390, 0.0
      %392 = vadd.xlane.f32.xlu0 %v391
      %v393 = vpop.xlane.xlu0 %392
      %v394 = vmul.f32 %v393, 0.03125
      %v395 = vmul.f32 %v389, %v389
      %v396 = vsub.f32 %v394, %v395
      %v397 = vsub.f32 %v382, %v389
      %v398 = vadd.f32 %v396, 1e-05
      %v399 = vrsqrt.pop %v398
      %v400 = vmul.f32 %v399, %v398
      %v401 = vmul.f32 %v400, %v399
      %v402 = vmul.f32 0.5, %v401
      %v403 = vsub.f32 1.5, %v402
      %v404 = vmul.f32 %v399, %v403
      %vm405 = vweird.f32 %v398
      %vm406 = vweird.f32 %v399
      %vm407 = vmor %vm405, %vm406
      %v408 = vsel %vm407, %v399, %v404
      %v409 = vmul.f32 %v397, %v408
      %v411 = vperm.slane %v383, 0
      %v413 = vmul.f32 %v409, %v411
      %v415 = vperm.slane %v384, 0
      %v417 = vadd.f32 %v413, %v415
      %v418 = vpack.c.bf16 %v417, %v417
      %v419 = vld [vmem:[%s3] sm:$0xff]
      %v420 = vld [vmem:[%s3 + $0x8] sm:$0xff]
      %v421 = vld [vmem:[%s3 + $0x10] sm:$0xff]
      %v422 = vld [vmem:[%s3 + $0x18] sm:$0xff]
      %v423 = vld [vmem:[%s3 + $0x20] sm:$0xff]
      %v424 = vld [vmem:[%s3 + $0x28] sm:$0xff]
      %v425 = vld [vmem:[%s3 + $0x30] sm:$0xff]
      %v426 = vld [vmem:[%s3 + $0x38] sm:$0xff]
      %v427 = vld [vmem:[%s3 + $0x40] sm:$0xff]
      %v428 = vld [vmem:[%s3 + $0x48] sm:$0xff]
      %v429 = vld [vmem:[%s3 + $0x50] sm:$0xff]
      %v430 = vld [vmem:[%s3 + $0x58] sm:$0xff]
      %v431 = vld [vmem:[%s3 + $0x60] sm:$0xff]
      %v432 = vld [vmem:[%s3 + $0x68] sm:$0xff]
      %v433 = vld [vmem:[%s3 + $0x70] sm:$0xff]
      %v434 = vld [vmem:[%s3 + $0x78] sm:$0xff]
      %v435 = vld [vmem:[%s4] sm:$0x3]
      %v437 = vperm.slane %v435, 0
      %v438 = vperm.slane %v435, 1
      %v457 = vunpack.c.l.b16 %v419
      %v458 = vunpack.c.h.b16 %v419
      %v459 = vunpack.c.l.b16 %v420
      %v460 = vunpack.c.h.b16 %v420
      %v461 = vunpack.c.l.b16 %v421
      %v462 = vunpack.c.h.b16 %v421
      %v463 = vunpack.c.l.b16 %v422
      %v464 = vunpack.c.h.b16 %v422
      %v465 = vunpack.c.l.b16 %v423
      %v466 = vunpack.c.h.b16 %v423
      %v467 = vunpack.c.l.b16 %v424
      %v468 = vunpack.c.h.b16 %v424
      %v469 = vunpack.c.l.b16 %v425
      %v470 = vunpack.c.h.b16 %v425
      %v471 = vunpack.c.l.b16 %v426
      %v472 = vunpack.c.h.b16 %v426
      %v473 = vunpack.c.l.b16 %v427
      %v474 = vunpack.c.h.b16 %v427
      %v475 = vunpack.c.l.b16 %v428
      %v476 = vunpack.c.h.b16 %v428
      %v477 = vunpack.c.l.b16 %v429
      %v478 = vunpack.c.h.b16 %v429
      %v479 = vunpack.c.l.b16 %v430
      %v480 = vunpack.c.h.b16 %v430
      %v481 = vunpack.c.l.b16 %v431
      %v482 = vunpack.c.h.b16 %v431
      %v483 = vunpack.c.l.b16 %v432
      %v484 = vunpack.c.h.b16 %v432
      %v485 = vunpack.c.l.b16 %v433
      %v486 = vunpack.c.h.b16 %v433
      %v487 = vunpack.c.l.b16 %v434
      %v488 = vunpack.c.h.b16 %v434
      %v489 = vpack.c.b16 %v459, %v457
      %v490 = vpack.c.b16 %v460, %v458
      %v491 = vpack.c.b16 %v463, %v461
      %v492 = vpack.c.b16 %v464, %v462
      %v493 = vpack.c.b16 %v467, %v465
      %v494 = vpack.c.b16 %v468, %v466
      %v495 = vpack.c.b16 %v471, %v469
      %v496 = vpack.c.b16 %v472, %v470
      %v497 = vpack.c.b16 %v475, %v473
      %v498 = vpack.c.b16 %v476, %v474
      %v499 = vpack.c.b16 %v479, %v477
      %v500 = vpack.c.b16 %v480, %v478
      %v501 = vpack.c.b16 %v483, %v481
      %v502 = vpack.c.b16 %v484, %v482
      %v503 = vpack.c.b16 %v487, %v485
      %v504 = vpack.c.b16 %v488, %v486
      %521 = vmatpush.bf16.msra.mxu0 %v503
      %522 = vmatpush.bf16.msra.mxu0 %v501
      %523 = vmatpush.bf16.msra.mxu0 %v499
      %524 = vmatpush.bf16.msra.mxu0 %v497
      %525 = vmatpush.bf16.msra.mxu0 %v495
      %526 = vmatpush.bf16.msra.mxu0 %v493
      %527 = vmatpush.bf16.msra.mxu0 %v491
      %528 = vmatpush.bf16.msra.mxu0 %v489
      %529 = vmatmul.bf16.gmra.mxu0 %v418
      %v530 = vpop.f32.mrf.mxu0
      %v531 = vadd.f32 %v437, %v530
      %v532 = vpop.f32.mrf.mxu0
      %533 = vdwg.mxu0
      %534 = vmatpush.bf16.msra.mxu0 %v504
      %535 = vmatpush.bf16.msra.mxu0 %v502
      %536 = vmatpush.bf16.msra.mxu0 %v500
      %537 = vmatpush.bf16.msra.mxu0 %v498
      %538 = vmatpush.bf16.msra.mxu0 %v496
      %539 = vmatpush.bf16.msra.mxu0 %v494
      %540 = vmatpush.bf16.msra.mxu0 %v492
      %541 = vmatpush.bf16.msra.mxu0 %v490
      %542 = vmatmul.bf16.gmra.mxu0 %v418
      %v543 = vpop.f32.mrf.mxu0
      %v544 = vadd.f32 %v438, %v543
      %v545 = vpop.f32.mrf.mxu0
      %546 = vdwg.mxu0
      %v547 = vxor.u32 %v544, 2147483648
      %v548 = vmul.f32 %v547, 1.442695
      %v549 = vpow.pop %v548
      %v550 = vadd.f32 %v549, 1.0
      %v551 = vrcp.pop %v550
      %v552 = vmul.f32 %v550, %v551
      %v553 = vsub.f32 1.0, %v552
      %v554 = vmul.f32 %v551, %v553
      %v555 = vadd.f32 %v551, %v554
      %vm556 = vweird.f32 %v550
      %vm557 = vweird.f32 %v551
      %vm558 = vmor %vm556, %vm557
      %v559 = vsel %vm558, %v551, %v555
      %v560 = vand.u32 2147483647, %v550
      %vm561 = vcmp.eq.f32.partialorder %v560, 8.507059e+37
      %v562 = vand.u32 %v550, 2147483648
      %v563 = vor.u32 1.1754944e-38, %v562
      %v564 = vsel %vm561, %v563, %v559
      %v565 = vmul.f32 1.0, %v564
      %v566 = vmul.f32 %v531, %v565
      %567 = vst [vmem:[#allocation2] sm:$0xff] 0.0
      %568 = vst [vmem:[#allocation2 + $0x8] sm:$0xff] 0.0
      %569 = vst [vmem:[#allocation2 + $0x10] sm:$0xff] 0.0
      %570 = vst [vmem:[#allocation2 + $0x18] sm:$0xff] 0.0
      %571 = vst [vmem:[#allocation2 + $0x20] sm:$0xf] 0.0
      %572 = vst [vmem:[#allocation2 + $0xf] sm:$0x3f] %v566
      %v573 = vld [vmem:[#allocation2] sm:$0x3f]
      %v574 = vld [vmem:[%s5] sm:$0x1]
      %v575 = vperm.slane %v574, 0
      %v576 = vmul.f32 %v573, %v575
      %v577 = vadd.f32 %v576, 0.0
      %v578 = vld [vmem:[#allocation2 + $0x1] sm:$0x3f]
      %v579 = vld [vmem:[%s5 + $0x1] sm:$0x1]
      %v580 = vperm.slane %v579, 0
      %v581 = vmul.f32 %v578, %v580
      %v582 = vadd.f32 %v577, %v581
      %v583 = vld [vmem:[#allocation2 + $0x2] sm:$0x3f]
      %v584 = vld [vmem:[%s5 + $0x2] sm:$0x1]
      %v585 = vperm.slane %v584, 0
      %v586 = vmul.f32 %v583, %v585
      %v587 = vadd.f32 %v582, %v586
      %v588 = vld [vmem:[#allocation2 + $0x3] sm:$0x3f]
      %v589 = vld [vmem:[%s5 + $0x3] sm:$0x1]
      %v590 = vperm.slane %v589, 0
      %v591 = vmul.f32 %v588, %v590
      %v592 = vadd.f32 %v587, %v591
      %v593 = vld [vmem:[#allocation2 + $0x4] sm:$0x3f]
      %v594 = vld [vmem:[%s5 + $0x4] sm:$0x1]
      %v595 = vperm.slane %v594, 0
      %v596 = vmul.f32 %v593, %v595
      %v597 = vadd.f32 %v592, %v596
      %v598 = vld [vmem:[#allocation2 + $0x5] sm:$0x3f]
      %v599 = vld [vmem:[%s5 + $0x5] sm:$0x1]
      %v600 = vperm.slane %v599, 0
      %v601 = vmul.f32 %v598, %v600
      %v602 = vadd.f32 %v597, %v601
      %v603 = vld [vmem:[#allocation2 + $0x6] sm:$0x3f]
      %v604 = vld [vmem:[%s5 + $0x6] sm:$0x1]
      %v605 = vperm.slane %v604, 0
      %v606 = vmul.f32 %v603, %v605
      %v607 = vadd.f32 %v602, %v606
      %v608 = vld [vmem:[#allocation2 + $0x7] sm:$0x3f]
      %v609 = vld [vmem:[%s5 + $0x7] sm:$0x1]
      %v610 = vperm.slane %v609, 0
      %v611 = vmul.f32 %v608, %v610
      %v612 = vadd.f32 %v607, %v611
      %v613 = vld [vmem:[#allocation2 + $0x8] sm:$0x3f]
      %v614 = vld [vmem:[%s5 + $0x8] sm:$0x1]
      %v615 = vperm.slane %v614, 0
      %v616 = vmul.f32 %v613, %v615
      %v617 = vadd.f32 %v612, %v616
      %v618 = vld [vmem:[#allocation2 + $0x9] sm:$0x3f]
      %v619 = vld [vmem:[%s5 + $0x9] sm:$0x1]
      %v620 = vperm.slane %v619, 0
      %v621 = vmul.f32 %v618, %v620
      %v622 = vadd.f32 %v617, %v621
      %v623 = vld [vmem:[#allocation2 + $0xa] sm:$0x3f]
      %v624 = vld [vmem:[%s5 + $0xa] sm:$0x1]
      %v625 = vperm.slane %v624, 0
      %v626 = vmul.f32 %v623, %v625
      %v627 = vadd.f32 %v622, %v626
      %v628 = vld [vmem:[#allocation2 + $0xb] sm:$0x3f]
      %v629 = vld [vmem:[%s5 + $0xb] sm:$0x1]
      %v630 = vperm.slane %v629, 0
      %v631 = vmul.f32 %v628, %v630
      %v632 = vadd.f32 %v627, %v631
      %v633 = vld [vmem:[#allocation2 + $0xc] sm:$0x3f]
      %v634 = vld [vmem:[%s5 + $0xc] sm:$0x1]
      %v635 = vperm.slane %v634, 0
      %v636 = vmul.f32 %v633, %v635
      %v637 = vadd.f32 %v632, %v636
      %v638 = vld [vmem:[#allocation2 + $0xd] sm:$0x3f]
      %v639 = vld [vmem:[%s5 + $0xd] sm:$0x1]
      %v640 = vperm.slane %v639, 0
      %v641 = vmul.f32 %v638, %v640
      %v642 = vadd.f32 %v637, %v641
      %v643 = vld [vmem:[#allocation2 + $0xe] sm:$0x3f]
      %v644 = vld [vmem:[%s5 + $0xe] sm:$0x1]
      %v645 = vperm.slane %v644, 0
      %v646 = vmul.f32 %v643, %v645
      %v647 = vadd.f32 %v642, %v646
      %v648 = vld [vmem:[#allocation2 + $0xf] sm:$0x3f]
      %v649 = vld [vmem:[%s5 + $0xf] sm:$0x1]
      %v650 = vperm.slane %v649, 0
      %v651 = vmul.f32 %v648, %v650
      %v652 = vadd.f32 %v647, %v651
      %v653 = vld [vmem:[#allocation2 + $0x10] sm:$0x3f]
      %v654 = vld [vmem:[%s5 + $0x10] sm:$0x1]
      %v655 = vperm.slane %v654, 0
      %v656 = vmul.f32 %v653, %v655
      %v657 = vadd.f32 %v652, %v656
      %v658 = vld [vmem:[#allocation2 + $0x11] sm:$0x3f]
      %v659 = vld [vmem:[%s5 + $0x11] sm:$0x1]
      %v660 = vperm.slane %v659, 0
      %v661 = vmul.f32 %v658, %v660
      %v662 = vadd.f32 %v657, %v661
      %v663 = vld [vmem:[#allocation2 + $0x12] sm:$0x3f]
      %v664 = vld [vmem:[%s5 + $0x12] sm:$0x1]
      %v665 = vperm.slane %v664, 0
      %v666 = vmul.f32 %v663, %v665
      %v667 = vadd.f32 %v662, %v666
      %v668 = vld [vmem:[#allocation2 + $0x13] sm:$0x3f]
      %v669 = vld [vmem:[%s5 + $0x13] sm:$0x1]
      %v670 = vperm.slane %v669, 0
      %v671 = vmul.f32 %v668, %v670
      %v672 = vadd.f32 %v667, %v671
      %v673 = vld [vmem:[#allocation2 + $0x14] sm:$0x3f]
      %v674 = vld [vmem:[%s5 + $0x14] sm:$0x1]
      %v675 = vperm.slane %v674, 0
      %v676 = vmul.f32 %v673, %v675
      %v677 = vadd.f32 %v672, %v676
      %v678 = vld [vmem:[#allocation2 + $0x15] sm:$0x3f]
      %v679 = vld [vmem:[%s5 + $0x15] sm:$0x1]
      %v680 = vperm.slane %v679, 0
      %v681 = vmul.f32 %v678, %v680
      %v682 = vadd.f32 %v677, %v681
      %v683 = vld [vmem:[#allocation2 + $0x16] sm:$0x3f]
      %v684 = vld [vmem:[%s5 + $0x16] sm:$0x1]
      %v685 = vperm.slane %v684, 0
      %v686 = vmul.f32 %v683, %v685
      %v687 = vadd.f32 %v682, %v686
      %v688 = vld [vmem:[#allocation2 + $0x17] sm:$0x3f]
      %v689 = vld [vmem:[%s5 + $0x17] sm:$0x1]
      %v690 = vperm.slane %v689, 0
      %v691 = vmul.f32 %v688, %v690
      %v692 = vadd.f32 %v687, %v691
      %v693 = vld [vmem:[#allocation2 + $0x18] sm:$0x3f]
      %v694 = vld [vmem:[%s5 + $0x18] sm:$0x1]
      %v695 = vperm.slane %v694, 0
      %v696 = vmul.f32 %v693, %v695
      %v697 = vadd.f32 %v692, %v696
      %v698 = vld [vmem:[#allocation2 + $0x19] sm:$0x3f]
      %v699 = vld [vmem:[%s5 + $0x19] sm:$0x1]
      %v700 = vperm.slane %v699, 0
      %v701 = vmul.f32 %v698, %v700
      %v702 = vadd.f32 %v697, %v701
      %v703 = vld [vmem:[#allocation2 + $0x1a] sm:$0x3f]
      %v704 = vld [vmem:[%s5 + $0x1a] sm:$0x1]
      %v705 = vperm.slane %v704, 0
      %v706 = vmul.f32 %v703, %v705
      %v707 = vadd.f32 %v702, %v706
      %v708 = vld [vmem:[#allocation2 + $0x1b] sm:$0x3f]
      %v709 = vld [vmem:[%s5 + $0x1b] sm:$0x1]
      %v710 = vperm.slane %v709, 0
      %v711 = vmul.f32 %v708, %v710
      %v712 = vadd.f32 %v707, %v711
      %v713 = vld [vmem:[#allocation2 + $0x1c] sm:$0x3f]
      %v714 = vld [vmem:[%s5 + $0x1c] sm:$0x1]
      %v715 = vperm.slane %v714, 0
      %v716 = vmul.f32 %v713, %v715
      %v717 = vadd.f32 %v712, %v716
      %v718 = vld [vmem:[#allocation2 + $0x1d] sm:$0x3f]
      %v719 = vld [vmem:[%s5 + $0x1d] sm:$0x1]
      %v720 = vperm.slane %v719, 0
      %v721 = vmul.f32 %v718, %v720
      %v722 = vadd.f32 %v717, %v721
      %v723 = vld [vmem:[#allocation2 + $0x1e] sm:$0x3f]
      %v724 = vld [vmem:[%s5 + $0x1e] sm:$0x1]
      %v725 = vperm.slane %v724, 0
      %v726 = vmul.f32 %v723, %v725
      %v727 = vadd.f32 %v722, %v726
      %v728 = vld [vmem:[%s6] sm:$0x1]
      %v730 = vperm.slane %v728, 0
      %v732 = vadd.f32 %v727, %v730
      %v733 = vld [vmem:[%s7] sm:$0x1]
      %v735 = vperm.slane %v733, 0
      %v737 = vmul.f32 %v732, %v735
      %v738 = vld [vmem:[%s8] sm:$0x1]
      %v740 = vperm.slane %v738, 0
      %v742 = vadd.f32 %v737, %v740
      %v743 = vxor.u32 %v742, 2147483648
      %v744 = vmul.f32 %v743, 1.442695
      %v745 = vpow.pop %v744
      %v746 = vadd.f32 %v745, 1.0
      %v747 = vrcp.pop %v746
      %v748 = vmul.f32 %v746, %v747
      %v749 = vsub.f32 1.0, %v748
      %v750 = vmul.f32 %v747, %v749
      %v751 = vadd.f32 %v747, %v750
      %vm752 = vweird.f32 %v746
      %vm753 = vweird.f32 %v747
      %vm754 = vmor %vm752, %vm753
      %v755 = vsel %vm754, %v747, %v751
      %v756 = vand.u32 2147483647, %v746
      %vm757 = vcmp.eq.f32.partialorder %v756, 8.507059e+37
      %v758 = vand.u32 %v746, 2147483648
      %v759 = vor.u32 1.1754944e-38, %v758
      %v760 = vsel %vm757, %v759, %v755
      %v761 = vmul.f32 1.0, %v760
      %v762 = vmul.f32 %v742, %v761
      %v763 = vpack.c.bf16 %v762, %v762
      %v764 = vld [vmem:[%s9] sm:$0xf]
      %v765 = vld [vmem:[%s9 + $0x4] sm:$0xf]
      %v766 = vld [vmem:[%s9 + $0x8] sm:$0xf]
      %v767 = vld [vmem:[%s9 + $0xc] sm:$0xf]
      %v768 = vld [vmem:[%s9 + $0x10] sm:$0xf]
      %v769 = vld [vmem:[%s9 + $0x14] sm:$0xf]
      %v770 = vld [vmem:[%s9 + $0x18] sm:$0xf]
      %v771 = vld [vmem:[%s9 + $0x1c] sm:$0xf]
      %v772 = vld [vmem:[%s9 + $0x20] sm:$0xf]
      %v773 = vld [vmem:[%s9 + $0x24] sm:$0xf]
      %v774 = vld [vmem:[%s9 + $0x28] sm:$0xf]
      %v775 = vld [vmem:[%s9 + $0x2c] sm:$0xf]
      %v776 = vld [vmem:[%s9 + $0x30] sm:$0xf]
      %v777 = vld [vmem:[%s9 + $0x34] sm:$0xf]
      %v778 = vld [vmem:[%s9 + $0x38] sm:$0xf]
      %v779 = vld [vmem:[%s9 + $0x3c] sm:$0xf]
      %v780 = vld [vmem:[%s10] sm:$0x1]
      %v782 = vperm.slane %v780, 0
      %v800 = vunpack.c.l.b16 %v764
      %v801 = vunpack.c.l.b16 %v765
      %v802 = vunpack.c.l.b16 %v766
      %v803 = vunpack.c.l.b16 %v767
      %v804 = vunpack.c.l.b16 %v768
      %v805 = vunpack.c.l.b16 %v769
      %v806 = vunpack.c.l.b16 %v770
      %v807 = vunpack.c.l.b16 %v771
      %v808 = vunpack.c.l.b16 %v772
      %v809 = vunpack.c.l.b16 %v773
      %v810 = vunpack.c.l.b16 %v774
      %v811 = vunpack.c.l.b16 %v775
      %v812 = vunpack.c.l.b16 %v776
      %v813 = vunpack.c.l.b16 %v777
      %v814 = vunpack.c.l.b16 %v778
      %v815 = vunpack.c.l.b16 %v779
      %v816 = vpack.c.b16 %v801, %v800
      %v817 = vpack.c.b16 %v803, %v802
      %v818 = vpack.c.b16 %v805, %v804
      %v819 = vpack.c.b16 %v807, %v806
      %v820 = vpack.c.b16 %v809, %v808
      %v821 = vpack.c.b16 %v811, %v810
      %v822 = vpack.c.b16 %v813, %v812
      %v823 = vpack.c.b16 %v815, %v814
      %832 = vmatpush.bf16.msra.mxu0 %v823
      %833 = vmatpush.bf16.msra.mxu0 %v822
      %834 = vmatpush.bf16.msra.mxu0 %v821
      %835 = vmatpush.bf16.msra.mxu0 %v820
      %836 = vmatpush.bf16.msra.mxu0 %v819
      %837 = vmatpush.bf16.msra.mxu0 %v818
      %838 = vmatpush.bf16.msra.mxu0 %v817
      %839 = vmatpush.bf16.msra.mxu0 %v816
      %840 = vmatmul.bf16.gmra.mxu0 %v763
      %v841 = vpop.f32.mrf.mxu0
      %v842 = vadd.f32 %v782, %v841
      %v843 = vpop.f32.mrf.mxu0
      %844 = vdwg.mxu0
      %v845 = vadd.f32 %v382, %v842
      %846 = vst [vmem:[%s381] sm:$0x3f] %v845
      %p847 = scmp.lt.s32.totalorder %s22, 1
      %s848 = scalar_select %p847, %s22, 1
      %s849 = smul.addr %s848, 8
      %s850 = scalar_lea.vmem %s11, %s849
      // Predicated region
      $region65: #{conformer_encoder_forward.16} parent=63 // pred_check
        %p851 = pneg %p276
      $region66: #{conformer_encoder_forward.16} parent=63 // pred_check_branch
        %853 = sbr.rel (%p851) target = $region68
      $region67: #{conformer_encoder_forward.16} parent=63 // pred_region
        _
      $region68: #{conformer_encoder_forward.16} parent=63 // pred_fallthru
        _
    $region64: #{conformer_encoder_forward.16} parent=5 // pred_fallthru
      _
    %p854 = scmp.le.s32.totalorder 2, %s17
    // Predicated region
    $region69: #{conformer_encoder_forward.16} parent=5 // pred_check
      %p855 = pneg %p854
    $region70: #{conformer_encoder_forward.16} parent=5 // pred_check_branch
      %857 = sbr.rel (%p855) target = $region72
    $region71: #{conformer_encoder_forward.16} parent=5 // pred_region
      %s858 = ssub.s32 %s17, 2
      // Predicated region
      $region73: #{conformer_encoder_forward.16} parent=71 // pred_check
        %p859 = pneg %p282
      $region74: #{conformer_encoder_forward.16} parent=71 // pred_check_branch
        %861 = sbr.rel (%p859) target = $region76
      $region75: #{conformer_encoder_forward.16} parent=71 // pred_region
        %p862 = scmp.lt.s32.totalorder %s23, 1
        %s863 = scalar_select %p862, %s23, 1
        %s864 = smul.addr %s863, 8
        %s865 = scalar_lea.vmem %s11, %s864
      $region76: #{conformer_encoder_forward.16} parent=71 // pred_fallthru
        _
    $region72: #{conformer_encoder_forward.16} parent=5 // pred_fallthru
      _
  $region6: #{conformer_encoder_forward.16} parent=0 // loop_footer
    %s21 = sadd.s32 1, %s17
  $region7: #{conformer_encoder_forward.16} parent=0 // loop_footer_branch
    %16 = sbr.rel target = $region3
  $region8: #{conformer_encoder_forward.16} parent=0 // loop_exit
    _

// kernel: conformer_encoder_forward.19
$region0: #{conformer_encoder_forward.19}
  #allocation0 [shape = 'u32[]', space=smem, size = 0x4, offset = 0x4, fixed_abs, tag = 'smem constant byte address 0x4 - core index']
  #allocation1 [shape = 'u32[72,128]{1,0:T(1,128)}', space=vmem, size = 0x9000, scoped, tag = 'internal scratch']
  %s0 = inlined_call_operand.vmem [shape: f32[2,6,128], index: 0, kind: input, shape index: {}]
  %s1 = inlined_call_operand.hbm [shape: f32[1,128], index: 1, kind: input, shape index: {}]
  %s2 = inlined_call_operand.hbm [shape: f32[1,128], index: 2, kind: input, shape index: {}]
  %s3 = inlined_call_operand.vmem [shape: bf16[128,384], index: 3, kind: input, shape index: {}]
  %s4 = inlined_call_operand.vmem [shape: f32[1,384], index: 4, kind: input, shape index: {}]
  %s5 = inlined_call_operand.vmem [shape: bf16[128,128], index: 5, kind: input, shape index: {}]
  %s6 = inlined_call_operand.hbm [shape: f32[1,128], index: 6, kind: input, shape index: {}]
  %s7 = inlined_call_operand.vmem [shape: f32[2,6,128], index: 7, kind: output, shape index: {}]
  %s8 = sld [smem:[#allocation0]]
  $region73: #{conformer_encoder_forward.19} parent=0
    _
  %s10 = ssub.s32 1, %s8
  %s11 = scalar_select 0, %s10, %s8
  $region1: #{conformer_encoder_forward.19} parent=0
    #allocation2 [shape = 'u8[512]{0}', space=vmem, size = 0x400, scoped, tag = 'input window, operand 1, single buffered']
    #allocation3 [shape = 's32[2]{0}', space=sflag, size = 0x8, scoped, tag = 'scoped memory for conformer_encoder_forward.19']
    #allocation4 [shape = 'u8[512]{0}', space=vmem, size = 0x400, scoped, tag = 'input window, operand 2, single buffered']
    #allocation5 [shape = 's32[1]{0}', space=sflag, size = 0x4, scoped, tag = 'scoped memory for conformer_encoder_forward.19']
    #allocation6 [shape = 'u8[512]{0}', space=vmem, size = 0x400, scoped, tag = 'input window, operand 6, single buffered']
    %12 = vsyncpa [#allocation3], 0
    %13 = vsyncpa [#allocation5], 0
    loop: start=0, step=1, limit=4
    $region2: #{conformer_encoder_forward.19} parent=1 // loop_pre_header
      _
    $region3: #{conformer_encoder_forward.19} parent=1 // loop_header
      %s15 = sphi 0, %s19
      %p16 = scmp.ge.s32.totalorder %s15, 4
      %s25 = sphi 0, %s27
      %s28 = sphi 0, %s25
      %s29 = sphi 0, %s28
      %s45 = sphi 0, %s29
      %s49 = sphi 0, %s49
      %s51 = sphi 0, %s49
      %s52 = sphi 0, %s51
      %s66 = sphi 0, %s52
      %s70 = sphi 0, %s70
      %s72 = sphi 0, %s70
      %s73 = sphi 0, %s72
      %s87 = sphi 0, %s73
      %s91 = sphi 0, %s91
      %s93 = sphi 0, %s91
      %s94 = sphi 0, %s93
      %s108 = sphi 0, %s94
      %s112 = sphi 0, %s112
      %s114 = sphi 0, %s112
      %s115 = sphi 0, %s114
      %s129 = sphi 0, %s115
      %s133 = sphi 0, %s133
      %s135 = sphi 0, %s133
      %s136 = sphi 0, %s135
      %s150 = sphi 0, %s136
      %s154 = sphi 0, %s154
      %s156 = sphi 0, %s154
      %s157 = sphi 0, %s156
      %s171 = sphi 0, %s157
      %s177 = sphi 0, %s179
      %s180 = sphi 0, %s177
      %s181 = sphi 0, %s180
      %s197 = sphi 0, %s181
    $region4: #{conformer_encoder_forward.19} parent=1 // loop_header_branch
      %18 = sbr.rel (%p16) target = $region8
    $region5: #{conformer_encoder_forward.19} parent=1 // loop_body
      %s20 = ssub.s32 %s15, 1
      %s21 = ssub.s32 %s15, 2
      %s22 = sadd.s32 %s15, 1
      %s23 = ssub.s32 %s15, %s22
      %p24 = scmp.eq.s32.totalorder %s23, 0
      %s26 = sadd.s32 %s25, 1
      %s27 = scalar_select %p24, %s25, %s26
      %p30 = pneg %p24
      %p31 = scmp.eq.s32.totalorder %s15, 1
      %p32 = por %p30, %p31
      %p33 = scmp.ne.s32.totalorder %s25, %s28
      %p34 = scmp.eq.s32.totalorder %s15, 0
      %p35 = por %p33, %p34
      %p36 = scmp.ne.s32.totalorder %s25, %s28
      %p37 = scmp.eq.s32.totalorder %s20, 1
      %p38 = por %p36, %p37
      %p39 = scmp.ne.s32.totalorder %s28, %s29
      %p40 = scmp.eq.s32.totalorder %s20, 0
      %p41 = por %p39, %p40
      %p42 = scmp.ne.s32.totalorder %s28, %s29
      %p43 = scmp.eq.s32.totalorder %s21, 1
      %p44 = por %p42, %p43
      %p46 = scmp.ne.s32.totalorder %s29, %s45
      %p47 = scmp.eq.s32.totalorder %s21, 0
      %p48 = por %p46, %p47
      %s50 = sadd.s32 %s49, 1
      %p53 = scmp.eq.s32.totalorder %s15, 1
      %p54 = scmp.ne.s32.totalorder %s49, %s51
      %p55 = scmp.eq.s32.totalorder %s15, 0
      %p56 = por %p54, %p55
      %p57 = scmp.ne.s32.totalorder %s49, %s51
      %p58 = scmp.eq.s32.totalorder %s20, 1
      %p59 = por %p57, %p58
      %p60 = scmp.ne.s32.totalorder %s51, %s52
      %p61 = scmp.eq.s32.totalorder %s20, 0
      %p62 = por %p60, %p61
      %p63 = scmp.ne.s32.totalorder %s51, %s52
      %p64 = scmp.eq.s32.totalorder %s21, 1
      %p65 = por %p63, %p64
      %p67 = scmp.ne.s32.totalorder %s52, %s66
      %p68 = scmp.eq.s32.totalorder %s21, 0
      %p69 = por %p67, %p68
      %s71 = sadd.s32 %s70, 1
      %p74 = scmp.eq.s32.totalorder %s15, 1
      %p75 = scmp.ne.s32.totalorder %s70, %s72
      %p76 = scmp.eq.s32.totalorder %s15, 0
      %p77 = por %p75, %p76
      %p78 = scmp.ne.s32.totalorder %s70, %s72
      %p79 = scmp.eq.s32.totalorder %s20, 1
      %p80 = por %p78, %p79
      %p81 = scmp.ne.s32.totalorder %s72, %s73
      %p82 = scmp.eq.s32.totalorder %s20, 0
      %p83 = por %p81, %p82
      %p84 = scmp.ne.s32.totalorder %s72, %s73
      %p85 = scmp.eq.s32.totalorder %s21, 1
      %p86 = por %p84, %p85
      %p88 = scmp.ne.s32.totalorder %s73, %s87
      %p89 = scmp.eq.s32.totalorder %s21, 0
      %p90 = por %p88, %p89
      %s92 = sadd.s32 %s91, 1
      %p95 = scmp.eq.s32.totalorder %s15, 1
      %p96 = scmp.ne.s32.totalorder %s91, %s93
      %p97 = scmp.eq.s32.totalorder %s15, 0
      %p98 = por %p96, %p97
      %p99 = scmp.ne.s32.totalorder %s91, %s93
      %p100 = scmp.eq.s32.totalorder %s20, 1
      %p101 = por %p99, %p100
      %p102 = scmp.ne.s32.totalorder %s93, %s94
      %p103 = scmp.eq.s32.totalorder %s20, 0
      %p104 = por %p102, %p103
      %p105 = scmp.ne.s32.totalorder %s93, %s94
      %p106 = scmp.eq.s32.totalorder %s21, 1
      %p107 = por %p105, %p106
      %p109 = scmp.ne.s32.totalorder %s94, %s108
      %p110 = scmp.eq.s32.totalorder %s21, 0
      %p111 = por %p109, %p110
      %s113 = sadd.s32 %s112, 1
      %p116 = scmp.eq.s32.totalorder %s15, 1
      %p117 = scmp.ne.s32.totalorder %s112, %s114
      %p118 = scmp.eq.s32.totalorder %s15, 0
      %p119 = por %p117, %p118
      %p120 = scmp.ne.s32.totalorder %s112, %s114
      %p121 = scmp.eq.s32.totalorder %s20, 1
      %p122 = por %p120, %p121
      %p123 = scmp.ne.s32.totalorder %s114, %s115
      %p124 = scmp.eq.s32.totalorder %s20, 0
      %p125 = por %p123, %p124
      %p126 = scmp.ne.s32.totalorder %s114, %s115
      %p127 = scmp.eq.s32.totalorder %s21, 1
      %p128 = por %p126, %p127
      %p130 = scmp.ne.s32.totalorder %s115, %s129
      %p131 = scmp.eq.s32.totalorder %s21, 0
      %p132 = por %p130, %p131
      %s134 = sadd.s32 %s133, 1
      %p137 = scmp.eq.s32.totalorder %s15, 1
      %p138 = scmp.ne.s32.totalorder %s133, %s135
      %p139 = scmp.eq.s32.totalorder %s15, 0
      %p140 = por %p138, %p139
      %p141 = scmp.ne.s32.totalorder %s133, %s135
      %p142 = scmp.eq.s32.totalorder %s20, 1
      %p143 = por %p141, %p142
      %p144 = scmp.ne.s32.totalorder %s135, %s136
      %p145 = scmp.eq.s32.totalorder %s20, 0
      %p146 = por %p144, %p145
      %p147 = scmp.ne.s32.totalorder %s135, %s136
      %p148 = scmp.eq.s32.totalorder %s21, 1
      %p149 = por %p147, %p148
      %p151 = scmp.ne.s32.totalorder %s136, %s150
      %p152 = scmp.eq.s32.totalorder %s21, 0
      %p153 = por %p151, %p152
      %s155 = sadd.s32 %s154, 1
      %p158 = scmp.eq.s32.totalorder %s15, 1
      %p159 = scmp.ne.s32.totalorder %s154, %s156
      %p160 = scmp.eq.s32.totalorder %s15, 0
      %p161 = por %p159, %p160
      %p162 = scmp.ne.s32.totalorder %s154, %s156
      %p163 = scmp.eq.s32.totalorder %s20, 1
      %p164 = por %p162, %p163
      %p165 = scmp.ne.s32.totalorder %s156, %s157
      %p166 = scmp.eq.s32.totalorder %s20, 0
      %p167 = por %p165, %p166
      %p168 = scmp.ne.s32.totalorder %s156, %s157
      %p169 = scmp.eq.s32.totalorder %s21, 1
      %p170 = por %p168, %p169
      %p172 = scmp.ne.s32.totalorder %s157, %s171
      %p173 = scmp.eq.s32.totalorder %s21, 0
      %p174 = por %p172, %p173
      %s175 = ssub.s32 %s15, %s22
      %p176 = scmp.eq.s32.totalorder %s175, 0
      %s178 = sadd.s32 %s177, 1
      %s179 = scalar_select %p176, %s177, %s178
      %p182 = pneg %p176
      %p183 = scmp.eq.s32.totalorder %s15, 1
      %p184 = por %p182, %p183
      %p185 = scmp.ne.s32.totalorder %s177, %s180
      %p186 = scmp.eq.s32.totalorder %s15, 0
      %p187 = por %p185, %p186
      %p188 = scmp.ne.s32.totalorder %s177, %s180
      %p189 = scmp.eq.s32.totalorder %s20, 1
      %p190 = por %p188, %p189
      %p191 = scmp.ne.s32.totalorder %s180, %s181
      %p192 = scmp.eq.s32.totalorder %s20, 0
      %p193 = por %p191, %p192
      %p194 = scmp.ne.s32.totalorder %s180, %s181
      %p195 = scmp.eq.s32.totalorder %s21, 1
      %p196 = por %p194, %p195
      %p198 = scmp.ne.s32.totalorder %s181, %s197
      %p199 = scmp.eq.s32.totalorder %s21, 0
      %p200 = por %p198, %p199
      %p201 = scmp.le.s32.totalorder 1, %s15
      %p202 = scmp.lt.s32.totalorder %s15, 3
      %p203 = pnand %p201, %p202
      %p204 = pneg %p203
      // Predicated region
      $region9: #{conformer_encoder_forward.19} parent=5 // pred_check
        _
      $region10: #{conformer_encoder_forward.19} parent=5 // pred_check_branch
        %206 = sbr.rel (%p203) target = $region12
      $region11: #{conformer_encoder_forward.19} parent=5 // pred_region
        %s207 = ssub.s32 %s15, 1
        // Predicated region
        $region13: #{conformer_encoder_forward.19} parent=11 // pred_check
          %p208 = pneg %p62
        $region14: #{conformer_encoder_forward.19} parent=11 // pred_check_branch
          %210 = sbr.rel (%p208) target = $region16
        $region15: #{conformer_encoder_forward.19} parent=11 // pred_region
          %212 = vsyncadd [#allocation3], 0
          %s214 = sshll.u32 %s1, 4
          %s215 = int_to_ptr.hbm [resolvable:$true] %s214
          %s216 = sshll.u32 [#allocation2], 4
          %s217 = int_to_ptr.vmem [resolvable:$true] %s216
          %219 = dma.hbm_to_vmem [thread:$0]  %s215, 16, %s217, [#allocation3]
        $region16: #{conformer_encoder_forward.19} parent=11 // pred_fallthru
          _
        // Predicated region
        $region17: #{conformer_encoder_forward.19} parent=11 // pred_check
          %p220 = pneg %p83
        $region18: #{conformer_encoder_forward.19} parent=11 // pred_check_branch
          %222 = sbr.rel (%p220) target = $region20
        $region19: #{conformer_encoder_forward.19} parent=11 // pred_region
          %224 = vsyncadd [#allocation5], 0
          %s226 = sshll.u32 %s2, 4
          %s227 = int_to_ptr.hbm [resolvable:$true] %s226
          %s228 = sshll.u32 [#allocation4], 4
          %s229 = int_to_ptr.vmem [resolvable:$true] %s228
          %231 = dma.hbm_to_vmem [thread:$0]  %s227, 16, %s229, [#allocation5]
        $region20: #{conformer_encoder_forward.19} parent=11 // pred_fallthru
          _
        // Predicated region
        $region21: #{conformer_encoder_forward.19} parent=11 // pred_check
          %p232 = pneg %p104
        $region22: #{conformer_encoder_forward.19} parent=11 // pred_check_branch
          %234 = sbr.rel (%p232) target = $region24
        $region23: #{conformer_encoder_forward.19} parent=11 // pred_region
          _
        $region24: #{conformer_encoder_forward.19} parent=11 // pred_fallthru
          _
        // Predicated region
        $region25: #{conformer_encoder_forward.19} parent=11 // pred_check
          %p235 = pneg %p125
        $region26: #{conformer_encoder_forward.19} parent=11 // pred_check_branch
          %237 = sbr.rel (%p235) target = $region28
        $region27: #{conformer_encoder_forward.19} parent=11 // pred_region
          _
        $region28: #{conformer_encoder_forward.19} parent=11 // pred_fallthru
          _
        // Predicated region
        $region29: #{conformer_encoder_forward.19} parent=11 // pred_check
          %p238 = pneg %p146
        $region30: #{conformer_encoder_forward.19} parent=11 // pred_check_branch
          %240 = sbr.rel (%p238) target = $region32
        $region31: #{conformer_encoder_forward.19} parent=11 // pred_region
          _
        $region32: #{conformer_encoder_forward.19} parent=11 // pred_fallthru
          _
        // Predicated region
        $region33: #{conformer_encoder_forward.19} parent=11 // pred_check
          %p241 = pneg %p167
        $region34: #{conformer_encoder_forward.19} parent=11 // pred_check_branch
          %243 = sbr.rel (%p241) target = $region36
        $region35: #{conformer_encoder_forward.19} parent=11 // pred_region
          %245 = vsyncadd [#allocation5], 0
          %s247 = sshll.u32 %s6, 4
          %s248 = int_to_ptr.hbm [resolvable:$true] %s247
          %s249 = sshll.u32 [#allocation6], 4
          %s250 = int_to_ptr.vmem [resolvable:$true] %s249
          %252 = dma.hbm_to_vmem [thread:$0]  %s248, 16, %s250, [#allocation5]
        $region36: #{conformer_encoder_forward.19} parent=11 // pred_fallthru
          _
      $region12: #{conformer_encoder_forward.19} parent=5 // pred_fallthru
        _
      %p253 = scmp.lt.s32.totalorder %s15, 2
      // Predicated region
      $region37: #{conformer_encoder_forward.19} parent=5 // pred_check
        %p254 = pneg %p253
      $region38: #{conformer_encoder_forward.19} parent=5 // pred_check_branch
        %256 = sbr.rel (%p254) target = $region40
      $region39: #{conformer_encoder_forward.19} parent=5 // pred_region
        // Predicated region
        $region41: #{conformer_encoder_forward.19} parent=39 // pred_check
          %p257 = pneg %p35
        $region42: #{conformer_encoder_forward.19} parent=39 // pred_check_branch
          %259 = sbr.rel (%p257) target = $region44
        $region43: #{conformer_encoder_forward.19} parent=39 // pred_region
          %p260 = scmp.lt.s32.totalorder %s15, 1
          %s261 = scalar_select %p260, %s15, 1
          %s262 = smul.addr %s261, 8
          %s263 = scalar_lea.vmem %s0, %s262
        $region44: #{conformer_encoder_forward.19} parent=39 // pred_fallthru
          _
      $region40: #{conformer_encoder_forward.19} parent=5 // pred_fallthru
        _
      %p264 = scmp.le.s32.totalorder 1, %s15
      %p265 = scmp.lt.s32.totalorder %s15, 3
      %p266 = pnand %p264, %p265
      %p267 = pneg %p266
      // Predicated region
      $region45: #{conformer_encoder_forward.19} parent=5 // pred_check
        _
      $region46: #{conformer_encoder_forward.19} parent=5 // pred_check_branch
        %269 = sbr.rel (%p266) target = $region48
      $region47: #{conformer_encoder_forward.19} parent=5 // pred_region
        %s270 = ssub.s32 %s15, 1
        // Predicated region
        $region49: #{conformer_encoder_forward.19} parent=47 // pred_check
          %p271 = pneg %p62
        $region50: #{conformer_encoder_forward.19} parent=47 // pred_check_branch
          %273 = sbr.rel (%p271) target = $region52
        $region51: #{conformer_encoder_forward.19} parent=47 // pred_region
          %275 = dma.done [#allocation3], 16
        $region52: #{conformer_encoder_forward.19} parent=47 // pred_fallthru
          _
        // Predicated region
        $region53: #{conformer_encoder_forward.19} parent=47 // pred_check
          %p276 = pneg %p83
        $region54: #{conformer_encoder_forward.19} parent=47 // pred_check_branch
          %278 = sbr.rel (%p276) target = $region56
        $region55: #{conformer_encoder_forward.19} parent=47 // pred_region
          %280 = dma.done [#allocation5], 16
        $region56: #{conformer_encoder_forward.19} parent=47 // pred_fallthru
          _
        // Predicated region
        $region57: #{conformer_encoder_forward.19} parent=47 // pred_check
          %p281 = pneg %p167
        $region58: #{conformer_encoder_forward.19} parent=47 // pred_check_branch
          %283 = sbr.rel (%p281) target = $region60
        $region59: #{conformer_encoder_forward.19} parent=47 // pred_region
          %285 = dma.done [#allocation5], 16
        $region60: #{conformer_encoder_forward.19} parent=47 // pred_fallthru
          _
        %p286 = scmp.lt.s32.totalorder %s20, 1
        %s287 = scalar_select %p286, %s20, 1
        %s288 = smul.addr %s287, 8
        %s289 = scalar_lea.vmem %s0, %s288
        %p290 = pneg %p41
        %p291 = pneg %p38
        %p292 = pneg %p62
        %p293 = pneg %p59
        %p294 = pneg %p83
        %p295 = pneg %p80
        %p296 = pneg %p104
        %p297 = pneg %p101
        %p298 = pneg %p125
        %p299 = pneg %p122
        %p300 = pneg %p146
        %p301 = pneg %p143
        %p302 = pneg %p167
        %p303 = pneg %p164
        %p304 = pneg %p193
        %p305 = pneg %p190
        %p306 = scmp.lt.s32.totalorder %s20, 1
        %s307 = scalar_select %p306, %s20, 1
        %s308 = smul.addr %s307, 8
        %s309 = scalar_lea.vmem %s7, %s308
        %p310 = scmp.lt.s32.totalorder %s20, 1
        %s311 = scalar_select %p310, %s20, 1
        %s312 = smul.addr %s311, 8
        %s313 = scalar_lea.vmem %s0, %s312
        %p314 = scmp.lt.s32.totalorder %s20, 1
        %s315 = scalar_select %p314, %s20, 1
        %s316 = smul.addr %s315, 8
        %s317 = scalar_lea.vmem %s7, %s316
        %v319 = vld [vmem:[%s313] sm:$0x3f]
        %v320 = vld [vmem:[#allocation2] sm:$0x1]
        %v321 = vld [vmem:[#allocation4] sm:$0x1]
        %vm322 = vcmask 1045504
        %v323 = vsel %vm322, %v319, 0.0
        %324 = vadd.xlane.f32.xlu0 %v323
        %v325 = vpop.xlane.xlu0 %324
        %v326 = vmul.f32 %v325, 0.03125
        %v327 = vmul.f32 %v319, %v319
        %v328 = vsel %vm322, %v327, 0.0
        %329 = vadd.xlane.f32.xlu0 %v328
        %v330 = vpop.xlane.xlu0 %329
        %v331 = vmul.f32 %v330, 0.03125
        %v332 = vmul.f32 %v326, %v326
        %v333 = vsub.f32 %v331, %v332
        %v334 = vsub.f32 %v319, %v326
        %v335 = vadd.f32 %v333, 1e-05
        %v336 = vrsqrt.pop %v335
        %v337 = vmul.f32 %v336, %v335
        %v338 = vmul.f32 %v337, %v336
        %v339 = vmul.f32 0.5, %v338
        %v340 = vsub.f32 1.5, %v339
        %v341 = vmul.f32 %v336, %v340
        %vm342 = vweird.f32 %v335
        %vm343 = vweird.f32 %v336
        %vm344 = vmor %vm342, %vm343
        %v345 = vsel %vm344, %v336, %v341
        %v346 = vmul.f32 %v334, %v345
        %v348 = vperm.slane %v320, 0
        %v350 = vmul.f32 %v346, %v348
        %v352 = vperm.slane %v321, 0
        %v354 = vadd.f32 %v350, %v352
        %v355 = vpack.c.bf16 %v354, %v354
        %v356 = vld [vmem:[%s3] sm:$0xff]
        %v357 = vld [vmem:[%s3 + $0x8] sm:$0xf]
        %v358 = vld [vmem:[%s3 + $0xc] sm:$0xff]
        %v359 = vld [vmem:[%s3 + $0x14] sm:$0xf]
        %v360 = vld [vmem:[%s3 + $0x18] sm:$0xff]
        %v361 = vld [vmem:[%s3 + $0x20] sm:$0xf]
        %v362 = vld [vmem:[%s3 + $0x24] sm:$0xff]
        %v363 = vld [vmem:[%s3 + $0x2c] sm:$0xf]
        %v364 = vld [vmem:[%s3 + $0x30] sm:$0xff]
        %v365 = vld [vmem:[%s3 + $0x38] sm:$0xf]
        %v366 = vld [vmem:[%s3 + $0x3c] sm:$0xff]
        %v367 = vld [vmem:[%s3 + $0x44] sm:$0xf]
        %v368 = vld [vmem:[%s3 + $0x48] sm:$0xff]
        %v369 = vld [vmem:[%s3 + $0x50] sm:$0xf]
        %v370 = vld [vmem:[%s3 + $0x54] sm:$0xff]
        %v371 = vld [vmem:[%s3 + $0x5c] sm:$0xf]
        %v372 = vld [vmem:[%s3 + $0x60] sm:$0xff]
        %v373 = vld [vmem:[%s3 + $0x68] sm:$0xf]
        %v374 = vld [vmem:[%s3 + $0x6c] sm:$0xff]
        %v375 = vld [vmem:[%s3 + $0x74] sm:$0xf]
        %v376 = vld [vmem:[%s3 + $0x78] sm:$0xff]
        %v377 = vld [vmem:[%s3 + $0x80] sm:$0xf]
        %v378 = vld [vmem:[%s3 + $0x84] sm:$0xff]
        %v379 = vld [vmem:[%s3 + $0x8c] sm:$0xf]
        %v380 = vld [vmem:[%s3 + $0x90] sm:$0xff]
        %v381 = vld [vmem:[%s3 + $0x98] sm:$0xf]
        %v382 = vld [vmem:[%s3 + $0x9c] sm:$0xff]
        %v383 = vld [vmem:[%s3 + $0xa4] sm:$0xf]
        %v384 = vld [vmem:[%s3 + $0xa8] sm:$0xff]
        %v385 = vld [vmem:[%s3 + $0xb0] sm:$0xf]
        %v386 = vld [vmem:[%s3 + $0xb4] sm:$0xff]
        %v387 = vld [vmem:[%s3 + $0xbc] sm:$0xf]
        %v388 = vld [vmem:[%s4] sm:$0x7]
        %v390 = vperm.slane %v388, 0
        %v391 = vperm.slane %v388, 1
        %v392 = vperm.slane %v388, 2
        %v428 = vunpack.c.l.b16 %v356
        %v429 = vunpack.c.h.b16 %v356
        %v430 = vunpack.c.l.b16 %v357
        %v431 = vunpack.c.l.b16 %v358
        %v432 = vunpack.c.h.b16 %v358
        %v433 = vunpack.c.l.b16 %v359
        %v434 = vunpack.c.l.b16 %v360
        %v435 = vunpack.c.h.b16 %v360
        %v436 = vunpack.c.l.b16 %v361
        %v437 = vunpack.c.l.b16 %v362
        %v438 = vunpack.c.h.b16 %v362
        %v439 = vunpack.c.l.b16 %v363
        %v440 = vunpack.c.l.b16 %v364
        %v441 = vunpack.c.h.b16 %v364
        %v442 = vunpack.c.l.b16 %v365
        %v443 = vunpack.c.l.b16 %v366
        %v444 = vunpack.c.h.b16 %v366
        %v445 = vunpack.c.l.b16 %v367
        %v446 = vunpack.c.l.b16 %v368
        %v447 = vunpack.c.h.b16 %v368
        %v448 = vunpack.c.l.b16 %v369
        %v449 = vunpack.c.l.b16 %v370
        %v450 = vunpack.c.h.b16 %v370
        %v451 = vunpack.c.l.b16 %v371
        %v452 = vunpack.c.l.b16 %v372
        %v453 = vunpack.c.h.b16 %v372
        %v454 = vunpack.c.l.b16 %v373
        %v455 = vunpack.c.l.b16 %v374
        %v456 = vunpack.c.h.b16 %v374
        %v457 = vunpack.c.l.b16 %v375
        %v458 = vunpack.c.l.b16 %v376
        %v459 = vunpack.c.h.b16 %v376
        %v460 = vunpack.c.l.b16 %v377
        %v461 = vunpack.c.l.b16 %v378
        %v462 = vunpack.c.h.b16 %v378
        %v463 = vunpack.c.l.b16 %v379
        %v464 = vunpack.c.l.b16 %v380
        %v465 = vunpack.c.h.b16 %v380
        %v466 = vunpack.c.l.b16 %v381
        %v467 = vunpack.c.l.b16 %v382
        %v468 = vunpack.c.h.b16 %v382
        %v469 = vunpack.c.l.b16 %v383
        %v470 = vunpack.c.l.b16 %v384
        %v471 = vunpack.c.h.b16 %v384
        %v472 = vunpack.c.l.b16 %v385
        %v473 = vunpack.c.l.b16 %v386
        %v474 = vunpack.c.h.b16 %v386
        %v475 = vunpack.c.l.b16 %v387
        %v476 = vpack.c.b16 %v431, %v428
        %v477 = vpack.c.b16 %v432, %v429
        %v478 = vpack.c.b16 %v433, %v430
        %v479 = vpack.c.b16 %v437, %v434
        %v480 = vpack.c.b16 %v438, %v435
        %v481 = vpack.c.b16 %v439, %v436
        %v482 = vpack.c.b16 %v443, %v440
        %v483 = vpack.c.b16 %v444, %v441
        %v484 = vpack.c.b16 %v445, %v442
        %v485 = vpack.c.b16 %v449, %v446
        %v486 = vpack.c.b16 %v450, %v447
        %v487 = vpack.c.b16 %v451, %v448
        %v488 = vpack.c.b16 %v455, %v452
        %v489 = vpack.c.b16 %v456, %v453
        %v490 = vpack.c.b16 %v457, %v454
        %v491 = vpack.c.b16 %v461, %v458
        %v492 = vpack.c.b16 %v462, %v459
        %v493 = vpack.c.b16 %v463, %v460
        %v494 = vpack.c.b16 %v467, %v464
        %v495 = vpack.c.b16 %v468, %v465
        %v496 = vpack.c.b16 %v469, %v466
        %v497 = vpack.c.b16 %v473, %v470
        %v498 = vpack.c.b16 %v474, %v471
        %v499 = vpack.c.b16 %v475, %v472
        %524 = vmatpush.bf16.msra.mxu0 %v497
        %525 = vmatpush.bf16.msra.mxu0 %v494
        %526 = vmatpush.bf16.msra.mxu0 %v491
        %527 = vmatpush.bf16.msra.mxu0 %v488
        %528 = vmatpush.bf16.msra.mxu0 %v485
        %529 = vmatpush.bf16.msra.mxu0 %v482
        %530 = vmatpush.bf16.msra.mxu0 %v479
        %531 = vmatpush.bf16.msra.mxu0 %v476
        %532 = vmatmul.bf16.gmra.mxu0 %v355
        %v533 = vpop.f32.mrf.mxu0
        %v534 = vadd.f32 %v390, %v533
        %v535 = vpop.f32.mrf.mxu0
        %536 = vdwg.mxu0
        %537 = vmatpush.bf16.msra.mxu0 %v498
        %538 = vmatpush.bf16.msra.mxu0 %v495
        %539 = vmatpush.bf16.msra.mxu0 %v492
        %540 = vmatpush.bf16.msra.mxu0 %v489
        %541 = vmatpush.bf16.msra.mxu0 %v486
        %542 = vmatpush.bf16.msra.mxu0 %v483
        %543 = vmatpush.bf16.msra.mxu0 %v480
        %544 = vmatpush.bf16.msra.mxu0 %v477
        %545 = vmatmul.bf16.gmra.mxu0 %v355
        %v546 = vpop.f32.mrf.mxu0
        %v547 = vadd.f32 %v391, %v546
        %v548 = vpop.f32.mrf.mxu0
        %549 = vdwg.mxu0
        %550 = vmatpush.bf16.msra.mxu0 %v499
        %551 = vmatpush.bf16.msra.mxu0 %v496
        %552 = vmatpush.bf16.msra.mxu0 %v493
        %553 = vmatpush.bf16.msra.mxu0 %v490
        %554 = vmatpush.bf16.msra.mxu0 %v487
        %555 = vmatpush.bf16.msra.mxu0 %v484
        %556 = vmatpush.bf16.msra.mxu0 %v481
        %557 = vmatpush.bf16.msra.mxu0 %v478
        %558 = vmatmul.bf16.gmra.mxu0 %v355
        %v559 = vpop.f32.mrf.mxu0
        %v560 = vadd.f32 %v392, %v559
        %v561 = vpop.f32.mrf.mxu0
        %562 = vdwg.mxu0
        %v563 = vpack.c.bf16 %v547, %v534
        %v564 = vpack.c.bf16 %v560, %v560
        %v565 = vld [vmem:[%s5] sm:$0xf]
        %v566 = vld [vmem:[%s5 + $0x4] sm:$0xf]
        %v567 = vld [vmem:[%s5 + $0x8] sm:$0xf]
        %v568 = vld [vmem:[%s5 + $0xc] sm:$0xf]
        %v570 = vunpack.c.h.b16 %v563
        %v571 = vpack.c.b16 %v570, %v570
        %vm572 = vcmask 64512
        %v574 = vsel %vm572, %v563, 0
        %v577 = vsel %vm572, %v571, 0
        %579 = vmatpush.bf16.xpose.msra.mxu0 0
        %580 = vmatpush.bf16.xpose.msra.mxu0 0
        %581 = vmatpush.bf16.xpose.msra.mxu0 0
        %582 = vmatpush.bf16.xpose.msra.mxu0 0
        %583 = vmatpush.bf16.xpose.msra.mxu0 0
        %584 = vmatpush.bf16.xpose.msra.mxu0 0
        %585 = vmatpush.bf16.xpose.msra.mxu0 0
        %586 = vmatpush.bf16.xpose.msra.mxu0 %v577
        %587 = vmatmul.bf16.gmra.mxu0 %v574
        %v588 = vpop.f32.mrf.mxu0
        %v589 = vadd.f32 0.0, %v588
        %v590 = vpop.f32.mrf.mxu0
        %591 = vdwg.mxu0
        %v592 = vmul.f32 %v589, 0.35355338
        %vm593 = vcmask 46080
        %v594 = vsel %vm593, %v592, -inf
        %595 = vmax.xlane.f32.xlu0 %v594
        %v596 = vpop.xlane.xlu0 %595
        %v597 = vsub.f32 %v592, %v596
        %v598 = vmul.f32 %v597, 1.442695
        %v599 = vpow.pop %v598
        %v600 = vsel %vm593, %v599, 0.0
        %601 = vadd.xlane.f32.xlu0 %v600
        %v602 = vpop.xlane.xlu0 %601
        %v603 = vrcp.pop %v602
        %v604 = vmul.f32 %v599, %v603
        %v605 = vpack.c.bf16 %v604, %v604
        %vm606 = vcmask 48128
        %v608 = vsel %vm606, %v605, 0
        %vm610 = vcmask 1042432
        %v612 = vsel %vm610, %v564, 0
        %614 = vmatpush.bf16.msra.mxu0 0
        %615 = vmatpush.bf16.msra.mxu0 0
        %616 = vmatpush.bf16.msra.mxu0 0
        %617 = vmatpush.bf16.msra.mxu0 0
        %618 = vmatpush.bf16.msra.mxu0 0
        %619 = vmatpush.bf16.msra.mxu0 0
        %620 = vmatpush.bf16.msra.mxu0 0
        %621 = vmatpush.bf16.msra.mxu0 %v612
        %622 = vmatmul.bf16.gmra.mxu0 %v608
        %v623 = vpop.f32.mrf.mxu0
        %v624 = vadd.f32 0.0, %v623
        %v625 = vpop.f32.mrf.mxu0
        %626 = vdwg.mxu0
        %v627 = vpack.c.bf16 %v624, %v624
        %v628 = vunpack.c.l.b16 %v563
        %v629 = vpack.c.b16 %v628, %v628
        %630 = vrot.lane.b32.xlu0 %v629, 120
        %v631 = vpop.permute.xlu0 %630
        %632 = vrot.lane.b32.xlu0 %v571, 120
        %v633 = vpop.permute.xlu0 %632
        %v635 = vsel %vm572, %v631, 0
        %v638 = vsel %vm572, %v633, 0
        %640 = vmatpush.bf16.xpose.msra.mxu0 0
        %641 = vmatpush.bf16.xpose.msra.mxu0 0
        %642 = vmatpush.bf16.xpose.msra.mxu0 0
        %643 = vmatpush.bf16.xpose.msra.mxu0 0
        %644 = vmatpush.bf16.xpose.msra.mxu0 0
        %645 = vmatpush.bf16.xpose.msra.mxu0 0
        %646 = vmatpush.bf16.xpose.msra.mxu0 0
        %647 = vmatpush.bf16.xpose.msra.mxu0 %v638
        %648 = vmatmul.bf16.gmra.mxu0 %v635
        %v649 = vpop.f32.mrf.mxu0
        %v650 = vadd.f32 0.0, %v649
        %v651 = vpop.f32.mrf.mxu0
        %652 = vdwg.mxu0
        %v653 = vmul.f32 %v650, 0.35355338
        %v654 = vsel %vm593, %v653, -inf
        %655 = vmax.xlane.f32.xlu0 %v654
        %v656 = vpop.xlane.xlu0 %655
        %v657 = vsub.f32 %v653, %v656
        %v658 = vmul.f32 %v657, 1.442695
        %v659 = vpow.pop %v658
        %v660 = vsel %vm593, %v659, 0.0
        %661 = vadd.xlane.f32.xlu0 %v660
        %v662 = vpop.xlane.xlu0 %661
        %v663 = vrcp.pop %v662
        %v664 = vmul.f32 %v659, %v663
        %v665 = vpack.c.bf16 %v664, %v664
        %v667 = vunpack.c.l.b16 %v564
        %v668 = vpack.c.b16 %v667, %v667
        %669 = vrot.lane.b32.xlu0 %v668, 120
        %v670 = vpop.permute.xlu0 %669
        %v672 = vsel %vm606, %v665, 0
        %v675 = vsel %vm610, %v670, 0
        %677 = vmatpush.bf16.msra.mxu0 0
        %678 = vmatpush.bf16.msra.mxu0 0
        %679 = vmatpush.bf16.msra.mxu0 0
        %680 = vmatpush.bf16.msra.mxu0 0
        %681 = vmatpush.bf16.msra.mxu0 0
        %682 = vmatpush.bf16.msra.mxu0 0
        %683 = vmatpush.bf16.msra.mxu0 0
        %684 = vmatpush.bf16.msra.mxu0 %v675
        %685 = vmatmul.bf16.gmra.mxu0 %v672
        %v686 = vpop.f32.mrf.mxu0
        %v687 = vadd.f32 0.0, %v686
        %v688 = vpop.f32.mrf.mxu0
        %689 = vdwg.mxu0
        %v690 = vpack.c.bf16 %v687, %v687
        %v692 = vsel %vm572, %v690, 0
        %vm694 = vcmask 1043456
        %v696 = vsel %vm694, %v566, 0
        %698 = vmatpush.bf16.msra.mxu0 0
        %699 = vmatpush.bf16.msra.mxu0 0
        %700 = vmatpush.bf16.msra.mxu0 0
        %701 = vmatpush.bf16.msra.mxu0 0
        %702 = vmatpush.bf16.msra.mxu0 0
        %703 = vmatpush.bf16.msra.mxu0 0
        %704 = vmatpush.bf16.msra.mxu0 0
        %705 = vmatpush.bf16.msra.mxu0 %v696
        %706 = vmatmul.bf16.gmra.mxu0 %v692
        %v707 = vpop.f32.mrf.mxu0
        %v708 = vadd.f32 0.0, %v707
        %v709 = vpop.f32.mrf.mxu0
        %710 = vdwg.mxu0
        %v712 = vsel %vm572, %v627, 0
        %v715 = vsel %vm694, %v565, 0
        %717 = vmatpush.bf16.msra.mxu0 0
        %718 = vmatpush.bf16.msra.mxu0 0
        %719 = vmatpush.bf16.msra.mxu0 0
        %720 = vmatpush.bf16.msra.mxu0 0
        %721 = vmatpush.bf16.msra.mxu0 0
        %722 = vmatpush.bf16.msra.mxu0 0
        %723 = vmatpush.bf16.msra.mxu0 0
        %724 = vmatpush.bf16.msra.mxu0 %v715
        %725 = vmatmul.bf16.gmra.mxu0 %v712
        %v726 = vpop.f32.mrf.mxu0
        %v727 = vadd.f32 %v708, %v726
        %v728 = vpop.f32.mrf.mxu0
        %729 = vdwg.mxu0
        %730 = vrot.lane.b32.xlu0 %v629, 112
        %v731 = vpop.permute.xlu0 %730
        %732 = vrot.lane.b32.xlu0 %v571, 112
        %v733 = vpop.permute.xlu0 %732
        %v735 = vsel %vm572, %v731, 0
        %v738 = vsel %vm572, %v733, 0
        %740 = vmatpush.bf16.xpose.msra.mxu0 0
        %741 = vmatpush.bf16.xpose.msra.mxu0 0
        %742 = vmatpush.bf16.xpose.msra.mxu0 0
        %743 = vmatpush.bf16.xpose.msra.mxu0 0
        %744 = vmatpush.bf16.xpose.msra.mxu0 0
        %745 = vmatpush.bf16.xpose.msra.mxu0 0
        %746 = vmatpush.bf16.xpose.msra.mxu0 0
        %747 = vmatpush.bf16.xpose.msra.mxu0 %v738
        %748 = vmatmul.bf16.gmra.mxu0 %v735
        %v749 = vpop.f32.mrf.mxu0
        %v750 = vadd.f32 0.0, %v749
        %v751 = vpop.f32.mrf.mxu0
        %752 = vdwg.mxu0
        %v753 = vmul.f32 %v750, 0.35355338
        %v754 = vsel %vm593, %v753, -inf
        %755 = vmax.xlane.f32.xlu0 %v754
        %v756 = vpop.xlane.xlu0 %755
        %v757 = vsub.f32 %v753, %v756
        %v758 = vmul.f32 %v757, 1.442695
        %v759 = vpow.pop %v758
        %v760 = vsel %vm593, %v759, 0.0
        %761 = vadd.xlane.f32.xlu0 %v760
        %v762 = vpop.xlane.xlu0 %761
        %v763 = vrcp.pop %v762
        %v764 = vmul.f32 %v759, %v763
        %v765 = vpack.c.bf16 %v764, %v764
        %766 = vrot.lane.b32.xlu0 %v668, 112
        %v767 = vpop.permute.xlu0 %766
        %v769 = vsel %vm606, %v765, 0
        %v772 = vsel %vm610, %v767, 0
        %774 = vmatpush.bf16.msra.mxu0 0
        %775 = vmatpush.bf16.msra.mxu0 0
        %776 = vmatpush.bf16.msra.mxu0 0
        %777 = vmatpush.bf16.msra.mxu0 0
        %778 = vmatpush.bf16.msra.mxu0 0
        %779 = vmatpush.bf16.msra.mxu0 0
        %780 = vmatpush.bf16.msra.mxu0 0
        %781 = vmatpush.bf16.msra.mxu0 %v772
        %782 = vmatmul.bf16.gmra.mxu0 %v769
        %v783 = vpop.f32.mrf.mxu0
        %v784 = vadd.f32 0.0, %v783
        %v785 = vpop.f32.mrf.mxu0
        %786 = vdwg.mxu0
        %v787 = vpack.c.bf16 %v784, %v784
        %v789 = vsel %vm572, %v787, 0
        %v792 = vsel %vm694, %v567, 0
        %794 = vmatpush.bf16.msra.mxu0 0
        %795 = vmatpush.bf16.msra.mxu0 0
        %796 = vmatpush.bf16.msra.mxu0 0
        %797 = vmatpush.bf16.msra.mxu0 0
        %798 = vmatpush.bf16.msra.mxu0 0
        %799 = vmatpush.bf16.msra.mxu0 0
        %800 = vmatpush.bf16.msra.mxu0 0
        %801 = vmatpush.bf16.msra.mxu0 %v792
        %802 = vmatmul.bf16.gmra.mxu0 %v789
        %v803 = vpop.f32.mrf.mxu0
        %v804 = vadd.f32 0.0, %v803
        %v805 = vpop.f32.mrf.mxu0
        %806 = vdwg.mxu0
        %v807 = vadd.f32 %v727, %v804
        %808 = vrot.lane.b32.xlu0 %v629, 104
        %v809 = vpop.permute.xlu0 %808
        %810 = vrot.lane.b32.xlu0 %v571, 104
        %v811 = vpop.permute.xlu0 %810
        %v813 = vsel %vm572, %v809, 0
        %v816 = vsel %vm572, %v811, 0
        %818 = vmatpush.bf16.xpose.msra.mxu0 0
        %819 = vmatpush.bf16.xpose.msra.mxu0 0
        %820 = vmatpush.bf16.xpose.msra.mxu0 0
        %821 = vmatpush.bf16.xpose.msra.mxu0 0
        %822 = vmatpush.bf16.xpose.msra.mxu0 0
        %823 = vmatpush.bf16.xpose.msra.mxu0 0
        %824 = vmatpush.bf16.xpose.msra.mxu0 0
        %825 = vmatpush.bf16.xpose.msra.mxu0 %v816
        %826 = vmatmul.bf16.gmra.mxu0 %v813
        %v827 = vpop.f32.mrf.mxu0
        %v828 = vadd.f32 0.0, %v827
        %v829 = vpop.f32.mrf.mxu0
        %830 = vdwg.mxu0
        %v831 = vmul.f32 %v828, 0.35355338
        %v832 = vsel %vm593, %v831, -inf
        %833 = vmax.xlane.f32.xlu0 %v832
        %v834 = vpop.xlane.xlu0 %833
        %v835 = vsub.f32 %v831, %v834
        %v836 = vmul.f32 %v835, 1.442695
        %v837 = vpow.pop %v836
        %v838 = vsel %vm593, %v837, 0.0
        %839 = vadd.xlane.f32.xlu0 %v838
        %v840 = vpop.xlane.xlu0 %839
        %v841 = vrcp.pop %v840
        %v842 = vmul.f32 %v837, %v841
        %v843 = vpack.c.bf16 %v842, %v842
        %844 = vrot.lane.b32.xlu0 %v668, 104
        %v845 = vpop.permute.xlu0 %844
        %v847 = vsel %vm606, %v843, 0
        %v850 = vsel %vm610, %v845, 0
        %852 = vmatpush.bf16.msra.mxu0 0
        %853 = vmatpush.bf16.msra.mxu0 0
        %854 = vmatpush.bf16.msra.mxu0 0
        %855 = vmatpush.bf16.msra.mxu0 0
        %856 = vmatpush.bf16.msra.mxu0 0
        %857 = vmatpush.bf16.msra.mxu0 0
        %858 = vmatpush.bf16.msra.mxu0 0
        %859 = vmatpush.bf16.msra.mxu0 %v850
        %860 = vmatmul.bf16.gmra.mxu0 %v847
        %v861 = vpop.f32.mrf.mxu0
        %v862 = vadd.f32 0.0, %v861
        %v863 = vpop.f32.mrf.mxu0
        %864 = vdwg.mxu0
        %v865 = vpack.c.bf16 %v862, %v862
        %v867 = vsel %vm572, %v865, 0
        %v870 = vsel %vm694, %v568, 0
        %872 = vmatpush.bf16.msra.mxu0 0
        %873 = vmatpush.bf16.msra.mxu0 0
        %874 = vmatpush.bf16.msra.mxu0 0
        %875 = vmatpush.bf16.msra.mxu0 0
        %876 = vmatpush.bf16.msra.mxu0 0
        %877 = vmatpush.bf16.msra.mxu0 0
        %878 = vmatpush.bf16.msra.mxu0 0
        %879 = vmatpush.bf16.msra.mxu0 %v870
        %880 = vmatmul.bf16.gmra.mxu0 %v867
        %v881 = vpop.f32.mrf.mxu0
        %v882 = vadd.f32 0.0, %v881
        %v883 = vpop.f32.mrf.mxu0
        %884 = vdwg.mxu0
        %v885 = vadd.f32 %v807, %v882
        %v886 = vadd.f32 %v319, %v885
        %v887 = vld [vmem:[#allocation6] sm:$0x1]
        %v889 = vperm.slane %v887, 0
        %v891 = vadd.f32 %v886, %v889
        %892 = vst [vmem:[%s317] sm:$0x3f] %v891
        %p893 = scmp.lt.s32.totalorder %s20, 1
        %s894 = scalar_select %p893, %s20, 1
        %s895 = smul.addr %s894, 8
        %s896 = scalar_lea.vmem %s7, %s895
        // Predicated region
        $region61: #{conformer_encoder_forward.19} parent=47 // pred_check
          %p897 = pneg %p190
        $region62: #{conformer_encoder_forward.19} parent=47 // pred_check_branch
          %899 = sbr.rel (%p897) target = $region64
        $region63: #{conformer_encoder_forward.19} parent=47 // pred_region
          _
        $region64: #{conformer_encoder_forward.19} parent=47 // pred_fallthru
          _
      $region48: #{conformer_encoder_forward.19} parent=5 // pred_fallthru
        _
      %p900 = scmp.le.s32.totalorder 2, %s15
      // Predicated region
      $region65: #{conformer_encoder_forward.19} parent=5 // pred_check
        %p901 = pneg %p900
      $region66: #{conformer_encoder_forward.19} parent=5 // pred_check_branch
        %903 = sbr.rel (%p901) target = $region68
      $region67: #{conformer_encoder_forward.19} parent=5 // pred_region
        %s904 = ssub.s32 %s15, 2
        // Predicated region
        $region69: #{conformer_encoder_forward.19} parent=67 // pred_check
          %p905 = pneg %p196
        $region70: #{conformer_encoder_forward.19} parent=67 // pred_check_branch
          %907 = sbr.rel (%p905) target = $region72
        $region71: #{conformer_encoder_forward.19} parent=67 // pred_region
          %p908 = scmp.lt.s32.totalorder %s21, 1
          %s909 = scalar_select %p908, %s21, 1
          %s910 = smul.addr %s909, 8
          %s911 = scalar_lea.vmem %s7, %s910
        $region72: #{conformer_encoder_forward.19} parent=67 // pred_fallthru
          _
      $region68: #{conformer_encoder_forward.19} parent=5 // pred_fallthru
        _
    $region6: #{conformer_encoder_forward.19} parent=1 // loop_footer
      %s19 = sadd.s32 1, %s15
    $region7: #{conformer_encoder_forward.19} parent=1 // loop_footer_branch
      %14 = sbr.rel target = $region3
    $region8: #{conformer_encoder_forward.19} parent=1 // loop_exit
      _
    %912 = vsyncpa [#allocation3], 1
    %s913 = scalar_lea.sflag [#allocation3], 1
    %914 = vsyncpa %s913, 1
    %915 = vsyncpa [#allocation5], 1

// kernel: conformer_encoder_forward.21
$region0: #{conformer_encoder_forward.21}
  #allocation0 [shape = 'u32[]', space=smem, size = 0x4, offset = 0x4, fixed_abs, tag = 'smem constant byte address 0x4 - core index']
  #allocation1 [shape = 'u32[72,128]{1,0:T(1,128)}', space=vmem, size = 0x9000, scoped, tag = 'internal scratch']
  %s0 = inlined_call_operand.vmem [shape: f32[12,128], index: 0, kind: input, shape index: {}]
  %s1 = inlined_call_operand.vmem [shape: f32[1,128], index: 1, kind: input, shape index: {}]
  %s2 = inlined_call_operand.vmem [shape: f32[1,128], index: 2, kind: input, shape index: {}]
  %s3 = inlined_call_operand.vmem [shape: bf16[128,128], index: 3, kind: input, shape index: {}]
  %s4 = inlined_call_operand.vmem [shape: f32[1,128], index: 4, kind: input, shape index: {}]
  %s5 = inlined_call_operand.vmem [shape: bf16[128,128], index: 5, kind: input, shape index: {}]
  %s6 = inlined_call_operand.vmem [shape: f32[1,128], index: 6, kind: input, shape index: {}]
  %s7 = inlined_call_operand.vmem [shape: f32[1,128], index: 7, kind: input, shape index: {}]
  %s8 = inlined_call_operand.vmem [shape: f32[1,128], index: 8, kind: input, shape index: {}]
  %s9 = inlined_call_operand.vmem [shape: f32[12,128], index: 9, kind: output, shape index: {}]
  %s10 = sld [smem:[#allocation0]]
  $region46: #{conformer_encoder_forward.21} parent=0
    _
  %s12 = ssub.s32 1, %s10
  %s13 = scalar_select 0, %s12, %s10
  // Predicated region
  $region2: #{conformer_encoder_forward.21} parent=0 // pred_check
    _
  $region3: #{conformer_encoder_forward.21} parent=0 // pred_check_branch
    %15 = sbr.rel (0) target = $region5
  $region4: #{conformer_encoder_forward.21} parent=0 // pred_region
    _
  $region5: #{conformer_encoder_forward.21} parent=0 // pred_fallthru
    _
  // Predicated region
  $region6: #{conformer_encoder_forward.21} parent=0 // pred_check
    _
  $region7: #{conformer_encoder_forward.21} parent=0 // pred_check_branch
    %17 = sbr.rel (0) target = $region9
  $region8: #{conformer_encoder_forward.21} parent=0 // pred_region
    _
  $region9: #{conformer_encoder_forward.21} parent=0 // pred_fallthru
    _
  // Predicated region
  $region10: #{conformer_encoder_forward.21} parent=0 // pred_check
    _
  $region11: #{conformer_encoder_forward.21} parent=0 // pred_check_branch
    %19 = sbr.rel (0) target = $region13
  $region12: #{conformer_encoder_forward.21} parent=0 // pred_region
    _
  $region13: #{conformer_encoder_forward.21} parent=0 // pred_fallthru
    _
  // Predicated region
  $region14: #{conformer_encoder_forward.21} parent=0 // pred_check
    _
  $region15: #{conformer_encoder_forward.21} parent=0 // pred_check_branch
    %21 = sbr.rel (0) target = $region17
  $region16: #{conformer_encoder_forward.21} parent=0 // pred_region
    _
  $region17: #{conformer_encoder_forward.21} parent=0 // pred_fallthru
    _
  // Predicated region
  $region18: #{conformer_encoder_forward.21} parent=0 // pred_check
    _
  $region19: #{conformer_encoder_forward.21} parent=0 // pred_check_branch
    %23 = sbr.rel (0) target = $region21
  $region20: #{conformer_encoder_forward.21} parent=0 // pred_region
    _
  $region21: #{conformer_encoder_forward.21} parent=0 // pred_fallthru
    _
  // Predicated region
  $region22: #{conformer_encoder_forward.21} parent=0 // pred_check
    _
  $region23: #{conformer_encoder_forward.21} parent=0 // pred_check_branch
    %25 = sbr.rel (0) target = $region25
  $region24: #{conformer_encoder_forward.21} parent=0 // pred_region
    _
  $region25: #{conformer_encoder_forward.21} parent=0 // pred_fallthru
    _
  // Predicated region
  $region26: #{conformer_encoder_forward.21} parent=0 // pred_check
    _
  $region27: #{conformer_encoder_forward.21} parent=0 // pred_check_branch
    %27 = sbr.rel (0) target = $region29
  $region28: #{conformer_encoder_forward.21} parent=0 // pred_region
    _
  $region29: #{conformer_encoder_forward.21} parent=0 // pred_fallthru
    _
  // Predicated region
  $region30: #{conformer_encoder_forward.21} parent=0 // pred_check
    _
  $region31: #{conformer_encoder_forward.21} parent=0 // pred_check_branch
    %29 = sbr.rel (0) target = $region33
  $region32: #{conformer_encoder_forward.21} parent=0 // pred_region
    _
  $region33: #{conformer_encoder_forward.21} parent=0 // pred_fallthru
    _
  // Predicated region
  $region34: #{conformer_encoder_forward.21} parent=0 // pred_check
    _
  $region35: #{conformer_encoder_forward.21} parent=0 // pred_check_branch
    %31 = sbr.rel (0) target = $region37
  $region36: #{conformer_encoder_forward.21} parent=0 // pred_region
    _
  $region37: #{conformer_encoder_forward.21} parent=0 // pred_fallthru
    _
  %v32 = vld [vmem:[%s0] sm:$0xff]
  %v33 = vld [vmem:[%s0 + $0x8] sm:$0xf]
  %v34 = vld [vmem:[%s1] sm:$0x1]
  %v35 = vld [vmem:[%s2] sm:$0x1]
  %36 = vadd.xlane.f32.xlu0 %v32
  %v37 = vpop.xlane.xlu0 %36
  %vm38 = vcmask 1043456
  %v39 = vsel %vm38, %v33, 0.0
  %40 = vadd.xlane.f32.xlu0 %v39
  %v41 = vpop.xlane.xlu0 %40
  %v42 = vmul.f32 %v37, 0.03125
  %v43 = vmul.f32 %v41, 0.03125
  %v44 = vmul.f32 %v32, %v32
  %v45 = vmul.f32 %v33, %v33
  %46 = vadd.xlane.f32.xlu0 %v44
  %v47 = vpop.xlane.xlu0 %46
  %v48 = vsel %vm38, %v45, 0.0
  %49 = vadd.xlane.f32.xlu0 %v48
  %v50 = vpop.xlane.xlu0 %49
  %v51 = vmul.f32 %v47, 0.03125
  %v52 = vmul.f32 %v50, 0.03125
  %v53 = vmul.f32 %v42, %v42
  %v54 = vmul.f32 %v43, %v43
  %v55 = vsub.f32 %v51, %v53
  %v56 = vsub.f32 %v52, %v54
  %v57 = vsub.f32 %v32, %v42
  %v58 = vsub.f32 %v33, %v43
  %v59 = vadd.f32 %v55, 1e-05
  %v60 = vadd.f32 %v56, 1e-05
  %v61 = vrsqrt.pop %v59
  %v62 = vmul.f32 %v61, %v59
  %v63 = vmul.f32 %v62, %v61
  %v64 = vmul.f32 0.5, %v63
  %v65 = vsub.f32 1.5, %v64
  %v66 = vmul.f32 %v61, %v65
  %vm67 = vweird.f32 %v59
  %vm68 = vweird.f32 %v61
  %vm69 = vmor %vm67, %vm68
  %v70 = vsel %vm69, %v61, %v66
  %v71 = vrsqrt.pop %v60
  %v72 = vmul.f32 %v71, %v60
  %v73 = vmul.f32 %v72, %v71
  %v74 = vmul.f32 0.5, %v73
  %v75 = vsub.f32 1.5, %v74
  %v76 = vmul.f32 %v71, %v75
  %vm77 = vweird.f32 %v60
  %vm78 = vweird.f32 %v71
  %vm79 = vmor %vm77, %vm78
  %v80 = vsel %vm79, %v71, %v76
  %v81 = vmul.f32 %v57, %v70
  %v82 = vmul.f32 %v58, %v80
  %v84 = vperm.slane %v34, 0
  %v86 = vmul.f32 %v81, %v84
  %v87 = vmul.f32 %v82, %v84
  %v89 = vperm.slane %v35, 0
  %v91 = vadd.f32 %v86, %v89
  %v92 = vadd.f32 %v87, %v89
  %v93 = vpack.c.bf16 %v92, %v91
  %v94 = vld [vmem:[%s3] sm:$0xf]
  %v95 = vld [vmem:[%s3 + $0x4] sm:$0xf]
  %v96 = vld [vmem:[%s3 + $0x8] sm:$0xf]
  %v97 = vld [vmem:[%s3 + $0xc] sm:$0xf]
  %v98 = vld [vmem:[%s3 + $0x10] sm:$0xf]
  %v99 = vld [vmem:[%s3 + $0x14] sm:$0xf]
  %v100 = vld [vmem:[%s3 + $0x18] sm:$0xf]
  %v101 = vld [vmem:[%s3 + $0x1c] sm:$0xf]
  %v102 = vld [vmem:[%s3 + $0x20] sm:$0xf]
  %v103 = vld [vmem:[%s3 + $0x24] sm:$0xf]
  %v104 = vld [vmem:[%s3 + $0x28] sm:$0xf]
  %v105 = vld [vmem:[%s3 + $0x2c] sm:$0xf]
  %v106 = vld [vmem:[%s3 + $0x30] sm:$0xf]
  %v107 = vld [vmem:[%s3 + $0x34] sm:$0xf]
  %v108 = vld [vmem:[%s3 + $0x38] sm:$0xf]
  %v109 = vld [vmem:[%s3 + $0x3c] sm:$0xf]
  %v110 = vld [vmem:[%s4] sm:$0x1]
  %v112 = vperm.slane %v110, 0
  %v130 = vunpack.c.l.b16 %v94
  %v131 = vunpack.c.l.b16 %v95
  %v132 = vunpack.c.l.b16 %v96
  %v133 = vunpack.c.l.b16 %v97
  %v134 = vunpack.c.l.b16 %v98
  %v135 = vunpack.c.l.b16 %v99
  %v136 = vunpack.c.l.b16 %v100
  %v137 = vunpack.c.l.b16 %v101
  %v138 = vunpack.c.l.b16 %v102
  %v139 = vunpack.c.l.b16 %v103
  %v140 = vunpack.c.l.b16 %v104
  %v141 = vunpack.c.l.b16 %v105
  %v142 = vunpack.c.l.b16 %v106
  %v143 = vunpack.c.l.b16 %v107
  %v144 = vunpack.c.l.b16 %v108
  %v145 = vunpack.c.l.b16 %v109
  %v146 = vpack.c.b16 %v131, %v130
  %v147 = vpack.c.b16 %v133, %v132
  %v148 = vpack.c.b16 %v135, %v134
  %v149 = vpack.c.b16 %v137, %v136
  %v150 = vpack.c.b16 %v139, %v138
  %v151 = vpack.c.b16 %v141, %v140
  %v152 = vpack.c.b16 %v143, %v142
  %v153 = vpack.c.b16 %v145, %v144
  %162 = vmatpush.bf16.msra.mxu0 %v153
  %163 = vmatpush.bf16.msra.mxu0 %v152
  %164 = vmatpush.bf16.msra.mxu0 %v151
  %165 = vmatpush.bf16.msra.mxu0 %v150
  %166 = vmatpush.bf16.msra.mxu0 %v149
  %167 = vmatpush.bf16.msra.mxu0 %v148
  %168 = vmatpush.bf16.msra.mxu0 %v147
  %169 = vmatpush.bf16.msra.mxu0 %v146
  %170 = vmatmul.bf16.gmra.mxu0 %v93
  %v171 = vpop.f32.mrf.mxu0
  %v172 = vadd.f32 %v112, %v171
  %v173 = vpop.f32.mrf.mxu0
  %v174 = vadd.f32 %v112, %v173
  %175 = vdwg.mxu0
  %v176 = vxor.u32 %v172, 2147483648
  %v177 = vxor.u32 %v174, 2147483648
  %v178 = vmul.f32 %v176, 1.442695
  %v179 = vpow.pop %v178
  %v180 = vmul.f32 %v177, 1.442695
  %v181 = vpow.pop %v180
  %v182 = vadd.f32 %v179, 1.0
  %v183 = vadd.f32 %v181, 1.0
  %v184 = vrcp.pop %v182
  %v185 = vmul.f32 %v182, %v184
  %v186 = vsub.f32 1.0, %v185
  %v187 = vmul.f32 %v184, %v186
  %v188 = vadd.f32 %v184, %v187
  %vm189 = vweird.f32 %v182
  %vm190 = vweird.f32 %v184
  %vm191 = vmor %vm189, %vm190
  %v192 = vsel %vm191, %v184, %v188
  %v193 = vand.u32 2147483647, %v182
  %vm194 = vcmp.eq.f32.partialorder %v193, 8.507059e+37
  %v195 = vand.u32 %v182, 2147483648
  %v196 = vor.u32 1.1754944e-38, %v195
  %v197 = vsel %vm194, %v196, %v192
  %v198 = vmul.f32 1.0, %v197
  %v199 = vrcp.pop %v183
  %v200 = vmul.f32 %v183, %v199
  %v201 = vsub.f32 1.0, %v200
  %v202 = vmul.f32 %v199, %v201
  %v203 = vadd.f32 %v199, %v202
  %vm204 = vweird.f32 %v183
  %vm205 = vweird.f32 %v199
  %vm206 = vmor %vm204, %vm205
  %v207 = vsel %vm206, %v199, %v203
  %v208 = vand.u32 2147483647, %v183
  %vm209 = vcmp.eq.f32.partialorder %v208, 8.507059e+37
  %v210 = vand.u32 %v183, 2147483648
  %v211 = vor.u32 1.1754944e-38, %v210
  %v212 = vsel %vm209, %v211, %v207
  %v213 = vmul.f32 1.0, %v212
  %v214 = vmul.f32 %v172, %v198
  %v215 = vmul.f32 %v174, %v213
  %v216 = vpack.c.bf16 %v215, %v214
  %v217 = vld [vmem:[%s5] sm:$0xf]
  %v218 = vld [vmem:[%s5 + $0x4] sm:$0xf]
  %v219 = vld [vmem:[%s5 + $0x8] sm:$0xf]
  %v220 = vld [vmem:[%s5 + $0xc] sm:$0xf]
  %v221 = vld [vmem:[%s5 + $0x10] sm:$0xf]
  %v222 = vld [vmem:[%s5 + $0x14] sm:$0xf]
  %v223 = vld [vmem:[%s5 + $0x18] sm:$0xf]
  %v224 = vld [vmem:[%s5 + $0x1c] sm:$0xf]
  %v225 = vld [vmem:[%s5 + $0x20] sm:$0xf]
  %v226 = vld [vmem:[%s5 + $0x24] sm:$0xf]
  %v227 = vld [vmem:[%s5 + $0x28] sm:$0xf]
  %v228 = vld [vmem:[%s5 + $0x2c] sm:$0xf]
  %v229 = vld [vmem:[%s5 + $0x30] sm:$0xf]
  %v230 = vld [vmem:[%s5 + $0x34] sm:$0xf]
  %v231 = vld [vmem:[%s5 + $0x38] sm:$0xf]
  %v232 = vld [vmem:[%s5 + $0x3c] sm:$0xf]
  %v233 = vld [vmem:[%s6] sm:$0x1]
  %v235 = vperm.slane %v233, 0
  %v253 = vunpack.c.l.b16 %v217
  %v254 = vunpack.c.l.b16 %v218
  %v255 = vunpack.c.l.b16 %v219
  %v256 = vunpack.c.l.b16 %v220
  %v257 = vunpack.c.l.b16 %v221
  %v258 = vunpack.c.l.b16 %v222
  %v259 = vunpack.c.l.b16 %v223
  %v260 = vunpack.c.l.b16 %v224
  %v261 = vunpack.c.l.b16 %v225
  %v262 = vunpack.c.l.b16 %v226
  %v263 = vunpack.c.l.b16 %v227
  %v264 = vunpack.c.l.b16 %v228
  %v265 = vunpack.c.l.b16 %v229
  %v266 = vunpack.c.l.b16 %v230
  %v267 = vunpack.c.l.b16 %v231
  %v268 = vunpack.c.l.b16 %v232
  %v269 = vpack.c.b16 %v254, %v253
  %v270 = vpack.c.b16 %v256, %v255
  %v271 = vpack.c.b16 %v258, %v257
  %v272 = vpack.c.b16 %v260, %v259
  %v273 = vpack.c.b16 %v262, %v261
  %v274 = vpack.c.b16 %v264, %v263
  %v275 = vpack.c.b16 %v266, %v265
  %v276 = vpack.c.b16 %v268, %v267
  %285 = vmatpush.bf16.msra.mxu0 %v276
  %286 = vmatpush.bf16.msra.mxu0 %v275
  %287 = vmatpush.bf16.msra.mxu0 %v274
  %288 = vmatpush.bf16.msra.mxu0 %v273
  %289 = vmatpush.bf16.msra.mxu0 %v272
  %290 = vmatpush.bf16.msra.mxu0 %v271
  %291 = vmatpush.bf16.msra.mxu0 %v270
  %292 = vmatpush.bf16.msra.mxu0 %v269
  %293 = vmatmul.bf16.gmra.mxu0 %v216
  %v294 = vpop.f32.mrf.mxu0
  %v295 = vadd.f32 %v235, %v294
  %v296 = vpop.f32.mrf.mxu0
  %v297 = vadd.f32 %v235, %v296
  %298 = vdwg.mxu0
  %v299 = vmul.f32 %v295, 0.5
  %v300 = vmul.f32 %v297, 0.5
  %v301 = vadd.f32 %v32, %v299
  %v302 = vadd.f32 %v33, %v300
  %v303 = vld [vmem:[%s7] sm:$0x1]
  %v304 = vld [vmem:[%s8] sm:$0x1]
  %305 = vadd.xlane.f32.xlu0 %v301
  %v306 = vpop.xlane.xlu0 %305
  %v307 = vsel %vm38, %v302, 0.0
  %308 = vadd.xlane.f32.xlu0 %v307
  %v309 = vpop.xlane.xlu0 %308
  %v310 = vmul.f32 %v306, 0.03125
  %v311 = vmul.f32 %v309, 0.03125
  %v312 = vmul.f32 %v301, %v301
  %v313 = vmul.f32 %v302, %v302
  %314 = vadd.xlane.f32.xlu0 %v312
  %v315 = vpop.xlane.xlu0 %314
  %v316 = vsel %vm38, %v313, 0.0
  %317 = vadd.xlane.f32.xlu0 %v316
  %v318 = vpop.xlane.xlu0 %317
  %v319 = vmul.f32 %v315, 0.03125
  %v320 = vmul.f32 %v318, 0.03125
  %v321 = vmul.f32 %v310, %v310
  %v322 = vmul.f32 %v311, %v311
  %v323 = vsub.f32 %v319, %v321
  %v324 = vsub.f32 %v320, %v322
  %v325 = vsub.f32 %v301, %v310
  %v326 = vsub.f32 %v302, %v311
  %v327 = vadd.f32 %v323, 1e-05
  %v328 = vadd.f32 %v324, 1e-05
  %v329 = vrsqrt.pop %v327
  %v330 = vmul.f32 %v329, %v327
  %v331 = vmul.f32 %v330, %v329
  %v332 = vmul.f32 0.5, %v331
  %v333 = vsub.f32 1.5, %v332
  %v334 = vmul.f32 %v329, %v333
  %vm335 = vweird.f32 %v327
  %vm336 = vweird.f32 %v329
  %vm337 = vmor %vm335, %vm336
  %v338 = vsel %vm337, %v329, %v334
  %v339 = vrsqrt.pop %v328
  %v340 = vmul.f32 %v339, %v328
  %v341 = vmul.f32 %v340, %v339
  %v342 = vmul.f32 0.5, %v341
  %v343 = vsub.f32 1.5, %v342
  %v344 = vmul.f32 %v339, %v343
  %vm345 = vweird.f32 %v328
  %vm346 = vweird.f32 %v339
  %vm347 = vmor %vm345, %vm346
  %v348 = vsel %vm347, %v339, %v344
  %v349 = vmul.f32 %v325, %v338
  %v350 = vmul.f32 %v326, %v348
  %v352 = vperm.slane %v303, 0
  %v354 = vmul.f32 %v349, %v352
  %v355 = vmul.f32 %v350, %v352
  %v357 = vperm.slane %v304, 0
  %v359 = vadd.f32 %v354, %v357
  %v360 = vadd.f32 %v355, %v357
  %361 = vst [vmem:[%s9] sm:$0xff] %v359
  %362 = vst [vmem:[%s9 + $0x8] sm:$0xf] %v360
  // Predicated region
  $region38: #{conformer_encoder_forward.21} parent=0 // pred_check
    _
  $region39: #{conformer_encoder_forward.21} parent=0 // pred_check_branch
    %364 = sbr.rel (0) target = $region41
  $region40: #{conformer_encoder_forward.21} parent=0 // pred_region
    _
  $region41: #{conformer_encoder_forward.21} parent=0 // pred_fallthru
    _
  // Predicated region
  $region42: #{conformer_encoder_forward.21} parent=0 // pred_check
    _
  $region43: #{conformer_encoder_forward.21} parent=0 // pred_check_branch
    %366 = sbr.rel (0) target = $region45
  $region44: #{conformer_encoder_forward.21} parent=0 // pred_region
    _
  $region45: #{conformer_encoder_forward.21} parent=0 // pred_fallthru
    _

// kernel: conformer_encoder_forward.20
$region0: #{conformer_encoder_forward.20}
  #allocation0 [shape = 'u32[]', space=smem, size = 0x4, offset = 0x4, fixed_abs, tag = 'smem constant byte address 0x4 - core index']
  #allocation1 [shape = 'u32[72,128]{1,0:T(1,128)}', space=vmem, size = 0x9000, scoped, tag = 'internal scratch']
  #allocation2 [shape = 'f32[36,128]{1,0:T(8,128)}', space=vmem, size = 0x5000, scoped, tag = 'scratch operand']
  %s0 = inlined_call_operand.vmem [shape: f32[2,6,128], index: 0, kind: input, shape index: {}]
  %s1 = inlined_call_operand.vmem [shape: f32[1,128], index: 1, kind: input, shape index: {}]
  %s2 = inlined_call_operand.hbm [shape: f32[1,128], index: 2, kind: input, shape index: {}]
  %s3 = inlined_call_operand.vmem [shape: bf16[128,256], index: 3, kind: input, shape index: {}]
  %s4 = inlined_call_operand.vmem [shape: f32[1,256], index: 4, kind: input, shape index: {}]
  %s5 = inlined_call_operand.vmem [shape: f32[31,128], index: 5, kind: input, shape index: {}]
  %s6 = inlined_call_operand.hbm [shape: f32[1,128], index: 6, kind: input, shape index: {}]
  %s7 = inlined_call_operand.hbm [shape: f32[1,128], index: 7, kind: input, shape index: {}]
  %s8 = inlined_call_operand.hbm [shape: f32[1,128], index: 8, kind: input, shape index: {}]
  %s9 = inlined_call_operand.vmem [shape: bf16[128,128], index: 9, kind: input, shape index: {}]
  %s10 = inlined_call_operand.hbm [shape: f32[1,128], index: 10, kind: input, shape index: {}]
  %s11 = inlined_call_operand.vmem [shape: f32[2,6,128], index: 11, kind: output, shape index: {}]
  %s12 = sld [smem:[#allocation0]]
  $region97: #{conformer_encoder_forward.20} parent=0
    _
  %s14 = ssub.s32 1, %s12
  %s15 = scalar_select 0, %s14, %s12
  $region1: #{conformer_encoder_forward.20} parent=0
    #allocation3 [shape = 'u8[512]{0}', space=vmem, size = 0x400, scoped, tag = 'input window, operand 2, single buffered']
    #allocation4 [shape = 's32[2]{0}', space=sflag, size = 0x8, scoped, tag = 'scoped memory for conformer_encoder_forward.20']
    #allocation5 [shape = 'u8[512]{0}', space=vmem, size = 0x400, scoped, tag = 'input window, operand 6, single buffered']
    #allocation6 [shape = 's32[1]{0}', space=sflag, size = 0x4, scoped, tag = 'scoped memory for conformer_encoder_forward.20']
    #allocation7 [shape = 'u8[512]{0}', space=vmem, size = 0x400, scoped, tag = 'input window, operand 7, single buffered']
    #allocation8 [shape = 'u8[512]{0}', space=vmem, size = 0x400, scoped, tag = 'input window, operand 8, single buffered']
    #allocation9 [shape = 's32[1]{0}', space=sflag, size = 0x4, scoped, tag = 'scoped memory for conformer_encoder_forward.20']
    #allocation10 [shape = 'u8[512]{0}', space=vmem, size = 0x400, scoped, tag = 'input window, operand 10, single buffered']
    %16 = vsyncpa [#allocation4], 0
    %17 = vsyncpa [#allocation6], 0
    %18 = vsyncpa [#allocation9], 0
    loop: start=0, step=1, limit=4
    $region2: #{conformer_encoder_forward.20} parent=1 // loop_pre_header
      _
    $region3: #{conformer_encoder_forward.20} parent=1 // loop_header
      %s20 = sphi 0, %s24
      %p21 = scmp.ge.s32.totalorder %s20, 4
      %s30 = sphi 0, %s32
      %s33 = sphi 0, %s30
      %s34 = sphi 0, %s33
      %s50 = sphi 0, %s34
      %s54 = sphi 0, %s54
      %s56 = sphi 0, %s54
      %s57 = sphi 0, %s56
      %s71 = sphi 0, %s57
      %s75 = sphi 0, %s75
      %s77 = sphi 0, %s75
      %s78 = sphi 0, %s77
      %s92 = sphi 0, %s78
      %s96 = sphi 0, %s96
      %s98 = sphi 0, %s96
      %s99 = sphi 0, %s98
      %s113 = sphi 0, %s99
      %s117 = sphi 0, %s117
      %s119 = sphi 0, %s117
      %s120 = sphi 0, %s119
      %s134 = sphi 0, %s120
      %s138 = sphi 0, %s138
      %s140 = sphi 0, %s138
      %s141 = sphi 0, %s140
      %s155 = sphi 0, %s141
      %s159 = sphi 0, %s159
      %s161 = sphi 0, %s159
      %s162 = sphi 0, %s161
      %s176 = sphi 0, %s162
      %s180 = sphi 0, %s180
      %s182 = sphi 0, %s180
      %s183 = sphi 0, %s182
      %s197 = sphi 0, %s183
      %s201 = sphi 0, %s201
      %s203 = sphi 0, %s201
      %s204 = sphi 0, %s203
      %s218 = sphi 0, %s204
      %s222 = sphi 0, %s222
      %s224 = sphi 0, %s222
      %s225 = sphi 0, %s224
      %s239 = sphi 0, %s225
      %s243 = sphi 0, %s243
      %s245 = sphi 0, %s243
      %s246 = sphi 0, %s245
      %s260 = sphi 0, %s246
      %s266 = sphi 0, %s268
      %s269 = sphi 0, %s266
      %s270 = sphi 0, %s269
      %s286 = sphi 0, %s270
    $region4: #{conformer_encoder_forward.20} parent=1 // loop_header_branch
      %23 = sbr.rel (%p21) target = $region8
    $region5: #{conformer_encoder_forward.20} parent=1 // loop_body
      %s25 = ssub.s32 %s20, 1
      %s26 = ssub.s32 %s20, 2
      %s27 = sadd.s32 %s20, 1
      %s28 = ssub.s32 %s20, %s27
      %p29 = scmp.eq.s32.totalorder %s28, 0
      %s31 = sadd.s32 %s30, 1
      %s32 = scalar_select %p29, %s30, %s31
      %p35 = pneg %p29
      %p36 = scmp.eq.s32.totalorder %s20, 1
      %p37 = por %p35, %p36
      %p38 = scmp.ne.s32.totalorder %s30, %s33
      %p39 = scmp.eq.s32.totalorder %s20, 0
      %p40 = por %p38, %p39
      %p41 = scmp.ne.s32.totalorder %s30, %s33
      %p42 = scmp.eq.s32.totalorder %s25, 1
      %p43 = por %p41, %p42
      %p44 = scmp.ne.s32.totalorder %s33, %s34
      %p45 = scmp.eq.s32.totalorder %s25, 0
      %p46 = por %p44, %p45
      %p47 = scmp.ne.s32.totalorder %s33, %s34
      %p48 = scmp.eq.s32.totalorder %s26, 1
      %p49 = por %p47, %p48
      %p51 = scmp.ne.s32.totalorder %s34, %s50
      %p52 = scmp.eq.s32.totalorder %s26, 0
      %p53 = por %p51, %p52
      %s55 = sadd.s32 %s54, 1
      %p58 = scmp.eq.s32.totalorder %s20, 1
      %p59 = scmp.ne.s32.totalorder %s54, %s56
      %p60 = scmp.eq.s32.totalorder %s20, 0
      %p61 = por %p59, %p60
      %p62 = scmp.ne.s32.totalorder %s54, %s56
      %p63 = scmp.eq.s32.totalorder %s25, 1
      %p64 = por %p62, %p63
      %p65 = scmp.ne.s32.totalorder %s56, %s57
      %p66 = scmp.eq.s32.totalorder %s25, 0
      %p67 = por %p65, %p66
      %p68 = scmp.ne.s32.totalorder %s56, %s57
      %p69 = scmp.eq.s32.totalorder %s26, 1
      %p70 = por %p68, %p69
      %p72 = scmp.ne.s32.totalorder %s57, %s71
      %p73 = scmp.eq.s32.totalorder %s26, 0
      %p74 = por %p72, %p73
      %s76 = sadd.s32 %s75, 1
      %p79 = scmp.eq.s32.totalorder %s20, 1
      %p80 = scmp.ne.s32.totalorder %s75, %s77
      %p81 = scmp.eq.s32.totalorder %s20, 0
      %p82 = por %p80, %p81
      %p83 = scmp.ne.s32.totalorder %s75, %s77
      %p84 = scmp.eq.s32.totalorder %s25, 1
      %p85 = por %p83, %p84
      %p86 = scmp.ne.s32.totalorder %s77, %s78
      %p87 = scmp.eq.s32.totalorder %s25, 0
      %p88 = por %p86, %p87
      %p89 = scmp.ne.s32.totalorder %s77, %s78
      %p90 = scmp.eq.s32.totalorder %s26, 1
      %p91 = por %p89, %p90
      %p93 = scmp.ne.s32.totalorder %s78, %s92
      %p94 = scmp.eq.s32.totalorder %s26, 0
      %p95 = por %p93, %p94
      %s97 = sadd.s32 %s96, 1
      %p100 = scmp.eq.s32.totalorder %s20, 1
      %p101 = scmp.ne.s32.totalorder %s96, %s98
      %p102 = scmp.eq.s32.totalorder %s20, 0
      %p103 = por %p101, %p102
      %p104 = scmp.ne.s32.totalorder %s96, %s98
      %p105 = scmp.eq.s32.totalorder %s25, 1
      %p106 = por %p104, %p105
      %p107 = scmp.ne.s32.totalorder %s98, %s99
      %p108 = scmp.eq.s32.totalorder %s25, 0
      %p109 = por %p107, %p108
      %p110 = scmp.ne.s32.totalorder %s98, %s99
      %p111 = scmp.eq.s32.totalorder %s26, 1
      %p112 = por %p110, %p111
      %p114 = scmp.ne.s32.totalorder %s99, %s113
      %p115 = scmp.eq.s32.totalorder %s26, 0
      %p116 = por %p114, %p115
      %s118 = sadd.s32 %s117, 1
      %p121 = scmp.eq.s32.totalorder %s20, 1
      %p122 = scmp.ne.s32.totalorder %s117, %s119
      %p123 = scmp.eq.s32.totalorder %s20, 0
      %p124 = por %p122, %p123
      %p125 = scmp.ne.s32.totalorder %s117, %s119
      %p126 = scmp.eq.s32.totalorder %s25, 1
      %p127 = por %p125, %p126
      %p128 = scmp.ne.s32.totalorder %s119, %s120
      %p129 = scmp.eq.s32.totalorder %s25, 0
      %p130 = por %p128, %p129
      %p131 = scmp.ne.s32.totalorder %s119, %s120
      %p132 = scmp.eq.s32.totalorder %s26, 1
      %p133 = por %p131, %p132
      %p135 = scmp.ne.s32.totalorder %s120, %s134
      %p136 = scmp.eq.s32.totalorder %s26, 0
      %p137 = por %p135, %p136
      %s139 = sadd.s32 %s138, 1
      %p142 = scmp.eq.s32.totalorder %s20, 1
      %p143 = scmp.ne.s32.totalorder %s138, %s140
      %p144 = scmp.eq.s32.totalorder %s20, 0
      %p145 = por %p143, %p144
      %p146 = scmp.ne.s32.totalorder %s138, %s140
      %p147 = scmp.eq.s32.totalorder %s25, 1
      %p148 = por %p146, %p147
      %p149 = scmp.ne.s32.totalorder %s140, %s141
      %p150 = scmp.eq.s32.totalorder %s25, 0
      %p151 = por %p149, %p150
      %p152 = scmp.ne.s32.totalorder %s140, %s141
      %p153 = scmp.eq.s32.totalorder %s26, 1
      %p154 = por %p152, %p153
      %p156 = scmp.ne.s32.totalorder %s141, %s155
      %p157 = scmp.eq.s32.totalorder %s26, 0
      %p158 = por %p156, %p157
      %s160 = sadd.s32 %s159, 1
      %p163 = scmp.eq.s32.totalorder %s20, 1
      %p164 = scmp.ne.s32.totalorder %s159, %s161
      %p165 = scmp.eq.s32.totalorder %s20, 0
      %p166 = por %p164, %p165
      %p167 = scmp.ne.s32.totalorder %s159, %s161
      %p168 = scmp.eq.s32.totalorder %s25, 1
      %p169 = por %p167, %p168
      %p170 = scmp.ne.s32.totalorder %s161, %s162
      %p171 = scmp.eq.s32.totalorder %s25, 0
      %p172 = por %p170, %p171
      %p173 = scmp.ne.s32.totalorder %s161, %s162
      %p174 = scmp.eq.s32.totalorder %s26, 1
      %p175 = por %p173, %p174
      %p177 = scmp.ne.s32.totalorder %s162, %s176
      %p178 = scmp.eq.s32.totalorder %s26, 0
      %p179 = por %p177, %p178
      %s181 = sadd.s32 %s180, 1
      %p184 = scmp.eq.s32.totalorder %s20, 1
      %p185 = scmp.ne.s32.totalorder %s180, %s182
      %p186 = scmp.eq.s32.totalorder %s20, 0
      %p187 = por %p185, %p186
      %p188 = scmp.ne.s32.totalorder %s180, %s182
      %p189 = scmp.eq.s32.totalorder %s25, 1
      %p190 = por %p188, %p189
      %p191 = scmp.ne.s32.totalorder %s182, %s183
      %p192 = scmp.eq.s32.totalorder %s25, 0
      %p193 = por %p191, %p192
      %p194 = scmp.ne.s32.totalorder %s182, %s183
      %p195 = scmp.eq.s32.totalorder %s26, 1
      %p196 = por %p194, %p195
      %p198 = scmp.ne.s32.totalorder %s183, %s197
      %p199 = scmp.eq.s32.totalorder %s26, 0
      %p200 = por %p198, %p199
      %s202 = sadd.s32 %s201, 1
      %p205 = scmp.eq.s32.totalorder %s20, 1
      %p206 = scmp.ne.s32.totalorder %s201, %s203
      %p207 = scmp.eq.s32.totalorder %s20, 0
      %p208 = por %p206, %p207
      %p209 = scmp.ne.s32.totalorder %s201, %s203
      %p210 = scmp.eq.s32.totalorder %s25, 1
      %p211 = por %p209, %p210
      %p212 = scmp.ne.s32.totalorder %s203, %s204
      %p213 = scmp.eq.s32.totalorder %s25, 0
      %p214 = por %p212, %p213
      %p215 = scmp.ne.s32.totalorder %s203, %s204
      %p216 = scmp.eq.s32.totalorder %s26, 1
      %p217 = por %p215, %p216
      %p219 = scmp.ne.s32.totalorder %s204, %s218
      %p220 = scmp.eq.s32.totalorder %s26, 0
      %p221 = por %p219, %p220
      %s223 = sadd.s32 %s222, 1
      %p226 = scmp.eq.s32.totalorder %s20, 1
      %p227 = scmp.ne.s32.totalorder %s222, %s224
      %p228 = scmp.eq.s32.totalorder %s20, 0
      %p229 = por %p227, %p228
      %p230 = scmp.ne.s32.totalorder %s222, %s224
      %p231 = scmp.eq.s32.totalorder %s25, 1
      %p232 = por %p230, %p231
      %p233 = scmp.ne.s32.totalorder %s224, %s225
      %p234 = scmp.eq.s32.totalorder %s25, 0
      %p235 = por %p233, %p234
      %p236 = scmp.ne.s32.totalorder %s224, %s225
      %p237 = scmp.eq.s32.totalorder %s26, 1
      %p238 = por %p236, %p237
      %p240 = scmp.ne.s32.totalorder %s225, %s239
      %p241 = scmp.eq.s32.totalorder %s26, 0
      %p242 = por %p240, %p241
      %s244 = sadd.s32 %s243, 1
      %p247 = scmp.eq.s32.totalorder %s20, 1
      %p248 = scmp.ne.s32.totalorder %s243, %s245
      %p249 = scmp.eq.s32.totalorder %s20, 0
      %p250 = por %p248, %p249
      %p251 = scmp.ne.s32.totalorder %s243, %s245
      %p252 = scmp.eq.s32.totalorder %s25, 1
      %p253 = por %p251, %p252
      %p254 = scmp.ne.s32.totalorder %s245, %s246
      %p255 = scmp.eq.s32.totalorder %s25, 0
      %p256 = por %p254, %p255
      %p257 = scmp.ne.s32.totalorder %s245, %s246
      %p258 = scmp.eq.s32.totalorder %s26, 1
      %p259 = por %p257, %p258
      %p261 = scmp.ne.s32.totalorder %s246, %s260
      %p262 = scmp.eq.s32.totalorder %s26, 0
      %p263 = por %p261, %p262
      %s264 = ssub.s32 %s20, %s27
      %p265 = scmp.eq.s32.totalorder %s264, 0
      %s267 = sadd.s32 %s266, 1
      %s268 = scalar_select %p265, %s266, %s267
      %p271 = pneg %p265
      %p272 = scmp.eq.s32.totalorder %s20, 1
      %p273 = por %p271, %p272
      %p274 = scmp.ne.s32.totalorder %s266, %s269
      %p275 = scmp.eq.s32.totalorder %s20, 0
      %p276 = por %p274, %p275
      %p277 = scmp.ne.s32.totalorder %s266, %s269
      %p278 = scmp.eq.s32.totalorder %s25, 1
      %p279 = por %p277, %p278
      %p280 = scmp.ne.s32.totalorder %s269, %s270
      %p281 = scmp.eq.s32.totalorder %s25, 0
      %p282 = por %p280, %p281
      %p283 = scmp.ne.s32.totalorder %s269, %s270
      %p284 = scmp.eq.s32.totalorder %s26, 1
      %p285 = por %p283, %p284
      %p287 = scmp.ne.s32.totalorder %s270, %s286
      %p288 = scmp.eq.s32.totalorder %s26, 0
      %p289 = por %p287, %p288
      %p290 = scmp.le.s32.totalorder 1, %s20
      %p291 = scmp.lt.s32.totalorder %s20, 3
      %p292 = pnand %p290, %p291
      %p293 = pneg %p292
      // Predicated region
      $region9: #{conformer_encoder_forward.20} parent=5 // pred_check
        _
      $region10: #{conformer_encoder_forward.20} parent=5 // pred_check_branch
        %295 = sbr.rel (%p292) target = $region12
      $region11: #{conformer_encoder_forward.20} parent=5 // pred_region
        %s296 = ssub.s32 %s20, 1
        // Predicated region
        $region13: #{conformer_encoder_forward.20} parent=11 // pred_check
          %p297 = pneg %p67
        $region14: #{conformer_encoder_forward.20} parent=11 // pred_check_branch
          %299 = sbr.rel (%p297) target = $region16
        $region15: #{conformer_encoder_forward.20} parent=11 // pred_region
          _
        $region16: #{conformer_encoder_forward.20} parent=11 // pred_fallthru
          _
        // Predicated region
        $region17: #{conformer_encoder_forward.20} parent=11 // pred_check
          %p300 = pneg %p88
        $region18: #{conformer_encoder_forward.20} parent=11 // pred_check_branch
          %302 = sbr.rel (%p300) target = $region20
        $region19: #{conformer_encoder_forward.20} parent=11 // pred_region
          %304 = vsyncadd [#allocation4], 0
          %s306 = sshll.u32 %s2, 4
          %s307 = int_to_ptr.hbm [resolvable:$true] %s306
          %s308 = sshll.u32 [#allocation3], 4
          %s309 = int_to_ptr.vmem [resolvable:$true] %s308
          %311 = dma.hbm_to_vmem [thread:$0]  %s307, 16, %s309, [#allocation4]
        $region20: #{conformer_encoder_forward.20} parent=11 // pred_fallthru
          _
        // Predicated region
        $region21: #{conformer_encoder_forward.20} parent=11 // pred_check
          %p312 = pneg %p109
        $region22: #{conformer_encoder_forward.20} parent=11 // pred_check_branch
          %314 = sbr.rel (%p312) target = $region24
        $region23: #{conformer_encoder_forward.20} parent=11 // pred_region
          _
        $region24: #{conformer_encoder_forward.20} parent=11 // pred_fallthru
          _
        // Predicated region
        $region25: #{conformer_encoder_forward.20} parent=11 // pred_check
          %p315 = pneg %p130
        $region26: #{conformer_encoder_forward.20} parent=11 // pred_check_branch
          %317 = sbr.rel (%p315) target = $region28
        $region27: #{conformer_encoder_forward.20} parent=11 // pred_region
          _
        $region28: #{conformer_encoder_forward.20} parent=11 // pred_fallthru
          _
        // Predicated region
        $region29: #{conformer_encoder_forward.20} parent=11 // pred_check
          %p318 = pneg %p151
        $region30: #{conformer_encoder_forward.20} parent=11 // pred_check_branch
          %320 = sbr.rel (%p318) target = $region32
        $region31: #{conformer_encoder_forward.20} parent=11 // pred_region
          _
        $region32: #{conformer_encoder_forward.20} parent=11 // pred_fallthru
          _
        // Predicated region
        $region33: #{conformer_encoder_forward.20} parent=11 // pred_check
          %p321 = pneg %p172
        $region34: #{conformer_encoder_forward.20} parent=11 // pred_check_branch
          %323 = sbr.rel (%p321) target = $region36
        $region35: #{conformer_encoder_forward.20} parent=11 // pred_region
          %325 = vsyncadd [#allocation6], 0
          %s327 = sshll.u32 %s6, 4
          %s328 = int_to_ptr.hbm [resolvable:$true] %s327
          %s329 = sshll.u32 [#allocation5], 4
          %s330 = int_to_ptr.vmem [resolvable:$true] %s329
          %332 = dma.hbm_to_vmem [thread:$0]  %s328, 16, %s330, [#allocation6]
        $region36: #{conformer_encoder_forward.20} parent=11 // pred_fallthru
          _
        // Predicated region
        $region37: #{conformer_encoder_forward.20} parent=11 // pred_check
          %p333 = pneg %p193
        $region38: #{conformer_encoder_forward.20} parent=11 // pred_check_branch
          %335 = sbr.rel (%p333) target = $region40
        $region39: #{conformer_encoder_forward.20} parent=11 // pred_region
          %337 = vsyncadd [#allocation6], 0
          %s339 = sshll.u32 %s7, 4
          %s340 = int_to_ptr.hbm [resolvable:$true] %s339
          %s341 = sshll.u32 [#allocation7], 4
          %s342 = int_to_ptr.vmem [resolvable:$true] %s341
          %344 = dma.hbm_to_vmem [thread:$0]  %s340, 16, %s342, [#allocation6]
        $region40: #{conformer_encoder_forward.20} parent=11 // pred_fallthru
          _
        // Predicated region
        $region41: #{conformer_encoder_forward.20} parent=11 // pred_check
          %p345 = pneg %p214
        $region42: #{conformer_encoder_forward.20} parent=11 // pred_check_branch
          %347 = sbr.rel (%p345) target = $region44
        $region43: #{conformer_encoder_forward.20} parent=11 // pred_region
          %349 = vsyncadd [#allocation9], 0
          %s351 = sshll.u32 %s8, 4
          %s352 = int_to_ptr.hbm [resolvable:$true] %s351
          %s353 = sshll.u32 [#allocation8], 4
          %s354 = int_to_ptr.vmem [resolvable:$true] %s353
          %356 = dma.hbm_to_vmem [thread:$0]  %s352, 16, %s354, [#allocation9]
        $region44: #{conformer_encoder_forward.20} parent=11 // pred_fallthru
          _
        // Predicated region
        $region45: #{conformer_encoder_forward.20} parent=11 // pred_check
          %p357 = pneg %p235
        $region46: #{conformer_encoder_forward.20} parent=11 // pred_check_branch
          %359 = sbr.rel (%p357) target = $region48
        $region47: #{conformer_encoder_forward.20} parent=11 // pred_region
          _
        $region48: #{conformer_encoder_forward.20} parent=11 // pred_fallthru
          _
        // Predicated region
        $region49: #{conformer_encoder_forward.20} parent=11 // pred_check
          %p360 = pneg %p256
        $region50: #{conformer_encoder_forward.20} parent=11 // pred_check_branch
          %362 = sbr.rel (%p360) target = $region52
        $region51: #{conformer_encoder_forward.20} parent=11 // pred_region
          %364 = vsyncadd [#allocation9], 0
          %s366 = sshll.u32 %s10, 4
          %s367 = int_to_ptr.hbm [resolvable:$true] %s366
          %s368 = sshll.u32 [#allocation10], 4
          %s369 = int_to_ptr.vmem [resolvable:$true] %s368
          %371 = dma.hbm_to_vmem [thread:$0]  %s367, 16, %s369, [#allocation9]
        $region52: #{conformer_encoder_forward.20} parent=11 // pred_fallthru
          _
      $region12: #{conformer_encoder_forward.20} parent=5 // pred_fallthru
        _
      %p372 = scmp.lt.s32.totalorder %s20, 2
      // Predicated region
      $region53: #{conformer_encoder_forward.20} parent=5 // pred_check
        %p373 = pneg %p372
      $region54: #{conformer_encoder_forward.20} parent=5 // pred_check_branch
        %375 = sbr.rel (%p373) target = $region56
      $region55: #{conformer_encoder_forward.20} parent=5 // pred_region
        // Predicated region
        $region57: #{conformer_encoder_forward.20} parent=55 // pred_check
          %p376 = pneg %p40
        $region58: #{conformer_encoder_forward.20} parent=55 // pred_check_branch
          %378 = sbr.rel (%p376) target = $region60
        $region59: #{conformer_encoder_forward.20} parent=55 // pred_region
          %p379 = scmp.lt.s32.totalorder %s20, 1
          %s380 = scalar_select %p379, %s20, 1
          %s381 = smul.addr %s380, 8
          %s382 = scalar_lea.vmem %s0, %s381
        $region60: #{conformer_encoder_forward.20} parent=55 // pred_fallthru
          _
      $region56: #{conformer_encoder_forward.20} parent=5 // pred_fallthru
        _
      %p383 = scmp.le.s32.totalorder 1, %s20
      %p384 = scmp.lt.s32.totalorder %s20, 3
      %p385 = pnand %p383, %p384
      %p386 = pneg %p385
      // Predicated region
      $region61: #{conformer_encoder_forward.20} parent=5 // pred_check
        _
      $region62: #{conformer_encoder_forward.20} parent=5 // pred_check_branch
        %388 = sbr.rel (%p385) target = $region64
      $region63: #{conformer_encoder_forward.20} parent=5 // pred_region
        %s389 = ssub.s32 %s20, 1
        // Predicated region
        $region65: #{conformer_encoder_forward.20} parent=63 // pred_check
          %p390 = pneg %p88
        $region66: #{conformer_encoder_forward.20} parent=63 // pred_check_branch
          %392 = sbr.rel (%p390) target = $region68
        $region67: #{conformer_encoder_forward.20} parent=63 // pred_region
          %394 = dma.done [#allocation4], 16
        $region68: #{conformer_encoder_forward.20} parent=63 // pred_fallthru
          _
        // Predicated region
        $region69: #{conformer_encoder_forward.20} parent=63 // pred_check
          %p395 = pneg %p172
        $region70: #{conformer_encoder_forward.20} parent=63 // pred_check_branch
          %397 = sbr.rel (%p395) target = $region72
        $region71: #{conformer_encoder_forward.20} parent=63 // pred_region
          %399 = dma.done [#allocation6], 16
        $region72: #{conformer_encoder_forward.20} parent=63 // pred_fallthru
          _
        // Predicated region
        $region73: #{conformer_encoder_forward.20} parent=63 // pred_check
          %p400 = pneg %p193
        $region74: #{conformer_encoder_forward.20} parent=63 // pred_check_branch
          %402 = sbr.rel (%p400) target = $region76
        $region75: #{conformer_encoder_forward.20} parent=63 // pred_region
          %404 = dma.done [#allocation6], 16
        $region76: #{conformer_encoder_forward.20} parent=63 // pred_fallthru
          _
        // Predicated region
        $region77: #{conformer_encoder_forward.20} parent=63 // pred_check
          %p405 = pneg %p214
        $region78: #{conformer_encoder_forward.20} parent=63 // pred_check_branch
          %407 = sbr.rel (%p405) target = $region80
        $region79: #{conformer_encoder_forward.20} parent=63 // pred_region
          %409 = dma.done [#allocation9], 16
        $region80: #{conformer_encoder_forward.20} parent=63 // pred_fallthru
          _
        // Predicated region
        $region81: #{conformer_encoder_forward.20} parent=63 // pred_check
          %p410 = pneg %p256
        $region82: #{conformer_encoder_forward.20} parent=63 // pred_check_branch
          %412 = sbr.rel (%p410) target = $region84
        $region83: #{conformer_encoder_forward.20} parent=63 // pred_region
          %414 = dma.done [#allocation9], 16
        $region84: #{conformer_encoder_forward.20} parent=63 // pred_fallthru
          _
        %p415 = scmp.lt.s32.totalorder %s25, 1
        %s416 = scalar_select %p415, %s25, 1
        %s417 = smul.addr %s416, 8
        %s418 = scalar_lea.vmem %s0, %s417
        %p419 = pneg %p46
        %p420 = pneg %p43
        %p421 = pneg %p67
        %p422 = pneg %p64
        %p423 = pneg %p88
        %p424 = pneg %p85
        %p425 = pneg %p109
        %p426 = pneg %p106
        %p427 = pneg %p130
        %p428 = pneg %p127
        %p429 = pneg %p151
        %p430 = pneg %p148
        %p431 = pneg %p172
        %p432 = pneg %p169
        %p433 = pneg %p193
        %p434 = pneg %p190
        %p435 = pneg %p214
        %p436 = pneg %p211
        %p437 = pneg %p235
        %p438 = pneg %p232
        %p439 = pneg %p256
        %p440 = pneg %p253
        %p441 = pneg %p282
        %p442 = pneg %p279
        %p443 = scmp.lt.s32.totalorder %s25, 1
        %s444 = scalar_select %p443, %s25, 1
        %s445 = smul.addr %s444, 8
        %s446 = scalar_lea.vmem %s11, %s445
        %p447 = scmp.lt.s32.totalorder %s25, 1
        %s448 = scalar_select %p447, %s25, 1
        %s449 = smul.addr %s448, 8
        %s450 = scalar_lea.vmem %s0, %s449
        %p451 = scmp.lt.s32.totalorder %s25, 1
        %s452 = scalar_select %p451, %s25, 1
        %s453 = smul.addr %s452, 8
        %s454 = scalar_lea.vmem %s11, %s453
        %v455 = vld [vmem:[%s450] sm:$0x3f]
        %v456 = vld [vmem:[%s1] sm:$0x1]
        %v457 = vld [vmem:[#allocation3] sm:$0x1]
        %vm458 = vcmask 1045504
        %v459 = vsel %vm458, %v455, 0.0
        %460 = vadd.xlane.f32.xlu0 %v459
        %v461 = vpop.xlane.xlu0 %460
        %v462 = vmul.f32 %v461, 0.03125
        %v463 = vmul.f32 %v455, %v455
        %v464 = vsel %vm458, %v463, 0.0
        %465 = vadd.xlane.f32.xlu0 %v464
        %v466 = vpop.xlane.xlu0 %465
        %v467 = vmul.f32 %v466, 0.03125
        %v468 = vmul.f32 %v462, %v462
        %v469 = vsub.f32 %v467, %v468
        %v470 = vsub.f32 %v455, %v462
        %v471 = vadd.f32 %v469, 1e-05
        %v472 = vrsqrt.pop %v471
        %v473 = vmul.f32 %v472, %v471
        %v474 = vmul.f32 %v473, %v472
        %v475 = vmul.f32 0.5, %v474
        %v476 = vsub.f32 1.5, %v475
        %v477 = vmul.f32 %v472, %v476
        %vm478 = vweird.f32 %v471
        %vm479 = vweird.f32 %v472
        %vm480 = vmor %vm478, %vm479
        %v481 = vsel %vm480, %v472, %v477
        %v482 = vmul.f32 %v470, %v481
        %v484 = vperm.slane %v456, 0
        %v486 = vmul.f32 %v482, %v484
        %v488 = vperm.slane %v457, 0
        %v490 = vadd.f32 %v486, %v488
        %v491 = vpack.c.bf16 %v490, %v490
        %v492 = vld [vmem:[%s3] sm:$0xff]
        %v493 = vld [vmem:[%s3 + $0x8] sm:$0xff]
        %v494 = vld [vmem:[%s3 + $0x10] sm:$0xff]
        %v495 = vld [vmem:[%s3 + $0x18] sm:$0xff]
        %v496 = vld [vmem:[%s3 + $0x20] sm:$0xff]
        %v497 = vld [vmem:[%s3 + $0x28] sm:$0xff]
        %v498 = vld [vmem:[%s3 + $0x30] sm:$0xff]
        %v499 = vld [vmem:[%s3 + $0x38] sm:$0xff]
        %v500 = vld [vmem:[%s3 + $0x40] sm:$0xff]
        %v501 = vld [vmem:[%s3 + $0x48] sm:$0xff]
        %v502 = vld [vmem:[%s3 + $0x50] sm:$0xff]
        %v503 = vld [vmem:[%s3 + $0x58] sm:$0xff]
        %v504 = vld [vmem:[%s3 + $0x60] sm:$0xff]
        %v505 = vld [vmem:[%s3 + $0x68] sm:$0xff]
        %v506 = vld [vmem:[%s3 + $0x70] sm:$0xff]
        %v507 = vld [vmem:[%s3 + $0x78] sm:$0xff]
        %v508 = vld [vmem:[%s4] sm:$0x3]
        %v510 = vperm.slane %v508, 0
        %v511 = vperm.slane %v508, 1
        %v530 = vunpack.c.l.b16 %v492
        %v531 = vunpack.c.h.b16 %v492
        %v532 = vunpack.c.l.b16 %v493
        %v533 = vunpack.c.h.b16 %v493
        %v534 = vunpack.c.l.b16 %v494
        %v535 = vunpack.c.h.b16 %v494
        %v536 = vunpack.c.l.b16 %v495
        %v537 = vunpack.c.h.b16 %v495
        %v538 = vunpack.c.l.b16 %v496
        %v539 = vunpack.c.h.b16 %v496
        %v540 = vunpack.c.l.b16 %v497
        %v541 = vunpack.c.h.b16 %v497
        %v542 = vunpack.c.l.b16 %v498
        %v543 = vunpack.c.h.b16 %v498
        %v544 = vunpack.c.l.b16 %v499
        %v545 = vunpack.c.h.b16 %v499
        %v546 = vunpack.c.l.b16 %v500
        %v547 = vunpack.c.h.b16 %v500
        %v548 = vunpack.c.l.b16 %v501
        %v549 = vunpack.c.h.b16 %v501
        %v550 = vunpack.c.l.b16 %v502
        %v551 = vunpack.c.h.b16 %v502
        %v552 = vunpack.c.l.b16 %v503
        %v553 = vunpack.c.h.b16 %v503
        %v554 = vunpack.c.l.b16 %v504
        %v555 = vunpack.c.h.b16 %v504
        %v556 = vunpack.c.l.b16 %v505
        %v557 = vunpack.c.h.b16 %v505
        %v558 = vunpack.c.l.b16 %v506
        %v559 = vunpack.c.h.b16 %v506
        %v560 = vunpack.c.l.b16 %v507
        %v561 = vunpack.c.h.b16 %v507
        %v562 = vpack.c.b16 %v532, %v530
        %v563 = vpack.c.b16 %v533, %v531
        %v564 = vpack.c.b16 %v536, %v534
        %v565 = vpack.c.b16 %v537, %v535
        %v566 = vpack.c.b16 %v540, %v538
        %v567 = vpack.c.b16 %v541, %v539
        %v568 = vpack.c.b16 %v544, %v542
        %v569 = vpack.c.b16 %v545, %v543
        %v570 = vpack.c.b16 %v548, %v546
        %v571 = vpack.c.b16 %v549, %v547
        %v572 = vpack.c.b16 %v552, %v550
        %v573 = vpack.c.b16 %v553, %v551
        %v574 = vpack.c.b16 %v556, %v554
        %v575 = vpack.c.b16 %v557, %v555
        %v576 = vpack.c.b16 %v560, %v558
        %v577 = vpack.c.b16 %v561, %v559
        %594 = vmatpush.bf16.msra.mxu0 %v576
        %595 = vmatpush.bf16.msra.mxu0 %v574
        %596 = vmatpush.bf16.msra.mxu0 %v572
        %597 = vmatpush.bf16.msra.mxu0 %v570
        %598 = vmatpush.bf16.msra.mxu0 %v568
        %599 = vmatpush.bf16.msra.mxu0 %v566
        %600 = vmatpush.bf16.msra.mxu0 %v564
        %601 = vmatpush.bf16.msra.mxu0 %v562
        %602 = vmatmul.bf16.gmra.mxu0 %v491
        %v603 = vpop.f32.mrf.mxu0
        %v604 = vadd.f32 %v510, %v603
        %v605 = vpop.f32.mrf.mxu0
        %606 = vdwg.mxu0
        %607 = vmatpush.bf16.msra.mxu0 %v577
        %608 = vmatpush.bf16.msra.mxu0 %v575
        %609 = vmatpush.bf16.msra.mxu0 %v573
        %610 = vmatpush.bf16.msra.mxu0 %v571
        %611 = vmatpush.bf16.msra.mxu0 %v569
        %612 = vmatpush.bf16.msra.mxu0 %v567
        %613 = vmatpush.bf16.msra.mxu0 %v565
        %614 = vmatpush.bf16.msra.mxu0 %v563
        %615 = vmatmul.bf16.gmra.mxu0 %v491
        %v616 = vpop.f32.mrf.mxu0
        %v617 = vadd.f32 %v511, %v616
        %v618 = vpop.f32.mrf.mxu0
        %619 = vdwg.mxu0
        %v620 = vxor.u32 %v617, 2147483648
        %v621 = vmul.f32 %v620, 1.442695
        %v622 = vpow.pop %v621
        %v623 = vadd.f32 %v622, 1.0
        %v624 = vrcp.pop %v623
        %v625 = vmul.f32 %v623, %v624
        %v626 = vsub.f32 1.0, %v625
        %v627 = vmul.f32 %v624, %v626
        %v628 = vadd.f32 %v624, %v627
        %vm629 = vweird.f32 %v623
        %vm630 = vweird.f32 %v624
        %vm631 = vmor %vm629, %vm630
        %v632 = vsel %vm631, %v624, %v628
        %v633 = vand.u32 2147483647, %v623
        %vm634 = vcmp.eq.f32.partialorder %v633, 8.507059e+37
        %v635 = vand.u32 %v623, 2147483648
        %v636 = vor.u32 1.1754944e-38, %v635
        %v637 = vsel %vm634, %v636, %v632
        %v638 = vmul.f32 1.0, %v637
        %v639 = vmul.f32 %v604, %v638
        %640 = vst [vmem:[#allocation2] sm:$0xff] 0.0
        %641 = vst [vmem:[#allocation2 + $0x8] sm:$0xff] 0.0
        %642 = vst [vmem:[#allocation2 + $0x10] sm:$0xff] 0.0
        %643 = vst [vmem:[#allocation2 + $0x18] sm:$0xff] 0.0
        %644 = vst [vmem:[#allocation2 + $0x20] sm:$0xf] 0.0
        %645 = vst [vmem:[#allocation2 + $0xf] sm:$0x3f] %v639
        %v646 = vld [vmem:[#allocation2] sm:$0x3f]
        %v647 = vld [vmem:[%s5] sm:$0x1]
        %v648 = vperm.slane %v647, 0
        %v649 = vmul.f32 %v646, %v648
        %v650 = vadd.f32 %v649, 0.0
        %v651 = vld [vmem:[#allocation2 + $0x1] sm:$0x3f]
        %v652 = vld [vmem:[%s5 + $0x1] sm:$0x1]
        %v653 = vperm.slane %v652, 0
        %v654 = vmul.f32 %v651, %v653
        %v655 = vadd.f32 %v650, %v654
        %v656 = vld [vmem:[#allocation2 + $0x2] sm:$0x3f]
        %v657 = vld [vmem:[%s5 + $0x2] sm:$0x1]
        %v658 = vperm.slane %v657, 0
        %v659 = vmul.f32 %v656, %v658
        %v660 = vadd.f32 %v655, %v659
        %v661 = vld [vmem:[#allocation2 + $0x3] sm:$0x3f]
        %v662 = vld [vmem:[%s5 + $0x3] sm:$0x1]
        %v663 = vperm.slane %v662, 0
        %v664 = vmul.f32 %v661, %v663
        %v665 = vadd.f32 %v660, %v664
        %v666 = vld [vmem:[#allocation2 + $0x4] sm:$0x3f]
        %v667 = vld [vmem:[%s5 + $0x4] sm:$0x1]
        %v668 = vperm.slane %v667, 0
        %v669 = vmul.f32 %v666, %v668
        %v670 = vadd.f32 %v665, %v669
        %v671 = vld [vmem:[#allocation2 + $0x5] sm:$0x3f]
        %v672 = vld [vmem:[%s5 + $0x5] sm:$0x1]
        %v673 = vperm.slane %v672, 0
        %v674 = vmul.f32 %v671, %v673
        %v675 = vadd.f32 %v670, %v674
        %v676 = vld [vmem:[#allocation2 + $0x6] sm:$0x3f]
        %v677 = vld [vmem:[%s5 + $0x6] sm:$0x1]
        %v678 = vperm.slane %v677, 0
        %v679 = vmul.f32 %v676, %v678
        %v680 = vadd.f32 %v675, %v679
        %v681 = vld [vmem:[#allocation2 + $0x7] sm:$0x3f]
        %v682 = vld [vmem:[%s5 + $0x7] sm:$0x1]
        %v683 = vperm.slane %v682, 0
        %v684 = vmul.f32 %v681, %v683
        %v685 = vadd.f32 %v680, %v684
        %v686 = vld [vmem:[#allocation2 + $0x8] sm:$0x3f]
        %v687 = vld [vmem:[%s5 + $0x8] sm:$0x1]
        %v688 = vperm.slane %v687, 0
        %v689 = vmul.f32 %v686, %v688
        %v690 = vadd.f32 %v685, %v689
        %v691 = vld [vmem:[#allocation2 + $0x9] sm:$0x3f]
        %v692 = vld [vmem:[%s5 + $0x9] sm:$0x1]
        %v693 = vperm.slane %v692, 0
        %v694 = vmul.f32 %v691, %v693
        %v695 = vadd.f32 %v690, %v694
        %v696 = vld [vmem:[#allocation2 + $0xa] sm:$0x3f]
        %v697 = vld [vmem:[%s5 + $0xa] sm:$0x1]
        %v698 = vperm.slane %v697, 0
        %v699 = vmul.f32 %v696, %v698
        %v700 = vadd.f32 %v695, %v699
        %v701 = vld [vmem:[#allocation2 + $0xb] sm:$0x3f]
        %v702 = vld [vmem:[%s5 + $0xb] sm:$0x1]
        %v703 = vperm.slane %v702, 0
        %v704 = vmul.f32 %v701, %v703
        %v705 = vadd.f32 %v700, %v704
        %v706 = vld [vmem:[#allocation2 + $0xc] sm:$0x3f]
        %v707 = vld [vmem:[%s5 + $0xc] sm:$0x1]
        %v708 = vperm.slane %v707, 0
        %v709 = vmul.f32 %v706, %v708
        %v710 = vadd.f32 %v705, %v709
        %v711 = vld [vmem:[#allocation2 + $0xd] sm:$0x3f]
        %v712 = vld [vmem:[%s5 + $0xd] sm:$0x1]
        %v713 = vperm.slane %v712, 0
        %v714 = vmul.f32 %v711, %v713
        %v715 = vadd.f32 %v710, %v714
        %v716 = vld [vmem:[#allocation2 + $0xe] sm:$0x3f]
        %v717 = vld [vmem:[%s5 + $0xe] sm:$0x1]
        %v718 = vperm.slane %v717, 0
        %v719 = vmul.f32 %v716, %v718
        %v720 = vadd.f32 %v715, %v719
        %v721 = vld [vmem:[#allocation2 + $0xf] sm:$0x3f]
        %v722 = vld [vmem:[%s5 + $0xf] sm:$0x1]
        %v723 = vperm.slane %v722, 0
        %v724 = vmul.f32 %v721, %v723
        %v725 = vadd.f32 %v720, %v724
        %v726 = vld [vmem:[#allocation2 + $0x10] sm:$0x3f]
        %v727 = vld [vmem:[%s5 + $0x10] sm:$0x1]
        %v728 = vperm.slane %v727, 0
        %v729 = vmul.f32 %v726, %v728
        %v730 = vadd.f32 %v725, %v729
        %v731 = vld [vmem:[#allocation2 + $0x11] sm:$0x3f]
        %v732 = vld [vmem:[%s5 + $0x11] sm:$0x1]
        %v733 = vperm.slane %v732, 0
        %v734 = vmul.f32 %v731, %v733
        %v735 = vadd.f32 %v730, %v734
        %v736 = vld [vmem:[#allocation2 + $0x12] sm:$0x3f]
        %v737 = vld [vmem:[%s5 + $0x12] sm:$0x1]
        %v738 = vperm.slane %v737, 0
        %v739 = vmul.f32 %v736, %v738
        %v740 = vadd.f32 %v735, %v739
        %v741 = vld [vmem:[#allocation2 + $0x13] sm:$0x3f]
        %v742 = vld [vmem:[%s5 + $0x13] sm:$0x1]
        %v743 = vperm.slane %v742, 0
        %v744 = vmul.f32 %v741, %v743
        %v745 = vadd.f32 %v740, %v744
        %v746 = vld [vmem:[#allocation2 + $0x14] sm:$0x3f]
        %v747 = vld [vmem:[%s5 + $0x14] sm:$0x1]
        %v748 = vperm.slane %v747, 0
        %v749 = vmul.f32 %v746, %v748
        %v750 = vadd.f32 %v745, %v749
        %v751 = vld [vmem:[#allocation2 + $0x15] sm:$0x3f]
        %v752 = vld [vmem:[%s5 + $0x15] sm:$0x1]
        %v753 = vperm.slane %v752, 0
        %v754 = vmul.f32 %v751, %v753
        %v755 = vadd.f32 %v750, %v754
        %v756 = vld [vmem:[#allocation2 + $0x16] sm:$0x3f]
        %v757 = vld [vmem:[%s5 + $0x16] sm:$0x1]
        %v758 = vperm.slane %v757, 0
        %v759 = vmul.f32 %v756, %v758
        %v760 = vadd.f32 %v755, %v759
        %v761 = vld [vmem:[#allocation2 + $0x17] sm:$0x3f]
        %v762 = vld [vmem:[%s5 + $0x17] sm:$0x1]
        %v763 = vperm.slane %v762, 0
        %v764 = vmul.f32 %v761, %v763
        %v765 = vadd.f32 %v760, %v764
        %v766 = vld [vmem:[#allocation2 + $0x18] sm:$0x3f]
        %v767 = vld [vmem:[%s5 + $0x18] sm:$0x1]
        %v768 = vperm.slane %v767, 0
        %v769 = vmul.f32 %v766, %v768
        %v770 = vadd.f32 %v765, %v769
        %v771 = vld [vmem:[#allocation2 + $0x19] sm:$0x3f]
        %v772 = vld [vmem:[%s5 + $0x19] sm:$0x1]
        %v773 = vperm.slane %v772, 0
        %v774 = vmul.f32 %v771, %v773
        %v775 = vadd.f32 %v770, %v774
        %v776 = vld [vmem:[#allocation2 + $0x1a] sm:$0x3f]
        %v777 = vld [vmem:[%s5 + $0x1a] sm:$0x1]
        %v778 = vperm.slane %v777, 0
        %v779 = vmul.f32 %v776, %v778
        %v780 = vadd.f32 %v775, %v779
        %v781 = vld [vmem:[#allocation2 + $0x1b] sm:$0x3f]
        %v782 = vld [vmem:[%s5 + $0x1b] sm:$0x1]
        %v783 = vperm.slane %v782, 0
        %v784 = vmul.f32 %v781, %v783
        %v785 = vadd.f32 %v780, %v784
        %v786 = vld [vmem:[#allocation2 + $0x1c] sm:$0x3f]
        %v787 = vld [vmem:[%s5 + $0x1c] sm:$0x1]
        %v788 = vperm.slane %v787, 0
        %v789 = vmul.f32 %v786, %v788
        %v790 = vadd.f32 %v785, %v789
        %v791 = vld [vmem:[#allocation2 + $0x1d] sm:$0x3f]
        %v792 = vld [vmem:[%s5 + $0x1d] sm:$0x1]
        %v793 = vperm.slane %v792, 0
        %v794 = vmul.f32 %v791, %v793
        %v795 = vadd.f32 %v790, %v794
        %v796 = vld [vmem:[#allocation2 + $0x1e] sm:$0x3f]
        %v797 = vld [vmem:[%s5 + $0x1e] sm:$0x1]
        %v798 = vperm.slane %v797, 0
        %v799 = vmul.f32 %v796, %v798
        %v800 = vadd.f32 %v795, %v799
        %v801 = vld [vmem:[#allocation5] sm:$0x1]
        %v803 = vperm.slane %v801, 0
        %v805 = vadd.f32 %v800, %v803
        %v806 = vld [vmem:[#allocation7] sm:$0x1]
        %v808 = vperm.slane %v806, 0
        %v810 = vmul.f32 %v805, %v808
        %v811 = vld [vmem:[#allocation8] sm:$0x1]
        %v813 = vperm.slane %v811, 0
        %v815 = vadd.f32 %v810, %v813
        %v816 = vxor.u32 %v815, 2147483648
        %v817 = vmul.f32 %v816, 1.442695
        %v818 = vpow.pop %v817
        %v819 = vadd.f32 %v818, 1.0
        %v820 = vrcp.pop %v819
        %v821 = vmul.f32 %v819, %v820
        %v822 = vsub.f32 1.0, %v821
        %v823 = vmul.f32 %v820, %v822
        %v824 = vadd.f32 %v820, %v823
        %vm825 = vweird.f32 %v819
        %vm826 = vweird.f32 %v820
        %vm827 = vmor %vm825, %vm826
        %v828 = vsel %vm827, %v820, %v824
        %v829 = vand.u32 2147483647, %v819
        %vm830 = vcmp.eq.f32.partialorder %v829, 8.507059e+37
        %v831 = vand.u32 %v819, 2147483648
        %v832 = vor.u32 1.1754944e-38, %v831
        %v833 = vsel %vm830, %v832, %v828
        %v834 = vmul.f32 1.0, %v833
        %v835 = vmul.f32 %v815, %v834
        %v836 = vpack.c.bf16 %v835, %v835
        %v837 = vld [vmem:[%s9] sm:$0xf]
        %v838 = vld [vmem:[%s9 + $0x4] sm:$0xf]
        %v839 = vld [vmem:[%s9 + $0x8] sm:$0xf]
        %v840 = vld [vmem:[%s9 + $0xc] sm:$0xf]
        %v841 = vld [vmem:[%s9 + $0x10] sm:$0xf]
        %v842 = vld [vmem:[%s9 + $0x14] sm:$0xf]
        %v843 = vld [vmem:[%s9 + $0x18] sm:$0xf]
        %v844 = vld [vmem:[%s9 + $0x1c] sm:$0xf]
        %v845 = vld [vmem:[%s9 + $0x20] sm:$0xf]
        %v846 = vld [vmem:[%s9 + $0x24] sm:$0xf]
        %v847 = vld [vmem:[%s9 + $0x28] sm:$0xf]
        %v848 = vld [vmem:[%s9 + $0x2c] sm:$0xf]
        %v849 = vld [vmem:[%s9 + $0x30] sm:$0xf]
        %v850 = vld [vmem:[%s9 + $0x34] sm:$0xf]
        %v851 = vld [vmem:[%s9 + $0x38] sm:$0xf]
        %v852 = vld [vmem:[%s9 + $0x3c] sm:$0xf]
        %v853 = vld [vmem:[#allocation10] sm:$0x1]
        %v855 = vperm.slane %v853, 0
        %v873 = vunpack.c.l.b16 %v837
        %v874 = vunpack.c.l.b16 %v838
        %v875 = vunpack.c.l.b16 %v839
        %v876 = vunpack.c.l.b16 %v840
        %v877 = vunpack.c.l.b16 %v841
        %v878 = vunpack.c.l.b16 %v842
        %v879 = vunpack.c.l.b16 %v843
        %v880 = vunpack.c.l.b16 %v844
        %v881 = vunpack.c.l.b16 %v845
        %v882 = vunpack.c.l.b16 %v846
        %v883 = vunpack.c.l.b16 %v847
        %v884 = vunpack.c.l.b16 %v848
        %v885 = vunpack.c.l.b16 %v849
        %v886 = vunpack.c.l.b16 %v850
        %v887 = vunpack.c.l.b16 %v851
        %v888 = vunpack.c.l.b16 %v852
        %v889 = vpack.c.b16 %v874, %v873
        %v890 = vpack.c.b16 %v876, %v875
        %v891 = vpack.c.b16 %v878, %v877
        %v892 = vpack.c.b16 %v880, %v879
        %v893 = vpack.c.b16 %v882, %v881
        %v894 = vpack.c.b16 %v884, %v883
        %v895 = vpack.c.b16 %v886, %v885
        %v896 = vpack.c.b16 %v888, %v887
        %905 = vmatpush.bf16.msra.mxu0 %v896
        %906 = vmatpush.bf16.msra.mxu0 %v895
        %907 = vmatpush.bf16.msra.mxu0 %v894
        %908 = vmatpush.bf16.msra.mxu0 %v893
        %909 = vmatpush.bf16.msra.mxu0 %v892
        %910 = vmatpush.bf16.msra.mxu0 %v891
        %911 = vmatpush.bf16.msra.mxu0 %v890
        %912 = vmatpush.bf16.msra.mxu0 %v889
        %913 = vmatmul.bf16.gmra.mxu0 %v836
        %v914 = vpop.f32.mrf.mxu0
        %v915 = vadd.f32 %v855, %v914
        %v916 = vpop.f32.mrf.mxu0
        %917 = vdwg.mxu0
        %v918 = vadd.f32 %v455, %v915
        %919 = vst [vmem:[%s454] sm:$0x3f] %v918
        %p920 = scmp.lt.s32.totalorder %s25, 1
        %s921 = scalar_select %p920, %s25, 1
        %s922 = smul.addr %s921, 8
        %s923 = scalar_lea.vmem %s11, %s922
        // Predicated region
        $region85: #{conformer_encoder_forward.20} parent=63 // pred_check
          %p924 = pneg %p279
        $region86: #{conformer_encoder_forward.20} parent=63 // pred_check_branch
          %926 = sbr.rel (%p924) target = $region88
        $region87: #{conformer_encoder_forward.20} parent=63 // pred_region
          _
        $region88: #{conformer_encoder_forward.20} parent=63 // pred_fallthru
          _
      $region64: #{conformer_encoder_forward.20} parent=5 // pred_fallthru
        _
      %p927 = scmp.le.s32.totalorder 2, %s20
      // Predicated region
      $region89: #{conformer_encoder_forward.20} parent=5 // pred_check
        %p928 = pneg %p927
      $region90: #{conformer_encoder_forward.20} parent=5 // pred_check_branch
        %930 = sbr.rel (%p928) target = $region92
      $region91: #{conformer_encoder_forward.20} parent=5 // pred_region
        %s931 = ssub.s32 %s20, 2
        // Predicated region
        $region93: #{conformer_encoder_forward.20} parent=91 // pred_check
          %p932 = pneg %p285
        $region94: #{conformer_encoder_forward.20} parent=91 // pred_check_branch
          %934 = sbr.rel (%p932) target = $region96
        $region95: #{conformer_encoder_forward.20} parent=91 // pred_region
          %p935 = scmp.lt.s32.totalorder %s26, 1
          %s936 = scalar_select %p935, %s26, 1
          %s937 = smul.addr %s936, 8
          %s938 = scalar_lea.vmem %s11, %s937
        $region96: #{conformer_encoder_forward.20} parent=91 // pred_fallthru
          _
      $region92: #{conformer_encoder_forward.20} parent=5 // pred_fallthru
        _
    $region6: #{conformer_encoder_forward.20} parent=1 // loop_footer
      %s24 = sadd.s32 1, %s20
    $region7: #{conformer_encoder_forward.20} parent=1 // loop_footer_branch
      %19 = sbr.rel target = $region3
    $region8: #{conformer_encoder_forward.20} parent=1 // loop_exit
      _
    %939 = vsyncpa [#allocation4], 1
    %s940 = scalar_lea.sflag [#allocation4], 1
    %941 = vsyncpa %s940, 1
    %942 = vsyncpa [#allocation6], 1
    %943 = vsyncpa [#allocation9], 1

</llo_original>
